<compile_context>
chip_gen: v6e
topology: v6e:2x2x1
jax: 0.10.0
libtpu: 0.0.40
codegen_flags: <defaults>
</compile_context>

<pallas_src>
import functools

import jax
import jax.numpy as jnp
from jax.experimental import pallas as pl
from jax.experimental.pallas import tpu as pltpu

PAD = 4                      # pad_size == max_displacement
NDISP = 2 * PAD + 1          # 9
NOUT = NDISP * NDISP         # 81
_LANES = 128


def _corr_kernel(rc_ref, in1_ref, in2_ref, out_ref, acc_ref, *, H, W, C):
    # rc_ref : (2, HWp) int32 -- row 0 = pixel row, row 1 = pixel col of each
    #          flattened spatial position (static lookup table).
    # in1_ref, in2_ref : (1, TC, HWp) current channel block, spatial flattened.
    # out_ref : (1, NOUT, HWp) resident across the channel grid axis.
    # acc_ref : (NOUT, HWp) float32 accumulator scratch.
    c_blk = pl.program_id(1)

    @pl.when(c_blk == 0)
    def _init():
        acc_ref[...] = jnp.zeros_like(acc_ref)

    # Load + cast each channel block exactly once; reused by all 81
    # displacements (review: hoist the in1 load/cast out of the loop).
    x1 = in1_ref[0].astype(jnp.float32)            # (TC, HWp)
    x2 = in2_ref[0].astype(jnp.float32)            # (TC, HWp)
    hwp = x1.shape[-1]

    row = rc_ref[0:1, :]                           # (1, HWp) int32
    col = rc_ref[1:2, :]                           # (1, HWp) int32

    # Statically unrolled loop over the 81 displacements (small fixed count;
    # the channel reduction is vectorized / carried by the grid so IR stays
    # small).  Each displacement: XLU lane rotation + static border mask.
    for dy in range(NDISP):
        oy = dy - PAD
        for dx in range(NDISP):
            ox = dx - PAD
            shift = (-(oy * W + ox)) % hwp         # static, non-negative
            rolled = x2 if shift == 0 else pltpu.roll(x2, shift=shift, axis=1)
            # partial[p] = sum_c in1[c, p] * in2[c, p + oy*W + ox]
            partial = jnp.sum(x1 * rolled, axis=0, keepdims=True)   # (1, HWp)
            # Zero out displaced reads falling outside the image, emulating
            # ConstantPad2d(4, 0) of the reference without a padded copy.
            valid = ((row >= -oy) & (row < H - oy) &
                     (col >= -ox) & (col < W - ox))
            partial = jnp.where(valid, partial, 0.0)
            k = dy * NDISP + dx
            acc_ref[pl.ds(k, 1), :] = acc_ref[pl.ds(k, 1), :] + partial

    @pl.when(c_blk == pl.num_programs(1) - 1)
    def _finalize():
        inv_c = jnp.float32(1.0 / C)
        # Single lane-dense (NOUT, HWp) store of the whole 81-channel block.
        out_ref[0] = (acc_ref[...] * inv_c).astype(out_ref.dtype)


def _pick_channel_block(C: int, itemsize: int) -> int:
    """Channel tile: largest size that keeps VMEM bounded and blocks legal."""
    if C <= 64:
        return C                       # block == full dim is always legal
    sublane = {4: 8, 2: 16, 1: 32}.get(itemsize, 8)
    for tc in (64, 32, 16, 8):
        if tc % sublane == 0 and C % tc == 0:
            return tc
    return C


def correlation(in1: jax.Array, in2: jax.Array) -> jax.Array:
    """Equivalent of Correlation.forward: (B, C, H, W) x 2 -> (B, 81, H, W)."""
    assert in1.shape == in2.shape
    B, C, H, W = in1.shape
    HW = H * W
    # Flatten spatial dims so the last (lane) axis is wide; pad it up to a
    # multiple of 128 so every store is unmasked.  (Contiguous reshape in the
    # wrapper is free; for H = W = 16 the pad is a no-op.)
    HWp = ((HW + _LANES - 1) // _LANES) * _LANES

    in1_f = in1.reshape(B, C, HW)
    in2_f = in2.reshape(B, C, HW)
    if HWp != HW:
        in1_f = jnp.pad(in1_f, ((0, 0), (0, 0), (0, HWp - HW)))
        in2_f = jnp.pad(in2_f, ((0, 0), (0, 0), (0, HWp - HW)))

    # Static (row, col) lookup per flattened position (avoids in-kernel
    # integer div/mod); tiny and resident in VMEM across the whole grid.
    p = jnp.arange(HWp, dtype=jnp.int32)
    rowcol = jnp.stack([p // W, p % W], axis=0)            # (2, HWp)

    TC = _pick_channel_block(C, in1.dtype.itemsize)
    nc = C // TC

    # VMEM budget: double-buffered inputs + f32 accumulator + output block.
    isz = in1.dtype.itemsize
    est = (2 * 2 * TC * HWp * isz          # in1 + in2 blocks, double buffered
           + NOUT * HWp * 4                # f32 accumulator scratch
           + 2 * NOUT * HWp * isz          # resident output block
           + 2 * HWp * 4)                  # row/col table
    vmem_limit = int(min(max(2 * est, 32 * 1024 * 1024), 64 * 1024 * 1024))

    kernel = functools.partial(_corr_kernel, H=H, W=W, C=C)

    out_flat = pl.pallas_call(
        kernel,
        out_shape=jax.ShapeDtypeStruct((B, NOUT, HWp), in1.dtype),
        grid_spec=pltpu.PrefetchScalarGridSpec(
            num_scalar_prefetch=0,
            grid=(B, nc),                  # channel (reduction) axis last
            in_specs=[
                pl.BlockSpec((2, HWp), lambda b, c: (0, 0)),
                pl.BlockSpec((1, TC, HWp), lambda b, c: (b, c, 0)),
                pl.BlockSpec((1, TC, HWp), lambda b, c: (b, c, 0)),
            ],
            out_specs=pl.BlockSpec((1, NOUT, HWp), lambda b, c: (b, 0, 0)),
            scratch_shapes=[pltpu.VMEM((NOUT, HWp), jnp.float32)],
        ),
        compiler_params=pltpu.CompilerParams(
            dimension_semantics=("parallel", "arbitrary"),
            vmem_limit_bytes=vmem_limit),
    )(rowcol, in1_f, in2_f)

    # TODO(synk): add spatial (row) tiling with a halo for very large H*W
    # where the resident 81*H*W output block exceeds the per-step VMEM budget.
    out = out_flat[:, :, :HW] if HWp != HW else out_flat
    return out.reshape(B, NOUT, H, W)


def _correlation_ref(in1, in2):
    """Pure-JAX reference mirroring the PyTorch forward."""
    B, C, H, W = in1.shape
    in2_pad = jnp.pad(in2, ((0, 0), (0, 0), (PAD, PAD), (PAD, PAD)))
    outs = []
    for dy in range(NDISP):
        for dx in range(NDISP):
            outs.append(jnp.mean(
                in1 * in2_pad[:, :, dy:dy + H, dx:dx + W], axis=1, keepdims=True))
    return jnp.concatenate(outs, axis=1)


if __name__ == "__main__":
    key = jax.random.PRNGKey(0)
    k1, k2 = jax.random.split(key)
    B, C, H, W = 2, 4, 16, 16
    in1 = jax.random.normal(k1, (B, C, H, W), dtype=jnp.float32)
    in2 = jax.random.normal(k2, (B, C, H, W), dtype=jnp.float32)

    out = jax.block_until_ready(correlation(in1, in2))
    ref = jax.block_until_ready(_correlation_ref(in1, in2))

    assert out.shape == (B, NOUT, H, W), out.shape
    err = float(jnp.max(jnp.abs(out - ref)))
    if err > 1e-5:
        raise AssertionError(f"mismatch vs reference, max abs err = {err}")
    print("KERNEL_OK")
</pallas_src>

<mosaic_0001>
module attributes {stable_mosaic.version = 11 : i64} {
  func.func @_corr_kernel(%arg0: i32, %arg1: i32, %arg2: memref<2x256xi32, #tpu.memory_space<vmem>>, %arg3: memref<1x4x256xf32, #tpu.memory_space<vmem>>, %arg4: memref<1x4x256xf32, #tpu.memory_space<vmem>>, %arg5: memref<1x81x256xf32, #tpu.memory_space<vmem>>, %arg6: memref<81x256xf32, #tpu.memory_space<vmem>>) attributes {dimension_semantics = [#tpu.dimension_semantics<parallel>, #tpu.dimension_semantics<arbitrary>], iteration_bounds = array<i64: 2, 1>, scalar_prefetch = 0 : i64, scratch_operands = 1 : i64, tpu.core_type = #tpu.core_type<tc>, window_params = [{pipeline_mode = #tpu.pipeline_mode<synchronous>, transform_indices = @transform_0, window_bounds = array<i64: 2, 256>}, {transform_indices = @transform_1, window_bounds = array<i64: 1, 4, 256>}, {transform_indices = @transform_2, window_bounds = array<i64: 1, 4, 256>}, {transform_indices = @transform_3, window_bounds = array<i64: 1, 81, 256>}]} {
    %c0_i32 = arith.constant 0 : i32
    %0 = arith.cmpi eq, %arg1, %c0_i32 : i32
    %1 = arith.extui %0 : i1 to i32
    %c0_i32_0 = arith.constant 0 : i32
    %2 = arith.cmpi ne, %1, %c0_i32_0 : i32
    scf.if %2 {
      %cst_737 = arith.constant 0.000000e+00 : f32
      %1631 = vector.broadcast %cst_737 : f32 to vector<81x256xf32>
      %c0_738 = arith.constant 0 : index
      %c0_739 = arith.constant 0 : index
      %1632 = vector.load %arg6[%c0_738, %c0_739] : memref<81x256xf32, #tpu.memory_space<vmem>>, vector<81x256xf32>
      tpu.vector_store %arg6[%c0_738, %c0_739], %1631 {strides = array<i32>} : memref<81x256xf32, #tpu.memory_space<vmem>>, vector<81x256xf32>,
    } else {
    }
    %c0 = arith.constant 0 : index
    %c0_1 = arith.constant 0 : index
    %c0_2 = arith.constant 0 : index
    %3 = vector.load %arg3[%c0, %c0_1, %c0_2] : memref<1x4x256xf32, #tpu.memory_space<vmem>>, vector<1x4x256xf32>
    %4 = vector.shape_cast %3 : vector<1x4x256xf32> to vector<4x256xf32>
    %c0_3 = arith.constant 0 : index
    %c0_4 = arith.constant 0 : index
    %c0_5 = arith.constant 0 : index
    %5 = vector.load %arg4[%c0_3, %c0_4, %c0_5] : memref<1x4x256xf32, #tpu.memory_space<vmem>>, vector<1x4x256xf32>
    %6 = vector.shape_cast %5 : vector<1x4x256xf32> to vector<4x256xf32>
    %c0_6 = arith.constant 0 : index
    %c0_7 = arith.constant 0 : index
    %7 = vector.load %arg2[%c0_6, %c0_7] : memref<2x256xi32, #tpu.memory_space<vmem>>, vector<1x256xi32>
    %c1 = arith.constant 1 : index
    %c0_8 = arith.constant 0 : index
    %8 = vector.load %arg2[%c1, %c0_8] : memref<2x256xi32, #tpu.memory_space<vmem>>, vector<1x256xi32>
    %c68_i32 = arith.constant 68 : i32
    %9 = tpu.dynamic_rotate %6 by %c68_i32 dim 1 : vector<4x256xf32>, i32 -> vector<4x256xf32>
    %10 = arith.mulf %4, %9 : vector<4x256xf32>
    %cst = arith.constant dense<0.000000e+00> : vector<256xf32>
    %11 = vector.multi_reduction <add>, %10, %cst [0] : vector<4x256xf32> to vector<256xf32>
    %12 = vector.shape_cast %11 : vector<256xf32> to vector<1x256xf32>
    %c4_i32 = arith.constant 4 : i32
    %13 = vector.broadcast %c4_i32 : i32 to vector<1x256xi32>
    %14 = arith.cmpi sge, %7, %13 : vector<1x256xi32>
    %c20_i32 = arith.constant 20 : i32
    %15 = vector.broadcast %c20_i32 : i32 to vector<1x256xi32>
    %16 = arith.cmpi slt, %7, %15 : vector<1x256xi32>
    %17 = arith.andi %14, %16 : vector<1x256xi1>
    %c4_i32_9 = arith.constant 4 : i32
    %18 = vector.broadcast %c4_i32_9 : i32 to vector<1x256xi32>
    %19 = arith.cmpi sge, %8, %18 : vector<1x256xi32>
    %20 = arith.andi %17, %19 : vector<1x256xi1>
    %c20_i32_10 = arith.constant 20 : i32
    %21 = vector.broadcast %c20_i32_10 : i32 to vector<1x256xi32>
    %22 = arith.cmpi slt, %8, %21 : vector<1x256xi32>
    %23 = arith.andi %20, %22 : vector<1x256xi1>
    %cst_11 = arith.constant 0.000000e+00 : f32
    %24 = vector.broadcast %cst_11 : f32 to vector<1x256xf32>
    %25 = arith.select %23, %12, %24 : vector<1x256xi1>, vector<1x256xf32>
    %c0_12 = arith.constant 0 : index
    %c0_13 = arith.constant 0 : index
    %26 = vector.load %arg6[%c0_12, %c0_13] : memref<81x256xf32, #tpu.memory_space<vmem>>, vector<1x256xf32>
    %27 = arith.addf %26, %25 : vector<1x256xf32>
    %c0_14 = arith.constant 0 : index
    %c0_15 = arith.constant 0 : index
    %28 = vector.load %arg6[%c0_14, %c0_15] : memref<81x256xf32, #tpu.memory_space<vmem>>, vector<1x256xf32>
    tpu.vector_store %arg6[%c0_14, %c0_15], %27 {strides = array<i32>} : memref<81x256xf32, #tpu.memory_space<vmem>>, vector<1x256xf32>,
    %c67_i32 = arith.constant 67 : i32
    %29 = tpu.dynamic_rotate %6 by %c67_i32 dim 1 : vector<4x256xf32>, i32 -> vector<4x256xf32>
    %30 = arith.mulf %4, %29 : vector<4x256xf32>
    %cst_16 = arith.constant dense<0.000000e+00> : vector<256xf32>
    %31 = vector.multi_reduction <add>, %30, %cst_16 [0] : vector<4x256xf32> to vector<256xf32>
    %32 = vector.shape_cast %31 : vector<256xf32> to vector<1x256xf32>
    %c4_i32_17 = arith.constant 4 : i32
    %33 = vector.broadcast %c4_i32_17 : i32 to vector<1x256xi32>
    %34 = arith.cmpi sge, %7, %33 : vector<1x256xi32>
    %c20_i32_18 = arith.constant 20 : i32
    %35 = vector.broadcast %c20_i32_18 : i32 to vector<1x256xi32>
    %36 = arith.cmpi slt, %7, %35 : vector<1x256xi32>
    %37 = arith.andi %34, %36 : vector<1x256xi1>
    %c3_i32 = arith.constant 3 : i32
    %38 = vector.broadcast %c3_i32 : i32 to vector<1x256xi32>
    %39 = arith.cmpi sge, %8, %38 : vector<1x256xi32>
    %40 = arith.andi %37, %39 : vector<1x256xi1>
    %c19_i32 = arith.constant 19 : i32
    %41 = vector.broadcast %c19_i32 : i32 to vector<1x256xi32>
    %42 = arith.cmpi slt, %8, %41 : vector<1x256xi32>
    %43 = arith.andi %40, %42 : vector<1x256xi1>
    %cst_19 = arith.constant 0.000000e+00 : f32
    %44 = vector.broadcast %cst_19 : f32 to vector<1x256xf32>
    %45 = arith.select %43, %32, %44 : vector<1x256xi1>, vector<1x256xf32>
    %c1_20 = arith.constant 1 : index
    %c0_21 = arith.constant 0 : index
    %46 = vector.load %arg6[%c1_20, %c0_21] : memref<81x256xf32, #tpu.memory_space<vmem>>, vector<1x256xf32>
    %47 = arith.addf %46, %45 : vector<1x256xf32>
    %c1_22 = arith.constant 1 : index
    %c0_23 = arith.constant 0 : index
    %48 = vector.load %arg6[%c1_22, %c0_23] : memref<81x256xf32, #tpu.memory_space<vmem>>, vector<1x256xf32>
    tpu.vector_store %arg6[%c1_22, %c0_23], %47 {strides = array<i32>} : memref<81x256xf32, #tpu.memory_space<vmem>>, vector<1x256xf32>,
    %c66_i32 = arith.constant 66 : i32
    %49 = tpu.dynamic_rotate %6 by %c66_i32 dim 1 : vector<4x256xf32>, i32 -> vector<4x256xf32>
    %50 = arith.mulf %4, %49 : vector<4x256xf32>
    %cst_24 = arith.constant dense<0.000000e+00> : vector<256xf32>
    %51 = vector.multi_reduction <add>, %50, %cst_24 [0] : vector<4x256xf32> to vector<256xf32>
    %52 = vector.shape_cast %51 : vector<256xf32> to vector<1x256xf32>
    %c4_i32_25 = arith.constant 4 : i32
    %53 = vector.broadcast %c4_i32_25 : i32 to vector<1x256xi32>
    %54 = arith.cmpi sge, %7, %53 : vector<1x256xi32>
    %c20_i32_26 = arith.constant 20 : i32
    %55 = vector.broadcast %c20_i32_26 : i32 to vector<1x256xi32>
    %56 = arith.cmpi slt, %7, %55 : vector<1x256xi32>
    %57 = arith.andi %54, %56 : vector<1x256xi1>
    %c2_i32 = arith.constant 2 : i32
    %58 = vector.broadcast %c2_i32 : i32 to vector<1x256xi32>
    %59 = arith.cmpi sge, %8, %58 : vector<1x256xi32>
    %60 = arith.andi %57, %59 : vector<1x256xi1>
    %c18_i32 = arith.constant 18 : i32
    %61 = vector.broadcast %c18_i32 : i32 to vector<1x256xi32>
    %62 = arith.cmpi slt, %8, %61 : vector<1x256xi32>
    %63 = arith.andi %60, %62 : vector<1x256xi1>
    %cst_27 = arith.constant 0.000000e+00 : f32
    %64 = vector.broadcast %cst_27 : f32 to vector<1x256xf32>
    %65 = arith.select %63, %52, %64 : vector<1x256xi1>, vector<1x256xf32>
    %c2 = arith.constant 2 : index
    %c0_28 = arith.constant 0 : index
    %66 = vector.load %arg6[%c2, %c0_28] : memref<81x256xf32, #tpu.memory_space<vmem>>, vector<1x256xf32>
    %67 = arith.addf %66, %65 : vector<1x256xf32>
    %c2_29 = arith.constant 2 : index
    %c0_30 = arith.constant 0 : index
    %68 = vector.load %arg6[%c2_29, %c0_30] : memref<81x256xf32, #tpu.memory_space<vmem>>, vector<1x256xf32>
    tpu.vector_store %arg6[%c2_29, %c0_30], %67 {strides = array<i32>} : memref<81x256xf32, #tpu.memory_space<vmem>>, vector<1x256xf32>,
    %c65_i32 = arith.constant 65 : i32
    %69 = tpu.dynamic_rotate %6 by %c65_i32 dim 1 : vector<4x256xf32>, i32 -> vector<4x256xf32>
    %70 = arith.mulf %4, %69 : vector<4x256xf32>
    %cst_31 = arith.constant dense<0.000000e+00> : vector<256xf32>
    %71 = vector.multi_reduction <add>, %70, %cst_31 [0] : vector<4x256xf32> to vector<256xf32>
    %72 = vector.shape_cast %71 : vector<256xf32> to vector<1x256xf32>
    %c4_i32_32 = arith.constant 4 : i32
    %73 = vector.broadcast %c4_i32_32 : i32 to vector<1x256xi32>
    %74 = arith.cmpi sge, %7, %73 : vector<1x256xi32>
    %c20_i32_33 = arith.constant 20 : i32
    %75 = vector.broadcast %c20_i32_33 : i32 to vector<1x256xi32>
    %76 = arith.cmpi slt, %7, %75 : vector<1x256xi32>
    %77 = arith.andi %74, %76 : vector<1x256xi1>
    %c1_i32 = arith.constant 1 : i32
    %78 = vector.broadcast %c1_i32 : i32 to vector<1x256xi32>
    %79 = arith.cmpi sge, %8, %78 : vector<1x256xi32>
    %80 = arith.andi %77, %79 : vector<1x256xi1>
    %c17_i32 = arith.constant 17 : i32
    %81 = vector.broadcast %c17_i32 : i32 to vector<1x256xi32>
    %82 = arith.cmpi slt, %8, %81 : vector<1x256xi32>
    %83 = arith.andi %80, %82 : vector<1x256xi1>
    %cst_34 = arith.constant 0.000000e+00 : f32
    %84 = vector.broadcast %cst_34 : f32 to vector<1x256xf32>
    %85 = arith.select %83, %72, %84 : vector<1x256xi1>, vector<1x256xf32>
    %c3 = arith.constant 3 : index
    %c0_35 = arith.constant 0 : index
    %86 = vector.load %arg6[%c3, %c0_35] : memref<81x256xf32, #tpu.memory_space<vmem>>, vector<1x256xf32>
    %87 = arith.addf %86, %85 : vector<1x256xf32>
    %c3_36 = arith.constant 3 : index
    %c0_37 = arith.constant 0 : index
    %88 = vector.load %arg6[%c3_36, %c0_37] : memref<81x256xf32, #tpu.memory_space<vmem>>, vector<1x256xf32>
    tpu.vector_store %arg6[%c3_36, %c0_37], %87 {strides = array<i32>} : memref<81x256xf32, #tpu.memory_space<vmem>>, vector<1x256xf32>,
    %c64_i32 = arith.constant 64 : i32
    %89 = tpu.dynamic_rotate %6 by %c64_i32 dim 1 : vector<4x256xf32>, i32 -> vector<4x256xf32>
    %90 = arith.mulf %4, %89 : vector<4x256xf32>
    %cst_38 = arith.constant dense<0.000000e+00> : vector<256xf32>
    %91 = vector.multi_reduction <add>, %90, %cst_38 [0] : vector<4x256xf32> to vector<256xf32>
    %92 = vector.shape_cast %91 : vector<256xf32> to vector<1x256xf32>
    %c4_i32_39 = arith.constant 4 : i32
    %93 = vector.broadcast %c4_i32_39 : i32 to vector<1x256xi32>
    %94 = arith.cmpi sge, %7, %93 : vector<1x256xi32>
    %c20_i32_40 = arith.constant 20 : i32
    %95 = vector.broadcast %c20_i32_40 : i32 to vector<1x256xi32>
    %96 = arith.cmpi slt, %7, %95 : vector<1x256xi32>
    %97 = arith.andi %94, %96 : vector<1x256xi1>
    %c0_i32_41 = arith.constant 0 : i32
    %98 = vector.broadcast %c0_i32_41 : i32 to vector<1x256xi32>
    %99 = arith.cmpi sge, %8, %98 : vector<1x256xi32>
    %100 = arith.andi %97, %99 : vector<1x256xi1>
    %c16_i32 = arith.constant 16 : i32
    %101 = vector.broadcast %c16_i32 : i32 to vector<1x256xi32>
    %102 = arith.cmpi slt, %8, %101 : vector<1x256xi32>
    %103 = arith.andi %100, %102 : vector<1x256xi1>
    %cst_42 = arith.constant 0.000000e+00 : f32
    %104 = vector.broadcast %cst_42 : f32 to vector<1x256xf32>
    %105 = arith.select %103, %92, %104 : vector<1x256xi1>, vector<1x256xf32>
    %c4 = arith.constant 4 : index
    %c0_43 = arith.constant 0 : index
    %106 = vector.load %arg6[%c4, %c0_43] : memref<81x256xf32, #tpu.memory_space<vmem>>, vector<1x256xf32>
    %107 = arith.addf %106, %105 : vector<1x256xf32>
    %c4_44 = arith.constant 4 : index
    %c0_45 = arith.constant 0 : index
    %108 = vector.load %arg6[%c4_44, %c0_45] : memref<81x256xf32, #tpu.memory_space<vmem>>, vector<1x256xf32>
    tpu.vector_store %arg6[%c4_44, %c0_45], %107 {strides = array<i32>} : memref<81x256xf32, #tpu.memory_space<vmem>>, vector<1x256xf32>,
    %c63_i32 = arith.constant 63 : i32
    %109 = tpu.dynamic_rotate %6 by %c63_i32 dim 1 : vector<4x256xf32>, i32 -> vector<4x256xf32>
    %110 = arith.mulf %4, %109 : vector<4x256xf32>
    %cst_46 = arith.constant dense<0.000000e+00> : vector<256xf32>
    %111 = vector.multi_reduction <add>, %110, %cst_46 [0] : vector<4x256xf32> to vector<256xf32>
    %112 = vector.shape_cast %111 : vector<256xf32> to vector<1x256xf32>
    %c4_i32_47 = arith.constant 4 : i32
    %113 = vector.broadcast %c4_i32_47 : i32 to vector<1x256xi32>
    %114 = arith.cmpi sge, %7, %113 : vector<1x256xi32>
    %c20_i32_48 = arith.constant 20 : i32
    %115 = vector.broadcast %c20_i32_48 : i32 to vector<1x256xi32>
    %116 = arith.cmpi slt, %7, %115 : vector<1x256xi32>
    %117 = arith.andi %114, %116 : vector<1x256xi1>
    %c-1_i32 = arith.constant -1 : i32
    %118 = vector.broadcast %c-1_i32 : i32 to vector<1x256xi32>
    %119 = arith.cmpi sge, %8, %118 : vector<1x256xi32>
    %120 = arith.andi %117, %119 : vector<1x256xi1>
    %c15_i32 = arith.constant 15 : i32
    %121 = vector.broadcast %c15_i32 : i32 to vector<1x256xi32>
    %122 = arith.cmpi slt, %8, %121 : vector<1x256xi32>
    %123 = arith.andi %120, %122 : vector<1x256xi1>
    %cst_49 = arith.constant 0.000000e+00 : f32
    %124 = vector.broadcast %cst_49 : f32 to vector<1x256xf32>
    %125 = arith.select %123, %112, %124 : vector<1x256xi1>, vector<1x256xf32>
    %c5 = arith.constant 5 : index
    %c0_50 = arith.constant 0 : index
    %126 = vector.load %arg6[%c5, %c0_50] : memref<81x256xf32, #tpu.memory_space<vmem>>, vector<1x256xf32>
    %127 = arith.addf %126, %125 : vector<1x256xf32>
    %c5_51 = arith.constant 5 : index
    %c0_52 = arith.constant 0 : index
    %128 = vector.load %arg6[%c5_51, %c0_52] : memref<81x256xf32, #tpu.memory_space<vmem>>, vector<1x256xf32>
    tpu.vector_store %arg6[%c5_51, %c0_52], %127 {strides = array<i32>} : memref<81x256xf32, #tpu.memory_space<vmem>>, vector<1x256xf32>,
    %c62_i32 = arith.constant 62 : i32
    %129 = tpu.dynamic_rotate %6 by %c62_i32 dim 1 : vector<4x256xf32>, i32 -> vector<4x256xf32>
    %130 = arith.mulf %4, %129 : vector<4x256xf32>
    %cst_53 = arith.constant dense<0.000000e+00> : vector<256xf32>
    %131 = vector.multi_reduction <add>, %130, %cst_53 [0] : vector<4x256xf32> to vector<256xf32>
    %132 = vector.shape_cast %131 : vector<256xf32> to vector<1x256xf32>
    %c4_i32_54 = arith.constant 4 : i32
    %133 = vector.broadcast %c4_i32_54 : i32 to vector<1x256xi32>
    %134 = arith.cmpi sge, %7, %133 : vector<1x256xi32>
    %c20_i32_55 = arith.constant 20 : i32
    %135 = vector.broadcast %c20_i32_55 : i32 to vector<1x256xi32>
    %136 = arith.cmpi slt, %7, %135 : vector<1x256xi32>
    %137 = arith.andi %134, %136 : vector<1x256xi1>
    %c-2_i32 = arith.constant -2 : i32
    %138 = vector.broadcast %c-2_i32 : i32 to vector<1x256xi32>
    %139 = arith.cmpi sge, %8, %138 : vector<1x256xi32>
    %140 = arith.andi %137, %139 : vector<1x256xi1>
    %c14_i32 = arith.constant 14 : i32
    %141 = vector.broadcast %c14_i32 : i32 to vector<1x256xi32>
    %142 = arith.cmpi slt, %8, %141 : vector<1x256xi32>
    %143 = arith.andi %140, %142 : vector<1x256xi1>
    %cst_56 = arith.constant 0.000000e+00 : f32
    %144 = vector.broadcast %cst_56 : f32 to vector<1x256xf32>
    %145 = arith.select %143, %132, %144 : vector<1x256xi1>, vector<1x256xf32>
    %c6 = arith.constant 6 : index
    %c0_57 = arith.constant 0 : index
    %146 = vector.load %arg6[%c6, %c0_57] : memref<81x256xf32, #tpu.memory_space<vmem>>, vector<1x256xf32>
    %147 = arith.addf %146, %145 : vector<1x256xf32>
    %c6_58 = arith.constant 6 : index
    %c0_59 = arith.constant 0 : index
    %148 = vector.load %arg6[%c6_58, %c0_59] : memref<81x256xf32, #tpu.memory_space<vmem>>, vector<1x256xf32>
    tpu.vector_store %arg6[%c6_58, %c0_59], %147 {strides = array<i32>} : memref<81x256xf32, #tpu.memory_space<vmem>>, vector<1x256xf32>,
    %c61_i32 = arith.constant 61 : i32
    %149 = tpu.dynamic_rotate %6 by %c61_i32 dim 1 : vector<4x256xf32>, i32 -> vector<4x256xf32>
    %150 = arith.mulf %4, %149 : vector<4x256xf32>
    %cst_60 = arith.constant dense<0.000000e+00> : vector<256xf32>
    %151 = vector.multi_reduction <add>, %150, %cst_60 [0] : vector<4x256xf32> to vector<256xf32>
    %152 = vector.shape_cast %151 : vector<256xf32> to vector<1x256xf32>
    %c4_i32_61 = arith.constant 4 : i32
    %153 = vector.broadcast %c4_i32_61 : i32 to vector<1x256xi32>
    %154 = arith.cmpi sge, %7, %153 : vector<1x256xi32>
    %c20_i32_62 = arith.constant 20 : i32
    %155 = vector.broadcast %c20_i32_62 : i32 to vector<1x256xi32>
    %156 = arith.cmpi slt, %7, %155 : vector<1x256xi32>
    %157 = arith.andi %154, %156 : vector<1x256xi1>
    %c-3_i32 = arith.constant -3 : i32
    %158 = vector.broadcast %c-3_i32 : i32 to vector<1x256xi32>
    %159 = arith.cmpi sge, %8, %158 : vector<1x256xi32>
    %160 = arith.andi %157, %159 : vector<1x256xi1>
    %c13_i32 = arith.constant 13 : i32
    %161 = vector.broadcast %c13_i32 : i32 to vector<1x256xi32>
    %162 = arith.cmpi slt, %8, %161 : vector<1x256xi32>
    %163 = arith.andi %160, %162 : vector<1x256xi1>
    %cst_63 = arith.constant 0.000000e+00 : f32
    %164 = vector.broadcast %cst_63 : f32 to vector<1x256xf32>
    %165 = arith.select %163, %152, %164 : vector<1x256xi1>, vector<1x256xf32>
    %c7 = arith.constant 7 : index
    %c0_64 = arith.constant 0 : index
    %166 = vector.load %arg6[%c7, %c0_64] : memref<81x256xf32, #tpu.memory_space<vmem>>, vector<1x256xf32>
    %167 = arith.addf %166, %165 : vector<1x256xf32>
    %c7_65 = arith.constant 7 : index
    %c0_66 = arith.constant 0 : index
    %168 = vector.load %arg6[%c7_65, %c0_66] : memref<81x256xf32, #tpu.memory_space<vmem>>, vector<1x256xf32>
    tpu.vector_store %arg6[%c7_65, %c0_66], %167 {strides = array<i32>} : memref<81x256xf32, #tpu.memory_space<vmem>>, vector<1x256xf32>,
    %c60_i32 = arith.constant 60 : i32
    %169 = tpu.dynamic_rotate %6 by %c60_i32 dim 1 : vector<4x256xf32>, i32 -> vector<4x256xf32>
    %170 = arith.mulf %4, %169 : vector<4x256xf32>
    %cst_67 = arith.constant dense<0.000000e+00> : vector<256xf32>
    %171 = vector.multi_reduction <add>, %170, %cst_67 [0] : vector<4x256xf32> to vector<256xf32>
    %172 = vector.shape_cast %171 : vector<256xf32> to vector<1x256xf32>
    %c4_i32_68 = arith.constant 4 : i32
    %173 = vector.broadcast %c4_i32_68 : i32 to vector<1x256xi32>
    %174 = arith.cmpi sge, %7, %173 : vector<1x256xi32>
    %c20_i32_69 = arith.constant 20 : i32
    %175 = vector.broadcast %c20_i32_69 : i32 to vector<1x256xi32>
    %176 = arith.cmpi slt, %7, %175 : vector<1x256xi32>
    %177 = arith.andi %174, %176 : vector<1x256xi1>
    %c-4_i32 = arith.constant -4 : i32
    %178 = vector.broadcast %c-4_i32 : i32 to vector<1x256xi32>
    %179 = arith.cmpi sge, %8, %178 : vector<1x256xi32>
    %180 = arith.andi %177, %179 : vector<1x256xi1>
    %c12_i32 = arith.constant 12 : i32
    %181 = vector.broadcast %c12_i32 : i32 to vector<1x256xi32>
    %182 = arith.cmpi slt, %8, %181 : vector<1x256xi32>
    %183 = arith.andi %180, %182 : vector<1x256xi1>
    %cst_70 = arith.constant 0.000000e+00 : f32
    %184 = vector.broadcast %cst_70 : f32 to vector<1x256xf32>
    %185 = arith.select %183, %172, %184 : vector<1x256xi1>, vector<1x256xf32>
    %c8 = arith.constant 8 : index
    %c0_71 = arith.constant 0 : index
    %186 = vector.load %arg6[%c8, %c0_71] : memref<81x256xf32, #tpu.memory_space<vmem>>, vector<1x256xf32>
    %187 = arith.addf %186, %185 : vector<1x256xf32>
    %c8_72 = arith.constant 8 : index
    %c0_73 = arith.constant 0 : index
    %188 = vector.load %arg6[%c8_72, %c0_73] : memref<81x256xf32, #tpu.memory_space<vmem>>, vector<1x256xf32>
    tpu.vector_store %arg6[%c8_72, %c0_73], %187 {strides = array<i32>} : memref<81x256xf32, #tpu.memory_space<vmem>>, vector<1x256xf32>,
    %c52_i32 = arith.constant 52 : i32
    %189 = tpu.dynamic_rotate %6 by %c52_i32 dim 1 : vector<4x256xf32>, i32 -> vector<4x256xf32>
    %190 = arith.mulf %4, %189 : vector<4x256xf32>
    %cst_74 = arith.constant dense<0.000000e+00> : vector<256xf32>
    %191 = vector.multi_reduction <add>, %190, %cst_74 [0] : vector<4x256xf32> to vector<256xf32>
    %192 = vector.shape_cast %191 : vector<256xf32> to vector<1x256xf32>
    %c3_i32_75 = arith.constant 3 : i32
    %193 = vector.broadcast %c3_i32_75 : i32 to vector<1x256xi32>
    %194 = arith.cmpi sge, %7, %193 : vector<1x256xi32>
    %c19_i32_76 = arith.constant 19 : i32
    %195 = vector.broadcast %c19_i32_76 : i32 to vector<1x256xi32>
    %196 = arith.cmpi slt, %7, %195 : vector<1x256xi32>
    %197 = arith.andi %194, %196 : vector<1x256xi1>
    %c4_i32_77 = arith.constant 4 : i32
    %198 = vector.broadcast %c4_i32_77 : i32 to vector<1x256xi32>
    %199 = arith.cmpi sge, %8, %198 : vector<1x256xi32>
    %200 = arith.andi %197, %199 : vector<1x256xi1>
    %c20_i32_78 = arith.constant 20 : i32
    %201 = vector.broadcast %c20_i32_78 : i32 to vector<1x256xi32>
    %202 = arith.cmpi slt, %8, %201 : vector<1x256xi32>
    %203 = arith.andi %200, %202 : vector<1x256xi1>
    %cst_79 = arith.constant 0.000000e+00 : f32
    %204 = vector.broadcast %cst_79 : f32 to vector<1x256xf32>
    %205 = arith.select %203, %192, %204 : vector<1x256xi1>, vector<1x256xf32>
    %c9 = arith.constant 9 : index
    %c0_80 = arith.constant 0 : index
    %206 = vector.load %arg6[%c9, %c0_80] : memref<81x256xf32, #tpu.memory_space<vmem>>, vector<1x256xf32>
    %207 = arith.addf %206, %205 : vector<1x256xf32>
    %c9_81 = arith.constant 9 : index
    %c0_82 = arith.constant 0 : index
    %208 = vector.load %arg6[%c9_81, %c0_82] : memref<81x256xf32, #tpu.memory_space<vmem>>, vector<1x256xf32>
    tpu.vector_store %arg6[%c9_81, %c0_82], %207 {strides = array<i32>} : memref<81x256xf32, #tpu.memory_space<vmem>>, vector<1x256xf32>,
    %c51_i32 = arith.constant 51 : i32
    %209 = tpu.dynamic_rotate %6 by %c51_i32 dim 1 : vector<4x256xf32>, i32 -> vector<4x256xf32>
    %210 = arith.mulf %4, %209 : vector<4x256xf32>
    %cst_83 = arith.constant dense<0.000000e+00> : vector<256xf32>
    %211 = vector.multi_reduction <add>, %210, %cst_83 [0] : vector<4x256xf32> to vector<256xf32>
    %212 = vector.shape_cast %211 : vector<256xf32> to vector<1x256xf32>
    %c3_i32_84 = arith.constant 3 : i32
    %213 = vector.broadcast %c3_i32_84 : i32 to vector<1x256xi32>
    %214 = arith.cmpi sge, %7, %213 : vector<1x256xi32>
    %c19_i32_85 = arith.constant 19 : i32
    %215 = vector.broadcast %c19_i32_85 : i32 to vector<1x256xi32>
    %216 = arith.cmpi slt, %7, %215 : vector<1x256xi32>
    %217 = arith.andi %214, %216 : vector<1x256xi1>
    %c3_i32_86 = arith.constant 3 : i32
    %218 = vector.broadcast %c3_i32_86 : i32 to vector<1x256xi32>
    %219 = arith.cmpi sge, %8, %218 : vector<1x256xi32>
    %220 = arith.andi %217, %219 : vector<1x256xi1>
    %c19_i32_87 = arith.constant 19 : i32
    %221 = vector.broadcast %c19_i32_87 : i32 to vector<1x256xi32>
    %222 = arith.cmpi slt, %8, %221 : vector<1x256xi32>
    %223 = arith.andi %220, %222 : vector<1x256xi1>
    %cst_88 = arith.constant 0.000000e+00 : f32
    %224 = vector.broadcast %cst_88 : f32 to vector<1x256xf32>
    %225 = arith.select %223, %212, %224 : vector<1x256xi1>, vector<1x256xf32>
    %c10 = arith.constant 10 : index
    %c0_89 = arith.constant 0 : index
    %226 = vector.load %arg6[%c10, %c0_89] : memref<81x256xf32, #tpu.memory_space<vmem>>, vector<1x256xf32>
    %227 = arith.addf %226, %225 : vector<1x256xf32>
    %c10_90 = arith.constant 10 : index
    %c0_91 = arith.constant 0 : index
    %228 = vector.load %arg6[%c10_90, %c0_91] : memref<81x256xf32, #tpu.memory_space<vmem>>, vector<1x256xf32>
    tpu.vector_store %arg6[%c10_90, %c0_91], %227 {strides = array<i32>} : memref<81x256xf32, #tpu.memory_space<vmem>>, vector<1x256xf32>,
    %c50_i32 = arith.constant 50 : i32
    %229 = tpu.dynamic_rotate %6 by %c50_i32 dim 1 : vector<4x256xf32>, i32 -> vector<4x256xf32>
    %230 = arith.mulf %4, %229 : vector<4x256xf32>
    %cst_92 = arith.constant dense<0.000000e+00> : vector<256xf32>
    %231 = vector.multi_reduction <add>, %230, %cst_92 [0] : vector<4x256xf32> to vector<256xf32>
    %232 = vector.shape_cast %231 : vector<256xf32> to vector<1x256xf32>
    %c3_i32_93 = arith.constant 3 : i32
    %233 = vector.broadcast %c3_i32_93 : i32 to vector<1x256xi32>
    %234 = arith.cmpi sge, %7, %233 : vector<1x256xi32>
    %c19_i32_94 = arith.constant 19 : i32
    %235 = vector.broadcast %c19_i32_94 : i32 to vector<1x256xi32>
    %236 = arith.cmpi slt, %7, %235 : vector<1x256xi32>
    %237 = arith.andi %234, %236 : vector<1x256xi1>
    %c2_i32_95 = arith.constant 2 : i32
    %238 = vector.broadcast %c2_i32_95 : i32 to vector<1x256xi32>
    %239 = arith.cmpi sge, %8, %238 : vector<1x256xi32>
    %240 = arith.andi %237, %239 : vector<1x256xi1>
    %c18_i32_96 = arith.constant 18 : i32
    %241 = vector.broadcast %c18_i32_96 : i32 to vector<1x256xi32>
    %242 = arith.cmpi slt, %8, %241 : vector<1x256xi32>
    %243 = arith.andi %240, %242 : vector<1x256xi1>
    %cst_97 = arith.constant 0.000000e+00 : f32
    %244 = vector.broadcast %cst_97 : f32 to vector<1x256xf32>
    %245 = arith.select %243, %232, %244 : vector<1x256xi1>, vector<1x256xf32>
    %c11 = arith.constant 11 : index
    %c0_98 = arith.constant 0 : index
    %246 = vector.load %arg6[%c11, %c0_98] : memref<81x256xf32, #tpu.memory_space<vmem>>, vector<1x256xf32>
    %247 = arith.addf %246, %245 : vector<1x256xf32>
    %c11_99 = arith.constant 11 : index
    %c0_100 = arith.constant 0 : index
    %248 = vector.load %arg6[%c11_99, %c0_100] : memref<81x256xf32, #tpu.memory_space<vmem>>, vector<1x256xf32>
    tpu.vector_store %arg6[%c11_99, %c0_100], %247 {strides = array<i32>} : memref<81x256xf32, #tpu.memory_space<vmem>>, vector<1x256xf32>,
    %c49_i32 = arith.constant 49 : i32
    %249 = tpu.dynamic_rotate %6 by %c49_i32 dim 1 : vector<4x256xf32>, i32 -> vector<4x256xf32>
    %250 = arith.mulf %4, %249 : vector<4x256xf32>
    %cst_101 = arith.constant dense<0.000000e+00> : vector<256xf32>
    %251 = vector.multi_reduction <add>, %250, %cst_101 [0] : vector<4x256xf32> to vector<256xf32>
    %252 = vector.shape_cast %251 : vector<256xf32> to vector<1x256xf32>
    %c3_i32_102 = arith.constant 3 : i32
    %253 = vector.broadcast %c3_i32_102 : i32 to vector<1x256xi32>
    %254 = arith.cmpi sge, %7, %253 : vector<1x256xi32>
    %c19_i32_103 = arith.constant 19 : i32
    %255 = vector.broadcast %c19_i32_103 : i32 to vector<1x256xi32>
    %256 = arith.cmpi slt, %7, %255 : vector<1x256xi32>
    %257 = arith.andi %254, %256 : vector<1x256xi1>
    %c1_i32_104 = arith.constant 1 : i32
    %258 = vector.broadcast %c1_i32_104 : i32 to vector<1x256xi32>
    %259 = arith.cmpi sge, %8, %258 : vector<1x256xi32>
    %260 = arith.andi %257, %259 : vector<1x256xi1>
    %c17_i32_105 = arith.constant 17 : i32
    %261 = vector.broadcast %c17_i32_105 : i32 to vector<1x256xi32>
    %262 = arith.cmpi slt, %8, %261 : vector<1x256xi32>
    %263 = arith.andi %260, %262 : vector<1x256xi1>
    %cst_106 = arith.constant 0.000000e+00 : f32
    %264 = vector.broadcast %cst_106 : f32 to vector<1x256xf32>
    %265 = arith.select %263, %252, %264 : vector<1x256xi1>, vector<1x256xf32>
    %c12 = arith.constant 12 : index
    %c0_107 = arith.constant 0 : index
    %266 = vector.load %arg6[%c12, %c0_107] : memref<81x256xf32, #tpu.memory_space<vmem>>, vector<1x256xf32>
    %267 = arith.addf %266, %265 : vector<1x256xf32>
    %c12_108 = arith.constant 12 : index
    %c0_109 = arith.constant 0 : index
    %268 = vector.load %arg6[%c12_108, %c0_109] : memref<81x256xf32, #tpu.memory_space<vmem>>, vector<1x256xf32>
    tpu.vector_store %arg6[%c12_108, %c0_109], %267 {strides = array<i32>} : memref<81x256xf32, #tpu.memory_space<vmem>>, vector<1x256xf32>,
    %c48_i32 = arith.constant 48 : i32
    %269 = tpu.dynamic_rotate %6 by %c48_i32 dim 1 : vector<4x256xf32>, i32 -> vector<4x256xf32>
    %270 = arith.mulf %4, %269 : vector<4x256xf32>
    %cst_110 = arith.constant dense<0.000000e+00> : vector<256xf32>
    %271 = vector.multi_reduction <add>, %270, %cst_110 [0] : vector<4x256xf32> to vector<256xf32>
    %272 = vector.shape_cast %271 : vector<256xf32> to vector<1x256xf32>
    %c3_i32_111 = arith.constant 3 : i32
    %273 = vector.broadcast %c3_i32_111 : i32 to vector<1x256xi32>
    %274 = arith.cmpi sge, %7, %273 : vector<1x256xi32>
    %c19_i32_112 = arith.constant 19 : i32
    %275 = vector.broadcast %c19_i32_112 : i32 to vector<1x256xi32>
    %276 = arith.cmpi slt, %7, %275 : vector<1x256xi32>
    %277 = arith.andi %274, %276 : vector<1x256xi1>
    %c0_i32_113 = arith.constant 0 : i32
    %278 = vector.broadcast %c0_i32_113 : i32 to vector<1x256xi32>
    %279 = arith.cmpi sge, %8, %278 : vector<1x256xi32>
    %280 = arith.andi %277, %279 : vector<1x256xi1>
    %c16_i32_114 = arith.constant 16 : i32
    %281 = vector.broadcast %c16_i32_114 : i32 to vector<1x256xi32>
    %282 = arith.cmpi slt, %8, %281 : vector<1x256xi32>
    %283 = arith.andi %280, %282 : vector<1x256xi1>
    %cst_115 = arith.constant 0.000000e+00 : f32
    %284 = vector.broadcast %cst_115 : f32 to vector<1x256xf32>
    %285 = arith.select %283, %272, %284 : vector<1x256xi1>, vector<1x256xf32>
    %c13 = arith.constant 13 : index
    %c0_116 = arith.constant 0 : index
    %286 = vector.load %arg6[%c13, %c0_116] : memref<81x256xf32, #tpu.memory_space<vmem>>, vector<1x256xf32>
    %287 = arith.addf %286, %285 : vector<1x256xf32>
    %c13_117 = arith.constant 13 : index
    %c0_118 = arith.constant 0 : index
    %288 = vector.load %arg6[%c13_117, %c0_118] : memref<81x256xf32, #tpu.memory_space<vmem>>, vector<1x256xf32>
    tpu.vector_store %arg6[%c13_117, %c0_118], %287 {strides = array<i32>} : memref<81x256xf32, #tpu.memory_space<vmem>>, vector<1x256xf32>,
    %c47_i32 = arith.constant 47 : i32
    %289 = tpu.dynamic_rotate %6 by %c47_i32 dim 1 : vector<4x256xf32>, i32 -> vector<4x256xf32>
    %290 = arith.mulf %4, %289 : vector<4x256xf32>
    %cst_119 = arith.constant dense<0.000000e+00> : vector<256xf32>
    %291 = vector.multi_reduction <add>, %290, %cst_119 [0] : vector<4x256xf32> to vector<256xf32>
    %292 = vector.shape_cast %291 : vector<256xf32> to vector<1x256xf32>
    %c3_i32_120 = arith.constant 3 : i32
    %293 = vector.broadcast %c3_i32_120 : i32 to vector<1x256xi32>
    %294 = arith.cmpi sge, %7, %293 : vector<1x256xi32>
    %c19_i32_121 = arith.constant 19 : i32
    %295 = vector.broadcast %c19_i32_121 : i32 to vector<1x256xi32>
    %296 = arith.cmpi slt, %7, %295 : vector<1x256xi32>
    %297 = arith.andi %294, %296 : vector<1x256xi1>
    %c-1_i32_122 = arith.constant -1 : i32
    %298 = vector.broadcast %c-1_i32_122 : i32 to vector<1x256xi32>
    %299 = arith.cmpi sge, %8, %298 : vector<1x256xi32>
    %300 = arith.andi %297, %299 : vector<1x256xi1>
    %c15_i32_123 = arith.constant 15 : i32
    %301 = vector.broadcast %c15_i32_123 : i32 to vector<1x256xi32>
    %302 = arith.cmpi slt, %8, %301 : vector<1x256xi32>
    %303 = arith.andi %300, %302 : vector<1x256xi1>
    %cst_124 = arith.constant 0.000000e+00 : f32
    %304 = vector.broadcast %cst_124 : f32 to vector<1x256xf32>
    %305 = arith.select %303, %292, %304 : vector<1x256xi1>, vector<1x256xf32>
    %c14 = arith.constant 14 : index
    %c0_125 = arith.constant 0 : index
    %306 = vector.load %arg6[%c14, %c0_125] : memref<81x256xf32, #tpu.memory_space<vmem>>, vector<1x256xf32>
    %307 = arith.addf %306, %305 : vector<1x256xf32>
    %c14_126 = arith.constant 14 : index
    %c0_127 = arith.constant 0 : index
    %308 = vector.load %arg6[%c14_126, %c0_127] : memref<81x256xf32, #tpu.memory_space<vmem>>, vector<1x256xf32>
    tpu.vector_store %arg6[%c14_126, %c0_127], %307 {strides = array<i32>} : memref<81x256xf32, #tpu.memory_space<vmem>>, vector<1x256xf32>,
    %c46_i32 = arith.constant 46 : i32
    %309 = tpu.dynamic_rotate %6 by %c46_i32 dim 1 : vector<4x256xf32>, i32 -> vector<4x256xf32>
    %310 = arith.mulf %4, %309 : vector<4x256xf32>
    %cst_128 = arith.constant dense<0.000000e+00> : vector<256xf32>
    %311 = vector.multi_reduction <add>, %310, %cst_128 [0] : vector<4x256xf32> to vector<256xf32>
    %312 = vector.shape_cast %311 : vector<256xf32> to vector<1x256xf32>
    %c3_i32_129 = arith.constant 3 : i32
    %313 = vector.broadcast %c3_i32_129 : i32 to vector<1x256xi32>
    %314 = arith.cmpi sge, %7, %313 : vector<1x256xi32>
    %c19_i32_130 = arith.constant 19 : i32
    %315 = vector.broadcast %c19_i32_130 : i32 to vector<1x256xi32>
    %316 = arith.cmpi slt, %7, %315 : vector<1x256xi32>
    %317 = arith.andi %314, %316 : vector<1x256xi1>
    %c-2_i32_131 = arith.constant -2 : i32
    %318 = vector.broadcast %c-2_i32_131 : i32 to vector<1x256xi32>
    %319 = arith.cmpi sge, %8, %318 : vector<1x256xi32>
    %320 = arith.andi %317, %319 : vector<1x256xi1>
    %c14_i32_132 = arith.constant 14 : i32
    %321 = vector.broadcast %c14_i32_132 : i32 to vector<1x256xi32>
    %322 = arith.cmpi slt, %8, %321 : vector<1x256xi32>
    %323 = arith.andi %320, %322 : vector<1x256xi1>
    %cst_133 = arith.constant 0.000000e+00 : f32
    %324 = vector.broadcast %cst_133 : f32 to vector<1x256xf32>
    %325 = arith.select %323, %312, %324 : vector<1x256xi1>, vector<1x256xf32>
    %c15 = arith.constant 15 : index
    %c0_134 = arith.constant 0 : index
    %326 = vector.load %arg6[%c15, %c0_134] : memref<81x256xf32, #tpu.memory_space<vmem>>, vector<1x256xf32>
    %327 = arith.addf %326, %325 : vector<1x256xf32>
    %c15_135 = arith.constant 15 : index
    %c0_136 = arith.constant 0 : index
    %328 = vector.load %arg6[%c15_135, %c0_136] : memref<81x256xf32, #tpu.memory_space<vmem>>, vector<1x256xf32>
    tpu.vector_store %arg6[%c15_135, %c0_136], %327 {strides = array<i32>} : memref<81x256xf32, #tpu.memory_space<vmem>>, vector<1x256xf32>,
    %c45_i32 = arith.constant 45 : i32
    %329 = tpu.dynamic_rotate %6 by %c45_i32 dim 1 : vector<4x256xf32>, i32 -> vector<4x256xf32>
    %330 = arith.mulf %4, %329 : vector<4x256xf32>
    %cst_137 = arith.constant dense<0.000000e+00> : vector<256xf32>
    %331 = vector.multi_reduction <add>, %330, %cst_137 [0] : vector<4x256xf32> to vector<256xf32>
    %332 = vector.shape_cast %331 : vector<256xf32> to vector<1x256xf32>
    %c3_i32_138 = arith.constant 3 : i32
    %333 = vector.broadcast %c3_i32_138 : i32 to vector<1x256xi32>
    %334 = arith.cmpi sge, %7, %333 : vector<1x256xi32>
    %c19_i32_139 = arith.constant 19 : i32
    %335 = vector.broadcast %c19_i32_139 : i32 to vector<1x256xi32>
    %336 = arith.cmpi slt, %7, %335 : vector<1x256xi32>
    %337 = arith.andi %334, %336 : vector<1x256xi1>
    %c-3_i32_140 = arith.constant -3 : i32
    %338 = vector.broadcast %c-3_i32_140 : i32 to vector<1x256xi32>
    %339 = arith.cmpi sge, %8, %338 : vector<1x256xi32>
    %340 = arith.andi %337, %339 : vector<1x256xi1>
    %c13_i32_141 = arith.constant 13 : i32
    %341 = vector.broadcast %c13_i32_141 : i32 to vector<1x256xi32>
    %342 = arith.cmpi slt, %8, %341 : vector<1x256xi32>
    %343 = arith.andi %340, %342 : vector<1x256xi1>
    %cst_142 = arith.constant 0.000000e+00 : f32
    %344 = vector.broadcast %cst_142 : f32 to vector<1x256xf32>
    %345 = arith.select %343, %332, %344 : vector<1x256xi1>, vector<1x256xf32>
    %c16 = arith.constant 16 : index
    %c0_143 = arith.constant 0 : index
    %346 = vector.load %arg6[%c16, %c0_143] : memref<81x256xf32, #tpu.memory_space<vmem>>, vector<1x256xf32>
    %347 = arith.addf %346, %345 : vector<1x256xf32>
    %c16_144 = arith.constant 16 : index
    %c0_145 = arith.constant 0 : index
    %348 = vector.load %arg6[%c16_144, %c0_145] : memref<81x256xf32, #tpu.memory_space<vmem>>, vector<1x256xf32>
    tpu.vector_store %arg6[%c16_144, %c0_145], %347 {strides = array<i32>} : memref<81x256xf32, #tpu.memory_space<vmem>>, vector<1x256xf32>,
    %c44_i32 = arith.constant 44 : i32
    %349 = tpu.dynamic_rotate %6 by %c44_i32 dim 1 : vector<4x256xf32>, i32 -> vector<4x256xf32>
    %350 = arith.mulf %4, %349 : vector<4x256xf32>
    %cst_146 = arith.constant dense<0.000000e+00> : vector<256xf32>
    %351 = vector.multi_reduction <add>, %350, %cst_146 [0] : vector<4x256xf32> to vector<256xf32>
    %352 = vector.shape_cast %351 : vector<256xf32> to vector<1x256xf32>
    %c3_i32_147 = arith.constant 3 : i32
    %353 = vector.broadcast %c3_i32_147 : i32 to vector<1x256xi32>
    %354 = arith.cmpi sge, %7, %353 : vector<1x256xi32>
    %c19_i32_148 = arith.constant 19 : i32
    %355 = vector.broadcast %c19_i32_148 : i32 to vector<1x256xi32>
    %356 = arith.cmpi slt, %7, %355 : vector<1x256xi32>
    %357 = arith.andi %354, %356 : vector<1x256xi1>
    %c-4_i32_149 = arith.constant -4 : i32
    %358 = vector.broadcast %c-4_i32_149 : i32 to vector<1x256xi32>
    %359 = arith.cmpi sge, %8, %358 : vector<1x256xi32>
    %360 = arith.andi %357, %359 : vector<1x256xi1>
    %c12_i32_150 = arith.constant 12 : i32
    %361 = vector.broadcast %c12_i32_150 : i32 to vector<1x256xi32>
    %362 = arith.cmpi slt, %8, %361 : vector<1x256xi32>
    %363 = arith.andi %360, %362 : vector<1x256xi1>
    %cst_151 = arith.constant 0.000000e+00 : f32
    %364 = vector.broadcast %cst_151 : f32 to vector<1x256xf32>
    %365 = arith.select %363, %352, %364 : vector<1x256xi1>, vector<1x256xf32>
    %c17 = arith.constant 17 : index
    %c0_152 = arith.constant 0 : index
    %366 = vector.load %arg6[%c17, %c0_152] : memref<81x256xf32, #tpu.memory_space<vmem>>, vector<1x256xf32>
    %367 = arith.addf %366, %365 : vector<1x256xf32>
    %c17_153 = arith.constant 17 : index
    %c0_154 = arith.constant 0 : index
    %368 = vector.load %arg6[%c17_153, %c0_154] : memref<81x256xf32, #tpu.memory_space<vmem>>, vector<1x256xf32>
    tpu.vector_store %arg6[%c17_153, %c0_154], %367 {strides = array<i32>} : memref<81x256xf32, #tpu.memory_space<vmem>>, vector<1x256xf32>,
    %c36_i32 = arith.constant 36 : i32
    %369 = tpu.dynamic_rotate %6 by %c36_i32 dim 1 : vector<4x256xf32>, i32 -> vector<4x256xf32>
    %370 = arith.mulf %4, %369 : vector<4x256xf32>
    %cst_155 = arith.constant dense<0.000000e+00> : vector<256xf32>
    %371 = vector.multi_reduction <add>, %370, %cst_155 [0] : vector<4x256xf32> to vector<256xf32>
    %372 = vector.shape_cast %371 : vector<256xf32> to vector<1x256xf32>
    %c2_i32_156 = arith.constant 2 : i32
    %373 = vector.broadcast %c2_i32_156 : i32 to vector<1x256xi32>
    %374 = arith.cmpi sge, %7, %373 : vector<1x256xi32>
    %c18_i32_157 = arith.constant 18 : i32
    %375 = vector.broadcast %c18_i32_157 : i32 to vector<1x256xi32>
    %376 = arith.cmpi slt, %7, %375 : vector<1x256xi32>
    %377 = arith.andi %374, %376 : vector<1x256xi1>
    %c4_i32_158 = arith.constant 4 : i32
    %378 = vector.broadcast %c4_i32_158 : i32 to vector<1x256xi32>
    %379 = arith.cmpi sge, %8, %378 : vector<1x256xi32>
    %380 = arith.andi %377, %379 : vector<1x256xi1>
    %c20_i32_159 = arith.constant 20 : i32
    %381 = vector.broadcast %c20_i32_159 : i32 to vector<1x256xi32>
    %382 = arith.cmpi slt, %8, %381 : vector<1x256xi32>
    %383 = arith.andi %380, %382 : vector<1x256xi1>
    %cst_160 = arith.constant 0.000000e+00 : f32
    %384 = vector.broadcast %cst_160 : f32 to vector<1x256xf32>
    %385 = arith.select %383, %372, %384 : vector<1x256xi1>, vector<1x256xf32>
    %c18 = arith.constant 18 : index
    %c0_161 = arith.constant 0 : index
    %386 = vector.load %arg6[%c18, %c0_161] : memref<81x256xf32, #tpu.memory_space<vmem>>, vector<1x256xf32>
    %387 = arith.addf %386, %385 : vector<1x256xf32>
    %c18_162 = arith.constant 18 : index
    %c0_163 = arith.constant 0 : index
    %388 = vector.load %arg6[%c18_162, %c0_163] : memref<81x256xf32, #tpu.memory_space<vmem>>, vector<1x256xf32>
    tpu.vector_store %arg6[%c18_162, %c0_163], %387 {strides = array<i32>} : memref<81x256xf32, #tpu.memory_space<vmem>>, vector<1x256xf32>,
    %c35_i32 = arith.constant 35 : i32
    %389 = tpu.dynamic_rotate %6 by %c35_i32 dim 1 : vector<4x256xf32>, i32 -> vector<4x256xf32>
    %390 = arith.mulf %4, %389 : vector<4x256xf32>
    %cst_164 = arith.constant dense<0.000000e+00> : vector<256xf32>
    %391 = vector.multi_reduction <add>, %390, %cst_164 [0] : vector<4x256xf32> to vector<256xf32>
    %392 = vector.shape_cast %391 : vector<256xf32> to vector<1x256xf32>
    %c2_i32_165 = arith.constant 2 : i32
    %393 = vector.broadcast %c2_i32_165 : i32 to vector<1x256xi32>
    %394 = arith.cmpi sge, %7, %393 : vector<1x256xi32>
    %c18_i32_166 = arith.constant 18 : i32
    %395 = vector.broadcast %c18_i32_166 : i32 to vector<1x256xi32>
    %396 = arith.cmpi slt, %7, %395 : vector<1x256xi32>
    %397 = arith.andi %394, %396 : vector<1x256xi1>
    %c3_i32_167 = arith.constant 3 : i32
    %398 = vector.broadcast %c3_i32_167 : i32 to vector<1x256xi32>
    %399 = arith.cmpi sge, %8, %398 : vector<1x256xi32>
    %400 = arith.andi %397, %399 : vector<1x256xi1>
    %c19_i32_168 = arith.constant 19 : i32
    %401 = vector.broadcast %c19_i32_168 : i32 to vector<1x256xi32>
    %402 = arith.cmpi slt, %8, %401 : vector<1x256xi32>
    %403 = arith.andi %400, %402 : vector<1x256xi1>
    %cst_169 = arith.constant 0.000000e+00 : f32
    %404 = vector.broadcast %cst_169 : f32 to vector<1x256xf32>
    %405 = arith.select %403, %392, %404 : vector<1x256xi1>, vector<1x256xf32>
    %c19 = arith.constant 19 : index
    %c0_170 = arith.constant 0 : index
    %406 = vector.load %arg6[%c19, %c0_170] : memref<81x256xf32, #tpu.memory_space<vmem>>, vector<1x256xf32>
    %407 = arith.addf %406, %405 : vector<1x256xf32>
    %c19_171 = arith.constant 19 : index
    %c0_172 = arith.constant 0 : index
    %408 = vector.load %arg6[%c19_171, %c0_172] : memref<81x256xf32, #tpu.memory_space<vmem>>, vector<1x256xf32>
    tpu.vector_store %arg6[%c19_171, %c0_172], %407 {strides = array<i32>} : memref<81x256xf32, #tpu.memory_space<vmem>>, vector<1x256xf32>,
    %c34_i32 = arith.constant 34 : i32
    %409 = tpu.dynamic_rotate %6 by %c34_i32 dim 1 : vector<4x256xf32>, i32 -> vector<4x256xf32>
    %410 = arith.mulf %4, %409 : vector<4x256xf32>
    %cst_173 = arith.constant dense<0.000000e+00> : vector<256xf32>
    %411 = vector.multi_reduction <add>, %410, %cst_173 [0] : vector<4x256xf32> to vector<256xf32>
    %412 = vector.shape_cast %411 : vector<256xf32> to vector<1x256xf32>
    %c2_i32_174 = arith.constant 2 : i32
    %413 = vector.broadcast %c2_i32_174 : i32 to vector<1x256xi32>
    %414 = arith.cmpi sge, %7, %413 : vector<1x256xi32>
    %c18_i32_175 = arith.constant 18 : i32
    %415 = vector.broadcast %c18_i32_175 : i32 to vector<1x256xi32>
    %416 = arith.cmpi slt, %7, %415 : vector<1x256xi32>
    %417 = arith.andi %414, %416 : vector<1x256xi1>
    %c2_i32_176 = arith.constant 2 : i32
    %418 = vector.broadcast %c2_i32_176 : i32 to vector<1x256xi32>
    %419 = arith.cmpi sge, %8, %418 : vector<1x256xi32>
    %420 = arith.andi %417, %419 : vector<1x256xi1>
    %c18_i32_177 = arith.constant 18 : i32
    %421 = vector.broadcast %c18_i32_177 : i32 to vector<1x256xi32>
    %422 = arith.cmpi slt, %8, %421 : vector<1x256xi32>
    %423 = arith.andi %420, %422 : vector<1x256xi1>
    %cst_178 = arith.constant 0.000000e+00 : f32
    %424 = vector.broadcast %cst_178 : f32 to vector<1x256xf32>
    %425 = arith.select %423, %412, %424 : vector<1x256xi1>, vector<1x256xf32>
    %c20 = arith.constant 20 : index
    %c0_179 = arith.constant 0 : index
    %426 = vector.load %arg6[%c20, %c0_179] : memref<81x256xf32, #tpu.memory_space<vmem>>, vector<1x256xf32>
    %427 = arith.addf %426, %425 : vector<1x256xf32>
    %c20_180 = arith.constant 20 : index
    %c0_181 = arith.constant 0 : index
    %428 = vector.load %arg6[%c20_180, %c0_181] : memref<81x256xf32, #tpu.memory_space<vmem>>, vector<1x256xf32>
    tpu.vector_store %arg6[%c20_180, %c0_181], %427 {strides = array<i32>} : memref<81x256xf32, #tpu.memory_space<vmem>>, vector<1x256xf32>,
    %c33_i32 = arith.constant 33 : i32
    %429 = tpu.dynamic_rotate %6 by %c33_i32 dim 1 : vector<4x256xf32>, i32 -> vector<4x256xf32>
    %430 = arith.mulf %4, %429 : vector<4x256xf32>
    %cst_182 = arith.constant dense<0.000000e+00> : vector<256xf32>
    %431 = vector.multi_reduction <add>, %430, %cst_182 [0] : vector<4x256xf32> to vector<256xf32>
    %432 = vector.shape_cast %431 : vector<256xf32> to vector<1x256xf32>
    %c2_i32_183 = arith.constant 2 : i32
    %433 = vector.broadcast %c2_i32_183 : i32 to vector<1x256xi32>
    %434 = arith.cmpi sge, %7, %433 : vector<1x256xi32>
    %c18_i32_184 = arith.constant 18 : i32
    %435 = vector.broadcast %c18_i32_184 : i32 to vector<1x256xi32>
    %436 = arith.cmpi slt, %7, %435 : vector<1x256xi32>
    %437 = arith.andi %434, %436 : vector<1x256xi1>
    %c1_i32_185 = arith.constant 1 : i32
    %438 = vector.broadcast %c1_i32_185 : i32 to vector<1x256xi32>
    %439 = arith.cmpi sge, %8, %438 : vector<1x256xi32>
    %440 = arith.andi %437, %439 : vector<1x256xi1>
    %c17_i32_186 = arith.constant 17 : i32
    %441 = vector.broadcast %c17_i32_186 : i32 to vector<1x256xi32>
    %442 = arith.cmpi slt, %8, %441 : vector<1x256xi32>
    %443 = arith.andi %440, %442 : vector<1x256xi1>
    %cst_187 = arith.constant 0.000000e+00 : f32
    %444 = vector.broadcast %cst_187 : f32 to vector<1x256xf32>
    %445 = arith.select %443, %432, %444 : vector<1x256xi1>, vector<1x256xf32>
    %c21 = arith.constant 21 : index
    %c0_188 = arith.constant 0 : index
    %446 = vector.load %arg6[%c21, %c0_188] : memref<81x256xf32, #tpu.memory_space<vmem>>, vector<1x256xf32>
    %447 = arith.addf %446, %445 : vector<1x256xf32>
    %c21_189 = arith.constant 21 : index
    %c0_190 = arith.constant 0 : index
    %448 = vector.load %arg6[%c21_189, %c0_190] : memref<81x256xf32, #tpu.memory_space<vmem>>, vector<1x256xf32>
    tpu.vector_store %arg6[%c21_189, %c0_190], %447 {strides = array<i32>} : memref<81x256xf32, #tpu.memory_space<vmem>>, vector<1x256xf32>,
    %c32_i32 = arith.constant 32 : i32
    %449 = tpu.dynamic_rotate %6 by %c32_i32 dim 1 : vector<4x256xf32>, i32 -> vector<4x256xf32>
    %450 = arith.mulf %4, %449 : vector<4x256xf32>
    %cst_191 = arith.constant dense<0.000000e+00> : vector<256xf32>
    %451 = vector.multi_reduction <add>, %450, %cst_191 [0] : vector<4x256xf32> to vector<256xf32>
    %452 = vector.shape_cast %451 : vector<256xf32> to vector<1x256xf32>
    %c2_i32_192 = arith.constant 2 : i32
    %453 = vector.broadcast %c2_i32_192 : i32 to vector<1x256xi32>
    %454 = arith.cmpi sge, %7, %453 : vector<1x256xi32>
    %c18_i32_193 = arith.constant 18 : i32
    %455 = vector.broadcast %c18_i32_193 : i32 to vector<1x256xi32>
    %456 = arith.cmpi slt, %7, %455 : vector<1x256xi32>
    %457 = arith.andi %454, %456 : vector<1x256xi1>
    %c0_i32_194 = arith.constant 0 : i32
    %458 = vector.broadcast %c0_i32_194 : i32 to vector<1x256xi32>
    %459 = arith.cmpi sge, %8, %458 : vector<1x256xi32>
    %460 = arith.andi %457, %459 : vector<1x256xi1>
    %c16_i32_195 = arith.constant 16 : i32
    %461 = vector.broadcast %c16_i32_195 : i32 to vector<1x256xi32>
    %462 = arith.cmpi slt, %8, %461 : vector<1x256xi32>
    %463 = arith.andi %460, %462 : vector<1x256xi1>
    %cst_196 = arith.constant 0.000000e+00 : f32
    %464 = vector.broadcast %cst_196 : f32 to vector<1x256xf32>
    %465 = arith.select %463, %452, %464 : vector<1x256xi1>, vector<1x256xf32>
    %c22 = arith.constant 22 : index
    %c0_197 = arith.constant 0 : index
    %466 = vector.load %arg6[%c22, %c0_197] : memref<81x256xf32, #tpu.memory_space<vmem>>, vector<1x256xf32>
    %467 = arith.addf %466, %465 : vector<1x256xf32>
    %c22_198 = arith.constant 22 : index
    %c0_199 = arith.constant 0 : index
    %468 = vector.load %arg6[%c22_198, %c0_199] : memref<81x256xf32, #tpu.memory_space<vmem>>, vector<1x256xf32>
    tpu.vector_store %arg6[%c22_198, %c0_199], %467 {strides = array<i32>} : memref<81x256xf32, #tpu.memory_space<vmem>>, vector<1x256xf32>,
    %c31_i32 = arith.constant 31 : i32
    %469 = tpu.dynamic_rotate %6 by %c31_i32 dim 1 : vector<4x256xf32>, i32 -> vector<4x256xf32>
    %470 = arith.mulf %4, %469 : vector<4x256xf32>
    %cst_200 = arith.constant dense<0.000000e+00> : vector<256xf32>
    %471 = vector.multi_reduction <add>, %470, %cst_200 [0] : vector<4x256xf32> to vector<256xf32>
    %472 = vector.shape_cast %471 : vector<256xf32> to vector<1x256xf32>
    %c2_i32_201 = arith.constant 2 : i32
    %473 = vector.broadcast %c2_i32_201 : i32 to vector<1x256xi32>
    %474 = arith.cmpi sge, %7, %473 : vector<1x256xi32>
    %c18_i32_202 = arith.constant 18 : i32
    %475 = vector.broadcast %c18_i32_202 : i32 to vector<1x256xi32>
    %476 = arith.cmpi slt, %7, %475 : vector<1x256xi32>
    %477 = arith.andi %474, %476 : vector<1x256xi1>
    %c-1_i32_203 = arith.constant -1 : i32
    %478 = vector.broadcast %c-1_i32_203 : i32 to vector<1x256xi32>
    %479 = arith.cmpi sge, %8, %478 : vector<1x256xi32>
    %480 = arith.andi %477, %479 : vector<1x256xi1>
    %c15_i32_204 = arith.constant 15 : i32
    %481 = vector.broadcast %c15_i32_204 : i32 to vector<1x256xi32>
    %482 = arith.cmpi slt, %8, %481 : vector<1x256xi32>
    %483 = arith.andi %480, %482 : vector<1x256xi1>
    %cst_205 = arith.constant 0.000000e+00 : f32
    %484 = vector.broadcast %cst_205 : f32 to vector<1x256xf32>
    %485 = arith.select %483, %472, %484 : vector<1x256xi1>, vector<1x256xf32>
    %c23 = arith.constant 23 : index
    %c0_206 = arith.constant 0 : index
    %486 = vector.load %arg6[%c23, %c0_206] : memref<81x256xf32, #tpu.memory_space<vmem>>, vector<1x256xf32>
    %487 = arith.addf %486, %485 : vector<1x256xf32>
    %c23_207 = arith.constant 23 : index
    %c0_208 = arith.constant 0 : index
    %488 = vector.load %arg6[%c23_207, %c0_208] : memref<81x256xf32, #tpu.memory_space<vmem>>, vector<1x256xf32>
    tpu.vector_store %arg6[%c23_207, %c0_208], %487 {strides = array<i32>} : memref<81x256xf32, #tpu.memory_space<vmem>>, vector<1x256xf32>,
    %c30_i32 = arith.constant 30 : i32
    %489 = tpu.dynamic_rotate %6 by %c30_i32 dim 1 : vector<4x256xf32>, i32 -> vector<4x256xf32>
    %490 = arith.mulf %4, %489 : vector<4x256xf32>
    %cst_209 = arith.constant dense<0.000000e+00> : vector<256xf32>
    %491 = vector.multi_reduction <add>, %490, %cst_209 [0] : vector<4x256xf32> to vector<256xf32>
    %492 = vector.shape_cast %491 : vector<256xf32> to vector<1x256xf32>
    %c2_i32_210 = arith.constant 2 : i32
    %493 = vector.broadcast %c2_i32_210 : i32 to vector<1x256xi32>
    %494 = arith.cmpi sge, %7, %493 : vector<1x256xi32>
    %c18_i32_211 = arith.constant 18 : i32
    %495 = vector.broadcast %c18_i32_211 : i32 to vector<1x256xi32>
    %496 = arith.cmpi slt, %7, %495 : vector<1x256xi32>
    %497 = arith.andi %494, %496 : vector<1x256xi1>
    %c-2_i32_212 = arith.constant -2 : i32
    %498 = vector.broadcast %c-2_i32_212 : i32 to vector<1x256xi32>
    %499 = arith.cmpi sge, %8, %498 : vector<1x256xi32>
    %500 = arith.andi %497, %499 : vector<1x256xi1>
    %c14_i32_213 = arith.constant 14 : i32
    %501 = vector.broadcast %c14_i32_213 : i32 to vector<1x256xi32>
    %502 = arith.cmpi slt, %8, %501 : vector<1x256xi32>
    %503 = arith.andi %500, %502 : vector<1x256xi1>
    %cst_214 = arith.constant 0.000000e+00 : f32
    %504 = vector.broadcast %cst_214 : f32 to vector<1x256xf32>
    %505 = arith.select %503, %492, %504 : vector<1x256xi1>, vector<1x256xf32>
    %c24 = arith.constant 24 : index
    %c0_215 = arith.constant 0 : index
    %506 = vector.load %arg6[%c24, %c0_215] : memref<81x256xf32, #tpu.memory_space<vmem>>, vector<1x256xf32>
    %507 = arith.addf %506, %505 : vector<1x256xf32>
    %c24_216 = arith.constant 24 : index
    %c0_217 = arith.constant 0 : index
    %508 = vector.load %arg6[%c24_216, %c0_217] : memref<81x256xf32, #tpu.memory_space<vmem>>, vector<1x256xf32>
    tpu.vector_store %arg6[%c24_216, %c0_217], %507 {strides = array<i32>} : memref<81x256xf32, #tpu.memory_space<vmem>>, vector<1x256xf32>,
    %c29_i32 = arith.constant 29 : i32
    %509 = tpu.dynamic_rotate %6 by %c29_i32 dim 1 : vector<4x256xf32>, i32 -> vector<4x256xf32>
    %510 = arith.mulf %4, %509 : vector<4x256xf32>
    %cst_218 = arith.constant dense<0.000000e+00> : vector<256xf32>
    %511 = vector.multi_reduction <add>, %510, %cst_218 [0] : vector<4x256xf32> to vector<256xf32>
    %512 = vector.shape_cast %511 : vector<256xf32> to vector<1x256xf32>
    %c2_i32_219 = arith.constant 2 : i32
    %513 = vector.broadcast %c2_i32_219 : i32 to vector<1x256xi32>
    %514 = arith.cmpi sge, %7, %513 : vector<1x256xi32>
    %c18_i32_220 = arith.constant 18 : i32
    %515 = vector.broadcast %c18_i32_220 : i32 to vector<1x256xi32>
    %516 = arith.cmpi slt, %7, %515 : vector<1x256xi32>
    %517 = arith.andi %514, %516 : vector<1x256xi1>
    %c-3_i32_221 = arith.constant -3 : i32
    %518 = vector.broadcast %c-3_i32_221 : i32 to vector<1x256xi32>
    %519 = arith.cmpi sge, %8, %518 : vector<1x256xi32>
    %520 = arith.andi %517, %519 : vector<1x256xi1>
    %c13_i32_222 = arith.constant 13 : i32
    %521 = vector.broadcast %c13_i32_222 : i32 to vector<1x256xi32>
    %522 = arith.cmpi slt, %8, %521 : vector<1x256xi32>
    %523 = arith.andi %520, %522 : vector<1x256xi1>
    %cst_223 = arith.constant 0.000000e+00 : f32
    %524 = vector.broadcast %cst_223 : f32 to vector<1x256xf32>
    %525 = arith.select %523, %512, %524 : vector<1x256xi1>, vector<1x256xf32>
    %c25 = arith.constant 25 : index
    %c0_224 = arith.constant 0 : index
    %526 = vector.load %arg6[%c25, %c0_224] : memref<81x256xf32, #tpu.memory_space<vmem>>, vector<1x256xf32>
    %527 = arith.addf %526, %525 : vector<1x256xf32>
    %c25_225 = arith.constant 25 : index
    %c0_226 = arith.constant 0 : index
    %528 = vector.load %arg6[%c25_225, %c0_226] : memref<81x256xf32, #tpu.memory_space<vmem>>, vector<1x256xf32>
    tpu.vector_store %arg6[%c25_225, %c0_226], %527 {strides = array<i32>} : memref<81x256xf32, #tpu.memory_space<vmem>>, vector<1x256xf32>,
    %c28_i32 = arith.constant 28 : i32
    %529 = tpu.dynamic_rotate %6 by %c28_i32 dim 1 : vector<4x256xf32>, i32 -> vector<4x256xf32>
    %530 = arith.mulf %4, %529 : vector<4x256xf32>
    %cst_227 = arith.constant dense<0.000000e+00> : vector<256xf32>
    %531 = vector.multi_reduction <add>, %530, %cst_227 [0] : vector<4x256xf32> to vector<256xf32>
    %532 = vector.shape_cast %531 : vector<256xf32> to vector<1x256xf32>
    %c2_i32_228 = arith.constant 2 : i32
    %533 = vector.broadcast %c2_i32_228 : i32 to vector<1x256xi32>
    %534 = arith.cmpi sge, %7, %533 : vector<1x256xi32>
    %c18_i32_229 = arith.constant 18 : i32
    %535 = vector.broadcast %c18_i32_229 : i32 to vector<1x256xi32>
    %536 = arith.cmpi slt, %7, %535 : vector<1x256xi32>
    %537 = arith.andi %534, %536 : vector<1x256xi1>
    %c-4_i32_230 = arith.constant -4 : i32
    %538 = vector.broadcast %c-4_i32_230 : i32 to vector<1x256xi32>
    %539 = arith.cmpi sge, %8, %538 : vector<1x256xi32>
    %540 = arith.andi %537, %539 : vector<1x256xi1>
    %c12_i32_231 = arith.constant 12 : i32
    %541 = vector.broadcast %c12_i32_231 : i32 to vector<1x256xi32>
    %542 = arith.cmpi slt, %8, %541 : vector<1x256xi32>
    %543 = arith.andi %540, %542 : vector<1x256xi1>
    %cst_232 = arith.constant 0.000000e+00 : f32
    %544 = vector.broadcast %cst_232 : f32 to vector<1x256xf32>
    %545 = arith.select %543, %532, %544 : vector<1x256xi1>, vector<1x256xf32>
    %c26 = arith.constant 26 : index
    %c0_233 = arith.constant 0 : index
    %546 = vector.load %arg6[%c26, %c0_233] : memref<81x256xf32, #tpu.memory_space<vmem>>, vector<1x256xf32>
    %547 = arith.addf %546, %545 : vector<1x256xf32>
    %c26_234 = arith.constant 26 : index
    %c0_235 = arith.constant 0 : index
    %548 = vector.load %arg6[%c26_234, %c0_235] : memref<81x256xf32, #tpu.memory_space<vmem>>, vector<1x256xf32>
    tpu.vector_store %arg6[%c26_234, %c0_235], %547 {strides = array<i32>} : memref<81x256xf32, #tpu.memory_space<vmem>>, vector<1x256xf32>,
    %c20_i32_236 = arith.constant 20 : i32
    %549 = tpu.dynamic_rotate %6 by %c20_i32_236 dim 1 : vector<4x256xf32>, i32 -> vector<4x256xf32>
    %550 = arith.mulf %4, %549 : vector<4x256xf32>
    %cst_237 = arith.constant dense<0.000000e+00> : vector<256xf32>
    %551 = vector.multi_reduction <add>, %550, %cst_237 [0] : vector<4x256xf32> to vector<256xf32>
    %552 = vector.shape_cast %551 : vector<256xf32> to vector<1x256xf32>
    %c1_i32_238 = arith.constant 1 : i32
    %553 = vector.broadcast %c1_i32_238 : i32 to vector<1x256xi32>
    %554 = arith.cmpi sge, %7, %553 : vector<1x256xi32>
    %c17_i32_239 = arith.constant 17 : i32
    %555 = vector.broadcast %c17_i32_239 : i32 to vector<1x256xi32>
    %556 = arith.cmpi slt, %7, %555 : vector<1x256xi32>
    %557 = arith.andi %554, %556 : vector<1x256xi1>
    %c4_i32_240 = arith.constant 4 : i32
    %558 = vector.broadcast %c4_i32_240 : i32 to vector<1x256xi32>
    %559 = arith.cmpi sge, %8, %558 : vector<1x256xi32>
    %560 = arith.andi %557, %559 : vector<1x256xi1>
    %c20_i32_241 = arith.constant 20 : i32
    %561 = vector.broadcast %c20_i32_241 : i32 to vector<1x256xi32>
    %562 = arith.cmpi slt, %8, %561 : vector<1x256xi32>
    %563 = arith.andi %560, %562 : vector<1x256xi1>
    %cst_242 = arith.constant 0.000000e+00 : f32
    %564 = vector.broadcast %cst_242 : f32 to vector<1x256xf32>
    %565 = arith.select %563, %552, %564 : vector<1x256xi1>, vector<1x256xf32>
    %c27 = arith.constant 27 : index
    %c0_243 = arith.constant 0 : index
    %566 = vector.load %arg6[%c27, %c0_243] : memref<81x256xf32, #tpu.memory_space<vmem>>, vector<1x256xf32>
    %567 = arith.addf %566, %565 : vector<1x256xf32>
    %c27_244 = arith.constant 27 : index
    %c0_245 = arith.constant 0 : index
    %568 = vector.load %arg6[%c27_244, %c0_245] : memref<81x256xf32, #tpu.memory_space<vmem>>, vector<1x256xf32>
    tpu.vector_store %arg6[%c27_244, %c0_245], %567 {strides = array<i32>} : memref<81x256xf32, #tpu.memory_space<vmem>>, vector<1x256xf32>,
    %c19_i32_246 = arith.constant 19 : i32
    %569 = tpu.dynamic_rotate %6 by %c19_i32_246 dim 1 : vector<4x256xf32>, i32 -> vector<4x256xf32>
    %570 = arith.mulf %4, %569 : vector<4x256xf32>
    %cst_247 = arith.constant dense<0.000000e+00> : vector<256xf32>
    %571 = vector.multi_reduction <add>, %570, %cst_247 [0] : vector<4x256xf32> to vector<256xf32>
    %572 = vector.shape_cast %571 : vector<256xf32> to vector<1x256xf32>
    %c1_i32_248 = arith.constant 1 : i32
    %573 = vector.broadcast %c1_i32_248 : i32 to vector<1x256xi32>
    %574 = arith.cmpi sge, %7, %573 : vector<1x256xi32>
    %c17_i32_249 = arith.constant 17 : i32
    %575 = vector.broadcast %c17_i32_249 : i32 to vector<1x256xi32>
    %576 = arith.cmpi slt, %7, %575 : vector<1x256xi32>
    %577 = arith.andi %574, %576 : vector<1x256xi1>
    %c3_i32_250 = arith.constant 3 : i32
    %578 = vector.broadcast %c3_i32_250 : i32 to vector<1x256xi32>
    %579 = arith.cmpi sge, %8, %578 : vector<1x256xi32>
    %580 = arith.andi %577, %579 : vector<1x256xi1>
    %c19_i32_251 = arith.constant 19 : i32
    %581 = vector.broadcast %c19_i32_251 : i32 to vector<1x256xi32>
    %582 = arith.cmpi slt, %8, %581 : vector<1x256xi32>
    %583 = arith.andi %580, %582 : vector<1x256xi1>
    %cst_252 = arith.constant 0.000000e+00 : f32
    %584 = vector.broadcast %cst_252 : f32 to vector<1x256xf32>
    %585 = arith.select %583, %572, %584 : vector<1x256xi1>, vector<1x256xf32>
    %c28 = arith.constant 28 : index
    %c0_253 = arith.constant 0 : index
    %586 = vector.load %arg6[%c28, %c0_253] : memref<81x256xf32, #tpu.memory_space<vmem>>, vector<1x256xf32>
    %587 = arith.addf %586, %585 : vector<1x256xf32>
    %c28_254 = arith.constant 28 : index
    %c0_255 = arith.constant 0 : index
    %588 = vector.load %arg6[%c28_254, %c0_255] : memref<81x256xf32, #tpu.memory_space<vmem>>, vector<1x256xf32>
    tpu.vector_store %arg6[%c28_254, %c0_255], %587 {strides = array<i32>} : memref<81x256xf32, #tpu.memory_space<vmem>>, vector<1x256xf32>,
    %c18_i32_256 = arith.constant 18 : i32
    %589 = tpu.dynamic_rotate %6 by %c18_i32_256 dim 1 : vector<4x256xf32>, i32 -> vector<4x256xf32>
    %590 = arith.mulf %4, %589 : vector<4x256xf32>
    %cst_257 = arith.constant dense<0.000000e+00> : vector<256xf32>
    %591 = vector.multi_reduction <add>, %590, %cst_257 [0] : vector<4x256xf32> to vector<256xf32>
    %592 = vector.shape_cast %591 : vector<256xf32> to vector<1x256xf32>
    %c1_i32_258 = arith.constant 1 : i32
    %593 = vector.broadcast %c1_i32_258 : i32 to vector<1x256xi32>
    %594 = arith.cmpi sge, %7, %593 : vector<1x256xi32>
    %c17_i32_259 = arith.constant 17 : i32
    %595 = vector.broadcast %c17_i32_259 : i32 to vector<1x256xi32>
    %596 = arith.cmpi slt, %7, %595 : vector<1x256xi32>
    %597 = arith.andi %594, %596 : vector<1x256xi1>
    %c2_i32_260 = arith.constant 2 : i32
    %598 = vector.broadcast %c2_i32_260 : i32 to vector<1x256xi32>
    %599 = arith.cmpi sge, %8, %598 : vector<1x256xi32>
    %600 = arith.andi %597, %599 : vector<1x256xi1>
    %c18_i32_261 = arith.constant 18 : i32
    %601 = vector.broadcast %c18_i32_261 : i32 to vector<1x256xi32>
    %602 = arith.cmpi slt, %8, %601 : vector<1x256xi32>
    %603 = arith.andi %600, %602 : vector<1x256xi1>
    %cst_262 = arith.constant 0.000000e+00 : f32
    %604 = vector.broadcast %cst_262 : f32 to vector<1x256xf32>
    %605 = arith.select %603, %592, %604 : vector<1x256xi1>, vector<1x256xf32>
    %c29 = arith.constant 29 : index
    %c0_263 = arith.constant 0 : index
    %606 = vector.load %arg6[%c29, %c0_263] : memref<81x256xf32, #tpu.memory_space<vmem>>, vector<1x256xf32>
    %607 = arith.addf %606, %605 : vector<1x256xf32>
    %c29_264 = arith.constant 29 : index
    %c0_265 = arith.constant 0 : index
    %608 = vector.load %arg6[%c29_264, %c0_265] : memref<81x256xf32, #tpu.memory_space<vmem>>, vector<1x256xf32>
    tpu.vector_store %arg6[%c29_264, %c0_265], %607 {strides = array<i32>} : memref<81x256xf32, #tpu.memory_space<vmem>>, vector<1x256xf32>,
    %c17_i32_266 = arith.constant 17 : i32
    %609 = tpu.dynamic_rotate %6 by %c17_i32_266 dim 1 : vector<4x256xf32>, i32 -> vector<4x256xf32>
    %610 = arith.mulf %4, %609 : vector<4x256xf32>
    %cst_267 = arith.constant dense<0.000000e+00> : vector<256xf32>
    %611 = vector.multi_reduction <add>, %610, %cst_267 [0] : vector<4x256xf32> to vector<256xf32>
    %612 = vector.shape_cast %611 : vector<256xf32> to vector<1x256xf32>
    %c1_i32_268 = arith.constant 1 : i32
    %613 = vector.broadcast %c1_i32_268 : i32 to vector<1x256xi32>
    %614 = arith.cmpi sge, %7, %613 : vector<1x256xi32>
    %c17_i32_269 = arith.constant 17 : i32
    %615 = vector.broadcast %c17_i32_269 : i32 to vector<1x256xi32>
    %616 = arith.cmpi slt, %7, %615 : vector<1x256xi32>
    %617 = arith.andi %614, %616 : vector<1x256xi1>
    %c1_i32_270 = arith.constant 1 : i32
    %618 = vector.broadcast %c1_i32_270 : i32 to vector<1x256xi32>
    %619 = arith.cmpi sge, %8, %618 : vector<1x256xi32>
    %620 = arith.andi %617, %619 : vector<1x256xi1>
    %c17_i32_271 = arith.constant 17 : i32
    %621 = vector.broadcast %c17_i32_271 : i32 to vector<1x256xi32>
    %622 = arith.cmpi slt, %8, %621 : vector<1x256xi32>
    %623 = arith.andi %620, %622 : vector<1x256xi1>
    %cst_272 = arith.constant 0.000000e+00 : f32
    %624 = vector.broadcast %cst_272 : f32 to vector<1x256xf32>
    %625 = arith.select %623, %612, %624 : vector<1x256xi1>, vector<1x256xf32>
    %c30 = arith.constant 30 : index
    %c0_273 = arith.constant 0 : index
    %626 = vector.load %arg6[%c30, %c0_273] : memref<81x256xf32, #tpu.memory_space<vmem>>, vector<1x256xf32>
    %627 = arith.addf %626, %625 : vector<1x256xf32>
    %c30_274 = arith.constant 30 : index
    %c0_275 = arith.constant 0 : index
    %628 = vector.load %arg6[%c30_274, %c0_275] : memref<81x256xf32, #tpu.memory_space<vmem>>, vector<1x256xf32>
    tpu.vector_store %arg6[%c30_274, %c0_275], %627 {strides = array<i32>} : memref<81x256xf32, #tpu.memory_space<vmem>>, vector<1x256xf32>,
    %c16_i32_276 = arith.constant 16 : i32
    %629 = tpu.dynamic_rotate %6 by %c16_i32_276 dim 1 : vector<4x256xf32>, i32 -> vector<4x256xf32>
    %630 = arith.mulf %4, %629 : vector<4x256xf32>
    %cst_277 = arith.constant dense<0.000000e+00> : vector<256xf32>
    %631 = vector.multi_reduction <add>, %630, %cst_277 [0] : vector<4x256xf32> to vector<256xf32>
    %632 = vector.shape_cast %631 : vector<256xf32> to vector<1x256xf32>
    %c1_i32_278 = arith.constant 1 : i32
    %633 = vector.broadcast %c1_i32_278 : i32 to vector<1x256xi32>
    %634 = arith.cmpi sge, %7, %633 : vector<1x256xi32>
    %c17_i32_279 = arith.constant 17 : i32
    %635 = vector.broadcast %c17_i32_279 : i32 to vector<1x256xi32>
    %636 = arith.cmpi slt, %7, %635 : vector<1x256xi32>
    %637 = arith.andi %634, %636 : vector<1x256xi1>
    %c0_i32_280 = arith.constant 0 : i32
    %638 = vector.broadcast %c0_i32_280 : i32 to vector<1x256xi32>
    %639 = arith.cmpi sge, %8, %638 : vector<1x256xi32>
    %640 = arith.andi %637, %639 : vector<1x256xi1>
    %c16_i32_281 = arith.constant 16 : i32
    %641 = vector.broadcast %c16_i32_281 : i32 to vector<1x256xi32>
    %642 = arith.cmpi slt, %8, %641 : vector<1x256xi32>
    %643 = arith.andi %640, %642 : vector<1x256xi1>
    %cst_282 = arith.constant 0.000000e+00 : f32
    %644 = vector.broadcast %cst_282 : f32 to vector<1x256xf32>
    %645 = arith.select %643, %632, %644 : vector<1x256xi1>, vector<1x256xf32>
    %c31 = arith.constant 31 : index
    %c0_283 = arith.constant 0 : index
    %646 = vector.load %arg6[%c31, %c0_283] : memref<81x256xf32, #tpu.memory_space<vmem>>, vector<1x256xf32>
    %647 = arith.addf %646, %645 : vector<1x256xf32>
    %c31_284 = arith.constant 31 : index
    %c0_285 = arith.constant 0 : index
    %648 = vector.load %arg6[%c31_284, %c0_285] : memref<81x256xf32, #tpu.memory_space<vmem>>, vector<1x256xf32>
    tpu.vector_store %arg6[%c31_284, %c0_285], %647 {strides = array<i32>} : memref<81x256xf32, #tpu.memory_space<vmem>>, vector<1x256xf32>,
    %c15_i32_286 = arith.constant 15 : i32
    %649 = tpu.dynamic_rotate %6 by %c15_i32_286 dim 1 : vector<4x256xf32>, i32 -> vector<4x256xf32>
    %650 = arith.mulf %4, %649 : vector<4x256xf32>
    %cst_287 = arith.constant dense<0.000000e+00> : vector<256xf32>
    %651 = vector.multi_reduction <add>, %650, %cst_287 [0] : vector<4x256xf32> to vector<256xf32>
    %652 = vector.shape_cast %651 : vector<256xf32> to vector<1x256xf32>
    %c1_i32_288 = arith.constant 1 : i32
    %653 = vector.broadcast %c1_i32_288 : i32 to vector<1x256xi32>
    %654 = arith.cmpi sge, %7, %653 : vector<1x256xi32>
    %c17_i32_289 = arith.constant 17 : i32
    %655 = vector.broadcast %c17_i32_289 : i32 to vector<1x256xi32>
    %656 = arith.cmpi slt, %7, %655 : vector<1x256xi32>
    %657 = arith.andi %654, %656 : vector<1x256xi1>
    %c-1_i32_290 = arith.constant -1 : i32
    %658 = vector.broadcast %c-1_i32_290 : i32 to vector<1x256xi32>
    %659 = arith.cmpi sge, %8, %658 : vector<1x256xi32>
    %660 = arith.andi %657, %659 : vector<1x256xi1>
    %c15_i32_291 = arith.constant 15 : i32
    %661 = vector.broadcast %c15_i32_291 : i32 to vector<1x256xi32>
    %662 = arith.cmpi slt, %8, %661 : vector<1x256xi32>
    %663 = arith.andi %660, %662 : vector<1x256xi1>
    %cst_292 = arith.constant 0.000000e+00 : f32
    %664 = vector.broadcast %cst_292 : f32 to vector<1x256xf32>
    %665 = arith.select %663, %652, %664 : vector<1x256xi1>, vector<1x256xf32>
    %c32 = arith.constant 32 : index
    %c0_293 = arith.constant 0 : index
    %666 = vector.load %arg6[%c32, %c0_293] : memref<81x256xf32, #tpu.memory_space<vmem>>, vector<1x256xf32>
    %667 = arith.addf %666, %665 : vector<1x256xf32>
    %c32_294 = arith.constant 32 : index
    %c0_295 = arith.constant 0 : index
    %668 = vector.load %arg6[%c32_294, %c0_295] : memref<81x256xf32, #tpu.memory_space<vmem>>, vector<1x256xf32>
    tpu.vector_store %arg6[%c32_294, %c0_295], %667 {strides = array<i32>} : memref<81x256xf32, #tpu.memory_space<vmem>>, vector<1x256xf32>,
    %c14_i32_296 = arith.constant 14 : i32
    %669 = tpu.dynamic_rotate %6 by %c14_i32_296 dim 1 : vector<4x256xf32>, i32 -> vector<4x256xf32>
    %670 = arith.mulf %4, %669 : vector<4x256xf32>
    %cst_297 = arith.constant dense<0.000000e+00> : vector<256xf32>
    %671 = vector.multi_reduction <add>, %670, %cst_297 [0] : vector<4x256xf32> to vector<256xf32>
    %672 = vector.shape_cast %671 : vector<256xf32> to vector<1x256xf32>
    %c1_i32_298 = arith.constant 1 : i32
    %673 = vector.broadcast %c1_i32_298 : i32 to vector<1x256xi32>
    %674 = arith.cmpi sge, %7, %673 : vector<1x256xi32>
    %c17_i32_299 = arith.constant 17 : i32
    %675 = vector.broadcast %c17_i32_299 : i32 to vector<1x256xi32>
    %676 = arith.cmpi slt, %7, %675 : vector<1x256xi32>
    %677 = arith.andi %674, %676 : vector<1x256xi1>
    %c-2_i32_300 = arith.constant -2 : i32
    %678 = vector.broadcast %c-2_i32_300 : i32 to vector<1x256xi32>
    %679 = arith.cmpi sge, %8, %678 : vector<1x256xi32>
    %680 = arith.andi %677, %679 : vector<1x256xi1>
    %c14_i32_301 = arith.constant 14 : i32
    %681 = vector.broadcast %c14_i32_301 : i32 to vector<1x256xi32>
    %682 = arith.cmpi slt, %8, %681 : vector<1x256xi32>
    %683 = arith.andi %680, %682 : vector<1x256xi1>
    %cst_302 = arith.constant 0.000000e+00 : f32
    %684 = vector.broadcast %cst_302 : f32 to vector<1x256xf32>
    %685 = arith.select %683, %672, %684 : vector<1x256xi1>, vector<1x256xf32>
    %c33 = arith.constant 33 : index
    %c0_303 = arith.constant 0 : index
    %686 = vector.load %arg6[%c33, %c0_303] : memref<81x256xf32, #tpu.memory_space<vmem>>, vector<1x256xf32>
    %687 = arith.addf %686, %685 : vector<1x256xf32>
    %c33_304 = arith.constant 33 : index
    %c0_305 = arith.constant 0 : index
    %688 = vector.load %arg6[%c33_304, %c0_305] : memref<81x256xf32, #tpu.memory_space<vmem>>, vector<1x256xf32>
    tpu.vector_store %arg6[%c33_304, %c0_305], %687 {strides = array<i32>} : memref<81x256xf32, #tpu.memory_space<vmem>>, vector<1x256xf32>,
    %c13_i32_306 = arith.constant 13 : i32
    %689 = tpu.dynamic_rotate %6 by %c13_i32_306 dim 1 : vector<4x256xf32>, i32 -> vector<4x256xf32>
    %690 = arith.mulf %4, %689 : vector<4x256xf32>
    %cst_307 = arith.constant dense<0.000000e+00> : vector<256xf32>
    %691 = vector.multi_reduction <add>, %690, %cst_307 [0] : vector<4x256xf32> to vector<256xf32>
    %692 = vector.shape_cast %691 : vector<256xf32> to vector<1x256xf32>
    %c1_i32_308 = arith.constant 1 : i32
    %693 = vector.broadcast %c1_i32_308 : i32 to vector<1x256xi32>
    %694 = arith.cmpi sge, %7, %693 : vector<1x256xi32>
    %c17_i32_309 = arith.constant 17 : i32
    %695 = vector.broadcast %c17_i32_309 : i32 to vector<1x256xi32>
    %696 = arith.cmpi slt, %7, %695 : vector<1x256xi32>
    %697 = arith.andi %694, %696 : vector<1x256xi1>
    %c-3_i32_310 = arith.constant -3 : i32
    %698 = vector.broadcast %c-3_i32_310 : i32 to vector<1x256xi32>
    %699 = arith.cmpi sge, %8, %698 : vector<1x256xi32>
    %700 = arith.andi %697, %699 : vector<1x256xi1>
    %c13_i32_311 = arith.constant 13 : i32
    %701 = vector.broadcast %c13_i32_311 : i32 to vector<1x256xi32>
    %702 = arith.cmpi slt, %8, %701 : vector<1x256xi32>
    %703 = arith.andi %700, %702 : vector<1x256xi1>
    %cst_312 = arith.constant 0.000000e+00 : f32
    %704 = vector.broadcast %cst_312 : f32 to vector<1x256xf32>
    %705 = arith.select %703, %692, %704 : vector<1x256xi1>, vector<1x256xf32>
    %c34 = arith.constant 34 : index
    %c0_313 = arith.constant 0 : index
    %706 = vector.load %arg6[%c34, %c0_313] : memref<81x256xf32, #tpu.memory_space<vmem>>, vector<1x256xf32>
    %707 = arith.addf %706, %705 : vector<1x256xf32>
    %c34_314 = arith.constant 34 : index
    %c0_315 = arith.constant 0 : index
    %708 = vector.load %arg6[%c34_314, %c0_315] : memref<81x256xf32, #tpu.memory_space<vmem>>, vector<1x256xf32>
    tpu.vector_store %arg6[%c34_314, %c0_315], %707 {strides = array<i32>} : memref<81x256xf32, #tpu.memory_space<vmem>>, vector<1x256xf32>,
    %c12_i32_316 = arith.constant 12 : i32
    %709 = tpu.dynamic_rotate %6 by %c12_i32_316 dim 1 : vector<4x256xf32>, i32 -> vector<4x256xf32>
    %710 = arith.mulf %4, %709 : vector<4x256xf32>
    %cst_317 = arith.constant dense<0.000000e+00> : vector<256xf32>
    %711 = vector.multi_reduction <add>, %710, %cst_317 [0] : vector<4x256xf32> to vector<256xf32>
    %712 = vector.shape_cast %711 : vector<256xf32> to vector<1x256xf32>
    %c1_i32_318 = arith.constant 1 : i32
    %713 = vector.broadcast %c1_i32_318 : i32 to vector<1x256xi32>
    %714 = arith.cmpi sge, %7, %713 : vector<1x256xi32>
    %c17_i32_319 = arith.constant 17 : i32
    %715 = vector.broadcast %c17_i32_319 : i32 to vector<1x256xi32>
    %716 = arith.cmpi slt, %7, %715 : vector<1x256xi32>
    %717 = arith.andi %714, %716 : vector<1x256xi1>
    %c-4_i32_320 = arith.constant -4 : i32
    %718 = vector.broadcast %c-4_i32_320 : i32 to vector<1x256xi32>
    %719 = arith.cmpi sge, %8, %718 : vector<1x256xi32>
    %720 = arith.andi %717, %719 : vector<1x256xi1>
    %c12_i32_321 = arith.constant 12 : i32
    %721 = vector.broadcast %c12_i32_321 : i32 to vector<1x256xi32>
    %722 = arith.cmpi slt, %8, %721 : vector<1x256xi32>
    %723 = arith.andi %720, %722 : vector<1x256xi1>
    %cst_322 = arith.constant 0.000000e+00 : f32
    %724 = vector.broadcast %cst_322 : f32 to vector<1x256xf32>
    %725 = arith.select %723, %712, %724 : vector<1x256xi1>, vector<1x256xf32>
    %c35 = arith.constant 35 : index
    %c0_323 = arith.constant 0 : index
    %726 = vector.load %arg6[%c35, %c0_323] : memref<81x256xf32, #tpu.memory_space<vmem>>, vector<1x256xf32>
    %727 = arith.addf %726, %725 : vector<1x256xf32>
    %c35_324 = arith.constant 35 : index
    %c0_325 = arith.constant 0 : index
    %728 = vector.load %arg6[%c35_324, %c0_325] : memref<81x256xf32, #tpu.memory_space<vmem>>, vector<1x256xf32>
    tpu.vector_store %arg6[%c35_324, %c0_325], %727 {strides = array<i32>} : memref<81x256xf32, #tpu.memory_space<vmem>>, vector<1x256xf32>,
    %c4_i32_326 = arith.constant 4 : i32
    %729 = tpu.dynamic_rotate %6 by %c4_i32_326 dim 1 : vector<4x256xf32>, i32 -> vector<4x256xf32>
    %730 = arith.mulf %4, %729 : vector<4x256xf32>
    %cst_327 = arith.constant dense<0.000000e+00> : vector<256xf32>
    %731 = vector.multi_reduction <add>, %730, %cst_327 [0] : vector<4x256xf32> to vector<256xf32>
    %732 = vector.shape_cast %731 : vector<256xf32> to vector<1x256xf32>
    %c0_i32_328 = arith.constant 0 : i32
    %733 = vector.broadcast %c0_i32_328 : i32 to vector<1x256xi32>
    %734 = arith.cmpi sge, %7, %733 : vector<1x256xi32>
    %c16_i32_329 = arith.constant 16 : i32
    %735 = vector.broadcast %c16_i32_329 : i32 to vector<1x256xi32>
    %736 = arith.cmpi slt, %7, %735 : vector<1x256xi32>
    %737 = arith.andi %734, %736 : vector<1x256xi1>
    %c4_i32_330 = arith.constant 4 : i32
    %738 = vector.broadcast %c4_i32_330 : i32 to vector<1x256xi32>
    %739 = arith.cmpi sge, %8, %738 : vector<1x256xi32>
    %740 = arith.andi %737, %739 : vector<1x256xi1>
    %c20_i32_331 = arith.constant 20 : i32
    %741 = vector.broadcast %c20_i32_331 : i32 to vector<1x256xi32>
    %742 = arith.cmpi slt, %8, %741 : vector<1x256xi32>
    %743 = arith.andi %740, %742 : vector<1x256xi1>
    %cst_332 = arith.constant 0.000000e+00 : f32
    %744 = vector.broadcast %cst_332 : f32 to vector<1x256xf32>
    %745 = arith.select %743, %732, %744 : vector<1x256xi1>, vector<1x256xf32>
    %c36 = arith.constant 36 : index
    %c0_333 = arith.constant 0 : index
    %746 = vector.load %arg6[%c36, %c0_333] : memref<81x256xf32, #tpu.memory_space<vmem>>, vector<1x256xf32>
    %747 = arith.addf %746, %745 : vector<1x256xf32>
    %c36_334 = arith.constant 36 : index
    %c0_335 = arith.constant 0 : index
    %748 = vector.load %arg6[%c36_334, %c0_335] : memref<81x256xf32, #tpu.memory_space<vmem>>, vector<1x256xf32>
    tpu.vector_store %arg6[%c36_334, %c0_335], %747 {strides = array<i32>} : memref<81x256xf32, #tpu.memory_space<vmem>>, vector<1x256xf32>,
    %c3_i32_336 = arith.constant 3 : i32
    %749 = tpu.dynamic_rotate %6 by %c3_i32_336 dim 1 : vector<4x256xf32>, i32 -> vector<4x256xf32>
    %750 = arith.mulf %4, %749 : vector<4x256xf32>
    %cst_337 = arith.constant dense<0.000000e+00> : vector<256xf32>
    %751 = vector.multi_reduction <add>, %750, %cst_337 [0] : vector<4x256xf32> to vector<256xf32>
    %752 = vector.shape_cast %751 : vector<256xf32> to vector<1x256xf32>
    %c0_i32_338 = arith.constant 0 : i32
    %753 = vector.broadcast %c0_i32_338 : i32 to vector<1x256xi32>
    %754 = arith.cmpi sge, %7, %753 : vector<1x256xi32>
    %c16_i32_339 = arith.constant 16 : i32
    %755 = vector.broadcast %c16_i32_339 : i32 to vector<1x256xi32>
    %756 = arith.cmpi slt, %7, %755 : vector<1x256xi32>
    %757 = arith.andi %754, %756 : vector<1x256xi1>
    %c3_i32_340 = arith.constant 3 : i32
    %758 = vector.broadcast %c3_i32_340 : i32 to vector<1x256xi32>
    %759 = arith.cmpi sge, %8, %758 : vector<1x256xi32>
    %760 = arith.andi %757, %759 : vector<1x256xi1>
    %c19_i32_341 = arith.constant 19 : i32
    %761 = vector.broadcast %c19_i32_341 : i32 to vector<1x256xi32>
    %762 = arith.cmpi slt, %8, %761 : vector<1x256xi32>
    %763 = arith.andi %760, %762 : vector<1x256xi1>
    %cst_342 = arith.constant 0.000000e+00 : f32
    %764 = vector.broadcast %cst_342 : f32 to vector<1x256xf32>
    %765 = arith.select %763, %752, %764 : vector<1x256xi1>, vector<1x256xf32>
    %c37 = arith.constant 37 : index
    %c0_343 = arith.constant 0 : index
    %766 = vector.load %arg6[%c37, %c0_343] : memref<81x256xf32, #tpu.memory_space<vmem>>, vector<1x256xf32>
    %767 = arith.addf %766, %765 : vector<1x256xf32>
    %c37_344 = arith.constant 37 : index
    %c0_345 = arith.constant 0 : index
    %768 = vector.load %arg6[%c37_344, %c0_345] : memref<81x256xf32, #tpu.memory_space<vmem>>, vector<1x256xf32>
    tpu.vector_store %arg6[%c37_344, %c0_345], %767 {strides = array<i32>} : memref<81x256xf32, #tpu.memory_space<vmem>>, vector<1x256xf32>,
    %c2_i32_346 = arith.constant 2 : i32
    %769 = tpu.dynamic_rotate %6 by %c2_i32_346 dim 1 : vector<4x256xf32>, i32 -> vector<4x256xf32>
    %770 = arith.mulf %4, %769 : vector<4x256xf32>
    %cst_347 = arith.constant dense<0.000000e+00> : vector<256xf32>
    %771 = vector.multi_reduction <add>, %770, %cst_347 [0] : vector<4x256xf32> to vector<256xf32>
    %772 = vector.shape_cast %771 : vector<256xf32> to vector<1x256xf32>
    %c0_i32_348 = arith.constant 0 : i32
    %773 = vector.broadcast %c0_i32_348 : i32 to vector<1x256xi32>
    %774 = arith.cmpi sge, %7, %773 : vector<1x256xi32>
    %c16_i32_349 = arith.constant 16 : i32
    %775 = vector.broadcast %c16_i32_349 : i32 to vector<1x256xi32>
    %776 = arith.cmpi slt, %7, %775 : vector<1x256xi32>
    %777 = arith.andi %774, %776 : vector<1x256xi1>
    %c2_i32_350 = arith.constant 2 : i32
    %778 = vector.broadcast %c2_i32_350 : i32 to vector<1x256xi32>
    %779 = arith.cmpi sge, %8, %778 : vector<1x256xi32>
    %780 = arith.andi %777, %779 : vector<1x256xi1>
    %c18_i32_351 = arith.constant 18 : i32
    %781 = vector.broadcast %c18_i32_351 : i32 to vector<1x256xi32>
    %782 = arith.cmpi slt, %8, %781 : vector<1x256xi32>
    %783 = arith.andi %780, %782 : vector<1x256xi1>
    %cst_352 = arith.constant 0.000000e+00 : f32
    %784 = vector.broadcast %cst_352 : f32 to vector<1x256xf32>
    %785 = arith.select %783, %772, %784 : vector<1x256xi1>, vector<1x256xf32>
    %c38 = arith.constant 38 : index
    %c0_353 = arith.constant 0 : index
    %786 = vector.load %arg6[%c38, %c0_353] : memref<81x256xf32, #tpu.memory_space<vmem>>, vector<1x256xf32>
    %787 = arith.addf %786, %785 : vector<1x256xf32>
    %c38_354 = arith.constant 38 : index
    %c0_355 = arith.constant 0 : index
    %788 = vector.load %arg6[%c38_354, %c0_355] : memref<81x256xf32, #tpu.memory_space<vmem>>, vector<1x256xf32>
    tpu.vector_store %arg6[%c38_354, %c0_355], %787 {strides = array<i32>} : memref<81x256xf32, #tpu.memory_space<vmem>>, vector<1x256xf32>,
    %c1_i32_356 = arith.constant 1 : i32
    %789 = tpu.dynamic_rotate %6 by %c1_i32_356 dim 1 : vector<4x256xf32>, i32 -> vector<4x256xf32>
    %790 = arith.mulf %4, %789 : vector<4x256xf32>
    %cst_357 = arith.constant dense<0.000000e+00> : vector<256xf32>
    %791 = vector.multi_reduction <add>, %790, %cst_357 [0] : vector<4x256xf32> to vector<256xf32>
    %792 = vector.shape_cast %791 : vector<256xf32> to vector<1x256xf32>
    %c0_i32_358 = arith.constant 0 : i32
    %793 = vector.broadcast %c0_i32_358 : i32 to vector<1x256xi32>
    %794 = arith.cmpi sge, %7, %793 : vector<1x256xi32>
    %c16_i32_359 = arith.constant 16 : i32
    %795 = vector.broadcast %c16_i32_359 : i32 to vector<1x256xi32>
    %796 = arith.cmpi slt, %7, %795 : vector<1x256xi32>
    %797 = arith.andi %794, %796 : vector<1x256xi1>
    %c1_i32_360 = arith.constant 1 : i32
    %798 = vector.broadcast %c1_i32_360 : i32 to vector<1x256xi32>
    %799 = arith.cmpi sge, %8, %798 : vector<1x256xi32>
    %800 = arith.andi %797, %799 : vector<1x256xi1>
    %c17_i32_361 = arith.constant 17 : i32
    %801 = vector.broadcast %c17_i32_361 : i32 to vector<1x256xi32>
    %802 = arith.cmpi slt, %8, %801 : vector<1x256xi32>
    %803 = arith.andi %800, %802 : vector<1x256xi1>
    %cst_362 = arith.constant 0.000000e+00 : f32
    %804 = vector.broadcast %cst_362 : f32 to vector<1x256xf32>
    %805 = arith.select %803, %792, %804 : vector<1x256xi1>, vector<1x256xf32>
    %c39 = arith.constant 39 : index
    %c0_363 = arith.constant 0 : index
    %806 = vector.load %arg6[%c39, %c0_363] : memref<81x256xf32, #tpu.memory_space<vmem>>, vector<1x256xf32>
    %807 = arith.addf %806, %805 : vector<1x256xf32>
    %c39_364 = arith.constant 39 : index
    %c0_365 = arith.constant 0 : index
    %808 = vector.load %arg6[%c39_364, %c0_365] : memref<81x256xf32, #tpu.memory_space<vmem>>, vector<1x256xf32>
    tpu.vector_store %arg6[%c39_364, %c0_365], %807 {strides = array<i32>} : memref<81x256xf32, #tpu.memory_space<vmem>>, vector<1x256xf32>,
    %809 = arith.mulf %4, %6 : vector<4x256xf32>
    %cst_366 = arith.constant dense<0.000000e+00> : vector<256xf32>
    %810 = vector.multi_reduction <add>, %809, %cst_366 [0] : vector<4x256xf32> to vector<256xf32>
    %811 = vector.shape_cast %810 : vector<256xf32> to vector<1x256xf32>
    %c0_i32_367 = arith.constant 0 : i32
    %812 = vector.broadcast %c0_i32_367 : i32 to vector<1x256xi32>
    %813 = arith.cmpi sge, %7, %812 : vector<1x256xi32>
    %c16_i32_368 = arith.constant 16 : i32
    %814 = vector.broadcast %c16_i32_368 : i32 to vector<1x256xi32>
    %815 = arith.cmpi slt, %7, %814 : vector<1x256xi32>
    %816 = arith.andi %813, %815 : vector<1x256xi1>
    %c0_i32_369 = arith.constant 0 : i32
    %817 = vector.broadcast %c0_i32_369 : i32 to vector<1x256xi32>
    %818 = arith.cmpi sge, %8, %817 : vector<1x256xi32>
    %819 = arith.andi %816, %818 : vector<1x256xi1>
    %c16_i32_370 = arith.constant 16 : i32
    %820 = vector.broadcast %c16_i32_370 : i32 to vector<1x256xi32>
    %821 = arith.cmpi slt, %8, %820 : vector<1x256xi32>
    %822 = arith.andi %819, %821 : vector<1x256xi1>
    %cst_371 = arith.constant 0.000000e+00 : f32
    %823 = vector.broadcast %cst_371 : f32 to vector<1x256xf32>
    %824 = arith.select %822, %811, %823 : vector<1x256xi1>, vector<1x256xf32>
    %c40 = arith.constant 40 : index
    %c0_372 = arith.constant 0 : index
    %825 = vector.load %arg6[%c40, %c0_372] : memref<81x256xf32, #tpu.memory_space<vmem>>, vector<1x256xf32>
    %826 = arith.addf %825, %824 : vector<1x256xf32>
    %c40_373 = arith.constant 40 : index
    %c0_374 = arith.constant 0 : index
    %827 = vector.load %arg6[%c40_373, %c0_374] : memref<81x256xf32, #tpu.memory_space<vmem>>, vector<1x256xf32>
    tpu.vector_store %arg6[%c40_373, %c0_374], %826 {strides = array<i32>} : memref<81x256xf32, #tpu.memory_space<vmem>>, vector<1x256xf32>,
    %c255_i32 = arith.constant 255 : i32
    %828 = tpu.dynamic_rotate %6 by %c255_i32 dim 1 : vector<4x256xf32>, i32 -> vector<4x256xf32>
    %829 = arith.mulf %4, %828 : vector<4x256xf32>
    %cst_375 = arith.constant dense<0.000000e+00> : vector<256xf32>
    %830 = vector.multi_reduction <add>, %829, %cst_375 [0] : vector<4x256xf32> to vector<256xf32>
    %831 = vector.shape_cast %830 : vector<256xf32> to vector<1x256xf32>
    %c0_i32_376 = arith.constant 0 : i32
    %832 = vector.broadcast %c0_i32_376 : i32 to vector<1x256xi32>
    %833 = arith.cmpi sge, %7, %832 : vector<1x256xi32>
    %c16_i32_377 = arith.constant 16 : i32
    %834 = vector.broadcast %c16_i32_377 : i32 to vector<1x256xi32>
    %835 = arith.cmpi slt, %7, %834 : vector<1x256xi32>
    %836 = arith.andi %833, %835 : vector<1x256xi1>
    %c-1_i32_378 = arith.constant -1 : i32
    %837 = vector.broadcast %c-1_i32_378 : i32 to vector<1x256xi32>
    %838 = arith.cmpi sge, %8, %837 : vector<1x256xi32>
    %839 = arith.andi %836, %838 : vector<1x256xi1>
    %c15_i32_379 = arith.constant 15 : i32
    %840 = vector.broadcast %c15_i32_379 : i32 to vector<1x256xi32>
    %841 = arith.cmpi slt, %8, %840 : vector<1x256xi32>
    %842 = arith.andi %839, %841 : vector<1x256xi1>
    %cst_380 = arith.constant 0.000000e+00 : f32
    %843 = vector.broadcast %cst_380 : f32 to vector<1x256xf32>
    %844 = arith.select %842, %831, %843 : vector<1x256xi1>, vector<1x256xf32>
    %c41 = arith.constant 41 : index
    %c0_381 = arith.constant 0 : index
    %845 = vector.load %arg6[%c41, %c0_381] : memref<81x256xf32, #tpu.memory_space<vmem>>, vector<1x256xf32>
    %846 = arith.addf %845, %844 : vector<1x256xf32>
    %c41_382 = arith.constant 41 : index
    %c0_383 = arith.constant 0 : index
    %847 = vector.load %arg6[%c41_382, %c0_383] : memref<81x256xf32, #tpu.memory_space<vmem>>, vector<1x256xf32>
    tpu.vector_store %arg6[%c41_382, %c0_383], %846 {strides = array<i32>} : memref<81x256xf32, #tpu.memory_space<vmem>>, vector<1x256xf32>,
    %c254_i32 = arith.constant 254 : i32
    %848 = tpu.dynamic_rotate %6 by %c254_i32 dim 1 : vector<4x256xf32>, i32 -> vector<4x256xf32>
    %849 = arith.mulf %4, %848 : vector<4x256xf32>
    %cst_384 = arith.constant dense<0.000000e+00> : vector<256xf32>
    %850 = vector.multi_reduction <add>, %849, %cst_384 [0] : vector<4x256xf32> to vector<256xf32>
    %851 = vector.shape_cast %850 : vector<256xf32> to vector<1x256xf32>
    %c0_i32_385 = arith.constant 0 : i32
    %852 = vector.broadcast %c0_i32_385 : i32 to vector<1x256xi32>
    %853 = arith.cmpi sge, %7, %852 : vector<1x256xi32>
    %c16_i32_386 = arith.constant 16 : i32
    %854 = vector.broadcast %c16_i32_386 : i32 to vector<1x256xi32>
    %855 = arith.cmpi slt, %7, %854 : vector<1x256xi32>
    %856 = arith.andi %853, %855 : vector<1x256xi1>
    %c-2_i32_387 = arith.constant -2 : i32
    %857 = vector.broadcast %c-2_i32_387 : i32 to vector<1x256xi32>
    %858 = arith.cmpi sge, %8, %857 : vector<1x256xi32>
    %859 = arith.andi %856, %858 : vector<1x256xi1>
    %c14_i32_388 = arith.constant 14 : i32
    %860 = vector.broadcast %c14_i32_388 : i32 to vector<1x256xi32>
    %861 = arith.cmpi slt, %8, %860 : vector<1x256xi32>
    %862 = arith.andi %859, %861 : vector<1x256xi1>
    %cst_389 = arith.constant 0.000000e+00 : f32
    %863 = vector.broadcast %cst_389 : f32 to vector<1x256xf32>
    %864 = arith.select %862, %851, %863 : vector<1x256xi1>, vector<1x256xf32>
    %c42 = arith.constant 42 : index
    %c0_390 = arith.constant 0 : index
    %865 = vector.load %arg6[%c42, %c0_390] : memref<81x256xf32, #tpu.memory_space<vmem>>, vector<1x256xf32>
    %866 = arith.addf %865, %864 : vector<1x256xf32>
    %c42_391 = arith.constant 42 : index
    %c0_392 = arith.constant 0 : index
    %867 = vector.load %arg6[%c42_391, %c0_392] : memref<81x256xf32, #tpu.memory_space<vmem>>, vector<1x256xf32>
    tpu.vector_store %arg6[%c42_391, %c0_392], %866 {strides = array<i32>} : memref<81x256xf32, #tpu.memory_space<vmem>>, vector<1x256xf32>,
    %c253_i32 = arith.constant 253 : i32
    %868 = tpu.dynamic_rotate %6 by %c253_i32 dim 1 : vector<4x256xf32>, i32 -> vector<4x256xf32>
    %869 = arith.mulf %4, %868 : vector<4x256xf32>
    %cst_393 = arith.constant dense<0.000000e+00> : vector<256xf32>
    %870 = vector.multi_reduction <add>, %869, %cst_393 [0] : vector<4x256xf32> to vector<256xf32>
    %871 = vector.shape_cast %870 : vector<256xf32> to vector<1x256xf32>
    %c0_i32_394 = arith.constant 0 : i32
    %872 = vector.broadcast %c0_i32_394 : i32 to vector<1x256xi32>
    %873 = arith.cmpi sge, %7, %872 : vector<1x256xi32>
    %c16_i32_395 = arith.constant 16 : i32
    %874 = vector.broadcast %c16_i32_395 : i32 to vector<1x256xi32>
    %875 = arith.cmpi slt, %7, %874 : vector<1x256xi32>
    %876 = arith.andi %873, %875 : vector<1x256xi1>
    %c-3_i32_396 = arith.constant -3 : i32
    %877 = vector.broadcast %c-3_i32_396 : i32 to vector<1x256xi32>
    %878 = arith.cmpi sge, %8, %877 : vector<1x256xi32>
    %879 = arith.andi %876, %878 : vector<1x256xi1>
    %c13_i32_397 = arith.constant 13 : i32
    %880 = vector.broadcast %c13_i32_397 : i32 to vector<1x256xi32>
    %881 = arith.cmpi slt, %8, %880 : vector<1x256xi32>
    %882 = arith.andi %879, %881 : vector<1x256xi1>
    %cst_398 = arith.constant 0.000000e+00 : f32
    %883 = vector.broadcast %cst_398 : f32 to vector<1x256xf32>
    %884 = arith.select %882, %871, %883 : vector<1x256xi1>, vector<1x256xf32>
    %c43 = arith.constant 43 : index
    %c0_399 = arith.constant 0 : index
    %885 = vector.load %arg6[%c43, %c0_399] : memref<81x256xf32, #tpu.memory_space<vmem>>, vector<1x256xf32>
    %886 = arith.addf %885, %884 : vector<1x256xf32>
    %c43_400 = arith.constant 43 : index
    %c0_401 = arith.constant 0 : index
    %887 = vector.load %arg6[%c43_400, %c0_401] : memref<81x256xf32, #tpu.memory_space<vmem>>, vector<1x256xf32>
    tpu.vector_store %arg6[%c43_400, %c0_401], %886 {strides = array<i32>} : memref<81x256xf32, #tpu.memory_space<vmem>>, vector<1x256xf32>,
    %c252_i32 = arith.constant 252 : i32
    %888 = tpu.dynamic_rotate %6 by %c252_i32 dim 1 : vector<4x256xf32>, i32 -> vector<4x256xf32>
    %889 = arith.mulf %4, %888 : vector<4x256xf32>
    %cst_402 = arith.constant dense<0.000000e+00> : vector<256xf32>
    %890 = vector.multi_reduction <add>, %889, %cst_402 [0] : vector<4x256xf32> to vector<256xf32>
    %891 = vector.shape_cast %890 : vector<256xf32> to vector<1x256xf32>
    %c0_i32_403 = arith.constant 0 : i32
    %892 = vector.broadcast %c0_i32_403 : i32 to vector<1x256xi32>
    %893 = arith.cmpi sge, %7, %892 : vector<1x256xi32>
    %c16_i32_404 = arith.constant 16 : i32
    %894 = vector.broadcast %c16_i32_404 : i32 to vector<1x256xi32>
    %895 = arith.cmpi slt, %7, %894 : vector<1x256xi32>
    %896 = arith.andi %893, %895 : vector<1x256xi1>
    %c-4_i32_405 = arith.constant -4 : i32
    %897 = vector.broadcast %c-4_i32_405 : i32 to vector<1x256xi32>
    %898 = arith.cmpi sge, %8, %897 : vector<1x256xi32>
    %899 = arith.andi %896, %898 : vector<1x256xi1>
    %c12_i32_406 = arith.constant 12 : i32
    %900 = vector.broadcast %c12_i32_406 : i32 to vector<1x256xi32>
    %901 = arith.cmpi slt, %8, %900 : vector<1x256xi32>
    %902 = arith.andi %899, %901 : vector<1x256xi1>
    %cst_407 = arith.constant 0.000000e+00 : f32
    %903 = vector.broadcast %cst_407 : f32 to vector<1x256xf32>
    %904 = arith.select %902, %891, %903 : vector<1x256xi1>, vector<1x256xf32>
    %c44 = arith.constant 44 : index
    %c0_408 = arith.constant 0 : index
    %905 = vector.load %arg6[%c44, %c0_408] : memref<81x256xf32, #tpu.memory_space<vmem>>, vector<1x256xf32>
    %906 = arith.addf %905, %904 : vector<1x256xf32>
    %c44_409 = arith.constant 44 : index
    %c0_410 = arith.constant 0 : index
    %907 = vector.load %arg6[%c44_409, %c0_410] : memref<81x256xf32, #tpu.memory_space<vmem>>, vector<1x256xf32>
    tpu.vector_store %arg6[%c44_409, %c0_410], %906 {strides = array<i32>} : memref<81x256xf32, #tpu.memory_space<vmem>>, vector<1x256xf32>,
    %c244_i32 = arith.constant 244 : i32
    %908 = tpu.dynamic_rotate %6 by %c244_i32 dim 1 : vector<4x256xf32>, i32 -> vector<4x256xf32>
    %909 = arith.mulf %4, %908 : vector<4x256xf32>
    %cst_411 = arith.constant dense<0.000000e+00> : vector<256xf32>
    %910 = vector.multi_reduction <add>, %909, %cst_411 [0] : vector<4x256xf32> to vector<256xf32>
    %911 = vector.shape_cast %910 : vector<256xf32> to vector<1x256xf32>
    %c-1_i32_412 = arith.constant -1 : i32
    %912 = vector.broadcast %c-1_i32_412 : i32 to vector<1x256xi32>
    %913 = arith.cmpi sge, %7, %912 : vector<1x256xi32>
    %c15_i32_413 = arith.constant 15 : i32
    %914 = vector.broadcast %c15_i32_413 : i32 to vector<1x256xi32>
    %915 = arith.cmpi slt, %7, %914 : vector<1x256xi32>
    %916 = arith.andi %913, %915 : vector<1x256xi1>
    %c4_i32_414 = arith.constant 4 : i32
    %917 = vector.broadcast %c4_i32_414 : i32 to vector<1x256xi32>
    %918 = arith.cmpi sge, %8, %917 : vector<1x256xi32>
    %919 = arith.andi %916, %918 : vector<1x256xi1>
    %c20_i32_415 = arith.constant 20 : i32
    %920 = vector.broadcast %c20_i32_415 : i32 to vector<1x256xi32>
    %921 = arith.cmpi slt, %8, %920 : vector<1x256xi32>
    %922 = arith.andi %919, %921 : vector<1x256xi1>
    %cst_416 = arith.constant 0.000000e+00 : f32
    %923 = vector.broadcast %cst_416 : f32 to vector<1x256xf32>
    %924 = arith.select %922, %911, %923 : vector<1x256xi1>, vector<1x256xf32>
    %c45 = arith.constant 45 : index
    %c0_417 = arith.constant 0 : index
    %925 = vector.load %arg6[%c45, %c0_417] : memref<81x256xf32, #tpu.memory_space<vmem>>, vector<1x256xf32>
    %926 = arith.addf %925, %924 : vector<1x256xf32>
    %c45_418 = arith.constant 45 : index
    %c0_419 = arith.constant 0 : index
    %927 = vector.load %arg6[%c45_418, %c0_419] : memref<81x256xf32, #tpu.memory_space<vmem>>, vector<1x256xf32>
    tpu.vector_store %arg6[%c45_418, %c0_419], %926 {strides = array<i32>} : memref<81x256xf32, #tpu.memory_space<vmem>>, vector<1x256xf32>,
    %c243_i32 = arith.constant 243 : i32
    %928 = tpu.dynamic_rotate %6 by %c243_i32 dim 1 : vector<4x256xf32>, i32 -> vector<4x256xf32>
    %929 = arith.mulf %4, %928 : vector<4x256xf32>
    %cst_420 = arith.constant dense<0.000000e+00> : vector<256xf32>
    %930 = vector.multi_reduction <add>, %929, %cst_420 [0] : vector<4x256xf32> to vector<256xf32>
    %931 = vector.shape_cast %930 : vector<256xf32> to vector<1x256xf32>
    %c-1_i32_421 = arith.constant -1 : i32
    %932 = vector.broadcast %c-1_i32_421 : i32 to vector<1x256xi32>
    %933 = arith.cmpi sge, %7, %932 : vector<1x256xi32>
    %c15_i32_422 = arith.constant 15 : i32
    %934 = vector.broadcast %c15_i32_422 : i32 to vector<1x256xi32>
    %935 = arith.cmpi slt, %7, %934 : vector<1x256xi32>
    %936 = arith.andi %933, %935 : vector<1x256xi1>
    %c3_i32_423 = arith.constant 3 : i32
    %937 = vector.broadcast %c3_i32_423 : i32 to vector<1x256xi32>
    %938 = arith.cmpi sge, %8, %937 : vector<1x256xi32>
    %939 = arith.andi %936, %938 : vector<1x256xi1>
    %c19_i32_424 = arith.constant 19 : i32
    %940 = vector.broadcast %c19_i32_424 : i32 to vector<1x256xi32>
    %941 = arith.cmpi slt, %8, %940 : vector<1x256xi32>
    %942 = arith.andi %939, %941 : vector<1x256xi1>
    %cst_425 = arith.constant 0.000000e+00 : f32
    %943 = vector.broadcast %cst_425 : f32 to vector<1x256xf32>
    %944 = arith.select %942, %931, %943 : vector<1x256xi1>, vector<1x256xf32>
    %c46 = arith.constant 46 : index
    %c0_426 = arith.constant 0 : index
    %945 = vector.load %arg6[%c46, %c0_426] : memref<81x256xf32, #tpu.memory_space<vmem>>, vector<1x256xf32>
    %946 = arith.addf %945, %944 : vector<1x256xf32>
    %c46_427 = arith.constant 46 : index
    %c0_428 = arith.constant 0 : index
    %947 = vector.load %arg6[%c46_427, %c0_428] : memref<81x256xf32, #tpu.memory_space<vmem>>, vector<1x256xf32>
    tpu.vector_store %arg6[%c46_427, %c0_428], %946 {strides = array<i32>} : memref<81x256xf32, #tpu.memory_space<vmem>>, vector<1x256xf32>,
    %c242_i32 = arith.constant 242 : i32
    %948 = tpu.dynamic_rotate %6 by %c242_i32 dim 1 : vector<4x256xf32>, i32 -> vector<4x256xf32>
    %949 = arith.mulf %4, %948 : vector<4x256xf32>
    %cst_429 = arith.constant dense<0.000000e+00> : vector<256xf32>
    %950 = vector.multi_reduction <add>, %949, %cst_429 [0] : vector<4x256xf32> to vector<256xf32>
    %951 = vector.shape_cast %950 : vector<256xf32> to vector<1x256xf32>
    %c-1_i32_430 = arith.constant -1 : i32
    %952 = vector.broadcast %c-1_i32_430 : i32 to vector<1x256xi32>
    %953 = arith.cmpi sge, %7, %952 : vector<1x256xi32>
    %c15_i32_431 = arith.constant 15 : i32
    %954 = vector.broadcast %c15_i32_431 : i32 to vector<1x256xi32>
    %955 = arith.cmpi slt, %7, %954 : vector<1x256xi32>
    %956 = arith.andi %953, %955 : vector<1x256xi1>
    %c2_i32_432 = arith.constant 2 : i32
    %957 = vector.broadcast %c2_i32_432 : i32 to vector<1x256xi32>
    %958 = arith.cmpi sge, %8, %957 : vector<1x256xi32>
    %959 = arith.andi %956, %958 : vector<1x256xi1>
    %c18_i32_433 = arith.constant 18 : i32
    %960 = vector.broadcast %c18_i32_433 : i32 to vector<1x256xi32>
    %961 = arith.cmpi slt, %8, %960 : vector<1x256xi32>
    %962 = arith.andi %959, %961 : vector<1x256xi1>
    %cst_434 = arith.constant 0.000000e+00 : f32
    %963 = vector.broadcast %cst_434 : f32 to vector<1x256xf32>
    %964 = arith.select %962, %951, %963 : vector<1x256xi1>, vector<1x256xf32>
    %c47 = arith.constant 47 : index
    %c0_435 = arith.constant 0 : index
    %965 = vector.load %arg6[%c47, %c0_435] : memref<81x256xf32, #tpu.memory_space<vmem>>, vector<1x256xf32>
    %966 = arith.addf %965, %964 : vector<1x256xf32>
    %c47_436 = arith.constant 47 : index
    %c0_437 = arith.constant 0 : index
    %967 = vector.load %arg6[%c47_436, %c0_437] : memref<81x256xf32, #tpu.memory_space<vmem>>, vector<1x256xf32>
    tpu.vector_store %arg6[%c47_436, %c0_437], %966 {strides = array<i32>} : memref<81x256xf32, #tpu.memory_space<vmem>>, vector<1x256xf32>,
    %c241_i32 = arith.constant 241 : i32
    %968 = tpu.dynamic_rotate %6 by %c241_i32 dim 1 : vector<4x256xf32>, i32 -> vector<4x256xf32>
    %969 = arith.mulf %4, %968 : vector<4x256xf32>
    %cst_438 = arith.constant dense<0.000000e+00> : vector<256xf32>
    %970 = vector.multi_reduction <add>, %969, %cst_438 [0] : vector<4x256xf32> to vector<256xf32>
    %971 = vector.shape_cast %970 : vector<256xf32> to vector<1x256xf32>
    %c-1_i32_439 = arith.constant -1 : i32
    %972 = vector.broadcast %c-1_i32_439 : i32 to vector<1x256xi32>
    %973 = arith.cmpi sge, %7, %972 : vector<1x256xi32>
    %c15_i32_440 = arith.constant 15 : i32
    %974 = vector.broadcast %c15_i32_440 : i32 to vector<1x256xi32>
    %975 = arith.cmpi slt, %7, %974 : vector<1x256xi32>
    %976 = arith.andi %973, %975 : vector<1x256xi1>
    %c1_i32_441 = arith.constant 1 : i32
    %977 = vector.broadcast %c1_i32_441 : i32 to vector<1x256xi32>
    %978 = arith.cmpi sge, %8, %977 : vector<1x256xi32>
    %979 = arith.andi %976, %978 : vector<1x256xi1>
    %c17_i32_442 = arith.constant 17 : i32
    %980 = vector.broadcast %c17_i32_442 : i32 to vector<1x256xi32>
    %981 = arith.cmpi slt, %8, %980 : vector<1x256xi32>
    %982 = arith.andi %979, %981 : vector<1x256xi1>
    %cst_443 = arith.constant 0.000000e+00 : f32
    %983 = vector.broadcast %cst_443 : f32 to vector<1x256xf32>
    %984 = arith.select %982, %971, %983 : vector<1x256xi1>, vector<1x256xf32>
    %c48 = arith.constant 48 : index
    %c0_444 = arith.constant 0 : index
    %985 = vector.load %arg6[%c48, %c0_444] : memref<81x256xf32, #tpu.memory_space<vmem>>, vector<1x256xf32>
    %986 = arith.addf %985, %984 : vector<1x256xf32>
    %c48_445 = arith.constant 48 : index
    %c0_446 = arith.constant 0 : index
    %987 = vector.load %arg6[%c48_445, %c0_446] : memref<81x256xf32, #tpu.memory_space<vmem>>, vector<1x256xf32>
    tpu.vector_store %arg6[%c48_445, %c0_446], %986 {strides = array<i32>} : memref<81x256xf32, #tpu.memory_space<vmem>>, vector<1x256xf32>,
    %c240_i32 = arith.constant 240 : i32
    %988 = tpu.dynamic_rotate %6 by %c240_i32 dim 1 : vector<4x256xf32>, i32 -> vector<4x256xf32>
    %989 = arith.mulf %4, %988 : vector<4x256xf32>
    %cst_447 = arith.constant dense<0.000000e+00> : vector<256xf32>
    %990 = vector.multi_reduction <add>, %989, %cst_447 [0] : vector<4x256xf32> to vector<256xf32>
    %991 = vector.shape_cast %990 : vector<256xf32> to vector<1x256xf32>
    %c-1_i32_448 = arith.constant -1 : i32
    %992 = vector.broadcast %c-1_i32_448 : i32 to vector<1x256xi32>
    %993 = arith.cmpi sge, %7, %992 : vector<1x256xi32>
    %c15_i32_449 = arith.constant 15 : i32
    %994 = vector.broadcast %c15_i32_449 : i32 to vector<1x256xi32>
    %995 = arith.cmpi slt, %7, %994 : vector<1x256xi32>
    %996 = arith.andi %993, %995 : vector<1x256xi1>
    %c0_i32_450 = arith.constant 0 : i32
    %997 = vector.broadcast %c0_i32_450 : i32 to vector<1x256xi32>
    %998 = arith.cmpi sge, %8, %997 : vector<1x256xi32>
    %999 = arith.andi %996, %998 : vector<1x256xi1>
    %c16_i32_451 = arith.constant 16 : i32
    %1000 = vector.broadcast %c16_i32_451 : i32 to vector<1x256xi32>
    %1001 = arith.cmpi slt, %8, %1000 : vector<1x256xi32>
    %1002 = arith.andi %999, %1001 : vector<1x256xi1>
    %cst_452 = arith.constant 0.000000e+00 : f32
    %1003 = vector.broadcast %cst_452 : f32 to vector<1x256xf32>
    %1004 = arith.select %1002, %991, %1003 : vector<1x256xi1>, vector<1x256xf32>
    %c49 = arith.constant 49 : index
    %c0_453 = arith.constant 0 : index
    %1005 = vector.load %arg6[%c49, %c0_453] : memref<81x256xf32, #tpu.memory_space<vmem>>, vector<1x256xf32>
    %1006 = arith.addf %1005, %1004 : vector<1x256xf32>
    %c49_454 = arith.constant 49 : index
    %c0_455 = arith.constant 0 : index
    %1007 = vector.load %arg6[%c49_454, %c0_455] : memref<81x256xf32, #tpu.memory_space<vmem>>, vector<1x256xf32>
    tpu.vector_store %arg6[%c49_454, %c0_455], %1006 {strides = array<i32>} : memref<81x256xf32, #tpu.memory_space<vmem>>, vector<1x256xf32>,
    %c239_i32 = arith.constant 239 : i32
    %1008 = tpu.dynamic_rotate %6 by %c239_i32 dim 1 : vector<4x256xf32>, i32 -> vector<4x256xf32>
    %1009 = arith.mulf %4, %1008 : vector<4x256xf32>
    %cst_456 = arith.constant dense<0.000000e+00> : vector<256xf32>
    %1010 = vector.multi_reduction <add>, %1009, %cst_456 [0] : vector<4x256xf32> to vector<256xf32>
    %1011 = vector.shape_cast %1010 : vector<256xf32> to vector<1x256xf32>
    %c-1_i32_457 = arith.constant -1 : i32
    %1012 = vector.broadcast %c-1_i32_457 : i32 to vector<1x256xi32>
    %1013 = arith.cmpi sge, %7, %1012 : vector<1x256xi32>
    %c15_i32_458 = arith.constant 15 : i32
    %1014 = vector.broadcast %c15_i32_458 : i32 to vector<1x256xi32>
    %1015 = arith.cmpi slt, %7, %1014 : vector<1x256xi32>
    %1016 = arith.andi %1013, %1015 : vector<1x256xi1>
    %c-1_i32_459 = arith.constant -1 : i32
    %1017 = vector.broadcast %c-1_i32_459 : i32 to vector<1x256xi32>
    %1018 = arith.cmpi sge, %8, %1017 : vector<1x256xi32>
    %1019 = arith.andi %1016, %1018 : vector<1x256xi1>
    %c15_i32_460 = arith.constant 15 : i32
    %1020 = vector.broadcast %c15_i32_460 : i32 to vector<1x256xi32>
    %1021 = arith.cmpi slt, %8, %1020 : vector<1x256xi32>
    %1022 = arith.andi %1019, %1021 : vector<1x256xi1>
    %cst_461 = arith.constant 0.000000e+00 : f32
    %1023 = vector.broadcast %cst_461 : f32 to vector<1x256xf32>
    %1024 = arith.select %1022, %1011, %1023 : vector<1x256xi1>, vector<1x256xf32>
    %c50 = arith.constant 50 : index
    %c0_462 = arith.constant 0 : index
    %1025 = vector.load %arg6[%c50, %c0_462] : memref<81x256xf32, #tpu.memory_space<vmem>>, vector<1x256xf32>
    %1026 = arith.addf %1025, %1024 : vector<1x256xf32>
    %c50_463 = arith.constant 50 : index
    %c0_464 = arith.constant 0 : index
    %1027 = vector.load %arg6[%c50_463, %c0_464] : memref<81x256xf32, #tpu.memory_space<vmem>>, vector<1x256xf32>
    tpu.vector_store %arg6[%c50_463, %c0_464], %1026 {strides = array<i32>} : memref<81x256xf32, #tpu.memory_space<vmem>>, vector<1x256xf32>,
    %c238_i32 = arith.constant 238 : i32
    %1028 = tpu.dynamic_rotate %6 by %c238_i32 dim 1 : vector<4x256xf32>, i32 -> vector<4x256xf32>
    %1029 = arith.mulf %4, %1028 : vector<4x256xf32>
    %cst_465 = arith.constant dense<0.000000e+00> : vector<256xf32>
    %1030 = vector.multi_reduction <add>, %1029, %cst_465 [0] : vector<4x256xf32> to vector<256xf32>
    %1031 = vector.shape_cast %1030 : vector<256xf32> to vector<1x256xf32>
    %c-1_i32_466 = arith.constant -1 : i32
    %1032 = vector.broadcast %c-1_i32_466 : i32 to vector<1x256xi32>
    %1033 = arith.cmpi sge, %7, %1032 : vector<1x256xi32>
    %c15_i32_467 = arith.constant 15 : i32
    %1034 = vector.broadcast %c15_i32_467 : i32 to vector<1x256xi32>
    %1035 = arith.cmpi slt, %7, %1034 : vector<1x256xi32>
    %1036 = arith.andi %1033, %1035 : vector<1x256xi1>
    %c-2_i32_468 = arith.constant -2 : i32
    %1037 = vector.broadcast %c-2_i32_468 : i32 to vector<1x256xi32>
    %1038 = arith.cmpi sge, %8, %1037 : vector<1x256xi32>
    %1039 = arith.andi %1036, %1038 : vector<1x256xi1>
    %c14_i32_469 = arith.constant 14 : i32
    %1040 = vector.broadcast %c14_i32_469 : i32 to vector<1x256xi32>
    %1041 = arith.cmpi slt, %8, %1040 : vector<1x256xi32>
    %1042 = arith.andi %1039, %1041 : vector<1x256xi1>
    %cst_470 = arith.constant 0.000000e+00 : f32
    %1043 = vector.broadcast %cst_470 : f32 to vector<1x256xf32>
    %1044 = arith.select %1042, %1031, %1043 : vector<1x256xi1>, vector<1x256xf32>
    %c51 = arith.constant 51 : index
    %c0_471 = arith.constant 0 : index
    %1045 = vector.load %arg6[%c51, %c0_471] : memref<81x256xf32, #tpu.memory_space<vmem>>, vector<1x256xf32>
    %1046 = arith.addf %1045, %1044 : vector<1x256xf32>
    %c51_472 = arith.constant 51 : index
    %c0_473 = arith.constant 0 : index
    %1047 = vector.load %arg6[%c51_472, %c0_473] : memref<81x256xf32, #tpu.memory_space<vmem>>, vector<1x256xf32>
    tpu.vector_store %arg6[%c51_472, %c0_473], %1046 {strides = array<i32>} : memref<81x256xf32, #tpu.memory_space<vmem>>, vector<1x256xf32>,
    %c237_i32 = arith.constant 237 : i32
    %1048 = tpu.dynamic_rotate %6 by %c237_i32 dim 1 : vector<4x256xf32>, i32 -> vector<4x256xf32>
    %1049 = arith.mulf %4, %1048 : vector<4x256xf32>
    %cst_474 = arith.constant dense<0.000000e+00> : vector<256xf32>
    %1050 = vector.multi_reduction <add>, %1049, %cst_474 [0] : vector<4x256xf32> to vector<256xf32>
    %1051 = vector.shape_cast %1050 : vector<256xf32> to vector<1x256xf32>
    %c-1_i32_475 = arith.constant -1 : i32
    %1052 = vector.broadcast %c-1_i32_475 : i32 to vector<1x256xi32>
    %1053 = arith.cmpi sge, %7, %1052 : vector<1x256xi32>
    %c15_i32_476 = arith.constant 15 : i32
    %1054 = vector.broadcast %c15_i32_476 : i32 to vector<1x256xi32>
    %1055 = arith.cmpi slt, %7, %1054 : vector<1x256xi32>
    %1056 = arith.andi %1053, %1055 : vector<1x256xi1>
    %c-3_i32_477 = arith.constant -3 : i32
    %1057 = vector.broadcast %c-3_i32_477 : i32 to vector<1x256xi32>
    %1058 = arith.cmpi sge, %8, %1057 : vector<1x256xi32>
    %1059 = arith.andi %1056, %1058 : vector<1x256xi1>
    %c13_i32_478 = arith.constant 13 : i32
    %1060 = vector.broadcast %c13_i32_478 : i32 to vector<1x256xi32>
    %1061 = arith.cmpi slt, %8, %1060 : vector<1x256xi32>
    %1062 = arith.andi %1059, %1061 : vector<1x256xi1>
    %cst_479 = arith.constant 0.000000e+00 : f32
    %1063 = vector.broadcast %cst_479 : f32 to vector<1x256xf32>
    %1064 = arith.select %1062, %1051, %1063 : vector<1x256xi1>, vector<1x256xf32>
    %c52 = arith.constant 52 : index
    %c0_480 = arith.constant 0 : index
    %1065 = vector.load %arg6[%c52, %c0_480] : memref<81x256xf32, #tpu.memory_space<vmem>>, vector<1x256xf32>
    %1066 = arith.addf %1065, %1064 : vector<1x256xf32>
    %c52_481 = arith.constant 52 : index
    %c0_482 = arith.constant 0 : index
    %1067 = vector.load %arg6[%c52_481, %c0_482] : memref<81x256xf32, #tpu.memory_space<vmem>>, vector<1x256xf32>
    tpu.vector_store %arg6[%c52_481, %c0_482], %1066 {strides = array<i32>} : memref<81x256xf32, #tpu.memory_space<vmem>>, vector<1x256xf32>,
    %c236_i32 = arith.constant 236 : i32
    %1068 = tpu.dynamic_rotate %6 by %c236_i32 dim 1 : vector<4x256xf32>, i32 -> vector<4x256xf32>
    %1069 = arith.mulf %4, %1068 : vector<4x256xf32>
    %cst_483 = arith.constant dense<0.000000e+00> : vector<256xf32>
    %1070 = vector.multi_reduction <add>, %1069, %cst_483 [0] : vector<4x256xf32> to vector<256xf32>
    %1071 = vector.shape_cast %1070 : vector<256xf32> to vector<1x256xf32>
    %c-1_i32_484 = arith.constant -1 : i32
    %1072 = vector.broadcast %c-1_i32_484 : i32 to vector<1x256xi32>
    %1073 = arith.cmpi sge, %7, %1072 : vector<1x256xi32>
    %c15_i32_485 = arith.constant 15 : i32
    %1074 = vector.broadcast %c15_i32_485 : i32 to vector<1x256xi32>
    %1075 = arith.cmpi slt, %7, %1074 : vector<1x256xi32>
    %1076 = arith.andi %1073, %1075 : vector<1x256xi1>
    %c-4_i32_486 = arith.constant -4 : i32
    %1077 = vector.broadcast %c-4_i32_486 : i32 to vector<1x256xi32>
    %1078 = arith.cmpi sge, %8, %1077 : vector<1x256xi32>
    %1079 = arith.andi %1076, %1078 : vector<1x256xi1>
    %c12_i32_487 = arith.constant 12 : i32
    %1080 = vector.broadcast %c12_i32_487 : i32 to vector<1x256xi32>
    %1081 = arith.cmpi slt, %8, %1080 : vector<1x256xi32>
    %1082 = arith.andi %1079, %1081 : vector<1x256xi1>
    %cst_488 = arith.constant 0.000000e+00 : f32
    %1083 = vector.broadcast %cst_488 : f32 to vector<1x256xf32>
    %1084 = arith.select %1082, %1071, %1083 : vector<1x256xi1>, vector<1x256xf32>
    %c53 = arith.constant 53 : index
    %c0_489 = arith.constant 0 : index
    %1085 = vector.load %arg6[%c53, %c0_489] : memref<81x256xf32, #tpu.memory_space<vmem>>, vector<1x256xf32>
    %1086 = arith.addf %1085, %1084 : vector<1x256xf32>
    %c53_490 = arith.constant 53 : index
    %c0_491 = arith.constant 0 : index
    %1087 = vector.load %arg6[%c53_490, %c0_491] : memref<81x256xf32, #tpu.memory_space<vmem>>, vector<1x256xf32>
    tpu.vector_store %arg6[%c53_490, %c0_491], %1086 {strides = array<i32>} : memref<81x256xf32, #tpu.memory_space<vmem>>, vector<1x256xf32>,
    %c228_i32 = arith.constant 228 : i32
    %1088 = tpu.dynamic_rotate %6 by %c228_i32 dim 1 : vector<4x256xf32>, i32 -> vector<4x256xf32>
    %1089 = arith.mulf %4, %1088 : vector<4x256xf32>
    %cst_492 = arith.constant dense<0.000000e+00> : vector<256xf32>
    %1090 = vector.multi_reduction <add>, %1089, %cst_492 [0] : vector<4x256xf32> to vector<256xf32>
    %1091 = vector.shape_cast %1090 : vector<256xf32> to vector<1x256xf32>
    %c-2_i32_493 = arith.constant -2 : i32
    %1092 = vector.broadcast %c-2_i32_493 : i32 to vector<1x256xi32>
    %1093 = arith.cmpi sge, %7, %1092 : vector<1x256xi32>
    %c14_i32_494 = arith.constant 14 : i32
    %1094 = vector.broadcast %c14_i32_494 : i32 to vector<1x256xi32>
    %1095 = arith.cmpi slt, %7, %1094 : vector<1x256xi32>
    %1096 = arith.andi %1093, %1095 : vector<1x256xi1>
    %c4_i32_495 = arith.constant 4 : i32
    %1097 = vector.broadcast %c4_i32_495 : i32 to vector<1x256xi32>
    %1098 = arith.cmpi sge, %8, %1097 : vector<1x256xi32>
    %1099 = arith.andi %1096, %1098 : vector<1x256xi1>
    %c20_i32_496 = arith.constant 20 : i32
    %1100 = vector.broadcast %c20_i32_496 : i32 to vector<1x256xi32>
    %1101 = arith.cmpi slt, %8, %1100 : vector<1x256xi32>
    %1102 = arith.andi %1099, %1101 : vector<1x256xi1>
    %cst_497 = arith.constant 0.000000e+00 : f32
    %1103 = vector.broadcast %cst_497 : f32 to vector<1x256xf32>
    %1104 = arith.select %1102, %1091, %1103 : vector<1x256xi1>, vector<1x256xf32>
    %c54 = arith.constant 54 : index
    %c0_498 = arith.constant 0 : index
    %1105 = vector.load %arg6[%c54, %c0_498] : memref<81x256xf32, #tpu.memory_space<vmem>>, vector<1x256xf32>
    %1106 = arith.addf %1105, %1104 : vector<1x256xf32>
    %c54_499 = arith.constant 54 : index
    %c0_500 = arith.constant 0 : index
    %1107 = vector.load %arg6[%c54_499, %c0_500] : memref<81x256xf32, #tpu.memory_space<vmem>>, vector<1x256xf32>
    tpu.vector_store %arg6[%c54_499, %c0_500], %1106 {strides = array<i32>} : memref<81x256xf32, #tpu.memory_space<vmem>>, vector<1x256xf32>,
    %c227_i32 = arith.constant 227 : i32
    %1108 = tpu.dynamic_rotate %6 by %c227_i32 dim 1 : vector<4x256xf32>, i32 -> vector<4x256xf32>
    %1109 = arith.mulf %4, %1108 : vector<4x256xf32>
    %cst_501 = arith.constant dense<0.000000e+00> : vector<256xf32>
    %1110 = vector.multi_reduction <add>, %1109, %cst_501 [0] : vector<4x256xf32> to vector<256xf32>
    %1111 = vector.shape_cast %1110 : vector<256xf32> to vector<1x256xf32>
    %c-2_i32_502 = arith.constant -2 : i32
    %1112 = vector.broadcast %c-2_i32_502 : i32 to vector<1x256xi32>
    %1113 = arith.cmpi sge, %7, %1112 : vector<1x256xi32>
    %c14_i32_503 = arith.constant 14 : i32
    %1114 = vector.broadcast %c14_i32_503 : i32 to vector<1x256xi32>
    %1115 = arith.cmpi slt, %7, %1114 : vector<1x256xi32>
    %1116 = arith.andi %1113, %1115 : vector<1x256xi1>
    %c3_i32_504 = arith.constant 3 : i32
    %1117 = vector.broadcast %c3_i32_504 : i32 to vector<1x256xi32>
    %1118 = arith.cmpi sge, %8, %1117 : vector<1x256xi32>
    %1119 = arith.andi %1116, %1118 : vector<1x256xi1>
    %c19_i32_505 = arith.constant 19 : i32
    %1120 = vector.broadcast %c19_i32_505 : i32 to vector<1x256xi32>
    %1121 = arith.cmpi slt, %8, %1120 : vector<1x256xi32>
    %1122 = arith.andi %1119, %1121 : vector<1x256xi1>
    %cst_506 = arith.constant 0.000000e+00 : f32
    %1123 = vector.broadcast %cst_506 : f32 to vector<1x256xf32>
    %1124 = arith.select %1122, %1111, %1123 : vector<1x256xi1>, vector<1x256xf32>
    %c55 = arith.constant 55 : index
    %c0_507 = arith.constant 0 : index
    %1125 = vector.load %arg6[%c55, %c0_507] : memref<81x256xf32, #tpu.memory_space<vmem>>, vector<1x256xf32>
    %1126 = arith.addf %1125, %1124 : vector<1x256xf32>
    %c55_508 = arith.constant 55 : index
    %c0_509 = arith.constant 0 : index
    %1127 = vector.load %arg6[%c55_508, %c0_509] : memref<81x256xf32, #tpu.memory_space<vmem>>, vector<1x256xf32>
    tpu.vector_store %arg6[%c55_508, %c0_509], %1126 {strides = array<i32>} : memref<81x256xf32, #tpu.memory_space<vmem>>, vector<1x256xf32>,
    %c226_i32 = arith.constant 226 : i32
    %1128 = tpu.dynamic_rotate %6 by %c226_i32 dim 1 : vector<4x256xf32>, i32 -> vector<4x256xf32>
    %1129 = arith.mulf %4, %1128 : vector<4x256xf32>
    %cst_510 = arith.constant dense<0.000000e+00> : vector<256xf32>
    %1130 = vector.multi_reduction <add>, %1129, %cst_510 [0] : vector<4x256xf32> to vector<256xf32>
    %1131 = vector.shape_cast %1130 : vector<256xf32> to vector<1x256xf32>
    %c-2_i32_511 = arith.constant -2 : i32
    %1132 = vector.broadcast %c-2_i32_511 : i32 to vector<1x256xi32>
    %1133 = arith.cmpi sge, %7, %1132 : vector<1x256xi32>
    %c14_i32_512 = arith.constant 14 : i32
    %1134 = vector.broadcast %c14_i32_512 : i32 to vector<1x256xi32>
    %1135 = arith.cmpi slt, %7, %1134 : vector<1x256xi32>
    %1136 = arith.andi %1133, %1135 : vector<1x256xi1>
    %c2_i32_513 = arith.constant 2 : i32
    %1137 = vector.broadcast %c2_i32_513 : i32 to vector<1x256xi32>
    %1138 = arith.cmpi sge, %8, %1137 : vector<1x256xi32>
    %1139 = arith.andi %1136, %1138 : vector<1x256xi1>
    %c18_i32_514 = arith.constant 18 : i32
    %1140 = vector.broadcast %c18_i32_514 : i32 to vector<1x256xi32>
    %1141 = arith.cmpi slt, %8, %1140 : vector<1x256xi32>
    %1142 = arith.andi %1139, %1141 : vector<1x256xi1>
    %cst_515 = arith.constant 0.000000e+00 : f32
    %1143 = vector.broadcast %cst_515 : f32 to vector<1x256xf32>
    %1144 = arith.select %1142, %1131, %1143 : vector<1x256xi1>, vector<1x256xf32>
    %c56 = arith.constant 56 : index
    %c0_516 = arith.constant 0 : index
    %1145 = vector.load %arg6[%c56, %c0_516] : memref<81x256xf32, #tpu.memory_space<vmem>>, vector<1x256xf32>
    %1146 = arith.addf %1145, %1144 : vector<1x256xf32>
    %c56_517 = arith.constant 56 : index
    %c0_518 = arith.constant 0 : index
    %1147 = vector.load %arg6[%c56_517, %c0_518] : memref<81x256xf32, #tpu.memory_space<vmem>>, vector<1x256xf32>
    tpu.vector_store %arg6[%c56_517, %c0_518], %1146 {strides = array<i32>} : memref<81x256xf32, #tpu.memory_space<vmem>>, vector<1x256xf32>,
    %c225_i32 = arith.constant 225 : i32
    %1148 = tpu.dynamic_rotate %6 by %c225_i32 dim 1 : vector<4x256xf32>, i32 -> vector<4x256xf32>
    %1149 = arith.mulf %4, %1148 : vector<4x256xf32>
    %cst_519 = arith.constant dense<0.000000e+00> : vector<256xf32>
    %1150 = vector.multi_reduction <add>, %1149, %cst_519 [0] : vector<4x256xf32> to vector<256xf32>
    %1151 = vector.shape_cast %1150 : vector<256xf32> to vector<1x256xf32>
    %c-2_i32_520 = arith.constant -2 : i32
    %1152 = vector.broadcast %c-2_i32_520 : i32 to vector<1x256xi32>
    %1153 = arith.cmpi sge, %7, %1152 : vector<1x256xi32>
    %c14_i32_521 = arith.constant 14 : i32
    %1154 = vector.broadcast %c14_i32_521 : i32 to vector<1x256xi32>
    %1155 = arith.cmpi slt, %7, %1154 : vector<1x256xi32>
    %1156 = arith.andi %1153, %1155 : vector<1x256xi1>
    %c1_i32_522 = arith.constant 1 : i32
    %1157 = vector.broadcast %c1_i32_522 : i32 to vector<1x256xi32>
    %1158 = arith.cmpi sge, %8, %1157 : vector<1x256xi32>
    %1159 = arith.andi %1156, %1158 : vector<1x256xi1>
    %c17_i32_523 = arith.constant 17 : i32
    %1160 = vector.broadcast %c17_i32_523 : i32 to vector<1x256xi32>
    %1161 = arith.cmpi slt, %8, %1160 : vector<1x256xi32>
    %1162 = arith.andi %1159, %1161 : vector<1x256xi1>
    %cst_524 = arith.constant 0.000000e+00 : f32
    %1163 = vector.broadcast %cst_524 : f32 to vector<1x256xf32>
    %1164 = arith.select %1162, %1151, %1163 : vector<1x256xi1>, vector<1x256xf32>
    %c57 = arith.constant 57 : index
    %c0_525 = arith.constant 0 : index
    %1165 = vector.load %arg6[%c57, %c0_525] : memref<81x256xf32, #tpu.memory_space<vmem>>, vector<1x256xf32>
    %1166 = arith.addf %1165, %1164 : vector<1x256xf32>
    %c57_526 = arith.constant 57 : index
    %c0_527 = arith.constant 0 : index
    %1167 = vector.load %arg6[%c57_526, %c0_527] : memref<81x256xf32, #tpu.memory_space<vmem>>, vector<1x256xf32>
    tpu.vector_store %arg6[%c57_526, %c0_527], %1166 {strides = array<i32>} : memref<81x256xf32, #tpu.memory_space<vmem>>, vector<1x256xf32>,
    %c224_i32 = arith.constant 224 : i32
    %1168 = tpu.dynamic_rotate %6 by %c224_i32 dim 1 : vector<4x256xf32>, i32 -> vector<4x256xf32>
    %1169 = arith.mulf %4, %1168 : vector<4x256xf32>
    %cst_528 = arith.constant dense<0.000000e+00> : vector<256xf32>
    %1170 = vector.multi_reduction <add>, %1169, %cst_528 [0] : vector<4x256xf32> to vector<256xf32>
    %1171 = vector.shape_cast %1170 : vector<256xf32> to vector<1x256xf32>
    %c-2_i32_529 = arith.constant -2 : i32
    %1172 = vector.broadcast %c-2_i32_529 : i32 to vector<1x256xi32>
    %1173 = arith.cmpi sge, %7, %1172 : vector<1x256xi32>
    %c14_i32_530 = arith.constant 14 : i32
    %1174 = vector.broadcast %c14_i32_530 : i32 to vector<1x256xi32>
    %1175 = arith.cmpi slt, %7, %1174 : vector<1x256xi32>
    %1176 = arith.andi %1173, %1175 : vector<1x256xi1>
    %c0_i32_531 = arith.constant 0 : i32
    %1177 = vector.broadcast %c0_i32_531 : i32 to vector<1x256xi32>
    %1178 = arith.cmpi sge, %8, %1177 : vector<1x256xi32>
    %1179 = arith.andi %1176, %1178 : vector<1x256xi1>
    %c16_i32_532 = arith.constant 16 : i32
    %1180 = vector.broadcast %c16_i32_532 : i32 to vector<1x256xi32>
    %1181 = arith.cmpi slt, %8, %1180 : vector<1x256xi32>
    %1182 = arith.andi %1179, %1181 : vector<1x256xi1>
    %cst_533 = arith.constant 0.000000e+00 : f32
    %1183 = vector.broadcast %cst_533 : f32 to vector<1x256xf32>
    %1184 = arith.select %1182, %1171, %1183 : vector<1x256xi1>, vector<1x256xf32>
    %c58 = arith.constant 58 : index
    %c0_534 = arith.constant 0 : index
    %1185 = vector.load %arg6[%c58, %c0_534] : memref<81x256xf32, #tpu.memory_space<vmem>>, vector<1x256xf32>
    %1186 = arith.addf %1185, %1184 : vector<1x256xf32>
    %c58_535 = arith.constant 58 : index
    %c0_536 = arith.constant 0 : index
    %1187 = vector.load %arg6[%c58_535, %c0_536] : memref<81x256xf32, #tpu.memory_space<vmem>>, vector<1x256xf32>
    tpu.vector_store %arg6[%c58_535, %c0_536], %1186 {strides = array<i32>} : memref<81x256xf32, #tpu.memory_space<vmem>>, vector<1x256xf32>,
    %c223_i32 = arith.constant 223 : i32
    %1188 = tpu.dynamic_rotate %6 by %c223_i32 dim 1 : vector<4x256xf32>, i32 -> vector<4x256xf32>
    %1189 = arith.mulf %4, %1188 : vector<4x256xf32>
    %cst_537 = arith.constant dense<0.000000e+00> : vector<256xf32>
    %1190 = vector.multi_reduction <add>, %1189, %cst_537 [0] : vector<4x256xf32> to vector<256xf32>
    %1191 = vector.shape_cast %1190 : vector<256xf32> to vector<1x256xf32>
    %c-2_i32_538 = arith.constant -2 : i32
    %1192 = vector.broadcast %c-2_i32_538 : i32 to vector<1x256xi32>
    %1193 = arith.cmpi sge, %7, %1192 : vector<1x256xi32>
    %c14_i32_539 = arith.constant 14 : i32
    %1194 = vector.broadcast %c14_i32_539 : i32 to vector<1x256xi32>
    %1195 = arith.cmpi slt, %7, %1194 : vector<1x256xi32>
    %1196 = arith.andi %1193, %1195 : vector<1x256xi1>
    %c-1_i32_540 = arith.constant -1 : i32
    %1197 = vector.broadcast %c-1_i32_540 : i32 to vector<1x256xi32>
    %1198 = arith.cmpi sge, %8, %1197 : vector<1x256xi32>
    %1199 = arith.andi %1196, %1198 : vector<1x256xi1>
    %c15_i32_541 = arith.constant 15 : i32
    %1200 = vector.broadcast %c15_i32_541 : i32 to vector<1x256xi32>
    %1201 = arith.cmpi slt, %8, %1200 : vector<1x256xi32>
    %1202 = arith.andi %1199, %1201 : vector<1x256xi1>
    %cst_542 = arith.constant 0.000000e+00 : f32
    %1203 = vector.broadcast %cst_542 : f32 to vector<1x256xf32>
    %1204 = arith.select %1202, %1191, %1203 : vector<1x256xi1>, vector<1x256xf32>
    %c59 = arith.constant 59 : index
    %c0_543 = arith.constant 0 : index
    %1205 = vector.load %arg6[%c59, %c0_543] : memref<81x256xf32, #tpu.memory_space<vmem>>, vector<1x256xf32>
    %1206 = arith.addf %1205, %1204 : vector<1x256xf32>
    %c59_544 = arith.constant 59 : index
    %c0_545 = arith.constant 0 : index
    %1207 = vector.load %arg6[%c59_544, %c0_545] : memref<81x256xf32, #tpu.memory_space<vmem>>, vector<1x256xf32>
    tpu.vector_store %arg6[%c59_544, %c0_545], %1206 {strides = array<i32>} : memref<81x256xf32, #tpu.memory_space<vmem>>, vector<1x256xf32>,
    %c222_i32 = arith.constant 222 : i32
    %1208 = tpu.dynamic_rotate %6 by %c222_i32 dim 1 : vector<4x256xf32>, i32 -> vector<4x256xf32>
    %1209 = arith.mulf %4, %1208 : vector<4x256xf32>
    %cst_546 = arith.constant dense<0.000000e+00> : vector<256xf32>
    %1210 = vector.multi_reduction <add>, %1209, %cst_546 [0] : vector<4x256xf32> to vector<256xf32>
    %1211 = vector.shape_cast %1210 : vector<256xf32> to vector<1x256xf32>
    %c-2_i32_547 = arith.constant -2 : i32
    %1212 = vector.broadcast %c-2_i32_547 : i32 to vector<1x256xi32>
    %1213 = arith.cmpi sge, %7, %1212 : vector<1x256xi32>
    %c14_i32_548 = arith.constant 14 : i32
    %1214 = vector.broadcast %c14_i32_548 : i32 to vector<1x256xi32>
    %1215 = arith.cmpi slt, %7, %1214 : vector<1x256xi32>
    %1216 = arith.andi %1213, %1215 : vector<1x256xi1>
    %c-2_i32_549 = arith.constant -2 : i32
    %1217 = vector.broadcast %c-2_i32_549 : i32 to vector<1x256xi32>
    %1218 = arith.cmpi sge, %8, %1217 : vector<1x256xi32>
    %1219 = arith.andi %1216, %1218 : vector<1x256xi1>
    %c14_i32_550 = arith.constant 14 : i32
    %1220 = vector.broadcast %c14_i32_550 : i32 to vector<1x256xi32>
    %1221 = arith.cmpi slt, %8, %1220 : vector<1x256xi32>
    %1222 = arith.andi %1219, %1221 : vector<1x256xi1>
    %cst_551 = arith.constant 0.000000e+00 : f32
    %1223 = vector.broadcast %cst_551 : f32 to vector<1x256xf32>
    %1224 = arith.select %1222, %1211, %1223 : vector<1x256xi1>, vector<1x256xf32>
    %c60 = arith.constant 60 : index
    %c0_552 = arith.constant 0 : index
    %1225 = vector.load %arg6[%c60, %c0_552] : memref<81x256xf32, #tpu.memory_space<vmem>>, vector<1x256xf32>
    %1226 = arith.addf %1225, %1224 : vector<1x256xf32>
    %c60_553 = arith.constant 60 : index
    %c0_554 = arith.constant 0 : index
    %1227 = vector.load %arg6[%c60_553, %c0_554] : memref<81x256xf32, #tpu.memory_space<vmem>>, vector<1x256xf32>
    tpu.vector_store %arg6[%c60_553, %c0_554], %1226 {strides = array<i32>} : memref<81x256xf32, #tpu.memory_space<vmem>>, vector<1x256xf32>,
    %c221_i32 = arith.constant 221 : i32
    %1228 = tpu.dynamic_rotate %6 by %c221_i32 dim 1 : vector<4x256xf32>, i32 -> vector<4x256xf32>
    %1229 = arith.mulf %4, %1228 : vector<4x256xf32>
    %cst_555 = arith.constant dense<0.000000e+00> : vector<256xf32>
    %1230 = vector.multi_reduction <add>, %1229, %cst_555 [0] : vector<4x256xf32> to vector<256xf32>
    %1231 = vector.shape_cast %1230 : vector<256xf32> to vector<1x256xf32>
    %c-2_i32_556 = arith.constant -2 : i32
    %1232 = vector.broadcast %c-2_i32_556 : i32 to vector<1x256xi32>
    %1233 = arith.cmpi sge, %7, %1232 : vector<1x256xi32>
    %c14_i32_557 = arith.constant 14 : i32
    %1234 = vector.broadcast %c14_i32_557 : i32 to vector<1x256xi32>
    %1235 = arith.cmpi slt, %7, %1234 : vector<1x256xi32>
    %1236 = arith.andi %1233, %1235 : vector<1x256xi1>
    %c-3_i32_558 = arith.constant -3 : i32
    %1237 = vector.broadcast %c-3_i32_558 : i32 to vector<1x256xi32>
    %1238 = arith.cmpi sge, %8, %1237 : vector<1x256xi32>
    %1239 = arith.andi %1236, %1238 : vector<1x256xi1>
    %c13_i32_559 = arith.constant 13 : i32
    %1240 = vector.broadcast %c13_i32_559 : i32 to vector<1x256xi32>
    %1241 = arith.cmpi slt, %8, %1240 : vector<1x256xi32>
    %1242 = arith.andi %1239, %1241 : vector<1x256xi1>
    %cst_560 = arith.constant 0.000000e+00 : f32
    %1243 = vector.broadcast %cst_560 : f32 to vector<1x256xf32>
    %1244 = arith.select %1242, %1231, %1243 : vector<1x256xi1>, vector<1x256xf32>
    %c61 = arith.constant 61 : index
    %c0_561 = arith.constant 0 : index
    %1245 = vector.load %arg6[%c61, %c0_561] : memref<81x256xf32, #tpu.memory_space<vmem>>, vector<1x256xf32>
    %1246 = arith.addf %1245, %1244 : vector<1x256xf32>
    %c61_562 = arith.constant 61 : index
    %c0_563 = arith.constant 0 : index
    %1247 = vector.load %arg6[%c61_562, %c0_563] : memref<81x256xf32, #tpu.memory_space<vmem>>, vector<1x256xf32>
    tpu.vector_store %arg6[%c61_562, %c0_563], %1246 {strides = array<i32>} : memref<81x256xf32, #tpu.memory_space<vmem>>, vector<1x256xf32>,
    %c220_i32 = arith.constant 220 : i32
    %1248 = tpu.dynamic_rotate %6 by %c220_i32 dim 1 : vector<4x256xf32>, i32 -> vector<4x256xf32>
    %1249 = arith.mulf %4, %1248 : vector<4x256xf32>
    %cst_564 = arith.constant dense<0.000000e+00> : vector<256xf32>
    %1250 = vector.multi_reduction <add>, %1249, %cst_564 [0] : vector<4x256xf32> to vector<256xf32>
    %1251 = vector.shape_cast %1250 : vector<256xf32> to vector<1x256xf32>
    %c-2_i32_565 = arith.constant -2 : i32
    %1252 = vector.broadcast %c-2_i32_565 : i32 to vector<1x256xi32>
    %1253 = arith.cmpi sge, %7, %1252 : vector<1x256xi32>
    %c14_i32_566 = arith.constant 14 : i32
    %1254 = vector.broadcast %c14_i32_566 : i32 to vector<1x256xi32>
    %1255 = arith.cmpi slt, %7, %1254 : vector<1x256xi32>
    %1256 = arith.andi %1253, %1255 : vector<1x256xi1>
    %c-4_i32_567 = arith.constant -4 : i32
    %1257 = vector.broadcast %c-4_i32_567 : i32 to vector<1x256xi32>
    %1258 = arith.cmpi sge, %8, %1257 : vector<1x256xi32>
    %1259 = arith.andi %1256, %1258 : vector<1x256xi1>
    %c12_i32_568 = arith.constant 12 : i32
    %1260 = vector.broadcast %c12_i32_568 : i32 to vector<1x256xi32>
    %1261 = arith.cmpi slt, %8, %1260 : vector<1x256xi32>
    %1262 = arith.andi %1259, %1261 : vector<1x256xi1>
    %cst_569 = arith.constant 0.000000e+00 : f32
    %1263 = vector.broadcast %cst_569 : f32 to vector<1x256xf32>
    %1264 = arith.select %1262, %1251, %1263 : vector<1x256xi1>, vector<1x256xf32>
    %c62 = arith.constant 62 : index
    %c0_570 = arith.constant 0 : index
    %1265 = vector.load %arg6[%c62, %c0_570] : memref<81x256xf32, #tpu.memory_space<vmem>>, vector<1x256xf32>
    %1266 = arith.addf %1265, %1264 : vector<1x256xf32>
    %c62_571 = arith.constant 62 : index
    %c0_572 = arith.constant 0 : index
    %1267 = vector.load %arg6[%c62_571, %c0_572] : memref<81x256xf32, #tpu.memory_space<vmem>>, vector<1x256xf32>
    tpu.vector_store %arg6[%c62_571, %c0_572], %1266 {strides = array<i32>} : memref<81x256xf32, #tpu.memory_space<vmem>>, vector<1x256xf32>,
    %c212_i32 = arith.constant 212 : i32
    %1268 = tpu.dynamic_rotate %6 by %c212_i32 dim 1 : vector<4x256xf32>, i32 -> vector<4x256xf32>
    %1269 = arith.mulf %4, %1268 : vector<4x256xf32>
    %cst_573 = arith.constant dense<0.000000e+00> : vector<256xf32>
    %1270 = vector.multi_reduction <add>, %1269, %cst_573 [0] : vector<4x256xf32> to vector<256xf32>
    %1271 = vector.shape_cast %1270 : vector<256xf32> to vector<1x256xf32>
    %c-3_i32_574 = arith.constant -3 : i32
    %1272 = vector.broadcast %c-3_i32_574 : i32 to vector<1x256xi32>
    %1273 = arith.cmpi sge, %7, %1272 : vector<1x256xi32>
    %c13_i32_575 = arith.constant 13 : i32
    %1274 = vector.broadcast %c13_i32_575 : i32 to vector<1x256xi32>
    %1275 = arith.cmpi slt, %7, %1274 : vector<1x256xi32>
    %1276 = arith.andi %1273, %1275 : vector<1x256xi1>
    %c4_i32_576 = arith.constant 4 : i32
    %1277 = vector.broadcast %c4_i32_576 : i32 to vector<1x256xi32>
    %1278 = arith.cmpi sge, %8, %1277 : vector<1x256xi32>
    %1279 = arith.andi %1276, %1278 : vector<1x256xi1>
    %c20_i32_577 = arith.constant 20 : i32
    %1280 = vector.broadcast %c20_i32_577 : i32 to vector<1x256xi32>
    %1281 = arith.cmpi slt, %8, %1280 : vector<1x256xi32>
    %1282 = arith.andi %1279, %1281 : vector<1x256xi1>
    %cst_578 = arith.constant 0.000000e+00 : f32
    %1283 = vector.broadcast %cst_578 : f32 to vector<1x256xf32>
    %1284 = arith.select %1282, %1271, %1283 : vector<1x256xi1>, vector<1x256xf32>
    %c63 = arith.constant 63 : index
    %c0_579 = arith.constant 0 : index
    %1285 = vector.load %arg6[%c63, %c0_579] : memref<81x256xf32, #tpu.memory_space<vmem>>, vector<1x256xf32>
    %1286 = arith.addf %1285, %1284 : vector<1x256xf32>
    %c63_580 = arith.constant 63 : index
    %c0_581 = arith.constant 0 : index
    %1287 = vector.load %arg6[%c63_580, %c0_581] : memref<81x256xf32, #tpu.memory_space<vmem>>, vector<1x256xf32>
    tpu.vector_store %arg6[%c63_580, %c0_581], %1286 {strides = array<i32>} : memref<81x256xf32, #tpu.memory_space<vmem>>, vector<1x256xf32>,
    %c211_i32 = arith.constant 211 : i32
    %1288 = tpu.dynamic_rotate %6 by %c211_i32 dim 1 : vector<4x256xf32>, i32 -> vector<4x256xf32>
    %1289 = arith.mulf %4, %1288 : vector<4x256xf32>
    %cst_582 = arith.constant dense<0.000000e+00> : vector<256xf32>
    %1290 = vector.multi_reduction <add>, %1289, %cst_582 [0] : vector<4x256xf32> to vector<256xf32>
    %1291 = vector.shape_cast %1290 : vector<256xf32> to vector<1x256xf32>
    %c-3_i32_583 = arith.constant -3 : i32
    %1292 = vector.broadcast %c-3_i32_583 : i32 to vector<1x256xi32>
    %1293 = arith.cmpi sge, %7, %1292 : vector<1x256xi32>
    %c13_i32_584 = arith.constant 13 : i32
    %1294 = vector.broadcast %c13_i32_584 : i32 to vector<1x256xi32>
    %1295 = arith.cmpi slt, %7, %1294 : vector<1x256xi32>
    %1296 = arith.andi %1293, %1295 : vector<1x256xi1>
    %c3_i32_585 = arith.constant 3 : i32
    %1297 = vector.broadcast %c3_i32_585 : i32 to vector<1x256xi32>
    %1298 = arith.cmpi sge, %8, %1297 : vector<1x256xi32>
    %1299 = arith.andi %1296, %1298 : vector<1x256xi1>
    %c19_i32_586 = arith.constant 19 : i32
    %1300 = vector.broadcast %c19_i32_586 : i32 to vector<1x256xi32>
    %1301 = arith.cmpi slt, %8, %1300 : vector<1x256xi32>
    %1302 = arith.andi %1299, %1301 : vector<1x256xi1>
    %cst_587 = arith.constant 0.000000e+00 : f32
    %1303 = vector.broadcast %cst_587 : f32 to vector<1x256xf32>
    %1304 = arith.select %1302, %1291, %1303 : vector<1x256xi1>, vector<1x256xf32>
    %c64 = arith.constant 64 : index
    %c0_588 = arith.constant 0 : index
    %1305 = vector.load %arg6[%c64, %c0_588] : memref<81x256xf32, #tpu.memory_space<vmem>>, vector<1x256xf32>
    %1306 = arith.addf %1305, %1304 : vector<1x256xf32>
    %c64_589 = arith.constant 64 : index
    %c0_590 = arith.constant 0 : index
    %1307 = vector.load %arg6[%c64_589, %c0_590] : memref<81x256xf32, #tpu.memory_space<vmem>>, vector<1x256xf32>
    tpu.vector_store %arg6[%c64_589, %c0_590], %1306 {strides = array<i32>} : memref<81x256xf32, #tpu.memory_space<vmem>>, vector<1x256xf32>,
    %c210_i32 = arith.constant 210 : i32
    %1308 = tpu.dynamic_rotate %6 by %c210_i32 dim 1 : vector<4x256xf32>, i32 -> vector<4x256xf32>
    %1309 = arith.mulf %4, %1308 : vector<4x256xf32>
    %cst_591 = arith.constant dense<0.000000e+00> : vector<256xf32>
    %1310 = vector.multi_reduction <add>, %1309, %cst_591 [0] : vector<4x256xf32> to vector<256xf32>
    %1311 = vector.shape_cast %1310 : vector<256xf32> to vector<1x256xf32>
    %c-3_i32_592 = arith.constant -3 : i32
    %1312 = vector.broadcast %c-3_i32_592 : i32 to vector<1x256xi32>
    %1313 = arith.cmpi sge, %7, %1312 : vector<1x256xi32>
    %c13_i32_593 = arith.constant 13 : i32
    %1314 = vector.broadcast %c13_i32_593 : i32 to vector<1x256xi32>
    %1315 = arith.cmpi slt, %7, %1314 : vector<1x256xi32>
    %1316 = arith.andi %1313, %1315 : vector<1x256xi1>
    %c2_i32_594 = arith.constant 2 : i32
    %1317 = vector.broadcast %c2_i32_594 : i32 to vector<1x256xi32>
    %1318 = arith.cmpi sge, %8, %1317 : vector<1x256xi32>
    %1319 = arith.andi %1316, %1318 : vector<1x256xi1>
    %c18_i32_595 = arith.constant 18 : i32
    %1320 = vector.broadcast %c18_i32_595 : i32 to vector<1x256xi32>
    %1321 = arith.cmpi slt, %8, %1320 : vector<1x256xi32>
    %1322 = arith.andi %1319, %1321 : vector<1x256xi1>
    %cst_596 = arith.constant 0.000000e+00 : f32
    %1323 = vector.broadcast %cst_596 : f32 to vector<1x256xf32>
    %1324 = arith.select %1322, %1311, %1323 : vector<1x256xi1>, vector<1x256xf32>
    %c65 = arith.constant 65 : index
    %c0_597 = arith.constant 0 : index
    %1325 = vector.load %arg6[%c65, %c0_597] : memref<81x256xf32, #tpu.memory_space<vmem>>, vector<1x256xf32>
    %1326 = arith.addf %1325, %1324 : vector<1x256xf32>
    %c65_598 = arith.constant 65 : index
    %c0_599 = arith.constant 0 : index
    %1327 = vector.load %arg6[%c65_598, %c0_599] : memref<81x256xf32, #tpu.memory_space<vmem>>, vector<1x256xf32>
    tpu.vector_store %arg6[%c65_598, %c0_599], %1326 {strides = array<i32>} : memref<81x256xf32, #tpu.memory_space<vmem>>, vector<1x256xf32>,
    %c209_i32 = arith.constant 209 : i32
    %1328 = tpu.dynamic_rotate %6 by %c209_i32 dim 1 : vector<4x256xf32>, i32 -> vector<4x256xf32>
    %1329 = arith.mulf %4, %1328 : vector<4x256xf32>
    %cst_600 = arith.constant dense<0.000000e+00> : vector<256xf32>
    %1330 = vector.multi_reduction <add>, %1329, %cst_600 [0] : vector<4x256xf32> to vector<256xf32>
    %1331 = vector.shape_cast %1330 : vector<256xf32> to vector<1x256xf32>
    %c-3_i32_601 = arith.constant -3 : i32
    %1332 = vector.broadcast %c-3_i32_601 : i32 to vector<1x256xi32>
    %1333 = arith.cmpi sge, %7, %1332 : vector<1x256xi32>
    %c13_i32_602 = arith.constant 13 : i32
    %1334 = vector.broadcast %c13_i32_602 : i32 to vector<1x256xi32>
    %1335 = arith.cmpi slt, %7, %1334 : vector<1x256xi32>
    %1336 = arith.andi %1333, %1335 : vector<1x256xi1>
    %c1_i32_603 = arith.constant 1 : i32
    %1337 = vector.broadcast %c1_i32_603 : i32 to vector<1x256xi32>
    %1338 = arith.cmpi sge, %8, %1337 : vector<1x256xi32>
    %1339 = arith.andi %1336, %1338 : vector<1x256xi1>
    %c17_i32_604 = arith.constant 17 : i32
    %1340 = vector.broadcast %c17_i32_604 : i32 to vector<1x256xi32>
    %1341 = arith.cmpi slt, %8, %1340 : vector<1x256xi32>
    %1342 = arith.andi %1339, %1341 : vector<1x256xi1>
    %cst_605 = arith.constant 0.000000e+00 : f32
    %1343 = vector.broadcast %cst_605 : f32 to vector<1x256xf32>
    %1344 = arith.select %1342, %1331, %1343 : vector<1x256xi1>, vector<1x256xf32>
    %c66 = arith.constant 66 : index
    %c0_606 = arith.constant 0 : index
    %1345 = vector.load %arg6[%c66, %c0_606] : memref<81x256xf32, #tpu.memory_space<vmem>>, vector<1x256xf32>
    %1346 = arith.addf %1345, %1344 : vector<1x256xf32>
    %c66_607 = arith.constant 66 : index
    %c0_608 = arith.constant 0 : index
    %1347 = vector.load %arg6[%c66_607, %c0_608] : memref<81x256xf32, #tpu.memory_space<vmem>>, vector<1x256xf32>
    tpu.vector_store %arg6[%c66_607, %c0_608], %1346 {strides = array<i32>} : memref<81x256xf32, #tpu.memory_space<vmem>>, vector<1x256xf32>,
    %c208_i32 = arith.constant 208 : i32
    %1348 = tpu.dynamic_rotate %6 by %c208_i32 dim 1 : vector<4x256xf32>, i32 -> vector<4x256xf32>
    %1349 = arith.mulf %4, %1348 : vector<4x256xf32>
    %cst_609 = arith.constant dense<0.000000e+00> : vector<256xf32>
    %1350 = vector.multi_reduction <add>, %1349, %cst_609 [0] : vector<4x256xf32> to vector<256xf32>
    %1351 = vector.shape_cast %1350 : vector<256xf32> to vector<1x256xf32>
    %c-3_i32_610 = arith.constant -3 : i32
    %1352 = vector.broadcast %c-3_i32_610 : i32 to vector<1x256xi32>
    %1353 = arith.cmpi sge, %7, %1352 : vector<1x256xi32>
    %c13_i32_611 = arith.constant 13 : i32
    %1354 = vector.broadcast %c13_i32_611 : i32 to vector<1x256xi32>
    %1355 = arith.cmpi slt, %7, %1354 : vector<1x256xi32>
    %1356 = arith.andi %1353, %1355 : vector<1x256xi1>
    %c0_i32_612 = arith.constant 0 : i32
    %1357 = vector.broadcast %c0_i32_612 : i32 to vector<1x256xi32>
    %1358 = arith.cmpi sge, %8, %1357 : vector<1x256xi32>
    %1359 = arith.andi %1356, %1358 : vector<1x256xi1>
    %c16_i32_613 = arith.constant 16 : i32
    %1360 = vector.broadcast %c16_i32_613 : i32 to vector<1x256xi32>
    %1361 = arith.cmpi slt, %8, %1360 : vector<1x256xi32>
    %1362 = arith.andi %1359, %1361 : vector<1x256xi1>
    %cst_614 = arith.constant 0.000000e+00 : f32
    %1363 = vector.broadcast %cst_614 : f32 to vector<1x256xf32>
    %1364 = arith.select %1362, %1351, %1363 : vector<1x256xi1>, vector<1x256xf32>
    %c67 = arith.constant 67 : index
    %c0_615 = arith.constant 0 : index
    %1365 = vector.load %arg6[%c67, %c0_615] : memref<81x256xf32, #tpu.memory_space<vmem>>, vector<1x256xf32>
    %1366 = arith.addf %1365, %1364 : vector<1x256xf32>
    %c67_616 = arith.constant 67 : index
    %c0_617 = arith.constant 0 : index
    %1367 = vector.load %arg6[%c67_616, %c0_617] : memref<81x256xf32, #tpu.memory_space<vmem>>, vector<1x256xf32>
    tpu.vector_store %arg6[%c67_616, %c0_617], %1366 {strides = array<i32>} : memref<81x256xf32, #tpu.memory_space<vmem>>, vector<1x256xf32>,
    %c207_i32 = arith.constant 207 : i32
    %1368 = tpu.dynamic_rotate %6 by %c207_i32 dim 1 : vector<4x256xf32>, i32 -> vector<4x256xf32>
    %1369 = arith.mulf %4, %1368 : vector<4x256xf32>
    %cst_618 = arith.constant dense<0.000000e+00> : vector<256xf32>
    %1370 = vector.multi_reduction <add>, %1369, %cst_618 [0] : vector<4x256xf32> to vector<256xf32>
    %1371 = vector.shape_cast %1370 : vector<256xf32> to vector<1x256xf32>
    %c-3_i32_619 = arith.constant -3 : i32
    %1372 = vector.broadcast %c-3_i32_619 : i32 to vector<1x256xi32>
    %1373 = arith.cmpi sge, %7, %1372 : vector<1x256xi32>
    %c13_i32_620 = arith.constant 13 : i32
    %1374 = vector.broadcast %c13_i32_620 : i32 to vector<1x256xi32>
    %1375 = arith.cmpi slt, %7, %1374 : vector<1x256xi32>
    %1376 = arith.andi %1373, %1375 : vector<1x256xi1>
    %c-1_i32_621 = arith.constant -1 : i32
    %1377 = vector.broadcast %c-1_i32_621 : i32 to vector<1x256xi32>
    %1378 = arith.cmpi sge, %8, %1377 : vector<1x256xi32>
    %1379 = arith.andi %1376, %1378 : vector<1x256xi1>
    %c15_i32_622 = arith.constant 15 : i32
    %1380 = vector.broadcast %c15_i32_622 : i32 to vector<1x256xi32>
    %1381 = arith.cmpi slt, %8, %1380 : vector<1x256xi32>
    %1382 = arith.andi %1379, %1381 : vector<1x256xi1>
    %cst_623 = arith.constant 0.000000e+00 : f32
    %1383 = vector.broadcast %cst_623 : f32 to vector<1x256xf32>
    %1384 = arith.select %1382, %1371, %1383 : vector<1x256xi1>, vector<1x256xf32>
    %c68 = arith.constant 68 : index
    %c0_624 = arith.constant 0 : index
    %1385 = vector.load %arg6[%c68, %c0_624] : memref<81x256xf32, #tpu.memory_space<vmem>>, vector<1x256xf32>
    %1386 = arith.addf %1385, %1384 : vector<1x256xf32>
    %c68_625 = arith.constant 68 : index
    %c0_626 = arith.constant 0 : index
    %1387 = vector.load %arg6[%c68_625, %c0_626] : memref<81x256xf32, #tpu.memory_space<vmem>>, vector<1x256xf32>
    tpu.vector_store %arg6[%c68_625, %c0_626], %1386 {strides = array<i32>} : memref<81x256xf32, #tpu.memory_space<vmem>>, vector<1x256xf32>,
    %c206_i32 = arith.constant 206 : i32
    %1388 = tpu.dynamic_rotate %6 by %c206_i32 dim 1 : vector<4x256xf32>, i32 -> vector<4x256xf32>
    %1389 = arith.mulf %4, %1388 : vector<4x256xf32>
    %cst_627 = arith.constant dense<0.000000e+00> : vector<256xf32>
    %1390 = vector.multi_reduction <add>, %1389, %cst_627 [0] : vector<4x256xf32> to vector<256xf32>
    %1391 = vector.shape_cast %1390 : vector<256xf32> to vector<1x256xf32>
    %c-3_i32_628 = arith.constant -3 : i32
    %1392 = vector.broadcast %c-3_i32_628 : i32 to vector<1x256xi32>
    %1393 = arith.cmpi sge, %7, %1392 : vector<1x256xi32>
    %c13_i32_629 = arith.constant 13 : i32
    %1394 = vector.broadcast %c13_i32_629 : i32 to vector<1x256xi32>
    %1395 = arith.cmpi slt, %7, %1394 : vector<1x256xi32>
    %1396 = arith.andi %1393, %1395 : vector<1x256xi1>
    %c-2_i32_630 = arith.constant -2 : i32
    %1397 = vector.broadcast %c-2_i32_630 : i32 to vector<1x256xi32>
    %1398 = arith.cmpi sge, %8, %1397 : vector<1x256xi32>
    %1399 = arith.andi %1396, %1398 : vector<1x256xi1>
    %c14_i32_631 = arith.constant 14 : i32
    %1400 = vector.broadcast %c14_i32_631 : i32 to vector<1x256xi32>
    %1401 = arith.cmpi slt, %8, %1400 : vector<1x256xi32>
    %1402 = arith.andi %1399, %1401 : vector<1x256xi1>
    %cst_632 = arith.constant 0.000000e+00 : f32
    %1403 = vector.broadcast %cst_632 : f32 to vector<1x256xf32>
    %1404 = arith.select %1402, %1391, %1403 : vector<1x256xi1>, vector<1x256xf32>
    %c69 = arith.constant 69 : index
    %c0_633 = arith.constant 0 : index
    %1405 = vector.load %arg6[%c69, %c0_633] : memref<81x256xf32, #tpu.memory_space<vmem>>, vector<1x256xf32>
    %1406 = arith.addf %1405, %1404 : vector<1x256xf32>
    %c69_634 = arith.constant 69 : index
    %c0_635 = arith.constant 0 : index
    %1407 = vector.load %arg6[%c69_634, %c0_635] : memref<81x256xf32, #tpu.memory_space<vmem>>, vector<1x256xf32>
    tpu.vector_store %arg6[%c69_634, %c0_635], %1406 {strides = array<i32>} : memref<81x256xf32, #tpu.memory_space<vmem>>, vector<1x256xf32>,
    %c205_i32 = arith.constant 205 : i32
    %1408 = tpu.dynamic_rotate %6 by %c205_i32 dim 1 : vector<4x256xf32>, i32 -> vector<4x256xf32>
    %1409 = arith.mulf %4, %1408 : vector<4x256xf32>
    %cst_636 = arith.constant dense<0.000000e+00> : vector<256xf32>
    %1410 = vector.multi_reduction <add>, %1409, %cst_636 [0] : vector<4x256xf32> to vector<256xf32>
    %1411 = vector.shape_cast %1410 : vector<256xf32> to vector<1x256xf32>
    %c-3_i32_637 = arith.constant -3 : i32
    %1412 = vector.broadcast %c-3_i32_637 : i32 to vector<1x256xi32>
    %1413 = arith.cmpi sge, %7, %1412 : vector<1x256xi32>
    %c13_i32_638 = arith.constant 13 : i32
    %1414 = vector.broadcast %c13_i32_638 : i32 to vector<1x256xi32>
    %1415 = arith.cmpi slt, %7, %1414 : vector<1x256xi32>
    %1416 = arith.andi %1413, %1415 : vector<1x256xi1>
    %c-3_i32_639 = arith.constant -3 : i32
    %1417 = vector.broadcast %c-3_i32_639 : i32 to vector<1x256xi32>
    %1418 = arith.cmpi sge, %8, %1417 : vector<1x256xi32>
    %1419 = arith.andi %1416, %1418 : vector<1x256xi1>
    %c13_i32_640 = arith.constant 13 : i32
    %1420 = vector.broadcast %c13_i32_640 : i32 to vector<1x256xi32>
    %1421 = arith.cmpi slt, %8, %1420 : vector<1x256xi32>
    %1422 = arith.andi %1419, %1421 : vector<1x256xi1>
    %cst_641 = arith.constant 0.000000e+00 : f32
    %1423 = vector.broadcast %cst_641 : f32 to vector<1x256xf32>
    %1424 = arith.select %1422, %1411, %1423 : vector<1x256xi1>, vector<1x256xf32>
    %c70 = arith.constant 70 : index
    %c0_642 = arith.constant 0 : index
    %1425 = vector.load %arg6[%c70, %c0_642] : memref<81x256xf32, #tpu.memory_space<vmem>>, vector<1x256xf32>
    %1426 = arith.addf %1425, %1424 : vector<1x256xf32>
    %c70_643 = arith.constant 70 : index
    %c0_644 = arith.constant 0 : index
    %1427 = vector.load %arg6[%c70_643, %c0_644] : memref<81x256xf32, #tpu.memory_space<vmem>>, vector<1x256xf32>
    tpu.vector_store %arg6[%c70_643, %c0_644], %1426 {strides = array<i32>} : memref<81x256xf32, #tpu.memory_space<vmem>>, vector<1x256xf32>,
    %c204_i32 = arith.constant 204 : i32
    %1428 = tpu.dynamic_rotate %6 by %c204_i32 dim 1 : vector<4x256xf32>, i32 -> vector<4x256xf32>
    %1429 = arith.mulf %4, %1428 : vector<4x256xf32>
    %cst_645 = arith.constant dense<0.000000e+00> : vector<256xf32>
    %1430 = vector.multi_reduction <add>, %1429, %cst_645 [0] : vector<4x256xf32> to vector<256xf32>
    %1431 = vector.shape_cast %1430 : vector<256xf32> to vector<1x256xf32>
    %c-3_i32_646 = arith.constant -3 : i32
    %1432 = vector.broadcast %c-3_i32_646 : i32 to vector<1x256xi32>
    %1433 = arith.cmpi sge, %7, %1432 : vector<1x256xi32>
    %c13_i32_647 = arith.constant 13 : i32
    %1434 = vector.broadcast %c13_i32_647 : i32 to vector<1x256xi32>
    %1435 = arith.cmpi slt, %7, %1434 : vector<1x256xi32>
    %1436 = arith.andi %1433, %1435 : vector<1x256xi1>
    %c-4_i32_648 = arith.constant -4 : i32
    %1437 = vector.broadcast %c-4_i32_648 : i32 to vector<1x256xi32>
    %1438 = arith.cmpi sge, %8, %1437 : vector<1x256xi32>
    %1439 = arith.andi %1436, %1438 : vector<1x256xi1>
    %c12_i32_649 = arith.constant 12 : i32
    %1440 = vector.broadcast %c12_i32_649 : i32 to vector<1x256xi32>
    %1441 = arith.cmpi slt, %8, %1440 : vector<1x256xi32>
    %1442 = arith.andi %1439, %1441 : vector<1x256xi1>
    %cst_650 = arith.constant 0.000000e+00 : f32
    %1443 = vector.broadcast %cst_650 : f32 to vector<1x256xf32>
    %1444 = arith.select %1442, %1431, %1443 : vector<1x256xi1>, vector<1x256xf32>
    %c71 = arith.constant 71 : index
    %c0_651 = arith.constant 0 : index
    %1445 = vector.load %arg6[%c71, %c0_651] : memref<81x256xf32, #tpu.memory_space<vmem>>, vector<1x256xf32>
    %1446 = arith.addf %1445, %1444 : vector<1x256xf32>
    %c71_652 = arith.constant 71 : index
    %c0_653 = arith.constant 0 : index
    %1447 = vector.load %arg6[%c71_652, %c0_653] : memref<81x256xf32, #tpu.memory_space<vmem>>, vector<1x256xf32>
    tpu.vector_store %arg6[%c71_652, %c0_653], %1446 {strides = array<i32>} : memref<81x256xf32, #tpu.memory_space<vmem>>, vector<1x256xf32>,
    %c196_i32 = arith.constant 196 : i32
    %1448 = tpu.dynamic_rotate %6 by %c196_i32 dim 1 : vector<4x256xf32>, i32 -> vector<4x256xf32>
    %1449 = arith.mulf %4, %1448 : vector<4x256xf32>
    %cst_654 = arith.constant dense<0.000000e+00> : vector<256xf32>
    %1450 = vector.multi_reduction <add>, %1449, %cst_654 [0] : vector<4x256xf32> to vector<256xf32>
    %1451 = vector.shape_cast %1450 : vector<256xf32> to vector<1x256xf32>
    %c-4_i32_655 = arith.constant -4 : i32
    %1452 = vector.broadcast %c-4_i32_655 : i32 to vector<1x256xi32>
    %1453 = arith.cmpi sge, %7, %1452 : vector<1x256xi32>
    %c12_i32_656 = arith.constant 12 : i32
    %1454 = vector.broadcast %c12_i32_656 : i32 to vector<1x256xi32>
    %1455 = arith.cmpi slt, %7, %1454 : vector<1x256xi32>
    %1456 = arith.andi %1453, %1455 : vector<1x256xi1>
    %c4_i32_657 = arith.constant 4 : i32
    %1457 = vector.broadcast %c4_i32_657 : i32 to vector<1x256xi32>
    %1458 = arith.cmpi sge, %8, %1457 : vector<1x256xi32>
    %1459 = arith.andi %1456, %1458 : vector<1x256xi1>
    %c20_i32_658 = arith.constant 20 : i32
    %1460 = vector.broadcast %c20_i32_658 : i32 to vector<1x256xi32>
    %1461 = arith.cmpi slt, %8, %1460 : vector<1x256xi32>
    %1462 = arith.andi %1459, %1461 : vector<1x256xi1>
    %cst_659 = arith.constant 0.000000e+00 : f32
    %1463 = vector.broadcast %cst_659 : f32 to vector<1x256xf32>
    %1464 = arith.select %1462, %1451, %1463 : vector<1x256xi1>, vector<1x256xf32>
    %c72 = arith.constant 72 : index
    %c0_660 = arith.constant 0 : index
    %1465 = vector.load %arg6[%c72, %c0_660] : memref<81x256xf32, #tpu.memory_space<vmem>>, vector<1x256xf32>
    %1466 = arith.addf %1465, %1464 : vector<1x256xf32>
    %c72_661 = arith.constant 72 : index
    %c0_662 = arith.constant 0 : index
    %1467 = vector.load %arg6[%c72_661, %c0_662] : memref<81x256xf32, #tpu.memory_space<vmem>>, vector<1x256xf32>
    tpu.vector_store %arg6[%c72_661, %c0_662], %1466 {strides = array<i32>} : memref<81x256xf32, #tpu.memory_space<vmem>>, vector<1x256xf32>,
    %c195_i32 = arith.constant 195 : i32
    %1468 = tpu.dynamic_rotate %6 by %c195_i32 dim 1 : vector<4x256xf32>, i32 -> vector<4x256xf32>
    %1469 = arith.mulf %4, %1468 : vector<4x256xf32>
    %cst_663 = arith.constant dense<0.000000e+00> : vector<256xf32>
    %1470 = vector.multi_reduction <add>, %1469, %cst_663 [0] : vector<4x256xf32> to vector<256xf32>
    %1471 = vector.shape_cast %1470 : vector<256xf32> to vector<1x256xf32>
    %c-4_i32_664 = arith.constant -4 : i32
    %1472 = vector.broadcast %c-4_i32_664 : i32 to vector<1x256xi32>
    %1473 = arith.cmpi sge, %7, %1472 : vector<1x256xi32>
    %c12_i32_665 = arith.constant 12 : i32
    %1474 = vector.broadcast %c12_i32_665 : i32 to vector<1x256xi32>
    %1475 = arith.cmpi slt, %7, %1474 : vector<1x256xi32>
    %1476 = arith.andi %1473, %1475 : vector<1x256xi1>
    %c3_i32_666 = arith.constant 3 : i32
    %1477 = vector.broadcast %c3_i32_666 : i32 to vector<1x256xi32>
    %1478 = arith.cmpi sge, %8, %1477 : vector<1x256xi32>
    %1479 = arith.andi %1476, %1478 : vector<1x256xi1>
    %c19_i32_667 = arith.constant 19 : i32
    %1480 = vector.broadcast %c19_i32_667 : i32 to vector<1x256xi32>
    %1481 = arith.cmpi slt, %8, %1480 : vector<1x256xi32>
    %1482 = arith.andi %1479, %1481 : vector<1x256xi1>
    %cst_668 = arith.constant 0.000000e+00 : f32
    %1483 = vector.broadcast %cst_668 : f32 to vector<1x256xf32>
    %1484 = arith.select %1482, %1471, %1483 : vector<1x256xi1>, vector<1x256xf32>
    %c73 = arith.constant 73 : index
    %c0_669 = arith.constant 0 : index
    %1485 = vector.load %arg6[%c73, %c0_669] : memref<81x256xf32, #tpu.memory_space<vmem>>, vector<1x256xf32>
    %1486 = arith.addf %1485, %1484 : vector<1x256xf32>
    %c73_670 = arith.constant 73 : index
    %c0_671 = arith.constant 0 : index
    %1487 = vector.load %arg6[%c73_670, %c0_671] : memref<81x256xf32, #tpu.memory_space<vmem>>, vector<1x256xf32>
    tpu.vector_store %arg6[%c73_670, %c0_671], %1486 {strides = array<i32>} : memref<81x256xf32, #tpu.memory_space<vmem>>, vector<1x256xf32>,
    %c194_i32 = arith.constant 194 : i32
    %1488 = tpu.dynamic_rotate %6 by %c194_i32 dim 1 : vector<4x256xf32>, i32 -> vector<4x256xf32>
    %1489 = arith.mulf %4, %1488 : vector<4x256xf32>
    %cst_672 = arith.constant dense<0.000000e+00> : vector<256xf32>
    %1490 = vector.multi_reduction <add>, %1489, %cst_672 [0] : vector<4x256xf32> to vector<256xf32>
    %1491 = vector.shape_cast %1490 : vector<256xf32> to vector<1x256xf32>
    %c-4_i32_673 = arith.constant -4 : i32
    %1492 = vector.broadcast %c-4_i32_673 : i32 to vector<1x256xi32>
    %1493 = arith.cmpi sge, %7, %1492 : vector<1x256xi32>
    %c12_i32_674 = arith.constant 12 : i32
    %1494 = vector.broadcast %c12_i32_674 : i32 to vector<1x256xi32>
    %1495 = arith.cmpi slt, %7, %1494 : vector<1x256xi32>
    %1496 = arith.andi %1493, %1495 : vector<1x256xi1>
    %c2_i32_675 = arith.constant 2 : i32
    %1497 = vector.broadcast %c2_i32_675 : i32 to vector<1x256xi32>
    %1498 = arith.cmpi sge, %8, %1497 : vector<1x256xi32>
    %1499 = arith.andi %1496, %1498 : vector<1x256xi1>
    %c18_i32_676 = arith.constant 18 : i32
    %1500 = vector.broadcast %c18_i32_676 : i32 to vector<1x256xi32>
    %1501 = arith.cmpi slt, %8, %1500 : vector<1x256xi32>
    %1502 = arith.andi %1499, %1501 : vector<1x256xi1>
    %cst_677 = arith.constant 0.000000e+00 : f32
    %1503 = vector.broadcast %cst_677 : f32 to vector<1x256xf32>
    %1504 = arith.select %1502, %1491, %1503 : vector<1x256xi1>, vector<1x256xf32>
    %c74 = arith.constant 74 : index
    %c0_678 = arith.constant 0 : index
    %1505 = vector.load %arg6[%c74, %c0_678] : memref<81x256xf32, #tpu.memory_space<vmem>>, vector<1x256xf32>
    %1506 = arith.addf %1505, %1504 : vector<1x256xf32>
    %c74_679 = arith.constant 74 : index
    %c0_680 = arith.constant 0 : index
    %1507 = vector.load %arg6[%c74_679, %c0_680] : memref<81x256xf32, #tpu.memory_space<vmem>>, vector<1x256xf32>
    tpu.vector_store %arg6[%c74_679, %c0_680], %1506 {strides = array<i32>} : memref<81x256xf32, #tpu.memory_space<vmem>>, vector<1x256xf32>,
    %c193_i32 = arith.constant 193 : i32
    %1508 = tpu.dynamic_rotate %6 by %c193_i32 dim 1 : vector<4x256xf32>, i32 -> vector<4x256xf32>
    %1509 = arith.mulf %4, %1508 : vector<4x256xf32>
    %cst_681 = arith.constant dense<0.000000e+00> : vector<256xf32>
    %1510 = vector.multi_reduction <add>, %1509, %cst_681 [0] : vector<4x256xf32> to vector<256xf32>
    %1511 = vector.shape_cast %1510 : vector<256xf32> to vector<1x256xf32>
    %c-4_i32_682 = arith.constant -4 : i32
    %1512 = vector.broadcast %c-4_i32_682 : i32 to vector<1x256xi32>
    %1513 = arith.cmpi sge, %7, %1512 : vector<1x256xi32>
    %c12_i32_683 = arith.constant 12 : i32
    %1514 = vector.broadcast %c12_i32_683 : i32 to vector<1x256xi32>
    %1515 = arith.cmpi slt, %7, %1514 : vector<1x256xi32>
    %1516 = arith.andi %1513, %1515 : vector<1x256xi1>
    %c1_i32_684 = arith.constant 1 : i32
    %1517 = vector.broadcast %c1_i32_684 : i32 to vector<1x256xi32>
    %1518 = arith.cmpi sge, %8, %1517 : vector<1x256xi32>
    %1519 = arith.andi %1516, %1518 : vector<1x256xi1>
    %c17_i32_685 = arith.constant 17 : i32
    %1520 = vector.broadcast %c17_i32_685 : i32 to vector<1x256xi32>
    %1521 = arith.cmpi slt, %8, %1520 : vector<1x256xi32>
    %1522 = arith.andi %1519, %1521 : vector<1x256xi1>
    %cst_686 = arith.constant 0.000000e+00 : f32
    %1523 = vector.broadcast %cst_686 : f32 to vector<1x256xf32>
    %1524 = arith.select %1522, %1511, %1523 : vector<1x256xi1>, vector<1x256xf32>
    %c75 = arith.constant 75 : index
    %c0_687 = arith.constant 0 : index
    %1525 = vector.load %arg6[%c75, %c0_687] : memref<81x256xf32, #tpu.memory_space<vmem>>, vector<1x256xf32>
    %1526 = arith.addf %1525, %1524 : vector<1x256xf32>
    %c75_688 = arith.constant 75 : index
    %c0_689 = arith.constant 0 : index
    %1527 = vector.load %arg6[%c75_688, %c0_689] : memref<81x256xf32, #tpu.memory_space<vmem>>, vector<1x256xf32>
    tpu.vector_store %arg6[%c75_688, %c0_689], %1526 {strides = array<i32>} : memref<81x256xf32, #tpu.memory_space<vmem>>, vector<1x256xf32>,
    %c192_i32 = arith.constant 192 : i32
    %1528 = tpu.dynamic_rotate %6 by %c192_i32 dim 1 : vector<4x256xf32>, i32 -> vector<4x256xf32>
    %1529 = arith.mulf %4, %1528 : vector<4x256xf32>
    %cst_690 = arith.constant dense<0.000000e+00> : vector<256xf32>
    %1530 = vector.multi_reduction <add>, %1529, %cst_690 [0] : vector<4x256xf32> to vector<256xf32>
    %1531 = vector.shape_cast %1530 : vector<256xf32> to vector<1x256xf32>
    %c-4_i32_691 = arith.constant -4 : i32
    %1532 = vector.broadcast %c-4_i32_691 : i32 to vector<1x256xi32>
    %1533 = arith.cmpi sge, %7, %1532 : vector<1x256xi32>
    %c12_i32_692 = arith.constant 12 : i32
    %1534 = vector.broadcast %c12_i32_692 : i32 to vector<1x256xi32>
    %1535 = arith.cmpi slt, %7, %1534 : vector<1x256xi32>
    %1536 = arith.andi %1533, %1535 : vector<1x256xi1>
    %c0_i32_693 = arith.constant 0 : i32
    %1537 = vector.broadcast %c0_i32_693 : i32 to vector<1x256xi32>
    %1538 = arith.cmpi sge, %8, %1537 : vector<1x256xi32>
    %1539 = arith.andi %1536, %1538 : vector<1x256xi1>
    %c16_i32_694 = arith.constant 16 : i32
    %1540 = vector.broadcast %c16_i32_694 : i32 to vector<1x256xi32>
    %1541 = arith.cmpi slt, %8, %1540 : vector<1x256xi32>
    %1542 = arith.andi %1539, %1541 : vector<1x256xi1>
    %cst_695 = arith.constant 0.000000e+00 : f32
    %1543 = vector.broadcast %cst_695 : f32 to vector<1x256xf32>
    %1544 = arith.select %1542, %1531, %1543 : vector<1x256xi1>, vector<1x256xf32>
    %c76 = arith.constant 76 : index
    %c0_696 = arith.constant 0 : index
    %1545 = vector.load %arg6[%c76, %c0_696] : memref<81x256xf32, #tpu.memory_space<vmem>>, vector<1x256xf32>
    %1546 = arith.addf %1545, %1544 : vector<1x256xf32>
    %c76_697 = arith.constant 76 : index
    %c0_698 = arith.constant 0 : index
    %1547 = vector.load %arg6[%c76_697, %c0_698] : memref<81x256xf32, #tpu.memory_space<vmem>>, vector<1x256xf32>
    tpu.vector_store %arg6[%c76_697, %c0_698], %1546 {strides = array<i32>} : memref<81x256xf32, #tpu.memory_space<vmem>>, vector<1x256xf32>,
    %c191_i32 = arith.constant 191 : i32
    %1548 = tpu.dynamic_rotate %6 by %c191_i32 dim 1 : vector<4x256xf32>, i32 -> vector<4x256xf32>
    %1549 = arith.mulf %4, %1548 : vector<4x256xf32>
    %cst_699 = arith.constant dense<0.000000e+00> : vector<256xf32>
    %1550 = vector.multi_reduction <add>, %1549, %cst_699 [0] : vector<4x256xf32> to vector<256xf32>
    %1551 = vector.shape_cast %1550 : vector<256xf32> to vector<1x256xf32>
    %c-4_i32_700 = arith.constant -4 : i32
    %1552 = vector.broadcast %c-4_i32_700 : i32 to vector<1x256xi32>
    %1553 = arith.cmpi sge, %7, %1552 : vector<1x256xi32>
    %c12_i32_701 = arith.constant 12 : i32
    %1554 = vector.broadcast %c12_i32_701 : i32 to vector<1x256xi32>
    %1555 = arith.cmpi slt, %7, %1554 : vector<1x256xi32>
    %1556 = arith.andi %1553, %1555 : vector<1x256xi1>
    %c-1_i32_702 = arith.constant -1 : i32
    %1557 = vector.broadcast %c-1_i32_702 : i32 to vector<1x256xi32>
    %1558 = arith.cmpi sge, %8, %1557 : vector<1x256xi32>
    %1559 = arith.andi %1556, %1558 : vector<1x256xi1>
    %c15_i32_703 = arith.constant 15 : i32
    %1560 = vector.broadcast %c15_i32_703 : i32 to vector<1x256xi32>
    %1561 = arith.cmpi slt, %8, %1560 : vector<1x256xi32>
    %1562 = arith.andi %1559, %1561 : vector<1x256xi1>
    %cst_704 = arith.constant 0.000000e+00 : f32
    %1563 = vector.broadcast %cst_704 : f32 to vector<1x256xf32>
    %1564 = arith.select %1562, %1551, %1563 : vector<1x256xi1>, vector<1x256xf32>
    %c77 = arith.constant 77 : index
    %c0_705 = arith.constant 0 : index
    %1565 = vector.load %arg6[%c77, %c0_705] : memref<81x256xf32, #tpu.memory_space<vmem>>, vector<1x256xf32>
    %1566 = arith.addf %1565, %1564 : vector<1x256xf32>
    %c77_706 = arith.constant 77 : index
    %c0_707 = arith.constant 0 : index
    %1567 = vector.load %arg6[%c77_706, %c0_707] : memref<81x256xf32, #tpu.memory_space<vmem>>, vector<1x256xf32>
    tpu.vector_store %arg6[%c77_706, %c0_707], %1566 {strides = array<i32>} : memref<81x256xf32, #tpu.memory_space<vmem>>, vector<1x256xf32>,
    %c190_i32 = arith.constant 190 : i32
    %1568 = tpu.dynamic_rotate %6 by %c190_i32 dim 1 : vector<4x256xf32>, i32 -> vector<4x256xf32>
    %1569 = arith.mulf %4, %1568 : vector<4x256xf32>
    %cst_708 = arith.constant dense<0.000000e+00> : vector<256xf32>
    %1570 = vector.multi_reduction <add>, %1569, %cst_708 [0] : vector<4x256xf32> to vector<256xf32>
    %1571 = vector.shape_cast %1570 : vector<256xf32> to vector<1x256xf32>
    %c-4_i32_709 = arith.constant -4 : i32
    %1572 = vector.broadcast %c-4_i32_709 : i32 to vector<1x256xi32>
    %1573 = arith.cmpi sge, %7, %1572 : vector<1x256xi32>
    %c12_i32_710 = arith.constant 12 : i32
    %1574 = vector.broadcast %c12_i32_710 : i32 to vector<1x256xi32>
    %1575 = arith.cmpi slt, %7, %1574 : vector<1x256xi32>
    %1576 = arith.andi %1573, %1575 : vector<1x256xi1>
    %c-2_i32_711 = arith.constant -2 : i32
    %1577 = vector.broadcast %c-2_i32_711 : i32 to vector<1x256xi32>
    %1578 = arith.cmpi sge, %8, %1577 : vector<1x256xi32>
    %1579 = arith.andi %1576, %1578 : vector<1x256xi1>
    %c14_i32_712 = arith.constant 14 : i32
    %1580 = vector.broadcast %c14_i32_712 : i32 to vector<1x256xi32>
    %1581 = arith.cmpi slt, %8, %1580 : vector<1x256xi32>
    %1582 = arith.andi %1579, %1581 : vector<1x256xi1>
    %cst_713 = arith.constant 0.000000e+00 : f32
    %1583 = vector.broadcast %cst_713 : f32 to vector<1x256xf32>
    %1584 = arith.select %1582, %1571, %1583 : vector<1x256xi1>, vector<1x256xf32>
    %c78 = arith.constant 78 : index
    %c0_714 = arith.constant 0 : index
    %1585 = vector.load %arg6[%c78, %c0_714] : memref<81x256xf32, #tpu.memory_space<vmem>>, vector<1x256xf32>
    %1586 = arith.addf %1585, %1584 : vector<1x256xf32>
    %c78_715 = arith.constant 78 : index
    %c0_716 = arith.constant 0 : index
    %1587 = vector.load %arg6[%c78_715, %c0_716] : memref<81x256xf32, #tpu.memory_space<vmem>>, vector<1x256xf32>
    tpu.vector_store %arg6[%c78_715, %c0_716], %1586 {strides = array<i32>} : memref<81x256xf32, #tpu.memory_space<vmem>>, vector<1x256xf32>,
    %c189_i32 = arith.constant 189 : i32
    %1588 = tpu.dynamic_rotate %6 by %c189_i32 dim 1 : vector<4x256xf32>, i32 -> vector<4x256xf32>
    %1589 = arith.mulf %4, %1588 : vector<4x256xf32>
    %cst_717 = arith.constant dense<0.000000e+00> : vector<256xf32>
    %1590 = vector.multi_reduction <add>, %1589, %cst_717 [0] : vector<4x256xf32> to vector<256xf32>
    %1591 = vector.shape_cast %1590 : vector<256xf32> to vector<1x256xf32>
    %c-4_i32_718 = arith.constant -4 : i32
    %1592 = vector.broadcast %c-4_i32_718 : i32 to vector<1x256xi32>
    %1593 = arith.cmpi sge, %7, %1592 : vector<1x256xi32>
    %c12_i32_719 = arith.constant 12 : i32
    %1594 = vector.broadcast %c12_i32_719 : i32 to vector<1x256xi32>
    %1595 = arith.cmpi slt, %7, %1594 : vector<1x256xi32>
    %1596 = arith.andi %1593, %1595 : vector<1x256xi1>
    %c-3_i32_720 = arith.constant -3 : i32
    %1597 = vector.broadcast %c-3_i32_720 : i32 to vector<1x256xi32>
    %1598 = arith.cmpi sge, %8, %1597 : vector<1x256xi32>
    %1599 = arith.andi %1596, %1598 : vector<1x256xi1>
    %c13_i32_721 = arith.constant 13 : i32
    %1600 = vector.broadcast %c13_i32_721 : i32 to vector<1x256xi32>
    %1601 = arith.cmpi slt, %8, %1600 : vector<1x256xi32>
    %1602 = arith.andi %1599, %1601 : vector<1x256xi1>
    %cst_722 = arith.constant 0.000000e+00 : f32
    %1603 = vector.broadcast %cst_722 : f32 to vector<1x256xf32>
    %1604 = arith.select %1602, %1591, %1603 : vector<1x256xi1>, vector<1x256xf32>
    %c79 = arith.constant 79 : index
    %c0_723 = arith.constant 0 : index
    %1605 = vector.load %arg6[%c79, %c0_723] : memref<81x256xf32, #tpu.memory_space<vmem>>, vector<1x256xf32>
    %1606 = arith.addf %1605, %1604 : vector<1x256xf32>
    %c79_724 = arith.constant 79 : index
    %c0_725 = arith.constant 0 : index
    %1607 = vector.load %arg6[%c79_724, %c0_725] : memref<81x256xf32, #tpu.memory_space<vmem>>, vector<1x256xf32>
    tpu.vector_store %arg6[%c79_724, %c0_725], %1606 {strides = array<i32>} : memref<81x256xf32, #tpu.memory_space<vmem>>, vector<1x256xf32>,
    %c188_i32 = arith.constant 188 : i32
    %1608 = tpu.dynamic_rotate %6 by %c188_i32 dim 1 : vector<4x256xf32>, i32 -> vector<4x256xf32>
    %1609 = arith.mulf %4, %1608 : vector<4x256xf32>
    %cst_726 = arith.constant dense<0.000000e+00> : vector<256xf32>
    %1610 = vector.multi_reduction <add>, %1609, %cst_726 [0] : vector<4x256xf32> to vector<256xf32>
    %1611 = vector.shape_cast %1610 : vector<256xf32> to vector<1x256xf32>
    %c-4_i32_727 = arith.constant -4 : i32
    %1612 = vector.broadcast %c-4_i32_727 : i32 to vector<1x256xi32>
    %1613 = arith.cmpi sge, %7, %1612 : vector<1x256xi32>
    %c12_i32_728 = arith.constant 12 : i32
    %1614 = vector.broadcast %c12_i32_728 : i32 to vector<1x256xi32>
    %1615 = arith.cmpi slt, %7, %1614 : vector<1x256xi32>
    %1616 = arith.andi %1613, %1615 : vector<1x256xi1>
    %c-4_i32_729 = arith.constant -4 : i32
    %1617 = vector.broadcast %c-4_i32_729 : i32 to vector<1x256xi32>
    %1618 = arith.cmpi sge, %8, %1617 : vector<1x256xi32>
    %1619 = arith.andi %1616, %1618 : vector<1x256xi1>
    %c12_i32_730 = arith.constant 12 : i32
    %1620 = vector.broadcast %c12_i32_730 : i32 to vector<1x256xi32>
    %1621 = arith.cmpi slt, %8, %1620 : vector<1x256xi32>
    %1622 = arith.andi %1619, %1621 : vector<1x256xi1>
    %cst_731 = arith.constant 0.000000e+00 : f32
    %1623 = vector.broadcast %cst_731 : f32 to vector<1x256xf32>
    %1624 = arith.select %1622, %1611, %1623 : vector<1x256xi1>, vector<1x256xf32>
    %c80 = arith.constant 80 : index
    %c0_732 = arith.constant 0 : index
    %1625 = vector.load %arg6[%c80, %c0_732] : memref<81x256xf32, #tpu.memory_space<vmem>>, vector<1x256xf32>
    %1626 = arith.addf %1625, %1624 : vector<1x256xf32>
    %c80_733 = arith.constant 80 : index
    %c0_734 = arith.constant 0 : index
    %1627 = vector.load %arg6[%c80_733, %c0_734] : memref<81x256xf32, #tpu.memory_space<vmem>>, vector<1x256xf32>
    tpu.vector_store %arg6[%c80_733, %c0_734], %1626 {strides = array<i32>} : memref<81x256xf32, #tpu.memory_space<vmem>>, vector<1x256xf32>,
    %c0_i32_735 = arith.constant 0 : i32
    %1628 = arith.cmpi eq, %arg1, %c0_i32_735 : i32
    %1629 = arith.extui %1628 : i1 to i32
    %c0_i32_736 = arith.constant 0 : i32
    %1630 = arith.cmpi ne, %1629, %c0_i32_736 : i32
    scf.if %1630 {
      %c0_737 = arith.constant 0 : index
      %c0_738 = arith.constant 0 : index
      %1631 = vector.load %arg6[%c0_737, %c0_738] : memref<81x256xf32, #tpu.memory_space<vmem>>, vector<81x256xf32>
      %cst_739 = arith.constant 2.500000e-01 : f32
      %1632 = vector.broadcast %cst_739 : f32 to vector<81x256xf32>
      %1633 = arith.mulf %1631, %1632 : vector<81x256xf32>
      %c0_740 = arith.constant 0 : index
      %c0_741 = arith.constant 0 : index
      %c0_742 = arith.constant 0 : index
      %1634 = vector.load %arg5[%c0_740, %c0_741, %c0_742] : memref<1x81x256xf32, #tpu.memory_space<vmem>>, vector<1x81x256xf32>
      %1635 = vector.shape_cast %1634 : vector<1x81x256xf32> to vector<81x256xf32>
      %1636 = vector.shape_cast %1633 : vector<81x256xf32> to vector<1x81x256xf32>
      tpu.vector_store %arg5[%c0_740, %c0_741, %c0_742], %1636 {strides = array<i32>} : memref<1x81x256xf32, #tpu.memory_space<vmem>>, vector<1x81x256xf32>,
    } else {
    }
    return
  }
  func.func @transform_0(%arg0: i32, %arg1: i32) -> (i32, i32) {
    %c0_i32 = arith.constant 0 : i32
    %c0_i32_0 = arith.constant 0 : i32
    %c0_i32_1 = arith.constant 0 : i32
    return %c0_i32, %c0_i32_0 : i32, i32
  }
  func.func @transform_1(%arg0: i32, %arg1: i32) -> (i32, i32, i32) {
    %c0_i32 = arith.constant 0 : i32
    %c0_i32_0 = arith.constant 0 : i32
    return %arg0, %arg1, %c0_i32 : i32, i32, i32
  }
  func.func @transform_2(%arg0: i32, %arg1: i32) -> (i32, i32, i32) {
    %c0_i32 = arith.constant 0 : i32
    %c0_i32_0 = arith.constant 0 : i32
    return %arg0, %arg1, %c0_i32 : i32, i32, i32
  }
  func.func @transform_3(%arg0: i32, %arg1: i32) -> (i32, i32, i32) {
    %c0_i32 = arith.constant 0 : i32
    %c0_i32_0 = arith.constant 0 : i32
    %c0_i32_1 = arith.constant 0 : i32
    return %arg0, %c0_i32, %c0_i32_0 : i32, i32, i32
  }
}

</mosaic_0001>

<llo_original>
// kernel: tpu_custom_call.1
$region0: #{tpu_custom_call.1}
  #allocation0 [shape = 'u32[]', space=smem, size = 0x4, offset = 0x4, fixed_abs, tag = 'smem constant byte address 0x4 - core index']
  #allocation1 [shape = 'u32[144,128]{1,0:T(1,128)}', space=vmem, size = 0x12000, scoped, tag = 'internal scratch']
  #allocation2 [shape = 'f32[81,256]{1,0:T(8,128)}', space=vmem, size = 0x16000, scoped, tag = 'scratch operand']
  %s0 = inlined_call_operand.hbm [shape: s32[2,256], index: 0, kind: input, shape index: {}]
  %s1 = inlined_call_operand.hbm [shape: f32[2,4,256], index: 1, kind: input, shape index: {}]
  %s2 = inlined_call_operand.hbm [shape: f32[2,4,256], index: 2, kind: input, shape index: {}]
  %s3 = inlined_call_operand.vmem [shape: f32[2,81,256], index: 3, kind: output, shape index: {}]
  %s4 = sld [smem:[#allocation0]]
  $region65: #{tpu_custom_call.1} parent=0
    _
  %s6 = ssub.s32 1, %s4
  %s7 = scalar_select 0, %s6, %s4
  $region1: #{tpu_custom_call.1} parent=0
    #allocation3 [shape = 'u8[2048]{0}', space=vmem, size = 0x800, scoped, tag = 'input window, operand 0, single buffered']
    #allocation4 [shape = 's32[2]{0}', space=sflag, size = 0x8, scoped, tag = 'scoped memory for tpu_custom_call.1']
    #allocation5 [shape = 'u8[8192]{0}', space=vmem, size = 0x2000, scoped, tag = 'input window, operand 1']
    #allocation6 [shape = 's32[2]{0}', space=sflag, size = 0x8, scoped, tag = 'scoped memory for tpu_custom_call.1']
    #allocation7 [shape = 'u8[8192]{0}', space=vmem, size = 0x2000, scoped, tag = 'input window, operand 2']
    %8 = vsyncpa [#allocation4], 0
    %9 = vsyncpa [#allocation6], 0
    %s10 = scalar_lea.sflag [#allocation6], 1
    %11 = vsyncpa %s10, 0
    loop: start=0, step=1, limit=4
    $region2: #{tpu_custom_call.1} parent=1 // loop_pre_header
      _
    $region3: #{tpu_custom_call.1} parent=1 // loop_header
      %s13 = sphi 0, %s17
      %p14 = scmp.ge.s32.totalorder %s13, 4
      %s20 = sphi 0, %s32
      %s21 = sphi 0, %s28
      %s22 = sphi 0, %s20
      %s23 = sphi 0, %s21
      %s24 = sphi 0, %s22
      %s25 = sphi 0, %s23
      %s33 = sphi 0, %s33
      %s35 = sphi 0, %s33
      %s36 = sphi 0, %s35
      %s50 = sphi 0, %s36
      %s58 = sphi 0, %s60
      %s61 = sphi 0, %s58
      %s62 = sphi 0, %s61
      %s78 = sphi 0, %s62
      %s86 = sphi 0, %s88
      %s89 = sphi 0, %s86
      %s90 = sphi 0, %s89
      %s106 = sphi 0, %s90
      %s112 = sphi 0, %s114
      %s115 = sphi 0, %s112
      %s116 = sphi 0, %s115
      %s132 = sphi 0, %s116
    $region4: #{tpu_custom_call.1} parent=1 // loop_header_branch
      %16 = sbr.rel (%p14) target = $region8
    $region5: #{tpu_custom_call.1} parent=1 // loop_body
      %s18 = ssub.s32 %s13, 1
      %s19 = ssub.s32 %s13, 2
      %s26 = sadd.s32 1, %s21
      %p27 = scmp.ge.s32.totalorder %s26, 1
      %s28 = scalar_select %p27, 0, %s26
      %s29 = sadd.s32 1, %s20
      %s30 = scalar_select %p27, %s29, %s20
      %p31 = scmp.ge.s32.totalorder %s30, 2
      %s32 = scalar_select %p31, 0, %s30
      %s34 = sadd.s32 %s33, 1
      %p37 = scmp.eq.s32.totalorder %s13, 1
      %p38 = scmp.ne.s32.totalorder %s33, %s35
      %p39 = scmp.eq.s32.totalorder %s13, 0
      %p40 = por %p38, %p39
      %p41 = scmp.ne.s32.totalorder %s33, %s35
      %p42 = scmp.eq.s32.totalorder %s18, 1
      %p43 = por %p41, %p42
      %p44 = scmp.ne.s32.totalorder %s35, %s36
      %p45 = scmp.eq.s32.totalorder %s18, 0
      %p46 = por %p44, %p45
      %p47 = scmp.ne.s32.totalorder %s35, %s36
      %p48 = scmp.eq.s32.totalorder %s19, 1
      %p49 = por %p47, %p48
      %p51 = scmp.ne.s32.totalorder %s36, %s50
      %p52 = scmp.eq.s32.totalorder %s19, 0
      %p53 = por %p51, %p52
      %s54 = ssub.s32 %s20, %s32
      %s55 = ssub.s32 %s21, %s28
      %s56 = sor.u32 %s54, %s55
      %p57 = scmp.eq.s32.totalorder %s56, 0
      %s59 = sadd.s32 %s58, 1
      %s60 = scalar_select %p57, %s58, %s59
      %p63 = pneg %p57
      %p64 = scmp.eq.s32.totalorder %s13, 1
      %p65 = por %p63, %p64
      %p66 = scmp.ne.s32.totalorder %s58, %s61
      %p67 = scmp.eq.s32.totalorder %s13, 0
      %p68 = por %p66, %p67
      %p69 = scmp.ne.s32.totalorder %s58, %s61
      %p70 = scmp.eq.s32.totalorder %s18, 1
      %p71 = por %p69, %p70
      %p72 = scmp.ne.s32.totalorder %s61, %s62
      %p73 = scmp.eq.s32.totalorder %s18, 0
      %p74 = por %p72, %p73
      %p75 = scmp.ne.s32.totalorder %s61, %s62
      %p76 = scmp.eq.s32.totalorder %s19, 1
      %p77 = por %p75, %p76
      %p79 = scmp.ne.s32.totalorder %s62, %s78
      %p80 = scmp.eq.s32.totalorder %s19, 0
      %p81 = por %p79, %p80
      %s82 = ssub.s32 %s20, %s32
      %s83 = ssub.s32 %s21, %s28
      %s84 = sor.u32 %s82, %s83
      %p85 = scmp.eq.s32.totalorder %s84, 0
      %s87 = sadd.s32 %s86, 1
      %s88 = scalar_select %p85, %s86, %s87
      %p91 = pneg %p85
      %p92 = scmp.eq.s32.totalorder %s13, 1
      %p93 = por %p91, %p92
      %p94 = scmp.ne.s32.totalorder %s86, %s89
      %p95 = scmp.eq.s32.totalorder %s13, 0
      %p96 = por %p94, %p95
      %p97 = scmp.ne.s32.totalorder %s86, %s89
      %p98 = scmp.eq.s32.totalorder %s18, 1
      %p99 = por %p97, %p98
      %p100 = scmp.ne.s32.totalorder %s89, %s90
      %p101 = scmp.eq.s32.totalorder %s18, 0
      %p102 = por %p100, %p101
      %p103 = scmp.ne.s32.totalorder %s89, %s90
      %p104 = scmp.eq.s32.totalorder %s19, 1
      %p105 = por %p103, %p104
      %p107 = scmp.ne.s32.totalorder %s90, %s106
      %p108 = scmp.eq.s32.totalorder %s19, 0
      %p109 = por %p107, %p108
      %s110 = ssub.s32 %s20, %s32
      %p111 = scmp.eq.s32.totalorder %s110, 0
      %s113 = sadd.s32 %s112, 1
      %s114 = scalar_select %p111, %s112, %s113
      %p117 = pneg %p111
      %p118 = scmp.eq.s32.totalorder %s13, 1
      %p119 = por %p117, %p118
      %p120 = scmp.ne.s32.totalorder %s112, %s115
      %p121 = scmp.eq.s32.totalorder %s13, 0
      %p122 = por %p120, %p121
      %p123 = scmp.ne.s32.totalorder %s112, %s115
      %p124 = scmp.eq.s32.totalorder %s18, 1
      %p125 = por %p123, %p124
      %p126 = scmp.ne.s32.totalorder %s115, %s116
      %p127 = scmp.eq.s32.totalorder %s18, 0
      %p128 = por %p126, %p127
      %p129 = scmp.ne.s32.totalorder %s115, %s116
      %p130 = scmp.eq.s32.totalorder %s19, 1
      %p131 = por %p129, %p130
      %p133 = scmp.ne.s32.totalorder %s116, %s132
      %p134 = scmp.eq.s32.totalorder %s19, 0
      %p135 = por %p133, %p134
      %p136 = scmp.le.s32.totalorder 1, %s13
      %p137 = scmp.lt.s32.totalorder %s13, 3
      %p138 = pnand %p136, %p137
      %p139 = pneg %p138
      // Predicated region
      $region9: #{tpu_custom_call.1} parent=5 // pred_check
        _
      $region10: #{tpu_custom_call.1} parent=5 // pred_check_branch
        %141 = sbr.rel (%p138) target = $region12
      $region11: #{tpu_custom_call.1} parent=5 // pred_region
        %s142 = ssub.s32 %s13, 1
        // Predicated region
        $region13: #{tpu_custom_call.1} parent=11 // pred_check
          %p143 = pneg %p46
        $region14: #{tpu_custom_call.1} parent=11 // pred_check_branch
          %145 = sbr.rel (%p143) target = $region16
        $region15: #{tpu_custom_call.1} parent=11 // pred_region
          %s147 = ssub.s32 64, 64
          %148 = vsyncadd [#allocation4], %s147
          %s150 = sshll.u32 [#allocation3], 4
          %s151 = int_to_ptr.vmem [resolvable:$true] %s150
          %153 = dma.hbm_to_vmem [thread:$0]  %s0, 64, %s151, [#allocation4]
        $region16: #{tpu_custom_call.1} parent=11 // pred_fallthru
          _
      $region12: #{tpu_custom_call.1} parent=5 // pred_fallthru
        _
      %p154 = scmp.lt.s32.totalorder %s13, 2
      // Predicated region
      $region17: #{tpu_custom_call.1} parent=5 // pred_check
        %p155 = pneg %p154
      $region18: #{tpu_custom_call.1} parent=5 // pred_check_branch
        %157 = sbr.rel (%p155) target = $region20
      $region19: #{tpu_custom_call.1} parent=5 // pred_region
        // Predicated region
        $region21: #{tpu_custom_call.1} parent=19 // pred_check
          %p158 = pneg %p68
        $region22: #{tpu_custom_call.1} parent=19 // pred_check_branch
          %160 = sbr.rel (%p158) target = $region24
        $region23: #{tpu_custom_call.1} parent=19 // pred_region
          %s161 = sand.u32 %s13, 1
          %s162 = scalar_lea.sflag [#allocation6], %s161
          %s163 = sand.u32 %s58, 1
          %s164 = smul.addr %s163, 8
          %s165 = scalar_lea.vmem [#allocation5], %s164
          %s167 = ssub.s32 128, 128
          %168 = vsyncadd %s162, %s167
          %s169 = smul.addr %s21, 2
          %s170 = smul.addr %s20, 2
          %s171 = sadd.s32 %s169, %s170
          %s172 = smul.addr %s171, 64
          %s173 = scalar_lea.hbm %s1, %s172
          %s175 = sshll.u32 %s165, 4
          %s176 = int_to_ptr.vmem [resolvable:$true] %s175
          %178 = dma.hbm_to_vmem [thread:$0]  %s173, 128, %s176, %s162
        $region24: #{tpu_custom_call.1} parent=19 // pred_fallthru
          _
        // Predicated region
        $region25: #{tpu_custom_call.1} parent=19 // pred_check
          %p179 = pneg %p96
        $region26: #{tpu_custom_call.1} parent=19 // pred_check_branch
          %181 = sbr.rel (%p179) target = $region28
        $region27: #{tpu_custom_call.1} parent=19 // pred_region
          %s182 = sand.u32 %s13, 1
          %s183 = scalar_lea.sflag [#allocation6], %s182
          %s184 = sand.u32 %s86, 1
          %s185 = smul.addr %s184, 8
          %s186 = scalar_lea.vmem [#allocation7], %s185
          %s188 = ssub.s32 128, 128
          %189 = vsyncadd %s183, %s188
          %s190 = smul.addr %s21, 2
          %s191 = smul.addr %s20, 2
          %s192 = sadd.s32 %s190, %s191
          %s193 = smul.addr %s192, 64
          %s194 = scalar_lea.hbm %s2, %s193
          %s196 = sshll.u32 %s186, 4
          %s197 = int_to_ptr.vmem [resolvable:$true] %s196
          %199 = dma.hbm_to_vmem [thread:$0]  %s194, 128, %s197, %s183
        $region28: #{tpu_custom_call.1} parent=19 // pred_fallthru
          _
      $region20: #{tpu_custom_call.1} parent=5 // pred_fallthru
        _
      %p200 = scmp.le.s32.totalorder 1, %s13
      %p201 = scmp.lt.s32.totalorder %s13, 3
      %p202 = pnand %p200, %p201
      %p203 = pneg %p202
      // Predicated region
      $region29: #{tpu_custom_call.1} parent=5 // pred_check
        _
      $region30: #{tpu_custom_call.1} parent=5 // pred_check_branch
        %205 = sbr.rel (%p202) target = $region32
      $region31: #{tpu_custom_call.1} parent=5 // pred_region
        %s206 = ssub.s32 %s13, 1
        // Predicated region
        $region33: #{tpu_custom_call.1} parent=31 // pred_check
          %p207 = pneg %p46
        $region34: #{tpu_custom_call.1} parent=31 // pred_check_branch
          %209 = sbr.rel (%p207) target = $region36
        $region35: #{tpu_custom_call.1} parent=31 // pred_region
          %210 = dma.done [#allocation4], 64
        $region36: #{tpu_custom_call.1} parent=31 // pred_fallthru
          _
        %s211 = sand.u32 %s18, 1
        %s212 = scalar_lea.sflag [#allocation6], %s211
        %s213 = sand.u32 %s61, 1
        %s214 = smul.addr %s213, 8
        %s215 = scalar_lea.vmem [#allocation5], %s214
        // Predicated region
        $region37: #{tpu_custom_call.1} parent=31 // pred_check
          %p216 = pneg %p74
        $region38: #{tpu_custom_call.1} parent=31 // pred_check_branch
          %218 = sbr.rel (%p216) target = $region40
        $region39: #{tpu_custom_call.1} parent=31 // pred_region
          %219 = dma.done %s212, 128
        $region40: #{tpu_custom_call.1} parent=31 // pred_fallthru
          _
        %s220 = sand.u32 %s18, 1
        %s221 = scalar_lea.sflag [#allocation6], %s220
        %s222 = sand.u32 %s89, 1
        %s223 = smul.addr %s222, 8
        %s224 = scalar_lea.vmem [#allocation7], %s223
        // Predicated region
        $region41: #{tpu_custom_call.1} parent=31 // pred_check
          %p225 = pneg %p102
        $region42: #{tpu_custom_call.1} parent=31 // pred_check_branch
          %227 = sbr.rel (%p225) target = $region44
        $region43: #{tpu_custom_call.1} parent=31 // pred_region
          %228 = dma.done %s221, 128
        $region44: #{tpu_custom_call.1} parent=31 // pred_fallthru
          _
        %p229 = pneg %p46
        %p230 = pneg %p43
        %s231 = sand.u32 %s18, 1
        %s232 = scalar_lea.sflag [#allocation6], %s231
        %s233 = sand.u32 %s61, 1
        %s234 = smul.addr %s233, 8
        %s235 = scalar_lea.vmem [#allocation5], %s234
        %p236 = pneg %p74
        %p237 = pneg %p71
        %s238 = sand.u32 %s18, 1
        %s239 = scalar_lea.sflag [#allocation6], %s238
        %s240 = sand.u32 %s89, 1
        %s241 = smul.addr %s240, 8
        %s242 = scalar_lea.vmem [#allocation7], %s241
        %p243 = pneg %p102
        %p244 = pneg %p99
        %p245 = pneg %p128
        %p246 = pneg %p125
        %p247 = scmp.lt.s32.totalorder %s22, 1
        %s248 = scalar_select %p247, %s22, 1
        %s249 = smul.addr %s248, 22
        %s250 = smul.addr %s249, 8
        %s251 = scalar_lea.vmem %s3, %s250
        %p252 = scmp.lt.s32.totalorder %s22, 1
        %s253 = scalar_select %p252, %s22, 1
        %s254 = smul.addr %s253, 22
        %s255 = smul.addr %s254, 8
        %s256 = scalar_lea.vmem %s3, %s255
        %p257 = scmp.eq.s32.totalorder %s23, 0
        // Predicated region
        $region45: #{tpu_custom_call.1} parent=31 // pred_check
          %p258 = pneg %p257
        $region46: #{tpu_custom_call.1} parent=31 // pred_check_branch
          %260 = sbr.rel (%p258) target = $region48
        $region47: #{tpu_custom_call.1} parent=31 // pred_region
          %261 = vst [vmem:[#allocation2] sm:$0xff] 0.0
          %262 = vst [vmem:[#allocation2 + $0x8] sm:$0xff] 0.0
          %263 = vst [vmem:[#allocation2 + $0x10] sm:$0xff] 0.0
          %264 = vst [vmem:[#allocation2 + $0x18] sm:$0xff] 0.0
          %265 = vst [vmem:[#allocation2 + $0x20] sm:$0xff] 0.0
          %266 = vst [vmem:[#allocation2 + $0x28] sm:$0xff] 0.0
          %267 = vst [vmem:[#allocation2 + $0x30] sm:$0xff] 0.0
          %268 = vst [vmem:[#allocation2 + $0x38] sm:$0xff] 0.0
          %269 = vst [vmem:[#allocation2 + $0x40] sm:$0xff] 0.0
          %270 = vst [vmem:[#allocation2 + $0x48] sm:$0xff] 0.0
          %271 = vst [vmem:[#allocation2 + $0x50] sm:$0xff] 0.0
          %272 = vst [vmem:[#allocation2 + $0x58] sm:$0xff] 0.0
          %273 = vst [vmem:[#allocation2 + $0x60] sm:$0xff] 0.0
          %274 = vst [vmem:[#allocation2 + $0x68] sm:$0xff] 0.0
          %275 = vst [vmem:[#allocation2 + $0x70] sm:$0xff] 0.0
          %276 = vst [vmem:[#allocation2 + $0x78] sm:$0xff] 0.0
          %277 = vst [vmem:[#allocation2 + $0x80] sm:$0xff] 0.0
          %278 = vst [vmem:[#allocation2 + $0x88] sm:$0xff] 0.0
          %279 = vst [vmem:[#allocation2 + $0x90] sm:$0xff] 0.0
          %280 = vst [vmem:[#allocation2 + $0x98] sm:$0xff] 0.0
          %281 = vst [vmem:[#allocation2 + $0xa0] sm:$0x1] 0.0
          %282 = vst [vmem:[#allocation2 + $0xa8] sm:$0x1] 0.0
        $region48: #{tpu_custom_call.1} parent=31 // pred_fallthru
          _
        %v283 = vld [vmem:[%s215] sm:$0xff]
        %v284 = vld [vmem:[%s224] sm:$0xff]
        %v285 = vld [vmem:[#allocation3] ss:$2 sm:$0x3]
        %s286 = scalar_lea.vmem [#allocation3], 1
        %v287 = vld [vmem:[%s286] ss:$2 sm:$0x3]
        %v289 = vcombine.high %v284, %v284
        %291 = vrot.lane.b32.xlu0 %v284, 68
        %v292 = vpop.permute.xlu0 %291
        %293 = vrot.lane.b32.xlu0 %v289, 68
        %v294 = vpop.permute.xlu0 %293
        %v295 = vlaneseq
        %v296 = vand.u32 %v295, 127
        %vm297 = vcmp.lt.s32.totalorder %v296, 68
        %v298 = vsel %vm297, %v292, %v294
        %v299 = vsel %vm297, %v294, %v292
        %v302 = vcombine.low %v299, %v298
        %v304 = vmul.f32 %v283, %v302
        %v306 = vcombine.high %v304, %v304
        %vm308 = vcmask 1043456
        %v309 = vsel %vm308, %v304, 0.0
        %v310 = vrot.slane %v309, 4
        %v311 = vadd.f32 %v309, %v310
        %v312 = vrot.slane %v311, 2
        %v313 = vadd.f32 %v311, %v312
        %v314 = vrot.slane %v313, 1
        %v315 = vadd.f32 %v313, %v314
        %v316 = vsel %vm308, %v306, 0.0
        %v317 = vrot.slane %v316, 4
        %v318 = vadd.f32 %v316, %v317
        %v319 = vrot.slane %v318, 2
        %v320 = vadd.f32 %v318, %v319
        %v321 = vrot.slane %v320, 1
        %v322 = vadd.f32 %v320, %v321
        %vm323 = vcmp.ge.s32.totalorder %v285, 4
        %vm324 = vcmp.lt.s32.totalorder %v285, 20
        %vm325 = vmand %vm323, %vm324
        %vm326 = vcmp.ge.s32.totalorder %v287, 4
        %vm327 = vmand %vm325, %vm326
        %vm328 = vcmp.lt.s32.totalorder %v287, 20
        %vm329 = vmand %vm327, %vm328
        %v332 = vcombine.low %v315, %v322
        %v334 = vunpack.c.l.s4 1966171168
        %v335 = vunpack.c.0.s8 %v334
        %v336 = vlaneseq
        %v337 = vshrl.u32 %v336, 7
        %v338 = vsub.s32 %v335, %v337
        %v339 = vrot.slane %v332, %v338
        %v341 = vunpack.c.l.s4 1966171168
        %v342 = vunpack.c.0.s8 %v341
        %v343 = vlaneseq
        %v344 = vshrl.u32 %v343, 7
        %v345 = vsub.s32 %v342, %v344
        %v346 = vrot.slane %v339, %v345
        %v348 = vsel %vm329, %v346, 0.0
        %v349 = vld [vmem:[#allocation2] ss:$8 sm:$0x3]
        %v350 = vadd.f32 %v349, %v348
        %v351 = vlaneseq
        %vm352 = vcmp.ge.s32.totalorder %v351, 0
        %vm353 = vcmp.lt.s32.totalorder %v351, 256
        %vm354 = vmand %vm352, %vm353
        %355 = vst.msk [vmem:[#allocation2] ss:$8 sm:$0x3] %vm354, %v350
        %356 = vst.msk [vmem:[#allocation2] ss:$8 sm:$0x0] %vm354, %v350
        %357 = vrot.lane.b32.xlu0 %v284, 67
        %v358 = vpop.permute.xlu0 %357
        %359 = vrot.lane.b32.xlu0 %v289, 67
        %v360 = vpop.permute.xlu0 %359
        %vm361 = vcmp.lt.s32.totalorder %v296, 67
        %v362 = vsel %vm361, %v358, %v360
        %v363 = vsel %vm361, %v360, %v358
        %v366 = vcombine.low %v363, %v362
        %v368 = vmul.f32 %v283, %v366
        %v370 = vcombine.high %v368, %v368
        %v372 = vsel %vm308, %v368, 0.0
        %v373 = vrot.slane %v372, 4
        %v374 = vadd.f32 %v372, %v373
        %v375 = vrot.slane %v374, 2
        %v376 = vadd.f32 %v374, %v375
        %v377 = vrot.slane %v376, 1
        %v378 = vadd.f32 %v376, %v377
        %v379 = vsel %vm308, %v370, 0.0
        %v380 = vrot.slane %v379, 4
        %v381 = vadd.f32 %v379, %v380
        %v382 = vrot.slane %v381, 2
        %v383 = vadd.f32 %v381, %v382
        %v384 = vrot.slane %v383, 1
        %v385 = vadd.f32 %v383, %v384
        %vm386 = vcmp.ge.s32.totalorder %v287, 3
        %vm387 = vmand %vm325, %vm386
        %vm388 = vcmp.lt.s32.totalorder %v287, 19
        %vm389 = vmand %vm387, %vm388
        %v392 = vcombine.low %v378, %v385
        %v394 = vunpack.c.l.s4 1966171168
        %v395 = vunpack.c.0.s8 %v394
        %v396 = vlaneseq
        %v397 = vshrl.u32 %v396, 7
        %v398 = vsub.s32 %v395, %v397
        %v399 = vrot.slane %v392, %v398
        %v401 = vunpack.c.l.s4 1966171168
        %v402 = vunpack.c.0.s8 %v401
        %v403 = vlaneseq
        %v404 = vshrl.u32 %v403, 7
        %v405 = vsub.s32 %v402, %v404
        %v406 = vrot.slane %v399, %v405
        %v408 = vsel %vm389, %v406, 0.0
        %s409 = scalar_lea.vmem [#allocation2], 1
        %v410 = vld [vmem:[%s409] ss:$8 sm:$0x3]
        %v411 = vadd.f32 %v410, %v408
        %412 = vst.msk [vmem:[%s409] ss:$8 sm:$0x3] %vm354, %v411
        %413 = vst.msk [vmem:[%s409] ss:$8 sm:$0x0] %vm354, %v411
        %414 = vrot.lane.b32.xlu0 %v284, 66
        %v415 = vpop.permute.xlu0 %414
        %416 = vrot.lane.b32.xlu0 %v289, 66
        %v417 = vpop.permute.xlu0 %416
        %vm418 = vcmp.lt.s32.totalorder %v296, 66
        %v419 = vsel %vm418, %v415, %v417
        %v420 = vsel %vm418, %v417, %v415
        %v423 = vcombine.low %v420, %v419
        %v425 = vmul.f32 %v283, %v423
        %v427 = vcombine.high %v425, %v425
        %v429 = vsel %vm308, %v425, 0.0
        %v430 = vrot.slane %v429, 4
        %v431 = vadd.f32 %v429, %v430
        %v432 = vrot.slane %v431, 2
        %v433 = vadd.f32 %v431, %v432
        %v434 = vrot.slane %v433, 1
        %v435 = vadd.f32 %v433, %v434
        %v436 = vsel %vm308, %v427, 0.0
        %v437 = vrot.slane %v436, 4
        %v438 = vadd.f32 %v436, %v437
        %v439 = vrot.slane %v438, 2
        %v440 = vadd.f32 %v438, %v439
        %v441 = vrot.slane %v440, 1
        %v442 = vadd.f32 %v440, %v441
        %vm443 = vcmp.ge.s32.totalorder %v287, 2
        %vm444 = vmand %vm325, %vm443
        %vm445 = vcmp.lt.s32.totalorder %v287, 18
        %vm446 = vmand %vm444, %vm445
        %v449 = vcombine.low %v435, %v442
        %v451 = vunpack.c.l.s4 1966171168
        %v452 = vunpack.c.0.s8 %v451
        %v453 = vlaneseq
        %v454 = vshrl.u32 %v453, 7
        %v455 = vsub.s32 %v452, %v454
        %v456 = vrot.slane %v449, %v455
        %v458 = vunpack.c.l.s4 1966171168
        %v459 = vunpack.c.0.s8 %v458
        %v460 = vlaneseq
        %v461 = vshrl.u32 %v460, 7
        %v462 = vsub.s32 %v459, %v461
        %v463 = vrot.slane %v456, %v462
        %v465 = vsel %vm446, %v463, 0.0
        %s466 = scalar_lea.vmem [#allocation2], 2
        %v467 = vld [vmem:[%s466] ss:$8 sm:$0x3]
        %v468 = vadd.f32 %v467, %v465
        %469 = vst.msk [vmem:[%s466] ss:$8 sm:$0x3] %vm354, %v468
        %470 = vst.msk [vmem:[%s466] ss:$8 sm:$0x0] %vm354, %v468
        %471 = vrot.lane.b32.xlu0 %v284, 65
        %v472 = vpop.permute.xlu0 %471
        %473 = vrot.lane.b32.xlu0 %v289, 65
        %v474 = vpop.permute.xlu0 %473
        %vm475 = vcmp.lt.s32.totalorder %v296, 65
        %v476 = vsel %vm475, %v472, %v474
        %v477 = vsel %vm475, %v474, %v472
        %v480 = vcombine.low %v477, %v476
        %v482 = vmul.f32 %v283, %v480
        %v484 = vcombine.high %v482, %v482
        %v486 = vsel %vm308, %v482, 0.0
        %v487 = vrot.slane %v486, 4
        %v488 = vadd.f32 %v486, %v487
        %v489 = vrot.slane %v488, 2
        %v490 = vadd.f32 %v488, %v489
        %v491 = vrot.slane %v490, 1
        %v492 = vadd.f32 %v490, %v491
        %v493 = vsel %vm308, %v484, 0.0
        %v494 = vrot.slane %v493, 4
        %v495 = vadd.f32 %v493, %v494
        %v496 = vrot.slane %v495, 2
        %v497 = vadd.f32 %v495, %v496
        %v498 = vrot.slane %v497, 1
        %v499 = vadd.f32 %v497, %v498
        %vm500 = vcmp.ge.s32.totalorder %v287, 1
        %vm501 = vmand %vm325, %vm500
        %vm502 = vcmp.lt.s32.totalorder %v287, 17
        %vm503 = vmand %vm501, %vm502
        %v506 = vcombine.low %v492, %v499
        %v508 = vunpack.c.l.s4 1966171168
        %v509 = vunpack.c.0.s8 %v508
        %v510 = vlaneseq
        %v511 = vshrl.u32 %v510, 7
        %v512 = vsub.s32 %v509, %v511
        %v513 = vrot.slane %v506, %v512
        %v515 = vunpack.c.l.s4 1966171168
        %v516 = vunpack.c.0.s8 %v515
        %v517 = vlaneseq
        %v518 = vshrl.u32 %v517, 7
        %v519 = vsub.s32 %v516, %v518
        %v520 = vrot.slane %v513, %v519
        %v522 = vsel %vm503, %v520, 0.0
        %s523 = scalar_lea.vmem [#allocation2], 3
        %v524 = vld [vmem:[%s523] ss:$8 sm:$0x3]
        %v525 = vadd.f32 %v524, %v522
        %526 = vst.msk [vmem:[%s523] ss:$8 sm:$0x3] %vm354, %v525
        %527 = vst.msk [vmem:[%s523] ss:$8 sm:$0x0] %vm354, %v525
        %528 = vrot.lane.b32.xlu0 %v284, 64
        %v529 = vpop.permute.xlu0 %528
        %530 = vrot.lane.b32.xlu0 %v289, 64
        %v531 = vpop.permute.xlu0 %530
        %vm532 = vcmp.lt.s32.totalorder %v296, 64
        %v533 = vsel %vm532, %v529, %v531
        %v534 = vsel %vm532, %v531, %v529
        %v537 = vcombine.low %v534, %v533
        %v539 = vmul.f32 %v283, %v537
        %v541 = vcombine.high %v539, %v539
        %v543 = vsel %vm308, %v539, 0.0
        %v544 = vrot.slane %v543, 4
        %v545 = vadd.f32 %v543, %v544
        %v546 = vrot.slane %v545, 2
        %v547 = vadd.f32 %v545, %v546
        %v548 = vrot.slane %v547, 1
        %v549 = vadd.f32 %v547, %v548
        %v550 = vsel %vm308, %v541, 0.0
        %v551 = vrot.slane %v550, 4
        %v552 = vadd.f32 %v550, %v551
        %v553 = vrot.slane %v552, 2
        %v554 = vadd.f32 %v552, %v553
        %v555 = vrot.slane %v554, 1
        %v556 = vadd.f32 %v554, %v555
        %vm557 = vcmp.ge.s32.totalorder %v287, 0
        %vm558 = vmand %vm325, %vm557
        %vm559 = vcmp.lt.s32.totalorder %v287, 16
        %vm560 = vmand %vm558, %vm559
        %v563 = vcombine.low %v549, %v556
        %v565 = vunpack.c.l.s4 1966171168
        %v566 = vunpack.c.0.s8 %v565
        %v567 = vlaneseq
        %v568 = vshrl.u32 %v567, 7
        %v569 = vsub.s32 %v566, %v568
        %v570 = vrot.slane %v563, %v569
        %v572 = vunpack.c.l.s4 1966171168
        %v573 = vunpack.c.0.s8 %v572
        %v574 = vlaneseq
        %v575 = vshrl.u32 %v574, 7
        %v576 = vsub.s32 %v573, %v575
        %v577 = vrot.slane %v570, %v576
        %v579 = vsel %vm560, %v577, 0.0
        %s580 = scalar_lea.vmem [#allocation2], 4
        %v581 = vld [vmem:[%s580] ss:$8 sm:$0x3]
        %v582 = vadd.f32 %v581, %v579
        %583 = vst.msk [vmem:[%s580] ss:$8 sm:$0x3] %vm354, %v582
        %584 = vst.msk [vmem:[%s580] ss:$8 sm:$0x0] %vm354, %v582
        %585 = vrot.lane.b32.xlu0 %v284, 63
        %v586 = vpop.permute.xlu0 %585
        %587 = vrot.lane.b32.xlu0 %v289, 63
        %v588 = vpop.permute.xlu0 %587
        %vm589 = vcmp.lt.s32.totalorder %v296, 63
        %v590 = vsel %vm589, %v586, %v588
        %v591 = vsel %vm589, %v588, %v586
        %v594 = vcombine.low %v591, %v590
        %v596 = vmul.f32 %v283, %v594
        %v598 = vcombine.high %v596, %v596
        %v600 = vsel %vm308, %v596, 0.0
        %v601 = vrot.slane %v600, 4
        %v602 = vadd.f32 %v600, %v601
        %v603 = vrot.slane %v602, 2
        %v604 = vadd.f32 %v602, %v603
        %v605 = vrot.slane %v604, 1
        %v606 = vadd.f32 %v604, %v605
        %v607 = vsel %vm308, %v598, 0.0
        %v608 = vrot.slane %v607, 4
        %v609 = vadd.f32 %v607, %v608
        %v610 = vrot.slane %v609, 2
        %v611 = vadd.f32 %v609, %v610
        %v612 = vrot.slane %v611, 1
        %v613 = vadd.f32 %v611, %v612
        %vm614 = vcmp.ge.s32.totalorder %v287, 4294967295
        %vm615 = vmand %vm325, %vm614
        %vm616 = vcmp.lt.s32.totalorder %v287, 15
        %vm617 = vmand %vm615, %vm616
        %v620 = vcombine.low %v606, %v613
        %v622 = vunpack.c.l.s4 1966171168
        %v623 = vunpack.c.0.s8 %v622
        %v624 = vlaneseq
        %v625 = vshrl.u32 %v624, 7
        %v626 = vsub.s32 %v623, %v625
        %v627 = vrot.slane %v620, %v626
        %v629 = vunpack.c.l.s4 1966171168
        %v630 = vunpack.c.0.s8 %v629
        %v631 = vlaneseq
        %v632 = vshrl.u32 %v631, 7
        %v633 = vsub.s32 %v630, %v632
        %v634 = vrot.slane %v627, %v633
        %v636 = vsel %vm617, %v634, 0.0
        %s637 = scalar_lea.vmem [#allocation2], 5
        %v638 = vld [vmem:[%s637] ss:$8 sm:$0x3]
        %v639 = vadd.f32 %v638, %v636
        %640 = vst.msk [vmem:[%s637] ss:$8 sm:$0x3] %vm354, %v639
        %641 = vst.msk [vmem:[%s637] ss:$8 sm:$0x0] %vm354, %v639
        %642 = vrot.lane.b32.xlu0 %v284, 62
        %v643 = vpop.permute.xlu0 %642
        %644 = vrot.lane.b32.xlu0 %v289, 62
        %v645 = vpop.permute.xlu0 %644
        %vm646 = vcmp.lt.s32.totalorder %v296, 62
        %v647 = vsel %vm646, %v643, %v645
        %v648 = vsel %vm646, %v645, %v643
        %v651 = vcombine.low %v648, %v647
        %v653 = vmul.f32 %v283, %v651
        %v655 = vcombine.high %v653, %v653
        %v657 = vsel %vm308, %v653, 0.0
        %v658 = vrot.slane %v657, 4
        %v659 = vadd.f32 %v657, %v658
        %v660 = vrot.slane %v659, 2
        %v661 = vadd.f32 %v659, %v660
        %v662 = vrot.slane %v661, 1
        %v663 = vadd.f32 %v661, %v662
        %v664 = vsel %vm308, %v655, 0.0
        %v665 = vrot.slane %v664, 4
        %v666 = vadd.f32 %v664, %v665
        %v667 = vrot.slane %v666, 2
        %v668 = vadd.f32 %v666, %v667
        %v669 = vrot.slane %v668, 1
        %v670 = vadd.f32 %v668, %v669
        %vm671 = vcmp.ge.s32.totalorder %v287, 4294967294
        %vm672 = vmand %vm325, %vm671
        %vm673 = vcmp.lt.s32.totalorder %v287, 14
        %vm674 = vmand %vm672, %vm673
        %v677 = vcombine.low %v663, %v670
        %v679 = vunpack.c.l.s4 1966171168
        %v680 = vunpack.c.0.s8 %v679
        %v681 = vlaneseq
        %v682 = vshrl.u32 %v681, 7
        %v683 = vsub.s32 %v680, %v682
        %v684 = vrot.slane %v677, %v683
        %v686 = vunpack.c.l.s4 1966171168
        %v687 = vunpack.c.0.s8 %v686
        %v688 = vlaneseq
        %v689 = vshrl.u32 %v688, 7
        %v690 = vsub.s32 %v687, %v689
        %v691 = vrot.slane %v684, %v690
        %v693 = vsel %vm674, %v691, 0.0
        %s694 = scalar_lea.vmem [#allocation2], 6
        %v695 = vld [vmem:[%s694] ss:$8 sm:$0x3]
        %v696 = vadd.f32 %v695, %v693
        %697 = vst.msk [vmem:[%s694] ss:$8 sm:$0x3] %vm354, %v696
        %698 = vst.msk [vmem:[%s694] ss:$8 sm:$0x0] %vm354, %v696
        %699 = vrot.lane.b32.xlu0 %v284, 61
        %v700 = vpop.permute.xlu0 %699
        %701 = vrot.lane.b32.xlu0 %v289, 61
        %v702 = vpop.permute.xlu0 %701
        %vm703 = vcmp.lt.s32.totalorder %v296, 61
        %v704 = vsel %vm703, %v700, %v702
        %v705 = vsel %vm703, %v702, %v700
        %v708 = vcombine.low %v705, %v704
        %v710 = vmul.f32 %v283, %v708
        %v712 = vcombine.high %v710, %v710
        %v714 = vsel %vm308, %v710, 0.0
        %v715 = vrot.slane %v714, 4
        %v716 = vadd.f32 %v714, %v715
        %v717 = vrot.slane %v716, 2
        %v718 = vadd.f32 %v716, %v717
        %v719 = vrot.slane %v718, 1
        %v720 = vadd.f32 %v718, %v719
        %v721 = vsel %vm308, %v712, 0.0
        %v722 = vrot.slane %v721, 4
        %v723 = vadd.f32 %v721, %v722
        %v724 = vrot.slane %v723, 2
        %v725 = vadd.f32 %v723, %v724
        %v726 = vrot.slane %v725, 1
        %v727 = vadd.f32 %v725, %v726
        %vm728 = vcmp.ge.s32.totalorder %v287, 4294967293
        %vm729 = vmand %vm325, %vm728
        %vm730 = vcmp.lt.s32.totalorder %v287, 13
        %vm731 = vmand %vm729, %vm730
        %v734 = vcombine.low %v720, %v727
        %v736 = vunpack.c.l.s4 1966171168
        %v737 = vunpack.c.0.s8 %v736
        %v738 = vlaneseq
        %v739 = vshrl.u32 %v738, 7
        %v740 = vsub.s32 %v737, %v739
        %v741 = vrot.slane %v734, %v740
        %v743 = vunpack.c.l.s4 1966171168
        %v744 = vunpack.c.0.s8 %v743
        %v745 = vlaneseq
        %v746 = vshrl.u32 %v745, 7
        %v747 = vsub.s32 %v744, %v746
        %v748 = vrot.slane %v741, %v747
        %v750 = vsel %vm731, %v748, 0.0
        %s751 = scalar_lea.vmem [#allocation2], 7
        %v752 = vld [vmem:[%s751] ss:$8 sm:$0x3]
        %v753 = vadd.f32 %v752, %v750
        %754 = vst.msk [vmem:[%s751] ss:$8 sm:$0x3] %vm354, %v753
        %755 = vst.msk [vmem:[%s751] ss:$8 sm:$0x0] %vm354, %v753
        %756 = vrot.lane.b32.xlu0 %v284, 60
        %v757 = vpop.permute.xlu0 %756
        %758 = vrot.lane.b32.xlu0 %v289, 60
        %v759 = vpop.permute.xlu0 %758
        %vm760 = vcmp.lt.s32.totalorder %v296, 60
        %v761 = vsel %vm760, %v757, %v759
        %v762 = vsel %vm760, %v759, %v757
        %v765 = vcombine.low %v762, %v761
        %v767 = vmul.f32 %v283, %v765
        %v769 = vcombine.high %v767, %v767
        %v771 = vsel %vm308, %v767, 0.0
        %v772 = vrot.slane %v771, 4
        %v773 = vadd.f32 %v771, %v772
        %v774 = vrot.slane %v773, 2
        %v775 = vadd.f32 %v773, %v774
        %v776 = vrot.slane %v775, 1
        %v777 = vadd.f32 %v775, %v776
        %v778 = vsel %vm308, %v769, 0.0
        %v779 = vrot.slane %v778, 4
        %v780 = vadd.f32 %v778, %v779
        %v781 = vrot.slane %v780, 2
        %v782 = vadd.f32 %v780, %v781
        %v783 = vrot.slane %v782, 1
        %v784 = vadd.f32 %v782, %v783
        %vm785 = vcmp.ge.s32.totalorder %v287, 4294967292
        %vm786 = vmand %vm325, %vm785
        %vm787 = vcmp.lt.s32.totalorder %v287, 12
        %vm788 = vmand %vm786, %vm787
        %v791 = vcombine.low %v777, %v784
        %v793 = vunpack.c.l.s4 1966171168
        %v794 = vunpack.c.0.s8 %v793
        %v795 = vlaneseq
        %v796 = vshrl.u32 %v795, 7
        %v797 = vsub.s32 %v794, %v796
        %v798 = vrot.slane %v791, %v797
        %v800 = vunpack.c.l.s4 1966171168
        %v801 = vunpack.c.0.s8 %v800
        %v802 = vlaneseq
        %v803 = vshrl.u32 %v802, 7
        %v804 = vsub.s32 %v801, %v803
        %v805 = vrot.slane %v798, %v804
        %v807 = vsel %vm788, %v805, 0.0
        %s808 = scalar_lea.vmem [#allocation2], 16
        %v809 = vld [vmem:[%s808] ss:$8 sm:$0x3]
        %v810 = vadd.f32 %v809, %v807
        %811 = vst.msk [vmem:[%s808] ss:$8 sm:$0x3] %vm354, %v810
        %812 = vst.msk [vmem:[%s808] ss:$8 sm:$0x0] %vm354, %v810
        %813 = vrot.lane.b32.xlu0 %v284, 52
        %v814 = vpop.permute.xlu0 %813
        %815 = vrot.lane.b32.xlu0 %v289, 52
        %v816 = vpop.permute.xlu0 %815
        %vm817 = vcmp.lt.s32.totalorder %v296, 52
        %v818 = vsel %vm817, %v814, %v816
        %v819 = vsel %vm817, %v816, %v814
        %v822 = vcombine.low %v819, %v818
        %v824 = vmul.f32 %v283, %v822
        %v826 = vcombine.high %v824, %v824
        %v828 = vsel %vm308, %v824, 0.0
        %v829 = vrot.slane %v828, 4
        %v830 = vadd.f32 %v828, %v829
        %v831 = vrot.slane %v830, 2
        %v832 = vadd.f32 %v830, %v831
        %v833 = vrot.slane %v832, 1
        %v834 = vadd.f32 %v832, %v833
        %v835 = vsel %vm308, %v826, 0.0
        %v836 = vrot.slane %v835, 4
        %v837 = vadd.f32 %v835, %v836
        %v838 = vrot.slane %v837, 2
        %v839 = vadd.f32 %v837, %v838
        %v840 = vrot.slane %v839, 1
        %v841 = vadd.f32 %v839, %v840
        %vm842 = vcmp.ge.s32.totalorder %v285, 3
        %vm843 = vcmp.lt.s32.totalorder %v285, 19
        %vm844 = vmand %vm842, %vm843
        %vm845 = vmand %vm844, %vm326
        %vm846 = vmand %vm845, %vm328
        %v849 = vcombine.low %v834, %v841
        %v851 = vunpack.c.l.s4 1966171168
        %v852 = vunpack.c.0.s8 %v851
        %v853 = vlaneseq
        %v854 = vshrl.u32 %v853, 7
        %v855 = vsub.s32 %v852, %v854
        %v856 = vrot.slane %v849, %v855
        %v858 = vunpack.c.l.s4 1966171168
        %v859 = vunpack.c.0.s8 %v858
        %v860 = vlaneseq
        %v861 = vshrl.u32 %v860, 7
        %v862 = vsub.s32 %v859, %v861
        %v863 = vrot.slane %v856, %v862
        %v865 = vsel %vm846, %v863, 0.0
        %s866 = scalar_lea.vmem [#allocation2], 17
        %v867 = vld [vmem:[%s866] ss:$8 sm:$0x3]
        %v868 = vadd.f32 %v867, %v865
        %869 = vst.msk [vmem:[%s866] ss:$8 sm:$0x3] %vm354, %v868
        %870 = vst.msk [vmem:[%s866] ss:$8 sm:$0x0] %vm354, %v868
        %871 = vrot.lane.b32.xlu0 %v284, 51
        %v872 = vpop.permute.xlu0 %871
        %873 = vrot.lane.b32.xlu0 %v289, 51
        %v874 = vpop.permute.xlu0 %873
        %vm875 = vcmp.lt.s32.totalorder %v296, 51
        %v876 = vsel %vm875, %v872, %v874
        %v877 = vsel %vm875, %v874, %v872
        %v880 = vcombine.low %v877, %v876
        %v882 = vmul.f32 %v283, %v880
        %v884 = vcombine.high %v882, %v882
        %v886 = vsel %vm308, %v882, 0.0
        %v887 = vrot.slane %v886, 4
        %v888 = vadd.f32 %v886, %v887
        %v889 = vrot.slane %v888, 2
        %v890 = vadd.f32 %v888, %v889
        %v891 = vrot.slane %v890, 1
        %v892 = vadd.f32 %v890, %v891
        %v893 = vsel %vm308, %v884, 0.0
        %v894 = vrot.slane %v893, 4
        %v895 = vadd.f32 %v893, %v894
        %v896 = vrot.slane %v895, 2
        %v897 = vadd.f32 %v895, %v896
        %v898 = vrot.slane %v897, 1
        %v899 = vadd.f32 %v897, %v898
        %vm900 = vmand %vm844, %vm386
        %vm901 = vmand %vm900, %vm388
        %v904 = vcombine.low %v892, %v899
        %v906 = vunpack.c.l.s4 1966171168
        %v907 = vunpack.c.0.s8 %v906
        %v908 = vlaneseq
        %v909 = vshrl.u32 %v908, 7
        %v910 = vsub.s32 %v907, %v909
        %v911 = vrot.slane %v904, %v910
        %v913 = vunpack.c.l.s4 1966171168
        %v914 = vunpack.c.0.s8 %v913
        %v915 = vlaneseq
        %v916 = vshrl.u32 %v915, 7
        %v917 = vsub.s32 %v914, %v916
        %v918 = vrot.slane %v911, %v917
        %v920 = vsel %vm901, %v918, 0.0
        %s921 = scalar_lea.vmem [#allocation2], 18
        %v922 = vld [vmem:[%s921] ss:$8 sm:$0x3]
        %v923 = vadd.f32 %v922, %v920
        %924 = vst.msk [vmem:[%s921] ss:$8 sm:$0x3] %vm354, %v923
        %925 = vst.msk [vmem:[%s921] ss:$8 sm:$0x0] %vm354, %v923
        %926 = vrot.lane.b32.xlu0 %v284, 50
        %v927 = vpop.permute.xlu0 %926
        %928 = vrot.lane.b32.xlu0 %v289, 50
        %v929 = vpop.permute.xlu0 %928
        %vm930 = vcmp.lt.s32.totalorder %v296, 50
        %v931 = vsel %vm930, %v927, %v929
        %v932 = vsel %vm930, %v929, %v927
        %v935 = vcombine.low %v932, %v931
        %v937 = vmul.f32 %v283, %v935
        %v939 = vcombine.high %v937, %v937
        %v941 = vsel %vm308, %v937, 0.0
        %v942 = vrot.slane %v941, 4
        %v943 = vadd.f32 %v941, %v942
        %v944 = vrot.slane %v943, 2
        %v945 = vadd.f32 %v943, %v944
        %v946 = vrot.slane %v945, 1
        %v947 = vadd.f32 %v945, %v946
        %v948 = vsel %vm308, %v939, 0.0
        %v949 = vrot.slane %v948, 4
        %v950 = vadd.f32 %v948, %v949
        %v951 = vrot.slane %v950, 2
        %v952 = vadd.f32 %v950, %v951
        %v953 = vrot.slane %v952, 1
        %v954 = vadd.f32 %v952, %v953
        %vm955 = vmand %vm844, %vm443
        %vm956 = vmand %vm955, %vm445
        %v959 = vcombine.low %v947, %v954
        %v961 = vunpack.c.l.s4 1966171168
        %v962 = vunpack.c.0.s8 %v961
        %v963 = vlaneseq
        %v964 = vshrl.u32 %v963, 7
        %v965 = vsub.s32 %v962, %v964
        %v966 = vrot.slane %v959, %v965
        %v968 = vunpack.c.l.s4 1966171168
        %v969 = vunpack.c.0.s8 %v968
        %v970 = vlaneseq
        %v971 = vshrl.u32 %v970, 7
        %v972 = vsub.s32 %v969, %v971
        %v973 = vrot.slane %v966, %v972
        %v975 = vsel %vm956, %v973, 0.0
        %s976 = scalar_lea.vmem [#allocation2], 19
        %v977 = vld [vmem:[%s976] ss:$8 sm:$0x3]
        %v978 = vadd.f32 %v977, %v975
        %979 = vst.msk [vmem:[%s976] ss:$8 sm:$0x3] %vm354, %v978
        %980 = vst.msk [vmem:[%s976] ss:$8 sm:$0x0] %vm354, %v978
        %981 = vrot.lane.b32.xlu0 %v284, 49
        %v982 = vpop.permute.xlu0 %981
        %983 = vrot.lane.b32.xlu0 %v289, 49
        %v984 = vpop.permute.xlu0 %983
        %vm985 = vcmp.lt.s32.totalorder %v296, 49
        %v986 = vsel %vm985, %v982, %v984
        %v987 = vsel %vm985, %v984, %v982
        %v990 = vcombine.low %v987, %v986
        %v992 = vmul.f32 %v283, %v990
        %v994 = vcombine.high %v992, %v992
        %v996 = vsel %vm308, %v992, 0.0
        %v997 = vrot.slane %v996, 4
        %v998 = vadd.f32 %v996, %v997
        %v999 = vrot.slane %v998, 2
        %v1000 = vadd.f32 %v998, %v999
        %v1001 = vrot.slane %v1000, 1
        %v1002 = vadd.f32 %v1000, %v1001
        %v1003 = vsel %vm308, %v994, 0.0
        %v1004 = vrot.slane %v1003, 4
        %v1005 = vadd.f32 %v1003, %v1004
        %v1006 = vrot.slane %v1005, 2
        %v1007 = vadd.f32 %v1005, %v1006
        %v1008 = vrot.slane %v1007, 1
        %v1009 = vadd.f32 %v1007, %v1008
        %vm1010 = vmand %vm844, %vm500
        %vm1011 = vmand %vm1010, %vm502
        %v1014 = vcombine.low %v1002, %v1009
        %v1016 = vunpack.c.l.s4 1966171168
        %v1017 = vunpack.c.0.s8 %v1016
        %v1018 = vlaneseq
        %v1019 = vshrl.u32 %v1018, 7
        %v1020 = vsub.s32 %v1017, %v1019
        %v1021 = vrot.slane %v1014, %v1020
        %v1023 = vunpack.c.l.s4 1966171168
        %v1024 = vunpack.c.0.s8 %v1023
        %v1025 = vlaneseq
        %v1026 = vshrl.u32 %v1025, 7
        %v1027 = vsub.s32 %v1024, %v1026
        %v1028 = vrot.slane %v1021, %v1027
        %v1030 = vsel %vm1011, %v1028, 0.0
        %s1031 = scalar_lea.vmem [#allocation2], 20
        %v1032 = vld [vmem:[%s1031] ss:$8 sm:$0x3]
        %v1033 = vadd.f32 %v1032, %v1030
        %1034 = vst.msk [vmem:[%s1031] ss:$8 sm:$0x3] %vm354, %v1033
        %1035 = vst.msk [vmem:[%s1031] ss:$8 sm:$0x0] %vm354, %v1033
        %1036 = vrot.lane.b32.xlu0 %v284, 48
        %v1037 = vpop.permute.xlu0 %1036
        %1038 = vrot.lane.b32.xlu0 %v289, 48
        %v1039 = vpop.permute.xlu0 %1038
        %vm1040 = vcmp.lt.s32.totalorder %v296, 48
        %v1041 = vsel %vm1040, %v1037, %v1039
        %v1042 = vsel %vm1040, %v1039, %v1037
        %v1045 = vcombine.low %v1042, %v1041
        %v1047 = vmul.f32 %v283, %v1045
        %v1049 = vcombine.high %v1047, %v1047
        %v1051 = vsel %vm308, %v1047, 0.0
        %v1052 = vrot.slane %v1051, 4
        %v1053 = vadd.f32 %v1051, %v1052
        %v1054 = vrot.slane %v1053, 2
        %v1055 = vadd.f32 %v1053, %v1054
        %v1056 = vrot.slane %v1055, 1
        %v1057 = vadd.f32 %v1055, %v1056
        %v1058 = vsel %vm308, %v1049, 0.0
        %v1059 = vrot.slane %v1058, 4
        %v1060 = vadd.f32 %v1058, %v1059
        %v1061 = vrot.slane %v1060, 2
        %v1062 = vadd.f32 %v1060, %v1061
        %v1063 = vrot.slane %v1062, 1
        %v1064 = vadd.f32 %v1062, %v1063
        %vm1065 = vmand %vm844, %vm557
        %vm1066 = vmand %vm1065, %vm559
        %v1069 = vcombine.low %v1057, %v1064
        %v1071 = vunpack.c.l.s4 1966171168
        %v1072 = vunpack.c.0.s8 %v1071
        %v1073 = vlaneseq
        %v1074 = vshrl.u32 %v1073, 7
        %v1075 = vsub.s32 %v1072, %v1074
        %v1076 = vrot.slane %v1069, %v1075
        %v1078 = vunpack.c.l.s4 1966171168
        %v1079 = vunpack.c.0.s8 %v1078
        %v1080 = vlaneseq
        %v1081 = vshrl.u32 %v1080, 7
        %v1082 = vsub.s32 %v1079, %v1081
        %v1083 = vrot.slane %v1076, %v1082
        %v1085 = vsel %vm1066, %v1083, 0.0
        %s1086 = scalar_lea.vmem [#allocation2], 21
        %v1087 = vld [vmem:[%s1086] ss:$8 sm:$0x3]
        %v1088 = vadd.f32 %v1087, %v1085
        %1089 = vst.msk [vmem:[%s1086] ss:$8 sm:$0x3] %vm354, %v1088
        %1090 = vst.msk [vmem:[%s1086] ss:$8 sm:$0x0] %vm354, %v1088
        %1091 = vrot.lane.b32.xlu0 %v284, 47
        %v1092 = vpop.permute.xlu0 %1091
        %1093 = vrot.lane.b32.xlu0 %v289, 47
        %v1094 = vpop.permute.xlu0 %1093
        %vm1095 = vcmp.lt.s32.totalorder %v296, 47
        %v1096 = vsel %vm1095, %v1092, %v1094
        %v1097 = vsel %vm1095, %v1094, %v1092
        %v1100 = vcombine.low %v1097, %v1096
        %v1102 = vmul.f32 %v283, %v1100
        %v1104 = vcombine.high %v1102, %v1102
        %v1106 = vsel %vm308, %v1102, 0.0
        %v1107 = vrot.slane %v1106, 4
        %v1108 = vadd.f32 %v1106, %v1107
        %v1109 = vrot.slane %v1108, 2
        %v1110 = vadd.f32 %v1108, %v1109
        %v1111 = vrot.slane %v1110, 1
        %v1112 = vadd.f32 %v1110, %v1111
        %v1113 = vsel %vm308, %v1104, 0.0
        %v1114 = vrot.slane %v1113, 4
        %v1115 = vadd.f32 %v1113, %v1114
        %v1116 = vrot.slane %v1115, 2
        %v1117 = vadd.f32 %v1115, %v1116
        %v1118 = vrot.slane %v1117, 1
        %v1119 = vadd.f32 %v1117, %v1118
        %vm1120 = vmand %vm844, %vm614
        %vm1121 = vmand %vm1120, %vm616
        %v1124 = vcombine.low %v1112, %v1119
        %v1126 = vunpack.c.l.s4 1966171168
        %v1127 = vunpack.c.0.s8 %v1126
        %v1128 = vlaneseq
        %v1129 = vshrl.u32 %v1128, 7
        %v1130 = vsub.s32 %v1127, %v1129
        %v1131 = vrot.slane %v1124, %v1130
        %v1133 = vunpack.c.l.s4 1966171168
        %v1134 = vunpack.c.0.s8 %v1133
        %v1135 = vlaneseq
        %v1136 = vshrl.u32 %v1135, 7
        %v1137 = vsub.s32 %v1134, %v1136
        %v1138 = vrot.slane %v1131, %v1137
        %v1140 = vsel %vm1121, %v1138, 0.0
        %s1141 = scalar_lea.vmem [#allocation2], 22
        %v1142 = vld [vmem:[%s1141] ss:$8 sm:$0x3]
        %v1143 = vadd.f32 %v1142, %v1140
        %1144 = vst.msk [vmem:[%s1141] ss:$8 sm:$0x3] %vm354, %v1143
        %1145 = vst.msk [vmem:[%s1141] ss:$8 sm:$0x0] %vm354, %v1143
        %1146 = vrot.lane.b32.xlu0 %v284, 46
        %v1147 = vpop.permute.xlu0 %1146
        %1148 = vrot.lane.b32.xlu0 %v289, 46
        %v1149 = vpop.permute.xlu0 %1148
        %vm1150 = vcmp.lt.s32.totalorder %v296, 46
        %v1151 = vsel %vm1150, %v1147, %v1149
        %v1152 = vsel %vm1150, %v1149, %v1147
        %v1155 = vcombine.low %v1152, %v1151
        %v1157 = vmul.f32 %v283, %v1155
        %v1159 = vcombine.high %v1157, %v1157
        %v1161 = vsel %vm308, %v1157, 0.0
        %v1162 = vrot.slane %v1161, 4
        %v1163 = vadd.f32 %v1161, %v1162
        %v1164 = vrot.slane %v1163, 2
        %v1165 = vadd.f32 %v1163, %v1164
        %v1166 = vrot.slane %v1165, 1
        %v1167 = vadd.f32 %v1165, %v1166
        %v1168 = vsel %vm308, %v1159, 0.0
        %v1169 = vrot.slane %v1168, 4
        %v1170 = vadd.f32 %v1168, %v1169
        %v1171 = vrot.slane %v1170, 2
        %v1172 = vadd.f32 %v1170, %v1171
        %v1173 = vrot.slane %v1172, 1
        %v1174 = vadd.f32 %v1172, %v1173
        %vm1175 = vmand %vm844, %vm671
        %vm1176 = vmand %vm1175, %vm673
        %v1179 = vcombine.low %v1167, %v1174
        %v1181 = vunpack.c.l.s4 1966171168
        %v1182 = vunpack.c.0.s8 %v1181
        %v1183 = vlaneseq
        %v1184 = vshrl.u32 %v1183, 7
        %v1185 = vsub.s32 %v1182, %v1184
        %v1186 = vrot.slane %v1179, %v1185
        %v1188 = vunpack.c.l.s4 1966171168
        %v1189 = vunpack.c.0.s8 %v1188
        %v1190 = vlaneseq
        %v1191 = vshrl.u32 %v1190, 7
        %v1192 = vsub.s32 %v1189, %v1191
        %v1193 = vrot.slane %v1186, %v1192
        %v1195 = vsel %vm1176, %v1193, 0.0
        %s1196 = scalar_lea.vmem [#allocation2], 23
        %v1197 = vld [vmem:[%s1196] ss:$8 sm:$0x3]
        %v1198 = vadd.f32 %v1197, %v1195
        %1199 = vst.msk [vmem:[%s1196] ss:$8 sm:$0x3] %vm354, %v1198
        %1200 = vst.msk [vmem:[%s1196] ss:$8 sm:$0x0] %vm354, %v1198
        %1201 = vrot.lane.b32.xlu0 %v284, 45
        %v1202 = vpop.permute.xlu0 %1201
        %1203 = vrot.lane.b32.xlu0 %v289, 45
        %v1204 = vpop.permute.xlu0 %1203
        %vm1205 = vcmp.lt.s32.totalorder %v296, 45
        %v1206 = vsel %vm1205, %v1202, %v1204
        %v1207 = vsel %vm1205, %v1204, %v1202
        %v1210 = vcombine.low %v1207, %v1206
        %v1212 = vmul.f32 %v283, %v1210
        %v1214 = vcombine.high %v1212, %v1212
        %v1216 = vsel %vm308, %v1212, 0.0
        %v1217 = vrot.slane %v1216, 4
        %v1218 = vadd.f32 %v1216, %v1217
        %v1219 = vrot.slane %v1218, 2
        %v1220 = vadd.f32 %v1218, %v1219
        %v1221 = vrot.slane %v1220, 1
        %v1222 = vadd.f32 %v1220, %v1221
        %v1223 = vsel %vm308, %v1214, 0.0
        %v1224 = vrot.slane %v1223, 4
        %v1225 = vadd.f32 %v1223, %v1224
        %v1226 = vrot.slane %v1225, 2
        %v1227 = vadd.f32 %v1225, %v1226
        %v1228 = vrot.slane %v1227, 1
        %v1229 = vadd.f32 %v1227, %v1228
        %vm1230 = vmand %vm844, %vm728
        %vm1231 = vmand %vm1230, %vm730
        %v1234 = vcombine.low %v1222, %v1229
        %v1236 = vunpack.c.l.s4 1966171168
        %v1237 = vunpack.c.0.s8 %v1236
        %v1238 = vlaneseq
        %v1239 = vshrl.u32 %v1238, 7
        %v1240 = vsub.s32 %v1237, %v1239
        %v1241 = vrot.slane %v1234, %v1240
        %v1243 = vunpack.c.l.s4 1966171168
        %v1244 = vunpack.c.0.s8 %v1243
        %v1245 = vlaneseq
        %v1246 = vshrl.u32 %v1245, 7
        %v1247 = vsub.s32 %v1244, %v1246
        %v1248 = vrot.slane %v1241, %v1247
        %v1250 = vsel %vm1231, %v1248, 0.0
        %s1251 = scalar_lea.vmem [#allocation2], 32
        %v1252 = vld [vmem:[%s1251] ss:$8 sm:$0x3]
        %v1253 = vadd.f32 %v1252, %v1250
        %1254 = vst.msk [vmem:[%s1251] ss:$8 sm:$0x3] %vm354, %v1253
        %1255 = vst.msk [vmem:[%s1251] ss:$8 sm:$0x0] %vm354, %v1253
        %1256 = vrot.lane.b32.xlu0 %v284, 44
        %v1257 = vpop.permute.xlu0 %1256
        %1258 = vrot.lane.b32.xlu0 %v289, 44
        %v1259 = vpop.permute.xlu0 %1258
        %vm1260 = vcmp.lt.s32.totalorder %v296, 44
        %v1261 = vsel %vm1260, %v1257, %v1259
        %v1262 = vsel %vm1260, %v1259, %v1257
        %v1265 = vcombine.low %v1262, %v1261
        %v1267 = vmul.f32 %v283, %v1265
        %v1269 = vcombine.high %v1267, %v1267
        %v1271 = vsel %vm308, %v1267, 0.0
        %v1272 = vrot.slane %v1271, 4
        %v1273 = vadd.f32 %v1271, %v1272
        %v1274 = vrot.slane %v1273, 2
        %v1275 = vadd.f32 %v1273, %v1274
        %v1276 = vrot.slane %v1275, 1
        %v1277 = vadd.f32 %v1275, %v1276
        %v1278 = vsel %vm308, %v1269, 0.0
        %v1279 = vrot.slane %v1278, 4
        %v1280 = vadd.f32 %v1278, %v1279
        %v1281 = vrot.slane %v1280, 2
        %v1282 = vadd.f32 %v1280, %v1281
        %v1283 = vrot.slane %v1282, 1
        %v1284 = vadd.f32 %v1282, %v1283
        %vm1285 = vmand %vm844, %vm785
        %vm1286 = vmand %vm1285, %vm787
        %v1289 = vcombine.low %v1277, %v1284
        %v1291 = vunpack.c.l.s4 1966171168
        %v1292 = vunpack.c.0.s8 %v1291
        %v1293 = vlaneseq
        %v1294 = vshrl.u32 %v1293, 7
        %v1295 = vsub.s32 %v1292, %v1294
        %v1296 = vrot.slane %v1289, %v1295
        %v1298 = vunpack.c.l.s4 1966171168
        %v1299 = vunpack.c.0.s8 %v1298
        %v1300 = vlaneseq
        %v1301 = vshrl.u32 %v1300, 7
        %v1302 = vsub.s32 %v1299, %v1301
        %v1303 = vrot.slane %v1296, %v1302
        %v1305 = vsel %vm1286, %v1303, 0.0
        %s1306 = scalar_lea.vmem [#allocation2], 33
        %v1307 = vld [vmem:[%s1306] ss:$8 sm:$0x3]
        %v1308 = vadd.f32 %v1307, %v1305
        %1309 = vst.msk [vmem:[%s1306] ss:$8 sm:$0x3] %vm354, %v1308
        %1310 = vst.msk [vmem:[%s1306] ss:$8 sm:$0x0] %vm354, %v1308
        %1311 = vrot.lane.b32.xlu0 %v284, 36
        %v1312 = vpop.permute.xlu0 %1311
        %1313 = vrot.lane.b32.xlu0 %v289, 36
        %v1314 = vpop.permute.xlu0 %1313
        %vm1315 = vcmp.lt.s32.totalorder %v296, 36
        %v1316 = vsel %vm1315, %v1312, %v1314
        %v1317 = vsel %vm1315, %v1314, %v1312
        %v1320 = vcombine.low %v1317, %v1316
        %v1322 = vmul.f32 %v283, %v1320
        %v1324 = vcombine.high %v1322, %v1322
        %v1326 = vsel %vm308, %v1322, 0.0
        %v1327 = vrot.slane %v1326, 4
        %v1328 = vadd.f32 %v1326, %v1327
        %v1329 = vrot.slane %v1328, 2
        %v1330 = vadd.f32 %v1328, %v1329
        %v1331 = vrot.slane %v1330, 1
        %v1332 = vadd.f32 %v1330, %v1331
        %v1333 = vsel %vm308, %v1324, 0.0
        %v1334 = vrot.slane %v1333, 4
        %v1335 = vadd.f32 %v1333, %v1334
        %v1336 = vrot.slane %v1335, 2
        %v1337 = vadd.f32 %v1335, %v1336
        %v1338 = vrot.slane %v1337, 1
        %v1339 = vadd.f32 %v1337, %v1338
        %vm1340 = vcmp.ge.s32.totalorder %v285, 2
        %vm1341 = vcmp.lt.s32.totalorder %v285, 18
        %vm1342 = vmand %vm1340, %vm1341
        %vm1343 = vmand %vm1342, %vm326
        %vm1344 = vmand %vm1343, %vm328
        %v1347 = vcombine.low %v1332, %v1339
        %v1349 = vunpack.c.l.s4 1966171168
        %v1350 = vunpack.c.0.s8 %v1349
        %v1351 = vlaneseq
        %v1352 = vshrl.u32 %v1351, 7
        %v1353 = vsub.s32 %v1350, %v1352
        %v1354 = vrot.slane %v1347, %v1353
        %v1356 = vunpack.c.l.s4 1966171168
        %v1357 = vunpack.c.0.s8 %v1356
        %v1358 = vlaneseq
        %v1359 = vshrl.u32 %v1358, 7
        %v1360 = vsub.s32 %v1357, %v1359
        %v1361 = vrot.slane %v1354, %v1360
        %v1363 = vsel %vm1344, %v1361, 0.0
        %s1364 = scalar_lea.vmem [#allocation2], 34
        %v1365 = vld [vmem:[%s1364] ss:$8 sm:$0x3]
        %v1366 = vadd.f32 %v1365, %v1363
        %1367 = vst.msk [vmem:[%s1364] ss:$8 sm:$0x3] %vm354, %v1366
        %1368 = vst.msk [vmem:[%s1364] ss:$8 sm:$0x0] %vm354, %v1366
        %1369 = vrot.lane.b32.xlu0 %v284, 35
        %v1370 = vpop.permute.xlu0 %1369
        %1371 = vrot.lane.b32.xlu0 %v289, 35
        %v1372 = vpop.permute.xlu0 %1371
        %vm1373 = vcmp.lt.s32.totalorder %v296, 35
        %v1374 = vsel %vm1373, %v1370, %v1372
        %v1375 = vsel %vm1373, %v1372, %v1370
        %v1378 = vcombine.low %v1375, %v1374
        %v1380 = vmul.f32 %v283, %v1378
        %v1382 = vcombine.high %v1380, %v1380
        %v1384 = vsel %vm308, %v1380, 0.0
        %v1385 = vrot.slane %v1384, 4
        %v1386 = vadd.f32 %v1384, %v1385
        %v1387 = vrot.slane %v1386, 2
        %v1388 = vadd.f32 %v1386, %v1387
        %v1389 = vrot.slane %v1388, 1
        %v1390 = vadd.f32 %v1388, %v1389
        %v1391 = vsel %vm308, %v1382, 0.0
        %v1392 = vrot.slane %v1391, 4
        %v1393 = vadd.f32 %v1391, %v1392
        %v1394 = vrot.slane %v1393, 2
        %v1395 = vadd.f32 %v1393, %v1394
        %v1396 = vrot.slane %v1395, 1
        %v1397 = vadd.f32 %v1395, %v1396
        %vm1398 = vmand %vm1342, %vm386
        %vm1399 = vmand %vm1398, %vm388
        %v1402 = vcombine.low %v1390, %v1397
        %v1404 = vunpack.c.l.s4 1966171168
        %v1405 = vunpack.c.0.s8 %v1404
        %v1406 = vlaneseq
        %v1407 = vshrl.u32 %v1406, 7
        %v1408 = vsub.s32 %v1405, %v1407
        %v1409 = vrot.slane %v1402, %v1408
        %v1411 = vunpack.c.l.s4 1966171168
        %v1412 = vunpack.c.0.s8 %v1411
        %v1413 = vlaneseq
        %v1414 = vshrl.u32 %v1413, 7
        %v1415 = vsub.s32 %v1412, %v1414
        %v1416 = vrot.slane %v1409, %v1415
        %v1418 = vsel %vm1399, %v1416, 0.0
        %s1419 = scalar_lea.vmem [#allocation2], 35
        %v1420 = vld [vmem:[%s1419] ss:$8 sm:$0x3]
        %v1421 = vadd.f32 %v1420, %v1418
        %1422 = vst.msk [vmem:[%s1419] ss:$8 sm:$0x3] %vm354, %v1421
        %1423 = vst.msk [vmem:[%s1419] ss:$8 sm:$0x0] %vm354, %v1421
        %1424 = vrot.lane.b32.xlu0 %v284, 34
        %v1425 = vpop.permute.xlu0 %1424
        %1426 = vrot.lane.b32.xlu0 %v289, 34
        %v1427 = vpop.permute.xlu0 %1426
        %vm1428 = vcmp.lt.s32.totalorder %v296, 34
        %v1429 = vsel %vm1428, %v1425, %v1427
        %v1430 = vsel %vm1428, %v1427, %v1425
        %v1433 = vcombine.low %v1430, %v1429
        %v1435 = vmul.f32 %v283, %v1433
        %v1437 = vcombine.high %v1435, %v1435
        %v1439 = vsel %vm308, %v1435, 0.0
        %v1440 = vrot.slane %v1439, 4
        %v1441 = vadd.f32 %v1439, %v1440
        %v1442 = vrot.slane %v1441, 2
        %v1443 = vadd.f32 %v1441, %v1442
        %v1444 = vrot.slane %v1443, 1
        %v1445 = vadd.f32 %v1443, %v1444
        %v1446 = vsel %vm308, %v1437, 0.0
        %v1447 = vrot.slane %v1446, 4
        %v1448 = vadd.f32 %v1446, %v1447
        %v1449 = vrot.slane %v1448, 2
        %v1450 = vadd.f32 %v1448, %v1449
        %v1451 = vrot.slane %v1450, 1
        %v1452 = vadd.f32 %v1450, %v1451
        %vm1453 = vmand %vm1342, %vm443
        %vm1454 = vmand %vm1453, %vm445
        %v1457 = vcombine.low %v1445, %v1452
        %v1459 = vunpack.c.l.s4 1966171168
        %v1460 = vunpack.c.0.s8 %v1459
        %v1461 = vlaneseq
        %v1462 = vshrl.u32 %v1461, 7
        %v1463 = vsub.s32 %v1460, %v1462
        %v1464 = vrot.slane %v1457, %v1463
        %v1466 = vunpack.c.l.s4 1966171168
        %v1467 = vunpack.c.0.s8 %v1466
        %v1468 = vlaneseq
        %v1469 = vshrl.u32 %v1468, 7
        %v1470 = vsub.s32 %v1467, %v1469
        %v1471 = vrot.slane %v1464, %v1470
        %v1473 = vsel %vm1454, %v1471, 0.0
        %s1474 = scalar_lea.vmem [#allocation2], 36
        %v1475 = vld [vmem:[%s1474] ss:$8 sm:$0x3]
        %v1476 = vadd.f32 %v1475, %v1473
        %1477 = vst.msk [vmem:[%s1474] ss:$8 sm:$0x3] %vm354, %v1476
        %1478 = vst.msk [vmem:[%s1474] ss:$8 sm:$0x0] %vm354, %v1476
        %1479 = vrot.lane.b32.xlu0 %v284, 33
        %v1480 = vpop.permute.xlu0 %1479
        %1481 = vrot.lane.b32.xlu0 %v289, 33
        %v1482 = vpop.permute.xlu0 %1481
        %vm1483 = vcmp.lt.s32.totalorder %v296, 33
        %v1484 = vsel %vm1483, %v1480, %v1482
        %v1485 = vsel %vm1483, %v1482, %v1480
        %v1488 = vcombine.low %v1485, %v1484
        %v1490 = vmul.f32 %v283, %v1488
        %v1492 = vcombine.high %v1490, %v1490
        %v1494 = vsel %vm308, %v1490, 0.0
        %v1495 = vrot.slane %v1494, 4
        %v1496 = vadd.f32 %v1494, %v1495
        %v1497 = vrot.slane %v1496, 2
        %v1498 = vadd.f32 %v1496, %v1497
        %v1499 = vrot.slane %v1498, 1
        %v1500 = vadd.f32 %v1498, %v1499
        %v1501 = vsel %vm308, %v1492, 0.0
        %v1502 = vrot.slane %v1501, 4
        %v1503 = vadd.f32 %v1501, %v1502
        %v1504 = vrot.slane %v1503, 2
        %v1505 = vadd.f32 %v1503, %v1504
        %v1506 = vrot.slane %v1505, 1
        %v1507 = vadd.f32 %v1505, %v1506
        %vm1508 = vmand %vm1342, %vm500
        %vm1509 = vmand %vm1508, %vm502
        %v1512 = vcombine.low %v1500, %v1507
        %v1514 = vunpack.c.l.s4 1966171168
        %v1515 = vunpack.c.0.s8 %v1514
        %v1516 = vlaneseq
        %v1517 = vshrl.u32 %v1516, 7
        %v1518 = vsub.s32 %v1515, %v1517
        %v1519 = vrot.slane %v1512, %v1518
        %v1521 = vunpack.c.l.s4 1966171168
        %v1522 = vunpack.c.0.s8 %v1521
        %v1523 = vlaneseq
        %v1524 = vshrl.u32 %v1523, 7
        %v1525 = vsub.s32 %v1522, %v1524
        %v1526 = vrot.slane %v1519, %v1525
        %v1528 = vsel %vm1509, %v1526, 0.0
        %s1529 = scalar_lea.vmem [#allocation2], 37
        %v1530 = vld [vmem:[%s1529] ss:$8 sm:$0x3]
        %v1531 = vadd.f32 %v1530, %v1528
        %1532 = vst.msk [vmem:[%s1529] ss:$8 sm:$0x3] %vm354, %v1531
        %1533 = vst.msk [vmem:[%s1529] ss:$8 sm:$0x0] %vm354, %v1531
        %1534 = vrot.lane.b32.xlu0 %v284, 32
        %v1535 = vpop.permute.xlu0 %1534
        %1536 = vrot.lane.b32.xlu0 %v289, 32
        %v1537 = vpop.permute.xlu0 %1536
        %vm1538 = vcmp.lt.s32.totalorder %v296, 32
        %v1539 = vsel %vm1538, %v1535, %v1537
        %v1540 = vsel %vm1538, %v1537, %v1535
        %v1543 = vcombine.low %v1540, %v1539
        %v1545 = vmul.f32 %v283, %v1543
        %v1547 = vcombine.high %v1545, %v1545
        %v1549 = vsel %vm308, %v1545, 0.0
        %v1550 = vrot.slane %v1549, 4
        %v1551 = vadd.f32 %v1549, %v1550
        %v1552 = vrot.slane %v1551, 2
        %v1553 = vadd.f32 %v1551, %v1552
        %v1554 = vrot.slane %v1553, 1
        %v1555 = vadd.f32 %v1553, %v1554
        %v1556 = vsel %vm308, %v1547, 0.0
        %v1557 = vrot.slane %v1556, 4
        %v1558 = vadd.f32 %v1556, %v1557
        %v1559 = vrot.slane %v1558, 2
        %v1560 = vadd.f32 %v1558, %v1559
        %v1561 = vrot.slane %v1560, 1
        %v1562 = vadd.f32 %v1560, %v1561
        %vm1563 = vmand %vm1342, %vm557
        %vm1564 = vmand %vm1563, %vm559
        %v1567 = vcombine.low %v1555, %v1562
        %v1569 = vunpack.c.l.s4 1966171168
        %v1570 = vunpack.c.0.s8 %v1569
        %v1571 = vlaneseq
        %v1572 = vshrl.u32 %v1571, 7
        %v1573 = vsub.s32 %v1570, %v1572
        %v1574 = vrot.slane %v1567, %v1573
        %v1576 = vunpack.c.l.s4 1966171168
        %v1577 = vunpack.c.0.s8 %v1576
        %v1578 = vlaneseq
        %v1579 = vshrl.u32 %v1578, 7
        %v1580 = vsub.s32 %v1577, %v1579
        %v1581 = vrot.slane %v1574, %v1580
        %v1583 = vsel %vm1564, %v1581, 0.0
        %s1584 = scalar_lea.vmem [#allocation2], 38
        %v1585 = vld [vmem:[%s1584] ss:$8 sm:$0x3]
        %v1586 = vadd.f32 %v1585, %v1583
        %1587 = vst.msk [vmem:[%s1584] ss:$8 sm:$0x3] %vm354, %v1586
        %1588 = vst.msk [vmem:[%s1584] ss:$8 sm:$0x0] %vm354, %v1586
        %1589 = vrot.lane.b32.xlu0 %v284, 31
        %v1590 = vpop.permute.xlu0 %1589
        %1591 = vrot.lane.b32.xlu0 %v289, 31
        %v1592 = vpop.permute.xlu0 %1591
        %vm1593 = vcmp.lt.s32.totalorder %v296, 31
        %v1594 = vsel %vm1593, %v1590, %v1592
        %v1595 = vsel %vm1593, %v1592, %v1590
        %v1598 = vcombine.low %v1595, %v1594
        %v1600 = vmul.f32 %v283, %v1598
        %v1602 = vcombine.high %v1600, %v1600
        %v1604 = vsel %vm308, %v1600, 0.0
        %v1605 = vrot.slane %v1604, 4
        %v1606 = vadd.f32 %v1604, %v1605
        %v1607 = vrot.slane %v1606, 2
        %v1608 = vadd.f32 %v1606, %v1607
        %v1609 = vrot.slane %v1608, 1
        %v1610 = vadd.f32 %v1608, %v1609
        %v1611 = vsel %vm308, %v1602, 0.0
        %v1612 = vrot.slane %v1611, 4
        %v1613 = vadd.f32 %v1611, %v1612
        %v1614 = vrot.slane %v1613, 2
        %v1615 = vadd.f32 %v1613, %v1614
        %v1616 = vrot.slane %v1615, 1
        %v1617 = vadd.f32 %v1615, %v1616
        %vm1618 = vmand %vm1342, %vm614
        %vm1619 = vmand %vm1618, %vm616
        %v1622 = vcombine.low %v1610, %v1617
        %v1624 = vunpack.c.l.s4 1966171168
        %v1625 = vunpack.c.0.s8 %v1624
        %v1626 = vlaneseq
        %v1627 = vshrl.u32 %v1626, 7
        %v1628 = vsub.s32 %v1625, %v1627
        %v1629 = vrot.slane %v1622, %v1628
        %v1631 = vunpack.c.l.s4 1966171168
        %v1632 = vunpack.c.0.s8 %v1631
        %v1633 = vlaneseq
        %v1634 = vshrl.u32 %v1633, 7
        %v1635 = vsub.s32 %v1632, %v1634
        %v1636 = vrot.slane %v1629, %v1635
        %v1638 = vsel %vm1619, %v1636, 0.0
        %s1639 = scalar_lea.vmem [#allocation2], 39
        %v1640 = vld [vmem:[%s1639] ss:$8 sm:$0x3]
        %v1641 = vadd.f32 %v1640, %v1638
        %1642 = vst.msk [vmem:[%s1639] ss:$8 sm:$0x3] %vm354, %v1641
        %1643 = vst.msk [vmem:[%s1639] ss:$8 sm:$0x0] %vm354, %v1641
        %1644 = vrot.lane.b32.xlu0 %v284, 30
        %v1645 = vpop.permute.xlu0 %1644
        %1646 = vrot.lane.b32.xlu0 %v289, 30
        %v1647 = vpop.permute.xlu0 %1646
        %vm1648 = vcmp.lt.s32.totalorder %v296, 30
        %v1649 = vsel %vm1648, %v1645, %v1647
        %v1650 = vsel %vm1648, %v1647, %v1645
        %v1653 = vcombine.low %v1650, %v1649
        %v1655 = vmul.f32 %v283, %v1653
        %v1657 = vcombine.high %v1655, %v1655
        %v1659 = vsel %vm308, %v1655, 0.0
        %v1660 = vrot.slane %v1659, 4
        %v1661 = vadd.f32 %v1659, %v1660
        %v1662 = vrot.slane %v1661, 2
        %v1663 = vadd.f32 %v1661, %v1662
        %v1664 = vrot.slane %v1663, 1
        %v1665 = vadd.f32 %v1663, %v1664
        %v1666 = vsel %vm308, %v1657, 0.0
        %v1667 = vrot.slane %v1666, 4
        %v1668 = vadd.f32 %v1666, %v1667
        %v1669 = vrot.slane %v1668, 2
        %v1670 = vadd.f32 %v1668, %v1669
        %v1671 = vrot.slane %v1670, 1
        %v1672 = vadd.f32 %v1670, %v1671
        %vm1673 = vmand %vm1342, %vm671
        %vm1674 = vmand %vm1673, %vm673
        %v1677 = vcombine.low %v1665, %v1672
        %v1679 = vunpack.c.l.s4 1966171168
        %v1680 = vunpack.c.0.s8 %v1679
        %v1681 = vlaneseq
        %v1682 = vshrl.u32 %v1681, 7
        %v1683 = vsub.s32 %v1680, %v1682
        %v1684 = vrot.slane %v1677, %v1683
        %v1686 = vunpack.c.l.s4 1966171168
        %v1687 = vunpack.c.0.s8 %v1686
        %v1688 = vlaneseq
        %v1689 = vshrl.u32 %v1688, 7
        %v1690 = vsub.s32 %v1687, %v1689
        %v1691 = vrot.slane %v1684, %v1690
        %v1693 = vsel %vm1674, %v1691, 0.0
        %s1694 = scalar_lea.vmem [#allocation2], 48
        %v1695 = vld [vmem:[%s1694] ss:$8 sm:$0x3]
        %v1696 = vadd.f32 %v1695, %v1693
        %1697 = vst.msk [vmem:[%s1694] ss:$8 sm:$0x3] %vm354, %v1696
        %1698 = vst.msk [vmem:[%s1694] ss:$8 sm:$0x0] %vm354, %v1696
        %1699 = vrot.lane.b32.xlu0 %v284, 29
        %v1700 = vpop.permute.xlu0 %1699
        %1701 = vrot.lane.b32.xlu0 %v289, 29
        %v1702 = vpop.permute.xlu0 %1701
        %vm1703 = vcmp.lt.s32.totalorder %v296, 29
        %v1704 = vsel %vm1703, %v1700, %v1702
        %v1705 = vsel %vm1703, %v1702, %v1700
        %v1708 = vcombine.low %v1705, %v1704
        %v1710 = vmul.f32 %v283, %v1708
        %v1712 = vcombine.high %v1710, %v1710
        %v1714 = vsel %vm308, %v1710, 0.0
        %v1715 = vrot.slane %v1714, 4
        %v1716 = vadd.f32 %v1714, %v1715
        %v1717 = vrot.slane %v1716, 2
        %v1718 = vadd.f32 %v1716, %v1717
        %v1719 = vrot.slane %v1718, 1
        %v1720 = vadd.f32 %v1718, %v1719
        %v1721 = vsel %vm308, %v1712, 0.0
        %v1722 = vrot.slane %v1721, 4
        %v1723 = vadd.f32 %v1721, %v1722
        %v1724 = vrot.slane %v1723, 2
        %v1725 = vadd.f32 %v1723, %v1724
        %v1726 = vrot.slane %v1725, 1
        %v1727 = vadd.f32 %v1725, %v1726
        %vm1728 = vmand %vm1342, %vm728
        %vm1729 = vmand %vm1728, %vm730
        %v1732 = vcombine.low %v1720, %v1727
        %v1734 = vunpack.c.l.s4 1966171168
        %v1735 = vunpack.c.0.s8 %v1734
        %v1736 = vlaneseq
        %v1737 = vshrl.u32 %v1736, 7
        %v1738 = vsub.s32 %v1735, %v1737
        %v1739 = vrot.slane %v1732, %v1738
        %v1741 = vunpack.c.l.s4 1966171168
        %v1742 = vunpack.c.0.s8 %v1741
        %v1743 = vlaneseq
        %v1744 = vshrl.u32 %v1743, 7
        %v1745 = vsub.s32 %v1742, %v1744
        %v1746 = vrot.slane %v1739, %v1745
        %v1748 = vsel %vm1729, %v1746, 0.0
        %s1749 = scalar_lea.vmem [#allocation2], 49
        %v1750 = vld [vmem:[%s1749] ss:$8 sm:$0x3]
        %v1751 = vadd.f32 %v1750, %v1748
        %1752 = vst.msk [vmem:[%s1749] ss:$8 sm:$0x3] %vm354, %v1751
        %1753 = vst.msk [vmem:[%s1749] ss:$8 sm:$0x0] %vm354, %v1751
        %1754 = vrot.lane.b32.xlu0 %v284, 28
        %v1755 = vpop.permute.xlu0 %1754
        %1756 = vrot.lane.b32.xlu0 %v289, 28
        %v1757 = vpop.permute.xlu0 %1756
        %vm1758 = vcmp.lt.s32.totalorder %v296, 28
        %v1759 = vsel %vm1758, %v1755, %v1757
        %v1760 = vsel %vm1758, %v1757, %v1755
        %v1763 = vcombine.low %v1760, %v1759
        %v1765 = vmul.f32 %v283, %v1763
        %v1767 = vcombine.high %v1765, %v1765
        %v1769 = vsel %vm308, %v1765, 0.0
        %v1770 = vrot.slane %v1769, 4
        %v1771 = vadd.f32 %v1769, %v1770
        %v1772 = vrot.slane %v1771, 2
        %v1773 = vadd.f32 %v1771, %v1772
        %v1774 = vrot.slane %v1773, 1
        %v1775 = vadd.f32 %v1773, %v1774
        %v1776 = vsel %vm308, %v1767, 0.0
        %v1777 = vrot.slane %v1776, 4
        %v1778 = vadd.f32 %v1776, %v1777
        %v1779 = vrot.slane %v1778, 2
        %v1780 = vadd.f32 %v1778, %v1779
        %v1781 = vrot.slane %v1780, 1
        %v1782 = vadd.f32 %v1780, %v1781
        %vm1783 = vmand %vm1342, %vm785
        %vm1784 = vmand %vm1783, %vm787
        %v1787 = vcombine.low %v1775, %v1782
        %v1789 = vunpack.c.l.s4 1966171168
        %v1790 = vunpack.c.0.s8 %v1789
        %v1791 = vlaneseq
        %v1792 = vshrl.u32 %v1791, 7
        %v1793 = vsub.s32 %v1790, %v1792
        %v1794 = vrot.slane %v1787, %v1793
        %v1796 = vunpack.c.l.s4 1966171168
        %v1797 = vunpack.c.0.s8 %v1796
        %v1798 = vlaneseq
        %v1799 = vshrl.u32 %v1798, 7
        %v1800 = vsub.s32 %v1797, %v1799
        %v1801 = vrot.slane %v1794, %v1800
        %v1803 = vsel %vm1784, %v1801, 0.0
        %s1804 = scalar_lea.vmem [#allocation2], 50
        %v1805 = vld [vmem:[%s1804] ss:$8 sm:$0x3]
        %v1806 = vadd.f32 %v1805, %v1803
        %1807 = vst.msk [vmem:[%s1804] ss:$8 sm:$0x3] %vm354, %v1806
        %1808 = vst.msk [vmem:[%s1804] ss:$8 sm:$0x0] %vm354, %v1806
        %1809 = vrot.lane.b32.xlu0 %v284, 20
        %v1810 = vpop.permute.xlu0 %1809
        %1811 = vrot.lane.b32.xlu0 %v289, 20
        %v1812 = vpop.permute.xlu0 %1811
        %vm1813 = vcmp.lt.s32.totalorder %v296, 20
        %v1814 = vsel %vm1813, %v1810, %v1812
        %v1815 = vsel %vm1813, %v1812, %v1810
        %v1818 = vcombine.low %v1815, %v1814
        %v1820 = vmul.f32 %v283, %v1818
        %v1822 = vcombine.high %v1820, %v1820
        %v1824 = vsel %vm308, %v1820, 0.0
        %v1825 = vrot.slane %v1824, 4
        %v1826 = vadd.f32 %v1824, %v1825
        %v1827 = vrot.slane %v1826, 2
        %v1828 = vadd.f32 %v1826, %v1827
        %v1829 = vrot.slane %v1828, 1
        %v1830 = vadd.f32 %v1828, %v1829
        %v1831 = vsel %vm308, %v1822, 0.0
        %v1832 = vrot.slane %v1831, 4
        %v1833 = vadd.f32 %v1831, %v1832
        %v1834 = vrot.slane %v1833, 2
        %v1835 = vadd.f32 %v1833, %v1834
        %v1836 = vrot.slane %v1835, 1
        %v1837 = vadd.f32 %v1835, %v1836
        %vm1838 = vcmp.ge.s32.totalorder %v285, 1
        %vm1839 = vcmp.lt.s32.totalorder %v285, 17
        %vm1840 = vmand %vm1838, %vm1839
        %vm1841 = vmand %vm1840, %vm326
        %vm1842 = vmand %vm1841, %vm328
        %v1845 = vcombine.low %v1830, %v1837
        %v1847 = vunpack.c.l.s4 1966171168
        %v1848 = vunpack.c.0.s8 %v1847
        %v1849 = vlaneseq
        %v1850 = vshrl.u32 %v1849, 7
        %v1851 = vsub.s32 %v1848, %v1850
        %v1852 = vrot.slane %v1845, %v1851
        %v1854 = vunpack.c.l.s4 1966171168
        %v1855 = vunpack.c.0.s8 %v1854
        %v1856 = vlaneseq
        %v1857 = vshrl.u32 %v1856, 7
        %v1858 = vsub.s32 %v1855, %v1857
        %v1859 = vrot.slane %v1852, %v1858
        %v1861 = vsel %vm1842, %v1859, 0.0
        %s1862 = scalar_lea.vmem [#allocation2], 51
        %v1863 = vld [vmem:[%s1862] ss:$8 sm:$0x3]
        %v1864 = vadd.f32 %v1863, %v1861
        %1865 = vst.msk [vmem:[%s1862] ss:$8 sm:$0x3] %vm354, %v1864
        %1866 = vst.msk [vmem:[%s1862] ss:$8 sm:$0x0] %vm354, %v1864
        %1867 = vrot.lane.b32.xlu0 %v284, 19
        %v1868 = vpop.permute.xlu0 %1867
        %1869 = vrot.lane.b32.xlu0 %v289, 19
        %v1870 = vpop.permute.xlu0 %1869
        %vm1871 = vcmp.lt.s32.totalorder %v296, 19
        %v1872 = vsel %vm1871, %v1868, %v1870
        %v1873 = vsel %vm1871, %v1870, %v1868
        %v1876 = vcombine.low %v1873, %v1872
        %v1878 = vmul.f32 %v283, %v1876
        %v1880 = vcombine.high %v1878, %v1878
        %v1882 = vsel %vm308, %v1878, 0.0
        %v1883 = vrot.slane %v1882, 4
        %v1884 = vadd.f32 %v1882, %v1883
        %v1885 = vrot.slane %v1884, 2
        %v1886 = vadd.f32 %v1884, %v1885
        %v1887 = vrot.slane %v1886, 1
        %v1888 = vadd.f32 %v1886, %v1887
        %v1889 = vsel %vm308, %v1880, 0.0
        %v1890 = vrot.slane %v1889, 4
        %v1891 = vadd.f32 %v1889, %v1890
        %v1892 = vrot.slane %v1891, 2
        %v1893 = vadd.f32 %v1891, %v1892
        %v1894 = vrot.slane %v1893, 1
        %v1895 = vadd.f32 %v1893, %v1894
        %vm1896 = vmand %vm1840, %vm386
        %vm1897 = vmand %vm1896, %vm388
        %v1900 = vcombine.low %v1888, %v1895
        %v1902 = vunpack.c.l.s4 1966171168
        %v1903 = vunpack.c.0.s8 %v1902
        %v1904 = vlaneseq
        %v1905 = vshrl.u32 %v1904, 7
        %v1906 = vsub.s32 %v1903, %v1905
        %v1907 = vrot.slane %v1900, %v1906
        %v1909 = vunpack.c.l.s4 1966171168
        %v1910 = vunpack.c.0.s8 %v1909
        %v1911 = vlaneseq
        %v1912 = vshrl.u32 %v1911, 7
        %v1913 = vsub.s32 %v1910, %v1912
        %v1914 = vrot.slane %v1907, %v1913
        %v1916 = vsel %vm1897, %v1914, 0.0
        %s1917 = scalar_lea.vmem [#allocation2], 52
        %v1918 = vld [vmem:[%s1917] ss:$8 sm:$0x3]
        %v1919 = vadd.f32 %v1918, %v1916
        %1920 = vst.msk [vmem:[%s1917] ss:$8 sm:$0x3] %vm354, %v1919
        %1921 = vst.msk [vmem:[%s1917] ss:$8 sm:$0x0] %vm354, %v1919
        %1922 = vrot.lane.b32.xlu0 %v284, 18
        %v1923 = vpop.permute.xlu0 %1922
        %1924 = vrot.lane.b32.xlu0 %v289, 18
        %v1925 = vpop.permute.xlu0 %1924
        %vm1926 = vcmp.lt.s32.totalorder %v296, 18
        %v1927 = vsel %vm1926, %v1923, %v1925
        %v1928 = vsel %vm1926, %v1925, %v1923
        %v1931 = vcombine.low %v1928, %v1927
        %v1933 = vmul.f32 %v283, %v1931
        %v1935 = vcombine.high %v1933, %v1933
        %v1937 = vsel %vm308, %v1933, 0.0
        %v1938 = vrot.slane %v1937, 4
        %v1939 = vadd.f32 %v1937, %v1938
        %v1940 = vrot.slane %v1939, 2
        %v1941 = vadd.f32 %v1939, %v1940
        %v1942 = vrot.slane %v1941, 1
        %v1943 = vadd.f32 %v1941, %v1942
        %v1944 = vsel %vm308, %v1935, 0.0
        %v1945 = vrot.slane %v1944, 4
        %v1946 = vadd.f32 %v1944, %v1945
        %v1947 = vrot.slane %v1946, 2
        %v1948 = vadd.f32 %v1946, %v1947
        %v1949 = vrot.slane %v1948, 1
        %v1950 = vadd.f32 %v1948, %v1949
        %vm1951 = vmand %vm1840, %vm443
        %vm1952 = vmand %vm1951, %vm445
        %v1955 = vcombine.low %v1943, %v1950
        %v1957 = vunpack.c.l.s4 1966171168
        %v1958 = vunpack.c.0.s8 %v1957
        %v1959 = vlaneseq
        %v1960 = vshrl.u32 %v1959, 7
        %v1961 = vsub.s32 %v1958, %v1960
        %v1962 = vrot.slane %v1955, %v1961
        %v1964 = vunpack.c.l.s4 1966171168
        %v1965 = vunpack.c.0.s8 %v1964
        %v1966 = vlaneseq
        %v1967 = vshrl.u32 %v1966, 7
        %v1968 = vsub.s32 %v1965, %v1967
        %v1969 = vrot.slane %v1962, %v1968
        %v1971 = vsel %vm1952, %v1969, 0.0
        %s1972 = scalar_lea.vmem [#allocation2], 53
        %v1973 = vld [vmem:[%s1972] ss:$8 sm:$0x3]
        %v1974 = vadd.f32 %v1973, %v1971
        %1975 = vst.msk [vmem:[%s1972] ss:$8 sm:$0x3] %vm354, %v1974
        %1976 = vst.msk [vmem:[%s1972] ss:$8 sm:$0x0] %vm354, %v1974
        %1977 = vrot.lane.b32.xlu0 %v284, 17
        %v1978 = vpop.permute.xlu0 %1977
        %1979 = vrot.lane.b32.xlu0 %v289, 17
        %v1980 = vpop.permute.xlu0 %1979
        %vm1981 = vcmp.lt.s32.totalorder %v296, 17
        %v1982 = vsel %vm1981, %v1978, %v1980
        %v1983 = vsel %vm1981, %v1980, %v1978
        %v1986 = vcombine.low %v1983, %v1982
        %v1988 = vmul.f32 %v283, %v1986
        %v1990 = vcombine.high %v1988, %v1988
        %v1992 = vsel %vm308, %v1988, 0.0
        %v1993 = vrot.slane %v1992, 4
        %v1994 = vadd.f32 %v1992, %v1993
        %v1995 = vrot.slane %v1994, 2
        %v1996 = vadd.f32 %v1994, %v1995
        %v1997 = vrot.slane %v1996, 1
        %v1998 = vadd.f32 %v1996, %v1997
        %v1999 = vsel %vm308, %v1990, 0.0
        %v2000 = vrot.slane %v1999, 4
        %v2001 = vadd.f32 %v1999, %v2000
        %v2002 = vrot.slane %v2001, 2
        %v2003 = vadd.f32 %v2001, %v2002
        %v2004 = vrot.slane %v2003, 1
        %v2005 = vadd.f32 %v2003, %v2004
        %vm2006 = vmand %vm1840, %vm500
        %vm2007 = vmand %vm2006, %vm502
        %v2010 = vcombine.low %v1998, %v2005
        %v2012 = vunpack.c.l.s4 1966171168
        %v2013 = vunpack.c.0.s8 %v2012
        %v2014 = vlaneseq
        %v2015 = vshrl.u32 %v2014, 7
        %v2016 = vsub.s32 %v2013, %v2015
        %v2017 = vrot.slane %v2010, %v2016
        %v2019 = vunpack.c.l.s4 1966171168
        %v2020 = vunpack.c.0.s8 %v2019
        %v2021 = vlaneseq
        %v2022 = vshrl.u32 %v2021, 7
        %v2023 = vsub.s32 %v2020, %v2022
        %v2024 = vrot.slane %v2017, %v2023
        %v2026 = vsel %vm2007, %v2024, 0.0
        %s2027 = scalar_lea.vmem [#allocation2], 54
        %v2028 = vld [vmem:[%s2027] ss:$8 sm:$0x3]
        %v2029 = vadd.f32 %v2028, %v2026
        %2030 = vst.msk [vmem:[%s2027] ss:$8 sm:$0x3] %vm354, %v2029
        %2031 = vst.msk [vmem:[%s2027] ss:$8 sm:$0x0] %vm354, %v2029
        %2032 = vrot.lane.b32.xlu0 %v284, 16
        %v2033 = vpop.permute.xlu0 %2032
        %2034 = vrot.lane.b32.xlu0 %v289, 16
        %v2035 = vpop.permute.xlu0 %2034
        %vm2036 = vcmp.lt.s32.totalorder %v296, 16
        %v2037 = vsel %vm2036, %v2033, %v2035
        %v2038 = vsel %vm2036, %v2035, %v2033
        %v2041 = vcombine.low %v2038, %v2037
        %v2043 = vmul.f32 %v283, %v2041
        %v2045 = vcombine.high %v2043, %v2043
        %v2047 = vsel %vm308, %v2043, 0.0
        %v2048 = vrot.slane %v2047, 4
        %v2049 = vadd.f32 %v2047, %v2048
        %v2050 = vrot.slane %v2049, 2
        %v2051 = vadd.f32 %v2049, %v2050
        %v2052 = vrot.slane %v2051, 1
        %v2053 = vadd.f32 %v2051, %v2052
        %v2054 = vsel %vm308, %v2045, 0.0
        %v2055 = vrot.slane %v2054, 4
        %v2056 = vadd.f32 %v2054, %v2055
        %v2057 = vrot.slane %v2056, 2
        %v2058 = vadd.f32 %v2056, %v2057
        %v2059 = vrot.slane %v2058, 1
        %v2060 = vadd.f32 %v2058, %v2059
        %vm2061 = vmand %vm1840, %vm557
        %vm2062 = vmand %vm2061, %vm559
        %v2065 = vcombine.low %v2053, %v2060
        %v2067 = vunpack.c.l.s4 1966171168
        %v2068 = vunpack.c.0.s8 %v2067
        %v2069 = vlaneseq
        %v2070 = vshrl.u32 %v2069, 7
        %v2071 = vsub.s32 %v2068, %v2070
        %v2072 = vrot.slane %v2065, %v2071
        %v2074 = vunpack.c.l.s4 1966171168
        %v2075 = vunpack.c.0.s8 %v2074
        %v2076 = vlaneseq
        %v2077 = vshrl.u32 %v2076, 7
        %v2078 = vsub.s32 %v2075, %v2077
        %v2079 = vrot.slane %v2072, %v2078
        %v2081 = vsel %vm2062, %v2079, 0.0
        %s2082 = scalar_lea.vmem [#allocation2], 55
        %v2083 = vld [vmem:[%s2082] ss:$8 sm:$0x3]
        %v2084 = vadd.f32 %v2083, %v2081
        %2085 = vst.msk [vmem:[%s2082] ss:$8 sm:$0x3] %vm354, %v2084
        %2086 = vst.msk [vmem:[%s2082] ss:$8 sm:$0x0] %vm354, %v2084
        %2087 = vrot.lane.b32.xlu0 %v284, 15
        %v2088 = vpop.permute.xlu0 %2087
        %2089 = vrot.lane.b32.xlu0 %v289, 15
        %v2090 = vpop.permute.xlu0 %2089
        %vm2091 = vcmp.lt.s32.totalorder %v296, 15
        %v2092 = vsel %vm2091, %v2088, %v2090
        %v2093 = vsel %vm2091, %v2090, %v2088
        %v2096 = vcombine.low %v2093, %v2092
        %v2098 = vmul.f32 %v283, %v2096
        %v2100 = vcombine.high %v2098, %v2098
        %v2102 = vsel %vm308, %v2098, 0.0
        %v2103 = vrot.slane %v2102, 4
        %v2104 = vadd.f32 %v2102, %v2103
        %v2105 = vrot.slane %v2104, 2
        %v2106 = vadd.f32 %v2104, %v2105
        %v2107 = vrot.slane %v2106, 1
        %v2108 = vadd.f32 %v2106, %v2107
        %v2109 = vsel %vm308, %v2100, 0.0
        %v2110 = vrot.slane %v2109, 4
        %v2111 = vadd.f32 %v2109, %v2110
        %v2112 = vrot.slane %v2111, 2
        %v2113 = vadd.f32 %v2111, %v2112
        %v2114 = vrot.slane %v2113, 1
        %v2115 = vadd.f32 %v2113, %v2114
        %vm2116 = vmand %vm1840, %vm614
        %vm2117 = vmand %vm2116, %vm616
        %v2120 = vcombine.low %v2108, %v2115
        %v2122 = vunpack.c.l.s4 1966171168
        %v2123 = vunpack.c.0.s8 %v2122
        %v2124 = vlaneseq
        %v2125 = vshrl.u32 %v2124, 7
        %v2126 = vsub.s32 %v2123, %v2125
        %v2127 = vrot.slane %v2120, %v2126
        %v2129 = vunpack.c.l.s4 1966171168
        %v2130 = vunpack.c.0.s8 %v2129
        %v2131 = vlaneseq
        %v2132 = vshrl.u32 %v2131, 7
        %v2133 = vsub.s32 %v2130, %v2132
        %v2134 = vrot.slane %v2127, %v2133
        %v2136 = vsel %vm2117, %v2134, 0.0
        %s2137 = scalar_lea.vmem [#allocation2], 64
        %v2138 = vld [vmem:[%s2137] ss:$8 sm:$0x3]
        %v2139 = vadd.f32 %v2138, %v2136
        %2140 = vst.msk [vmem:[%s2137] ss:$8 sm:$0x3] %vm354, %v2139
        %2141 = vst.msk [vmem:[%s2137] ss:$8 sm:$0x0] %vm354, %v2139
        %2142 = vrot.lane.b32.xlu0 %v284, 14
        %v2143 = vpop.permute.xlu0 %2142
        %2144 = vrot.lane.b32.xlu0 %v289, 14
        %v2145 = vpop.permute.xlu0 %2144
        %vm2146 = vcmp.lt.s32.totalorder %v296, 14
        %v2147 = vsel %vm2146, %v2143, %v2145
        %v2148 = vsel %vm2146, %v2145, %v2143
        %v2151 = vcombine.low %v2148, %v2147
        %v2153 = vmul.f32 %v283, %v2151
        %v2155 = vcombine.high %v2153, %v2153
        %v2157 = vsel %vm308, %v2153, 0.0
        %v2158 = vrot.slane %v2157, 4
        %v2159 = vadd.f32 %v2157, %v2158
        %v2160 = vrot.slane %v2159, 2
        %v2161 = vadd.f32 %v2159, %v2160
        %v2162 = vrot.slane %v2161, 1
        %v2163 = vadd.f32 %v2161, %v2162
        %v2164 = vsel %vm308, %v2155, 0.0
        %v2165 = vrot.slane %v2164, 4
        %v2166 = vadd.f32 %v2164, %v2165
        %v2167 = vrot.slane %v2166, 2
        %v2168 = vadd.f32 %v2166, %v2167
        %v2169 = vrot.slane %v2168, 1
        %v2170 = vadd.f32 %v2168, %v2169
        %vm2171 = vmand %vm1840, %vm671
        %vm2172 = vmand %vm2171, %vm673
        %v2175 = vcombine.low %v2163, %v2170
        %v2177 = vunpack.c.l.s4 1966171168
        %v2178 = vunpack.c.0.s8 %v2177
        %v2179 = vlaneseq
        %v2180 = vshrl.u32 %v2179, 7
        %v2181 = vsub.s32 %v2178, %v2180
        %v2182 = vrot.slane %v2175, %v2181
        %v2184 = vunpack.c.l.s4 1966171168
        %v2185 = vunpack.c.0.s8 %v2184
        %v2186 = vlaneseq
        %v2187 = vshrl.u32 %v2186, 7
        %v2188 = vsub.s32 %v2185, %v2187
        %v2189 = vrot.slane %v2182, %v2188
        %v2191 = vsel %vm2172, %v2189, 0.0
        %s2192 = scalar_lea.vmem [#allocation2], 65
        %v2193 = vld [vmem:[%s2192] ss:$8 sm:$0x3]
        %v2194 = vadd.f32 %v2193, %v2191
        %2195 = vst.msk [vmem:[%s2192] ss:$8 sm:$0x3] %vm354, %v2194
        %2196 = vst.msk [vmem:[%s2192] ss:$8 sm:$0x0] %vm354, %v2194
        %2197 = vrot.lane.b32.xlu0 %v284, 13
        %v2198 = vpop.permute.xlu0 %2197
        %2199 = vrot.lane.b32.xlu0 %v289, 13
        %v2200 = vpop.permute.xlu0 %2199
        %vm2201 = vcmp.lt.s32.totalorder %v296, 13
        %v2202 = vsel %vm2201, %v2198, %v2200
        %v2203 = vsel %vm2201, %v2200, %v2198
        %v2206 = vcombine.low %v2203, %v2202
        %v2208 = vmul.f32 %v283, %v2206
        %v2210 = vcombine.high %v2208, %v2208
        %v2212 = vsel %vm308, %v2208, 0.0
        %v2213 = vrot.slane %v2212, 4
        %v2214 = vadd.f32 %v2212, %v2213
        %v2215 = vrot.slane %v2214, 2
        %v2216 = vadd.f32 %v2214, %v2215
        %v2217 = vrot.slane %v2216, 1
        %v2218 = vadd.f32 %v2216, %v2217
        %v2219 = vsel %vm308, %v2210, 0.0
        %v2220 = vrot.slane %v2219, 4
        %v2221 = vadd.f32 %v2219, %v2220
        %v2222 = vrot.slane %v2221, 2
        %v2223 = vadd.f32 %v2221, %v2222
        %v2224 = vrot.slane %v2223, 1
        %v2225 = vadd.f32 %v2223, %v2224
        %vm2226 = vmand %vm1840, %vm728
        %vm2227 = vmand %vm2226, %vm730
        %v2230 = vcombine.low %v2218, %v2225
        %v2232 = vunpack.c.l.s4 1966171168
        %v2233 = vunpack.c.0.s8 %v2232
        %v2234 = vlaneseq
        %v2235 = vshrl.u32 %v2234, 7
        %v2236 = vsub.s32 %v2233, %v2235
        %v2237 = vrot.slane %v2230, %v2236
        %v2239 = vunpack.c.l.s4 1966171168
        %v2240 = vunpack.c.0.s8 %v2239
        %v2241 = vlaneseq
        %v2242 = vshrl.u32 %v2241, 7
        %v2243 = vsub.s32 %v2240, %v2242
        %v2244 = vrot.slane %v2237, %v2243
        %v2246 = vsel %vm2227, %v2244, 0.0
        %s2247 = scalar_lea.vmem [#allocation2], 66
        %v2248 = vld [vmem:[%s2247] ss:$8 sm:$0x3]
        %v2249 = vadd.f32 %v2248, %v2246
        %2250 = vst.msk [vmem:[%s2247] ss:$8 sm:$0x3] %vm354, %v2249
        %2251 = vst.msk [vmem:[%s2247] ss:$8 sm:$0x0] %vm354, %v2249
        %2252 = vrot.lane.b32.xlu0 %v284, 12
        %v2253 = vpop.permute.xlu0 %2252
        %2254 = vrot.lane.b32.xlu0 %v289, 12
        %v2255 = vpop.permute.xlu0 %2254
        %vm2256 = vcmp.lt.s32.totalorder %v296, 12
        %v2257 = vsel %vm2256, %v2253, %v2255
        %v2258 = vsel %vm2256, %v2255, %v2253
        %v2261 = vcombine.low %v2258, %v2257
        %v2263 = vmul.f32 %v283, %v2261
        %v2265 = vcombine.high %v2263, %v2263
        %v2267 = vsel %vm308, %v2263, 0.0
        %v2268 = vrot.slane %v2267, 4
        %v2269 = vadd.f32 %v2267, %v2268
        %v2270 = vrot.slane %v2269, 2
        %v2271 = vadd.f32 %v2269, %v2270
        %v2272 = vrot.slane %v2271, 1
        %v2273 = vadd.f32 %v2271, %v2272
        %v2274 = vsel %vm308, %v2265, 0.0
        %v2275 = vrot.slane %v2274, 4
        %v2276 = vadd.f32 %v2274, %v2275
        %v2277 = vrot.slane %v2276, 2
        %v2278 = vadd.f32 %v2276, %v2277
        %v2279 = vrot.slane %v2278, 1
        %v2280 = vadd.f32 %v2278, %v2279
        %vm2281 = vmand %vm1840, %vm785
        %vm2282 = vmand %vm2281, %vm787
        %v2285 = vcombine.low %v2273, %v2280
        %v2287 = vunpack.c.l.s4 1966171168
        %v2288 = vunpack.c.0.s8 %v2287
        %v2289 = vlaneseq
        %v2290 = vshrl.u32 %v2289, 7
        %v2291 = vsub.s32 %v2288, %v2290
        %v2292 = vrot.slane %v2285, %v2291
        %v2294 = vunpack.c.l.s4 1966171168
        %v2295 = vunpack.c.0.s8 %v2294
        %v2296 = vlaneseq
        %v2297 = vshrl.u32 %v2296, 7
        %v2298 = vsub.s32 %v2295, %v2297
        %v2299 = vrot.slane %v2292, %v2298
        %v2301 = vsel %vm2282, %v2299, 0.0
        %s2302 = scalar_lea.vmem [#allocation2], 67
        %v2303 = vld [vmem:[%s2302] ss:$8 sm:$0x3]
        %v2304 = vadd.f32 %v2303, %v2301
        %2305 = vst.msk [vmem:[%s2302] ss:$8 sm:$0x3] %vm354, %v2304
        %2306 = vst.msk [vmem:[%s2302] ss:$8 sm:$0x0] %vm354, %v2304
        %2307 = vrot.lane.b32.xlu0 %v284, 4
        %v2308 = vpop.permute.xlu0 %2307
        %2309 = vrot.lane.b32.xlu0 %v289, 4
        %v2310 = vpop.permute.xlu0 %2309
        %vm2311 = vcmp.lt.s32.totalorder %v296, 4
        %v2312 = vsel %vm2311, %v2308, %v2310
        %v2313 = vsel %vm2311, %v2310, %v2308
        %v2316 = vcombine.low %v2313, %v2312
        %v2318 = vmul.f32 %v283, %v2316
        %v2320 = vcombine.high %v2318, %v2318
        %v2322 = vsel %vm308, %v2318, 0.0
        %v2323 = vrot.slane %v2322, 4
        %v2324 = vadd.f32 %v2322, %v2323
        %v2325 = vrot.slane %v2324, 2
        %v2326 = vadd.f32 %v2324, %v2325
        %v2327 = vrot.slane %v2326, 1
        %v2328 = vadd.f32 %v2326, %v2327
        %v2329 = vsel %vm308, %v2320, 0.0
        %v2330 = vrot.slane %v2329, 4
        %v2331 = vadd.f32 %v2329, %v2330
        %v2332 = vrot.slane %v2331, 2
        %v2333 = vadd.f32 %v2331, %v2332
        %v2334 = vrot.slane %v2333, 1
        %v2335 = vadd.f32 %v2333, %v2334
        %vm2336 = vcmp.ge.s32.totalorder %v285, 0
        %vm2337 = vcmp.lt.s32.totalorder %v285, 16
        %vm2338 = vmand %vm2336, %vm2337
        %vm2339 = vmand %vm2338, %vm326
        %vm2340 = vmand %vm2339, %vm328
        %v2343 = vcombine.low %v2328, %v2335
        %v2345 = vunpack.c.l.s4 1966171168
        %v2346 = vunpack.c.0.s8 %v2345
        %v2347 = vlaneseq
        %v2348 = vshrl.u32 %v2347, 7
        %v2349 = vsub.s32 %v2346, %v2348
        %v2350 = vrot.slane %v2343, %v2349
        %v2352 = vunpack.c.l.s4 1966171168
        %v2353 = vunpack.c.0.s8 %v2352
        %v2354 = vlaneseq
        %v2355 = vshrl.u32 %v2354, 7
        %v2356 = vsub.s32 %v2353, %v2355
        %v2357 = vrot.slane %v2350, %v2356
        %v2359 = vsel %vm2340, %v2357, 0.0
        %s2360 = scalar_lea.vmem [#allocation2], 68
        %v2361 = vld [vmem:[%s2360] ss:$8 sm:$0x3]
        %v2362 = vadd.f32 %v2361, %v2359
        %2363 = vst.msk [vmem:[%s2360] ss:$8 sm:$0x3] %vm354, %v2362
        %2364 = vst.msk [vmem:[%s2360] ss:$8 sm:$0x0] %vm354, %v2362
        %2365 = vrot.lane.b32.xlu0 %v284, 3
        %v2366 = vpop.permute.xlu0 %2365
        %2367 = vrot.lane.b32.xlu0 %v289, 3
        %v2368 = vpop.permute.xlu0 %2367
        %vm2369 = vcmp.lt.s32.totalorder %v296, 3
        %v2370 = vsel %vm2369, %v2366, %v2368
        %v2371 = vsel %vm2369, %v2368, %v2366
        %v2374 = vcombine.low %v2371, %v2370
        %v2376 = vmul.f32 %v283, %v2374
        %v2378 = vcombine.high %v2376, %v2376
        %v2380 = vsel %vm308, %v2376, 0.0
        %v2381 = vrot.slane %v2380, 4
        %v2382 = vadd.f32 %v2380, %v2381
        %v2383 = vrot.slane %v2382, 2
        %v2384 = vadd.f32 %v2382, %v2383
        %v2385 = vrot.slane %v2384, 1
        %v2386 = vadd.f32 %v2384, %v2385
        %v2387 = vsel %vm308, %v2378, 0.0
        %v2388 = vrot.slane %v2387, 4
        %v2389 = vadd.f32 %v2387, %v2388
        %v2390 = vrot.slane %v2389, 2
        %v2391 = vadd.f32 %v2389, %v2390
        %v2392 = vrot.slane %v2391, 1
        %v2393 = vadd.f32 %v2391, %v2392
        %vm2394 = vmand %vm2338, %vm386
        %vm2395 = vmand %vm2394, %vm388
        %v2398 = vcombine.low %v2386, %v2393
        %v2400 = vunpack.c.l.s4 1966171168
        %v2401 = vunpack.c.0.s8 %v2400
        %v2402 = vlaneseq
        %v2403 = vshrl.u32 %v2402, 7
        %v2404 = vsub.s32 %v2401, %v2403
        %v2405 = vrot.slane %v2398, %v2404
        %v2407 = vunpack.c.l.s4 1966171168
        %v2408 = vunpack.c.0.s8 %v2407
        %v2409 = vlaneseq
        %v2410 = vshrl.u32 %v2409, 7
        %v2411 = vsub.s32 %v2408, %v2410
        %v2412 = vrot.slane %v2405, %v2411
        %v2414 = vsel %vm2395, %v2412, 0.0
        %s2415 = scalar_lea.vmem [#allocation2], 69
        %v2416 = vld [vmem:[%s2415] ss:$8 sm:$0x3]
        %v2417 = vadd.f32 %v2416, %v2414
        %2418 = vst.msk [vmem:[%s2415] ss:$8 sm:$0x3] %vm354, %v2417
        %2419 = vst.msk [vmem:[%s2415] ss:$8 sm:$0x0] %vm354, %v2417
        %2420 = vrot.lane.b32.xlu0 %v284, 2
        %v2421 = vpop.permute.xlu0 %2420
        %2422 = vrot.lane.b32.xlu0 %v289, 2
        %v2423 = vpop.permute.xlu0 %2422
        %vm2424 = vcmp.lt.s32.totalorder %v296, 2
        %v2425 = vsel %vm2424, %v2421, %v2423
        %v2426 = vsel %vm2424, %v2423, %v2421
        %v2429 = vcombine.low %v2426, %v2425
        %v2431 = vmul.f32 %v283, %v2429
        %v2433 = vcombine.high %v2431, %v2431
        %v2435 = vsel %vm308, %v2431, 0.0
        %v2436 = vrot.slane %v2435, 4
        %v2437 = vadd.f32 %v2435, %v2436
        %v2438 = vrot.slane %v2437, 2
        %v2439 = vadd.f32 %v2437, %v2438
        %v2440 = vrot.slane %v2439, 1
        %v2441 = vadd.f32 %v2439, %v2440
        %v2442 = vsel %vm308, %v2433, 0.0
        %v2443 = vrot.slane %v2442, 4
        %v2444 = vadd.f32 %v2442, %v2443
        %v2445 = vrot.slane %v2444, 2
        %v2446 = vadd.f32 %v2444, %v2445
        %v2447 = vrot.slane %v2446, 1
        %v2448 = vadd.f32 %v2446, %v2447
        %vm2449 = vmand %vm2338, %vm443
        %vm2450 = vmand %vm2449, %vm445
        %v2453 = vcombine.low %v2441, %v2448
        %v2455 = vunpack.c.l.s4 1966171168
        %v2456 = vunpack.c.0.s8 %v2455
        %v2457 = vlaneseq
        %v2458 = vshrl.u32 %v2457, 7
        %v2459 = vsub.s32 %v2456, %v2458
        %v2460 = vrot.slane %v2453, %v2459
        %v2462 = vunpack.c.l.s4 1966171168
        %v2463 = vunpack.c.0.s8 %v2462
        %v2464 = vlaneseq
        %v2465 = vshrl.u32 %v2464, 7
        %v2466 = vsub.s32 %v2463, %v2465
        %v2467 = vrot.slane %v2460, %v2466
        %v2469 = vsel %vm2450, %v2467, 0.0
        %s2470 = scalar_lea.vmem [#allocation2], 70
        %v2471 = vld [vmem:[%s2470] ss:$8 sm:$0x3]
        %v2472 = vadd.f32 %v2471, %v2469
        %2473 = vst.msk [vmem:[%s2470] ss:$8 sm:$0x3] %vm354, %v2472
        %2474 = vst.msk [vmem:[%s2470] ss:$8 sm:$0x0] %vm354, %v2472
        %2475 = vrot.lane.b32.xlu0 %v284, 1
        %v2476 = vpop.permute.xlu0 %2475
        %2477 = vrot.lane.b32.xlu0 %v289, 1
        %v2478 = vpop.permute.xlu0 %2477
        %vm2479 = vcmp.lt.s32.totalorder %v296, 1
        %v2480 = vsel %vm2479, %v2476, %v2478
        %v2481 = vsel %vm2479, %v2478, %v2476
        %v2484 = vcombine.low %v2481, %v2480
        %v2486 = vmul.f32 %v283, %v2484
        %v2488 = vcombine.high %v2486, %v2486
        %v2490 = vsel %vm308, %v2486, 0.0
        %v2491 = vrot.slane %v2490, 4
        %v2492 = vadd.f32 %v2490, %v2491
        %v2493 = vrot.slane %v2492, 2
        %v2494 = vadd.f32 %v2492, %v2493
        %v2495 = vrot.slane %v2494, 1
        %v2496 = vadd.f32 %v2494, %v2495
        %v2497 = vsel %vm308, %v2488, 0.0
        %v2498 = vrot.slane %v2497, 4
        %v2499 = vadd.f32 %v2497, %v2498
        %v2500 = vrot.slane %v2499, 2
        %v2501 = vadd.f32 %v2499, %v2500
        %v2502 = vrot.slane %v2501, 1
        %v2503 = vadd.f32 %v2501, %v2502
        %vm2504 = vmand %vm2338, %vm500
        %vm2505 = vmand %vm2504, %vm502
        %v2508 = vcombine.low %v2496, %v2503
        %v2510 = vunpack.c.l.s4 1966171168
        %v2511 = vunpack.c.0.s8 %v2510
        %v2512 = vlaneseq
        %v2513 = vshrl.u32 %v2512, 7
        %v2514 = vsub.s32 %v2511, %v2513
        %v2515 = vrot.slane %v2508, %v2514
        %v2517 = vunpack.c.l.s4 1966171168
        %v2518 = vunpack.c.0.s8 %v2517
        %v2519 = vlaneseq
        %v2520 = vshrl.u32 %v2519, 7
        %v2521 = vsub.s32 %v2518, %v2520
        %v2522 = vrot.slane %v2515, %v2521
        %v2524 = vsel %vm2505, %v2522, 0.0
        %s2525 = scalar_lea.vmem [#allocation2], 71
        %v2526 = vld [vmem:[%s2525] ss:$8 sm:$0x3]
        %v2527 = vadd.f32 %v2526, %v2524
        %2528 = vst.msk [vmem:[%s2525] ss:$8 sm:$0x3] %vm354, %v2527
        %2529 = vst.msk [vmem:[%s2525] ss:$8 sm:$0x0] %vm354, %v2527
        %v2530 = vmul.f32 %v283, %v284
        %v2532 = vcombine.high %v2530, %v2530
        %v2534 = vsel %vm308, %v2530, 0.0
        %v2535 = vrot.slane %v2534, 4
        %v2536 = vadd.f32 %v2534, %v2535
        %v2537 = vrot.slane %v2536, 2
        %v2538 = vadd.f32 %v2536, %v2537
        %v2539 = vrot.slane %v2538, 1
        %v2540 = vadd.f32 %v2538, %v2539
        %v2541 = vsel %vm308, %v2532, 0.0
        %v2542 = vrot.slane %v2541, 4
        %v2543 = vadd.f32 %v2541, %v2542
        %v2544 = vrot.slane %v2543, 2
        %v2545 = vadd.f32 %v2543, %v2544
        %v2546 = vrot.slane %v2545, 1
        %v2547 = vadd.f32 %v2545, %v2546
        %vm2548 = vmand %vm2338, %vm557
        %vm2549 = vmand %vm2548, %vm559
        %v2552 = vcombine.low %v2540, %v2547
        %v2554 = vunpack.c.l.s4 1966171168
        %v2555 = vunpack.c.0.s8 %v2554
        %v2556 = vlaneseq
        %v2557 = vshrl.u32 %v2556, 7
        %v2558 = vsub.s32 %v2555, %v2557
        %v2559 = vrot.slane %v2552, %v2558
        %v2561 = vunpack.c.l.s4 1966171168
        %v2562 = vunpack.c.0.s8 %v2561
        %v2563 = vlaneseq
        %v2564 = vshrl.u32 %v2563, 7
        %v2565 = vsub.s32 %v2562, %v2564
        %v2566 = vrot.slane %v2559, %v2565
        %v2568 = vsel %vm2549, %v2566, 0.0
        %s2569 = scalar_lea.vmem [#allocation2], 80
        %v2570 = vld [vmem:[%s2569] ss:$8 sm:$0x3]
        %v2571 = vadd.f32 %v2570, %v2568
        %2572 = vst.msk [vmem:[%s2569] ss:$8 sm:$0x3] %vm354, %v2571
        %2573 = vst.msk [vmem:[%s2569] ss:$8 sm:$0x0] %vm354, %v2571
        %2574 = vrot.lane.b32.xlu0 %v284, 127
        %v2575 = vpop.permute.xlu0 %2574
        %2576 = vrot.lane.b32.xlu0 %v289, 127
        %v2577 = vpop.permute.xlu0 %2576
        %vm2578 = vcmp.lt.s32.totalorder %v296, 127
        %v2579 = vsel %vm2578, %v2575, %v2577
        %v2580 = vsel %vm2578, %v2577, %v2575
        %v2583 = vcombine.low %v2579, %v2580
        %v2585 = vmul.f32 %v283, %v2583
        %v2587 = vcombine.high %v2585, %v2585
        %v2589 = vsel %vm308, %v2585, 0.0
        %v2590 = vrot.slane %v2589, 4
        %v2591 = vadd.f32 %v2589, %v2590
        %v2592 = vrot.slane %v2591, 2
        %v2593 = vadd.f32 %v2591, %v2592
        %v2594 = vrot.slane %v2593, 1
        %v2595 = vadd.f32 %v2593, %v2594
        %v2596 = vsel %vm308, %v2587, 0.0
        %v2597 = vrot.slane %v2596, 4
        %v2598 = vadd.f32 %v2596, %v2597
        %v2599 = vrot.slane %v2598, 2
        %v2600 = vadd.f32 %v2598, %v2599
        %v2601 = vrot.slane %v2600, 1
        %v2602 = vadd.f32 %v2600, %v2601
        %vm2603 = vmand %vm2338, %vm614
        %vm2604 = vmand %vm2603, %vm616
        %v2607 = vcombine.low %v2595, %v2602
        %v2609 = vunpack.c.l.s4 1966171168
        %v2610 = vunpack.c.0.s8 %v2609
        %v2611 = vlaneseq
        %v2612 = vshrl.u32 %v2611, 7
        %v2613 = vsub.s32 %v2610, %v2612
        %v2614 = vrot.slane %v2607, %v2613
        %v2616 = vunpack.c.l.s4 1966171168
        %v2617 = vunpack.c.0.s8 %v2616
        %v2618 = vlaneseq
        %v2619 = vshrl.u32 %v2618, 7
        %v2620 = vsub.s32 %v2617, %v2619
        %v2621 = vrot.slane %v2614, %v2620
        %v2623 = vsel %vm2604, %v2621, 0.0
        %s2624 = scalar_lea.vmem [#allocation2], 81
        %v2625 = vld [vmem:[%s2624] ss:$8 sm:$0x3]
        %v2626 = vadd.f32 %v2625, %v2623
        %2627 = vst.msk [vmem:[%s2624] ss:$8 sm:$0x3] %vm354, %v2626
        %2628 = vst.msk [vmem:[%s2624] ss:$8 sm:$0x0] %vm354, %v2626
        %2629 = vrot.lane.b32.xlu0 %v284, 126
        %v2630 = vpop.permute.xlu0 %2629
        %2631 = vrot.lane.b32.xlu0 %v289, 126
        %v2632 = vpop.permute.xlu0 %2631
        %vm2633 = vcmp.lt.s32.totalorder %v296, 126
        %v2634 = vsel %vm2633, %v2630, %v2632
        %v2635 = vsel %vm2633, %v2632, %v2630
        %v2638 = vcombine.low %v2634, %v2635
        %v2640 = vmul.f32 %v283, %v2638
        %v2642 = vcombine.high %v2640, %v2640
        %v2644 = vsel %vm308, %v2640, 0.0
        %v2645 = vrot.slane %v2644, 4
        %v2646 = vadd.f32 %v2644, %v2645
        %v2647 = vrot.slane %v2646, 2
        %v2648 = vadd.f32 %v2646, %v2647
        %v2649 = vrot.slane %v2648, 1
        %v2650 = vadd.f32 %v2648, %v2649
        %v2651 = vsel %vm308, %v2642, 0.0
        %v2652 = vrot.slane %v2651, 4
        %v2653 = vadd.f32 %v2651, %v2652
        %v2654 = vrot.slane %v2653, 2
        %v2655 = vadd.f32 %v2653, %v2654
        %v2656 = vrot.slane %v2655, 1
        %v2657 = vadd.f32 %v2655, %v2656
        %vm2658 = vmand %vm2338, %vm671
        %vm2659 = vmand %vm2658, %vm673
        %v2662 = vcombine.low %v2650, %v2657
        %v2664 = vunpack.c.l.s4 1966171168
        %v2665 = vunpack.c.0.s8 %v2664
        %v2666 = vlaneseq
        %v2667 = vshrl.u32 %v2666, 7
        %v2668 = vsub.s32 %v2665, %v2667
        %v2669 = vrot.slane %v2662, %v2668
        %v2671 = vunpack.c.l.s4 1966171168
        %v2672 = vunpack.c.0.s8 %v2671
        %v2673 = vlaneseq
        %v2674 = vshrl.u32 %v2673, 7
        %v2675 = vsub.s32 %v2672, %v2674
        %v2676 = vrot.slane %v2669, %v2675
        %v2678 = vsel %vm2659, %v2676, 0.0
        %s2679 = scalar_lea.vmem [#allocation2], 82
        %v2680 = vld [vmem:[%s2679] ss:$8 sm:$0x3]
        %v2681 = vadd.f32 %v2680, %v2678
        %2682 = vst.msk [vmem:[%s2679] ss:$8 sm:$0x3] %vm354, %v2681
        %2683 = vst.msk [vmem:[%s2679] ss:$8 sm:$0x0] %vm354, %v2681
        %2684 = vrot.lane.b32.xlu0 %v284, 125
        %v2685 = vpop.permute.xlu0 %2684
        %2686 = vrot.lane.b32.xlu0 %v289, 125
        %v2687 = vpop.permute.xlu0 %2686
        %vm2688 = vcmp.lt.s32.totalorder %v296, 125
        %v2689 = vsel %vm2688, %v2685, %v2687
        %v2690 = vsel %vm2688, %v2687, %v2685
        %v2693 = vcombine.low %v2689, %v2690
        %v2695 = vmul.f32 %v283, %v2693
        %v2697 = vcombine.high %v2695, %v2695
        %v2699 = vsel %vm308, %v2695, 0.0
        %v2700 = vrot.slane %v2699, 4
        %v2701 = vadd.f32 %v2699, %v2700
        %v2702 = vrot.slane %v2701, 2
        %v2703 = vadd.f32 %v2701, %v2702
        %v2704 = vrot.slane %v2703, 1
        %v2705 = vadd.f32 %v2703, %v2704
        %v2706 = vsel %vm308, %v2697, 0.0
        %v2707 = vrot.slane %v2706, 4
        %v2708 = vadd.f32 %v2706, %v2707
        %v2709 = vrot.slane %v2708, 2
        %v2710 = vadd.f32 %v2708, %v2709
        %v2711 = vrot.slane %v2710, 1
        %v2712 = vadd.f32 %v2710, %v2711
        %vm2713 = vmand %vm2338, %vm728
        %vm2714 = vmand %vm2713, %vm730
        %v2717 = vcombine.low %v2705, %v2712
        %v2719 = vunpack.c.l.s4 1966171168
        %v2720 = vunpack.c.0.s8 %v2719
        %v2721 = vlaneseq
        %v2722 = vshrl.u32 %v2721, 7
        %v2723 = vsub.s32 %v2720, %v2722
        %v2724 = vrot.slane %v2717, %v2723
        %v2726 = vunpack.c.l.s4 1966171168
        %v2727 = vunpack.c.0.s8 %v2726
        %v2728 = vlaneseq
        %v2729 = vshrl.u32 %v2728, 7
        %v2730 = vsub.s32 %v2727, %v2729
        %v2731 = vrot.slane %v2724, %v2730
        %v2733 = vsel %vm2714, %v2731, 0.0
        %s2734 = scalar_lea.vmem [#allocation2], 83
        %v2735 = vld [vmem:[%s2734] ss:$8 sm:$0x3]
        %v2736 = vadd.f32 %v2735, %v2733
        %2737 = vst.msk [vmem:[%s2734] ss:$8 sm:$0x3] %vm354, %v2736
        %2738 = vst.msk [vmem:[%s2734] ss:$8 sm:$0x0] %vm354, %v2736
        %2739 = vrot.lane.b32.xlu0 %v284, 124
        %v2740 = vpop.permute.xlu0 %2739
        %2741 = vrot.lane.b32.xlu0 %v289, 124
        %v2742 = vpop.permute.xlu0 %2741
        %vm2743 = vcmp.lt.s32.totalorder %v296, 124
        %v2744 = vsel %vm2743, %v2740, %v2742
        %v2745 = vsel %vm2743, %v2742, %v2740
        %v2748 = vcombine.low %v2744, %v2745
        %v2750 = vmul.f32 %v283, %v2748
        %v2752 = vcombine.high %v2750, %v2750
        %v2754 = vsel %vm308, %v2750, 0.0
        %v2755 = vrot.slane %v2754, 4
        %v2756 = vadd.f32 %v2754, %v2755
        %v2757 = vrot.slane %v2756, 2
        %v2758 = vadd.f32 %v2756, %v2757
        %v2759 = vrot.slane %v2758, 1
        %v2760 = vadd.f32 %v2758, %v2759
        %v2761 = vsel %vm308, %v2752, 0.0
        %v2762 = vrot.slane %v2761, 4
        %v2763 = vadd.f32 %v2761, %v2762
        %v2764 = vrot.slane %v2763, 2
        %v2765 = vadd.f32 %v2763, %v2764
        %v2766 = vrot.slane %v2765, 1
        %v2767 = vadd.f32 %v2765, %v2766
        %vm2768 = vmand %vm2338, %vm785
        %vm2769 = vmand %vm2768, %vm787
        %v2772 = vcombine.low %v2760, %v2767
        %v2774 = vunpack.c.l.s4 1966171168
        %v2775 = vunpack.c.0.s8 %v2774
        %v2776 = vlaneseq
        %v2777 = vshrl.u32 %v2776, 7
        %v2778 = vsub.s32 %v2775, %v2777
        %v2779 = vrot.slane %v2772, %v2778
        %v2781 = vunpack.c.l.s4 1966171168
        %v2782 = vunpack.c.0.s8 %v2781
        %v2783 = vlaneseq
        %v2784 = vshrl.u32 %v2783, 7
        %v2785 = vsub.s32 %v2782, %v2784
        %v2786 = vrot.slane %v2779, %v2785
        %v2788 = vsel %vm2769, %v2786, 0.0
        %s2789 = scalar_lea.vmem [#allocation2], 84
        %v2790 = vld [vmem:[%s2789] ss:$8 sm:$0x3]
        %v2791 = vadd.f32 %v2790, %v2788
        %2792 = vst.msk [vmem:[%s2789] ss:$8 sm:$0x3] %vm354, %v2791
        %2793 = vst.msk [vmem:[%s2789] ss:$8 sm:$0x0] %vm354, %v2791
        %2794 = vrot.lane.b32.xlu0 %v284, 116
        %v2795 = vpop.permute.xlu0 %2794
        %2796 = vrot.lane.b32.xlu0 %v289, 116
        %v2797 = vpop.permute.xlu0 %2796
        %vm2798 = vcmp.lt.s32.totalorder %v296, 116
        %v2799 = vsel %vm2798, %v2795, %v2797
        %v2800 = vsel %vm2798, %v2797, %v2795
        %v2803 = vcombine.low %v2799, %v2800
        %v2805 = vmul.f32 %v283, %v2803
        %v2807 = vcombine.high %v2805, %v2805
        %v2809 = vsel %vm308, %v2805, 0.0
        %v2810 = vrot.slane %v2809, 4
        %v2811 = vadd.f32 %v2809, %v2810
        %v2812 = vrot.slane %v2811, 2
        %v2813 = vadd.f32 %v2811, %v2812
        %v2814 = vrot.slane %v2813, 1
        %v2815 = vadd.f32 %v2813, %v2814
        %v2816 = vsel %vm308, %v2807, 0.0
        %v2817 = vrot.slane %v2816, 4
        %v2818 = vadd.f32 %v2816, %v2817
        %v2819 = vrot.slane %v2818, 2
        %v2820 = vadd.f32 %v2818, %v2819
        %v2821 = vrot.slane %v2820, 1
        %v2822 = vadd.f32 %v2820, %v2821
        %vm2823 = vcmp.ge.s32.totalorder %v285, 4294967295
        %vm2824 = vcmp.lt.s32.totalorder %v285, 15
        %vm2825 = vmand %vm2823, %vm2824
        %vm2826 = vmand %vm2825, %vm326
        %vm2827 = vmand %vm2826, %vm328
        %v2830 = vcombine.low %v2815, %v2822
        %v2832 = vunpack.c.l.s4 1966171168
        %v2833 = vunpack.c.0.s8 %v2832
        %v2834 = vlaneseq
        %v2835 = vshrl.u32 %v2834, 7
        %v2836 = vsub.s32 %v2833, %v2835
        %v2837 = vrot.slane %v2830, %v2836
        %v2839 = vunpack.c.l.s4 1966171168
        %v2840 = vunpack.c.0.s8 %v2839
        %v2841 = vlaneseq
        %v2842 = vshrl.u32 %v2841, 7
        %v2843 = vsub.s32 %v2840, %v2842
        %v2844 = vrot.slane %v2837, %v2843
        %v2846 = vsel %vm2827, %v2844, 0.0
        %s2847 = scalar_lea.vmem [#allocation2], 85
        %v2848 = vld [vmem:[%s2847] ss:$8 sm:$0x3]
        %v2849 = vadd.f32 %v2848, %v2846
        %2850 = vst.msk [vmem:[%s2847] ss:$8 sm:$0x3] %vm354, %v2849
        %2851 = vst.msk [vmem:[%s2847] ss:$8 sm:$0x0] %vm354, %v2849
        %2852 = vrot.lane.b32.xlu0 %v284, 115
        %v2853 = vpop.permute.xlu0 %2852
        %2854 = vrot.lane.b32.xlu0 %v289, 115
        %v2855 = vpop.permute.xlu0 %2854
        %vm2856 = vcmp.lt.s32.totalorder %v296, 115
        %v2857 = vsel %vm2856, %v2853, %v2855
        %v2858 = vsel %vm2856, %v2855, %v2853
        %v2861 = vcombine.low %v2857, %v2858
        %v2863 = vmul.f32 %v283, %v2861
        %v2865 = vcombine.high %v2863, %v2863
        %v2867 = vsel %vm308, %v2863, 0.0
        %v2868 = vrot.slane %v2867, 4
        %v2869 = vadd.f32 %v2867, %v2868
        %v2870 = vrot.slane %v2869, 2
        %v2871 = vadd.f32 %v2869, %v2870
        %v2872 = vrot.slane %v2871, 1
        %v2873 = vadd.f32 %v2871, %v2872
        %v2874 = vsel %vm308, %v2865, 0.0
        %v2875 = vrot.slane %v2874, 4
        %v2876 = vadd.f32 %v2874, %v2875
        %v2877 = vrot.slane %v2876, 2
        %v2878 = vadd.f32 %v2876, %v2877
        %v2879 = vrot.slane %v2878, 1
        %v2880 = vadd.f32 %v2878, %v2879
        %vm2881 = vmand %vm2825, %vm386
        %vm2882 = vmand %vm2881, %vm388
        %v2885 = vcombine.low %v2873, %v2880
        %v2887 = vunpack.c.l.s4 1966171168
        %v2888 = vunpack.c.0.s8 %v2887
        %v2889 = vlaneseq
        %v2890 = vshrl.u32 %v2889, 7
        %v2891 = vsub.s32 %v2888, %v2890
        %v2892 = vrot.slane %v2885, %v2891
        %v2894 = vunpack.c.l.s4 1966171168
        %v2895 = vunpack.c.0.s8 %v2894
        %v2896 = vlaneseq
        %v2897 = vshrl.u32 %v2896, 7
        %v2898 = vsub.s32 %v2895, %v2897
        %v2899 = vrot.slane %v2892, %v2898
        %v2901 = vsel %vm2882, %v2899, 0.0
        %s2902 = scalar_lea.vmem [#allocation2], 86
        %v2903 = vld [vmem:[%s2902] ss:$8 sm:$0x3]
        %v2904 = vadd.f32 %v2903, %v2901
        %2905 = vst.msk [vmem:[%s2902] ss:$8 sm:$0x3] %vm354, %v2904
        %2906 = vst.msk [vmem:[%s2902] ss:$8 sm:$0x0] %vm354, %v2904
        %2907 = vrot.lane.b32.xlu0 %v284, 114
        %v2908 = vpop.permute.xlu0 %2907
        %2909 = vrot.lane.b32.xlu0 %v289, 114
        %v2910 = vpop.permute.xlu0 %2909
        %vm2911 = vcmp.lt.s32.totalorder %v296, 114
        %v2912 = vsel %vm2911, %v2908, %v2910
        %v2913 = vsel %vm2911, %v2910, %v2908
        %v2916 = vcombine.low %v2912, %v2913
        %v2918 = vmul.f32 %v283, %v2916
        %v2920 = vcombine.high %v2918, %v2918
        %v2922 = vsel %vm308, %v2918, 0.0
        %v2923 = vrot.slane %v2922, 4
        %v2924 = vadd.f32 %v2922, %v2923
        %v2925 = vrot.slane %v2924, 2
        %v2926 = vadd.f32 %v2924, %v2925
        %v2927 = vrot.slane %v2926, 1
        %v2928 = vadd.f32 %v2926, %v2927
        %v2929 = vsel %vm308, %v2920, 0.0
        %v2930 = vrot.slane %v2929, 4
        %v2931 = vadd.f32 %v2929, %v2930
        %v2932 = vrot.slane %v2931, 2
        %v2933 = vadd.f32 %v2931, %v2932
        %v2934 = vrot.slane %v2933, 1
        %v2935 = vadd.f32 %v2933, %v2934
        %vm2936 = vmand %vm2825, %vm443
        %vm2937 = vmand %vm2936, %vm445
        %v2940 = vcombine.low %v2928, %v2935
        %v2942 = vunpack.c.l.s4 1966171168
        %v2943 = vunpack.c.0.s8 %v2942
        %v2944 = vlaneseq
        %v2945 = vshrl.u32 %v2944, 7
        %v2946 = vsub.s32 %v2943, %v2945
        %v2947 = vrot.slane %v2940, %v2946
        %v2949 = vunpack.c.l.s4 1966171168
        %v2950 = vunpack.c.0.s8 %v2949
        %v2951 = vlaneseq
        %v2952 = vshrl.u32 %v2951, 7
        %v2953 = vsub.s32 %v2950, %v2952
        %v2954 = vrot.slane %v2947, %v2953
        %v2956 = vsel %vm2937, %v2954, 0.0
        %s2957 = scalar_lea.vmem [#allocation2], 87
        %v2958 = vld [vmem:[%s2957] ss:$8 sm:$0x3]
        %v2959 = vadd.f32 %v2958, %v2956
        %2960 = vst.msk [vmem:[%s2957] ss:$8 sm:$0x3] %vm354, %v2959
        %2961 = vst.msk [vmem:[%s2957] ss:$8 sm:$0x0] %vm354, %v2959
        %2962 = vrot.lane.b32.xlu0 %v284, 113
        %v2963 = vpop.permute.xlu0 %2962
        %2964 = vrot.lane.b32.xlu0 %v289, 113
        %v2965 = vpop.permute.xlu0 %2964
        %vm2966 = vcmp.lt.s32.totalorder %v296, 113
        %v2967 = vsel %vm2966, %v2963, %v2965
        %v2968 = vsel %vm2966, %v2965, %v2963
        %v2971 = vcombine.low %v2967, %v2968
        %v2973 = vmul.f32 %v283, %v2971
        %v2975 = vcombine.high %v2973, %v2973
        %v2977 = vsel %vm308, %v2973, 0.0
        %v2978 = vrot.slane %v2977, 4
        %v2979 = vadd.f32 %v2977, %v2978
        %v2980 = vrot.slane %v2979, 2
        %v2981 = vadd.f32 %v2979, %v2980
        %v2982 = vrot.slane %v2981, 1
        %v2983 = vadd.f32 %v2981, %v2982
        %v2984 = vsel %vm308, %v2975, 0.0
        %v2985 = vrot.slane %v2984, 4
        %v2986 = vadd.f32 %v2984, %v2985
        %v2987 = vrot.slane %v2986, 2
        %v2988 = vadd.f32 %v2986, %v2987
        %v2989 = vrot.slane %v2988, 1
        %v2990 = vadd.f32 %v2988, %v2989
        %vm2991 = vmand %vm2825, %vm500
        %vm2992 = vmand %vm2991, %vm502
        %v2995 = vcombine.low %v2983, %v2990
        %v2997 = vunpack.c.l.s4 1966171168
        %v2998 = vunpack.c.0.s8 %v2997
        %v2999 = vlaneseq
        %v3000 = vshrl.u32 %v2999, 7
        %v3001 = vsub.s32 %v2998, %v3000
        %v3002 = vrot.slane %v2995, %v3001
        %v3004 = vunpack.c.l.s4 1966171168
        %v3005 = vunpack.c.0.s8 %v3004
        %v3006 = vlaneseq
        %v3007 = vshrl.u32 %v3006, 7
        %v3008 = vsub.s32 %v3005, %v3007
        %v3009 = vrot.slane %v3002, %v3008
        %v3011 = vsel %vm2992, %v3009, 0.0
        %s3012 = scalar_lea.vmem [#allocation2], 96
        %v3013 = vld [vmem:[%s3012] ss:$8 sm:$0x3]
        %v3014 = vadd.f32 %v3013, %v3011
        %3015 = vst.msk [vmem:[%s3012] ss:$8 sm:$0x3] %vm354, %v3014
        %3016 = vst.msk [vmem:[%s3012] ss:$8 sm:$0x0] %vm354, %v3014
        %3017 = vrot.lane.b32.xlu0 %v284, 112
        %v3018 = vpop.permute.xlu0 %3017
        %3019 = vrot.lane.b32.xlu0 %v289, 112
        %v3020 = vpop.permute.xlu0 %3019
        %vm3021 = vcmp.lt.s32.totalorder %v296, 112
        %v3022 = vsel %vm3021, %v3018, %v3020
        %v3023 = vsel %vm3021, %v3020, %v3018
        %v3026 = vcombine.low %v3022, %v3023
        %v3028 = vmul.f32 %v283, %v3026
        %v3030 = vcombine.high %v3028, %v3028
        %v3032 = vsel %vm308, %v3028, 0.0
        %v3033 = vrot.slane %v3032, 4
        %v3034 = vadd.f32 %v3032, %v3033
        %v3035 = vrot.slane %v3034, 2
        %v3036 = vadd.f32 %v3034, %v3035
        %v3037 = vrot.slane %v3036, 1
        %v3038 = vadd.f32 %v3036, %v3037
        %v3039 = vsel %vm308, %v3030, 0.0
        %v3040 = vrot.slane %v3039, 4
        %v3041 = vadd.f32 %v3039, %v3040
        %v3042 = vrot.slane %v3041, 2
        %v3043 = vadd.f32 %v3041, %v3042
        %v3044 = vrot.slane %v3043, 1
        %v3045 = vadd.f32 %v3043, %v3044
        %vm3046 = vmand %vm2825, %vm557
        %vm3047 = vmand %vm3046, %vm559
        %v3050 = vcombine.low %v3038, %v3045
        %v3052 = vunpack.c.l.s4 1966171168
        %v3053 = vunpack.c.0.s8 %v3052
        %v3054 = vlaneseq
        %v3055 = vshrl.u32 %v3054, 7
        %v3056 = vsub.s32 %v3053, %v3055
        %v3057 = vrot.slane %v3050, %v3056
        %v3059 = vunpack.c.l.s4 1966171168
        %v3060 = vunpack.c.0.s8 %v3059
        %v3061 = vlaneseq
        %v3062 = vshrl.u32 %v3061, 7
        %v3063 = vsub.s32 %v3060, %v3062
        %v3064 = vrot.slane %v3057, %v3063
        %v3066 = vsel %vm3047, %v3064, 0.0
        %s3067 = scalar_lea.vmem [#allocation2], 97
        %v3068 = vld [vmem:[%s3067] ss:$8 sm:$0x3]
        %v3069 = vadd.f32 %v3068, %v3066
        %3070 = vst.msk [vmem:[%s3067] ss:$8 sm:$0x3] %vm354, %v3069
        %3071 = vst.msk [vmem:[%s3067] ss:$8 sm:$0x0] %vm354, %v3069
        %3072 = vrot.lane.b32.xlu0 %v284, 111
        %v3073 = vpop.permute.xlu0 %3072
        %3074 = vrot.lane.b32.xlu0 %v289, 111
        %v3075 = vpop.permute.xlu0 %3074
        %vm3076 = vcmp.lt.s32.totalorder %v296, 111
        %v3077 = vsel %vm3076, %v3073, %v3075
        %v3078 = vsel %vm3076, %v3075, %v3073
        %v3081 = vcombine.low %v3077, %v3078
        %v3083 = vmul.f32 %v283, %v3081
        %v3085 = vcombine.high %v3083, %v3083
        %v3087 = vsel %vm308, %v3083, 0.0
        %v3088 = vrot.slane %v3087, 4
        %v3089 = vadd.f32 %v3087, %v3088
        %v3090 = vrot.slane %v3089, 2
        %v3091 = vadd.f32 %v3089, %v3090
        %v3092 = vrot.slane %v3091, 1
        %v3093 = vadd.f32 %v3091, %v3092
        %v3094 = vsel %vm308, %v3085, 0.0
        %v3095 = vrot.slane %v3094, 4
        %v3096 = vadd.f32 %v3094, %v3095
        %v3097 = vrot.slane %v3096, 2
        %v3098 = vadd.f32 %v3096, %v3097
        %v3099 = vrot.slane %v3098, 1
        %v3100 = vadd.f32 %v3098, %v3099
        %vm3101 = vmand %vm2825, %vm614
        %vm3102 = vmand %vm3101, %vm616
        %v3105 = vcombine.low %v3093, %v3100
        %v3107 = vunpack.c.l.s4 1966171168
        %v3108 = vunpack.c.0.s8 %v3107
        %v3109 = vlaneseq
        %v3110 = vshrl.u32 %v3109, 7
        %v3111 = vsub.s32 %v3108, %v3110
        %v3112 = vrot.slane %v3105, %v3111
        %v3114 = vunpack.c.l.s4 1966171168
        %v3115 = vunpack.c.0.s8 %v3114
        %v3116 = vlaneseq
        %v3117 = vshrl.u32 %v3116, 7
        %v3118 = vsub.s32 %v3115, %v3117
        %v3119 = vrot.slane %v3112, %v3118
        %v3121 = vsel %vm3102, %v3119, 0.0
        %s3122 = scalar_lea.vmem [#allocation2], 98
        %v3123 = vld [vmem:[%s3122] ss:$8 sm:$0x3]
        %v3124 = vadd.f32 %v3123, %v3121
        %3125 = vst.msk [vmem:[%s3122] ss:$8 sm:$0x3] %vm354, %v3124
        %3126 = vst.msk [vmem:[%s3122] ss:$8 sm:$0x0] %vm354, %v3124
        %3127 = vrot.lane.b32.xlu0 %v284, 110
        %v3128 = vpop.permute.xlu0 %3127
        %3129 = vrot.lane.b32.xlu0 %v289, 110
        %v3130 = vpop.permute.xlu0 %3129
        %vm3131 = vcmp.lt.s32.totalorder %v296, 110
        %v3132 = vsel %vm3131, %v3128, %v3130
        %v3133 = vsel %vm3131, %v3130, %v3128
        %v3136 = vcombine.low %v3132, %v3133
        %v3138 = vmul.f32 %v283, %v3136
        %v3140 = vcombine.high %v3138, %v3138
        %v3142 = vsel %vm308, %v3138, 0.0
        %v3143 = vrot.slane %v3142, 4
        %v3144 = vadd.f32 %v3142, %v3143
        %v3145 = vrot.slane %v3144, 2
        %v3146 = vadd.f32 %v3144, %v3145
        %v3147 = vrot.slane %v3146, 1
        %v3148 = vadd.f32 %v3146, %v3147
        %v3149 = vsel %vm308, %v3140, 0.0
        %v3150 = vrot.slane %v3149, 4
        %v3151 = vadd.f32 %v3149, %v3150
        %v3152 = vrot.slane %v3151, 2
        %v3153 = vadd.f32 %v3151, %v3152
        %v3154 = vrot.slane %v3153, 1
        %v3155 = vadd.f32 %v3153, %v3154
        %vm3156 = vmand %vm2825, %vm671
        %vm3157 = vmand %vm3156, %vm673
        %v3160 = vcombine.low %v3148, %v3155
        %v3162 = vunpack.c.l.s4 1966171168
        %v3163 = vunpack.c.0.s8 %v3162
        %v3164 = vlaneseq
        %v3165 = vshrl.u32 %v3164, 7
        %v3166 = vsub.s32 %v3163, %v3165
        %v3167 = vrot.slane %v3160, %v3166
        %v3169 = vunpack.c.l.s4 1966171168
        %v3170 = vunpack.c.0.s8 %v3169
        %v3171 = vlaneseq
        %v3172 = vshrl.u32 %v3171, 7
        %v3173 = vsub.s32 %v3170, %v3172
        %v3174 = vrot.slane %v3167, %v3173
        %v3176 = vsel %vm3157, %v3174, 0.0
        %s3177 = scalar_lea.vmem [#allocation2], 99
        %v3178 = vld [vmem:[%s3177] ss:$8 sm:$0x3]
        %v3179 = vadd.f32 %v3178, %v3176
        %3180 = vst.msk [vmem:[%s3177] ss:$8 sm:$0x3] %vm354, %v3179
        %3181 = vst.msk [vmem:[%s3177] ss:$8 sm:$0x0] %vm354, %v3179
        %3182 = vrot.lane.b32.xlu0 %v284, 109
        %v3183 = vpop.permute.xlu0 %3182
        %3184 = vrot.lane.b32.xlu0 %v289, 109
        %v3185 = vpop.permute.xlu0 %3184
        %vm3186 = vcmp.lt.s32.totalorder %v296, 109
        %v3187 = vsel %vm3186, %v3183, %v3185
        %v3188 = vsel %vm3186, %v3185, %v3183
        %v3191 = vcombine.low %v3187, %v3188
        %v3193 = vmul.f32 %v283, %v3191
        %v3195 = vcombine.high %v3193, %v3193
        %v3197 = vsel %vm308, %v3193, 0.0
        %v3198 = vrot.slane %v3197, 4
        %v3199 = vadd.f32 %v3197, %v3198
        %v3200 = vrot.slane %v3199, 2
        %v3201 = vadd.f32 %v3199, %v3200
        %v3202 = vrot.slane %v3201, 1
        %v3203 = vadd.f32 %v3201, %v3202
        %v3204 = vsel %vm308, %v3195, 0.0
        %v3205 = vrot.slane %v3204, 4
        %v3206 = vadd.f32 %v3204, %v3205
        %v3207 = vrot.slane %v3206, 2
        %v3208 = vadd.f32 %v3206, %v3207
        %v3209 = vrot.slane %v3208, 1
        %v3210 = vadd.f32 %v3208, %v3209
        %vm3211 = vmand %vm2825, %vm728
        %vm3212 = vmand %vm3211, %vm730
        %v3215 = vcombine.low %v3203, %v3210
        %v3217 = vunpack.c.l.s4 1966171168
        %v3218 = vunpack.c.0.s8 %v3217
        %v3219 = vlaneseq
        %v3220 = vshrl.u32 %v3219, 7
        %v3221 = vsub.s32 %v3218, %v3220
        %v3222 = vrot.slane %v3215, %v3221
        %v3224 = vunpack.c.l.s4 1966171168
        %v3225 = vunpack.c.0.s8 %v3224
        %v3226 = vlaneseq
        %v3227 = vshrl.u32 %v3226, 7
        %v3228 = vsub.s32 %v3225, %v3227
        %v3229 = vrot.slane %v3222, %v3228
        %v3231 = vsel %vm3212, %v3229, 0.0
        %s3232 = scalar_lea.vmem [#allocation2], 100
        %v3233 = vld [vmem:[%s3232] ss:$8 sm:$0x3]
        %v3234 = vadd.f32 %v3233, %v3231
        %3235 = vst.msk [vmem:[%s3232] ss:$8 sm:$0x3] %vm354, %v3234
        %3236 = vst.msk [vmem:[%s3232] ss:$8 sm:$0x0] %vm354, %v3234
        %3237 = vrot.lane.b32.xlu0 %v284, 108
        %v3238 = vpop.permute.xlu0 %3237
        %3239 = vrot.lane.b32.xlu0 %v289, 108
        %v3240 = vpop.permute.xlu0 %3239
        %vm3241 = vcmp.lt.s32.totalorder %v296, 108
        %v3242 = vsel %vm3241, %v3238, %v3240
        %v3243 = vsel %vm3241, %v3240, %v3238
        %v3246 = vcombine.low %v3242, %v3243
        %v3248 = vmul.f32 %v283, %v3246
        %v3250 = vcombine.high %v3248, %v3248
        %v3252 = vsel %vm308, %v3248, 0.0
        %v3253 = vrot.slane %v3252, 4
        %v3254 = vadd.f32 %v3252, %v3253
        %v3255 = vrot.slane %v3254, 2
        %v3256 = vadd.f32 %v3254, %v3255
        %v3257 = vrot.slane %v3256, 1
        %v3258 = vadd.f32 %v3256, %v3257
        %v3259 = vsel %vm308, %v3250, 0.0
        %v3260 = vrot.slane %v3259, 4
        %v3261 = vadd.f32 %v3259, %v3260
        %v3262 = vrot.slane %v3261, 2
        %v3263 = vadd.f32 %v3261, %v3262
        %v3264 = vrot.slane %v3263, 1
        %v3265 = vadd.f32 %v3263, %v3264
        %vm3266 = vmand %vm2825, %vm785
        %vm3267 = vmand %vm3266, %vm787
        %v3270 = vcombine.low %v3258, %v3265
        %v3272 = vunpack.c.l.s4 1966171168
        %v3273 = vunpack.c.0.s8 %v3272
        %v3274 = vlaneseq
        %v3275 = vshrl.u32 %v3274, 7
        %v3276 = vsub.s32 %v3273, %v3275
        %v3277 = vrot.slane %v3270, %v3276
        %v3279 = vunpack.c.l.s4 1966171168
        %v3280 = vunpack.c.0.s8 %v3279
        %v3281 = vlaneseq
        %v3282 = vshrl.u32 %v3281, 7
        %v3283 = vsub.s32 %v3280, %v3282
        %v3284 = vrot.slane %v3277, %v3283
        %v3286 = vsel %vm3267, %v3284, 0.0
        %s3287 = scalar_lea.vmem [#allocation2], 101
        %v3288 = vld [vmem:[%s3287] ss:$8 sm:$0x3]
        %v3289 = vadd.f32 %v3288, %v3286
        %3290 = vst.msk [vmem:[%s3287] ss:$8 sm:$0x3] %vm354, %v3289
        %3291 = vst.msk [vmem:[%s3287] ss:$8 sm:$0x0] %vm354, %v3289
        %3292 = vrot.lane.b32.xlu0 %v284, 100
        %v3293 = vpop.permute.xlu0 %3292
        %3294 = vrot.lane.b32.xlu0 %v289, 100
        %v3295 = vpop.permute.xlu0 %3294
        %vm3296 = vcmp.lt.s32.totalorder %v296, 100
        %v3297 = vsel %vm3296, %v3293, %v3295
        %v3298 = vsel %vm3296, %v3295, %v3293
        %v3301 = vcombine.low %v3297, %v3298
        %v3303 = vmul.f32 %v283, %v3301
        %v3305 = vcombine.high %v3303, %v3303
        %v3307 = vsel %vm308, %v3303, 0.0
        %v3308 = vrot.slane %v3307, 4
        %v3309 = vadd.f32 %v3307, %v3308
        %v3310 = vrot.slane %v3309, 2
        %v3311 = vadd.f32 %v3309, %v3310
        %v3312 = vrot.slane %v3311, 1
        %v3313 = vadd.f32 %v3311, %v3312
        %v3314 = vsel %vm308, %v3305, 0.0
        %v3315 = vrot.slane %v3314, 4
        %v3316 = vadd.f32 %v3314, %v3315
        %v3317 = vrot.slane %v3316, 2
        %v3318 = vadd.f32 %v3316, %v3317
        %v3319 = vrot.slane %v3318, 1
        %v3320 = vadd.f32 %v3318, %v3319
        %vm3321 = vcmp.ge.s32.totalorder %v285, 4294967294
        %vm3322 = vcmp.lt.s32.totalorder %v285, 14
        %vm3323 = vmand %vm3321, %vm3322
        %vm3324 = vmand %vm3323, %vm326
        %vm3325 = vmand %vm3324, %vm328
        %v3328 = vcombine.low %v3313, %v3320
        %v3330 = vunpack.c.l.s4 1966171168
        %v3331 = vunpack.c.0.s8 %v3330
        %v3332 = vlaneseq
        %v3333 = vshrl.u32 %v3332, 7
        %v3334 = vsub.s32 %v3331, %v3333
        %v3335 = vrot.slane %v3328, %v3334
        %v3337 = vunpack.c.l.s4 1966171168
        %v3338 = vunpack.c.0.s8 %v3337
        %v3339 = vlaneseq
        %v3340 = vshrl.u32 %v3339, 7
        %v3341 = vsub.s32 %v3338, %v3340
        %v3342 = vrot.slane %v3335, %v3341
        %v3344 = vsel %vm3325, %v3342, 0.0
        %s3345 = scalar_lea.vmem [#allocation2], 102
        %v3346 = vld [vmem:[%s3345] ss:$8 sm:$0x3]
        %v3347 = vadd.f32 %v3346, %v3344
        %3348 = vst.msk [vmem:[%s3345] ss:$8 sm:$0x3] %vm354, %v3347
        %3349 = vst.msk [vmem:[%s3345] ss:$8 sm:$0x0] %vm354, %v3347
        %3350 = vrot.lane.b32.xlu0 %v284, 99
        %v3351 = vpop.permute.xlu0 %3350
        %3352 = vrot.lane.b32.xlu0 %v289, 99
        %v3353 = vpop.permute.xlu0 %3352
        %vm3354 = vcmp.lt.s32.totalorder %v296, 99
        %v3355 = vsel %vm3354, %v3351, %v3353
        %v3356 = vsel %vm3354, %v3353, %v3351
        %v3359 = vcombine.low %v3355, %v3356
        %v3361 = vmul.f32 %v283, %v3359
        %v3363 = vcombine.high %v3361, %v3361
        %v3365 = vsel %vm308, %v3361, 0.0
        %v3366 = vrot.slane %v3365, 4
        %v3367 = vadd.f32 %v3365, %v3366
        %v3368 = vrot.slane %v3367, 2
        %v3369 = vadd.f32 %v3367, %v3368
        %v3370 = vrot.slane %v3369, 1
        %v3371 = vadd.f32 %v3369, %v3370
        %v3372 = vsel %vm308, %v3363, 0.0
        %v3373 = vrot.slane %v3372, 4
        %v3374 = vadd.f32 %v3372, %v3373
        %v3375 = vrot.slane %v3374, 2
        %v3376 = vadd.f32 %v3374, %v3375
        %v3377 = vrot.slane %v3376, 1
        %v3378 = vadd.f32 %v3376, %v3377
        %vm3379 = vmand %vm3323, %vm386
        %vm3380 = vmand %vm3379, %vm388
        %v3383 = vcombine.low %v3371, %v3378
        %v3385 = vunpack.c.l.s4 1966171168
        %v3386 = vunpack.c.0.s8 %v3385
        %v3387 = vlaneseq
        %v3388 = vshrl.u32 %v3387, 7
        %v3389 = vsub.s32 %v3386, %v3388
        %v3390 = vrot.slane %v3383, %v3389
        %v3392 = vunpack.c.l.s4 1966171168
        %v3393 = vunpack.c.0.s8 %v3392
        %v3394 = vlaneseq
        %v3395 = vshrl.u32 %v3394, 7
        %v3396 = vsub.s32 %v3393, %v3395
        %v3397 = vrot.slane %v3390, %v3396
        %v3399 = vsel %vm3380, %v3397, 0.0
        %s3400 = scalar_lea.vmem [#allocation2], 103
        %v3401 = vld [vmem:[%s3400] ss:$8 sm:$0x3]
        %v3402 = vadd.f32 %v3401, %v3399
        %3403 = vst.msk [vmem:[%s3400] ss:$8 sm:$0x3] %vm354, %v3402
        %3404 = vst.msk [vmem:[%s3400] ss:$8 sm:$0x0] %vm354, %v3402
        %3405 = vrot.lane.b32.xlu0 %v284, 98
        %v3406 = vpop.permute.xlu0 %3405
        %3407 = vrot.lane.b32.xlu0 %v289, 98
        %v3408 = vpop.permute.xlu0 %3407
        %vm3409 = vcmp.lt.s32.totalorder %v296, 98
        %v3410 = vsel %vm3409, %v3406, %v3408
        %v3411 = vsel %vm3409, %v3408, %v3406
        %v3414 = vcombine.low %v3410, %v3411
        %v3416 = vmul.f32 %v283, %v3414
        %v3418 = vcombine.high %v3416, %v3416
        %v3420 = vsel %vm308, %v3416, 0.0
        %v3421 = vrot.slane %v3420, 4
        %v3422 = vadd.f32 %v3420, %v3421
        %v3423 = vrot.slane %v3422, 2
        %v3424 = vadd.f32 %v3422, %v3423
        %v3425 = vrot.slane %v3424, 1
        %v3426 = vadd.f32 %v3424, %v3425
        %v3427 = vsel %vm308, %v3418, 0.0
        %v3428 = vrot.slane %v3427, 4
        %v3429 = vadd.f32 %v3427, %v3428
        %v3430 = vrot.slane %v3429, 2
        %v3431 = vadd.f32 %v3429, %v3430
        %v3432 = vrot.slane %v3431, 1
        %v3433 = vadd.f32 %v3431, %v3432
        %vm3434 = vmand %vm3323, %vm443
        %vm3435 = vmand %vm3434, %vm445
        %v3438 = vcombine.low %v3426, %v3433
        %v3440 = vunpack.c.l.s4 1966171168
        %v3441 = vunpack.c.0.s8 %v3440
        %v3442 = vlaneseq
        %v3443 = vshrl.u32 %v3442, 7
        %v3444 = vsub.s32 %v3441, %v3443
        %v3445 = vrot.slane %v3438, %v3444
        %v3447 = vunpack.c.l.s4 1966171168
        %v3448 = vunpack.c.0.s8 %v3447
        %v3449 = vlaneseq
        %v3450 = vshrl.u32 %v3449, 7
        %v3451 = vsub.s32 %v3448, %v3450
        %v3452 = vrot.slane %v3445, %v3451
        %v3454 = vsel %vm3435, %v3452, 0.0
        %s3455 = scalar_lea.vmem [#allocation2], 112
        %v3456 = vld [vmem:[%s3455] ss:$8 sm:$0x3]
        %v3457 = vadd.f32 %v3456, %v3454
        %3458 = vst.msk [vmem:[%s3455] ss:$8 sm:$0x3] %vm354, %v3457
        %3459 = vst.msk [vmem:[%s3455] ss:$8 sm:$0x0] %vm354, %v3457
        %3460 = vrot.lane.b32.xlu0 %v284, 97
        %v3461 = vpop.permute.xlu0 %3460
        %3462 = vrot.lane.b32.xlu0 %v289, 97
        %v3463 = vpop.permute.xlu0 %3462
        %vm3464 = vcmp.lt.s32.totalorder %v296, 97
        %v3465 = vsel %vm3464, %v3461, %v3463
        %v3466 = vsel %vm3464, %v3463, %v3461
        %v3469 = vcombine.low %v3465, %v3466
        %v3471 = vmul.f32 %v283, %v3469
        %v3473 = vcombine.high %v3471, %v3471
        %v3475 = vsel %vm308, %v3471, 0.0
        %v3476 = vrot.slane %v3475, 4
        %v3477 = vadd.f32 %v3475, %v3476
        %v3478 = vrot.slane %v3477, 2
        %v3479 = vadd.f32 %v3477, %v3478
        %v3480 = vrot.slane %v3479, 1
        %v3481 = vadd.f32 %v3479, %v3480
        %v3482 = vsel %vm308, %v3473, 0.0
        %v3483 = vrot.slane %v3482, 4
        %v3484 = vadd.f32 %v3482, %v3483
        %v3485 = vrot.slane %v3484, 2
        %v3486 = vadd.f32 %v3484, %v3485
        %v3487 = vrot.slane %v3486, 1
        %v3488 = vadd.f32 %v3486, %v3487
        %vm3489 = vmand %vm3323, %vm500
        %vm3490 = vmand %vm3489, %vm502
        %v3493 = vcombine.low %v3481, %v3488
        %v3495 = vunpack.c.l.s4 1966171168
        %v3496 = vunpack.c.0.s8 %v3495
        %v3497 = vlaneseq
        %v3498 = vshrl.u32 %v3497, 7
        %v3499 = vsub.s32 %v3496, %v3498
        %v3500 = vrot.slane %v3493, %v3499
        %v3502 = vunpack.c.l.s4 1966171168
        %v3503 = vunpack.c.0.s8 %v3502
        %v3504 = vlaneseq
        %v3505 = vshrl.u32 %v3504, 7
        %v3506 = vsub.s32 %v3503, %v3505
        %v3507 = vrot.slane %v3500, %v3506
        %v3509 = vsel %vm3490, %v3507, 0.0
        %s3510 = scalar_lea.vmem [#allocation2], 113
        %v3511 = vld [vmem:[%s3510] ss:$8 sm:$0x3]
        %v3512 = vadd.f32 %v3511, %v3509
        %3513 = vst.msk [vmem:[%s3510] ss:$8 sm:$0x3] %vm354, %v3512
        %3514 = vst.msk [vmem:[%s3510] ss:$8 sm:$0x0] %vm354, %v3512
        %3515 = vrot.lane.b32.xlu0 %v284, 96
        %v3516 = vpop.permute.xlu0 %3515
        %3517 = vrot.lane.b32.xlu0 %v289, 96
        %v3518 = vpop.permute.xlu0 %3517
        %vm3519 = vcmp.lt.s32.totalorder %v296, 96
        %v3520 = vsel %vm3519, %v3516, %v3518
        %v3521 = vsel %vm3519, %v3518, %v3516
        %v3524 = vcombine.low %v3520, %v3521
        %v3526 = vmul.f32 %v283, %v3524
        %v3528 = vcombine.high %v3526, %v3526
        %v3530 = vsel %vm308, %v3526, 0.0
        %v3531 = vrot.slane %v3530, 4
        %v3532 = vadd.f32 %v3530, %v3531
        %v3533 = vrot.slane %v3532, 2
        %v3534 = vadd.f32 %v3532, %v3533
        %v3535 = vrot.slane %v3534, 1
        %v3536 = vadd.f32 %v3534, %v3535
        %v3537 = vsel %vm308, %v3528, 0.0
        %v3538 = vrot.slane %v3537, 4
        %v3539 = vadd.f32 %v3537, %v3538
        %v3540 = vrot.slane %v3539, 2
        %v3541 = vadd.f32 %v3539, %v3540
        %v3542 = vrot.slane %v3541, 1
        %v3543 = vadd.f32 %v3541, %v3542
        %vm3544 = vmand %vm3323, %vm557
        %vm3545 = vmand %vm3544, %vm559
        %v3548 = vcombine.low %v3536, %v3543
        %v3550 = vunpack.c.l.s4 1966171168
        %v3551 = vunpack.c.0.s8 %v3550
        %v3552 = vlaneseq
        %v3553 = vshrl.u32 %v3552, 7
        %v3554 = vsub.s32 %v3551, %v3553
        %v3555 = vrot.slane %v3548, %v3554
        %v3557 = vunpack.c.l.s4 1966171168
        %v3558 = vunpack.c.0.s8 %v3557
        %v3559 = vlaneseq
        %v3560 = vshrl.u32 %v3559, 7
        %v3561 = vsub.s32 %v3558, %v3560
        %v3562 = vrot.slane %v3555, %v3561
        %v3564 = vsel %vm3545, %v3562, 0.0
        %s3565 = scalar_lea.vmem [#allocation2], 114
        %v3566 = vld [vmem:[%s3565] ss:$8 sm:$0x3]
        %v3567 = vadd.f32 %v3566, %v3564
        %3568 = vst.msk [vmem:[%s3565] ss:$8 sm:$0x3] %vm354, %v3567
        %3569 = vst.msk [vmem:[%s3565] ss:$8 sm:$0x0] %vm354, %v3567
        %3570 = vrot.lane.b32.xlu0 %v284, 95
        %v3571 = vpop.permute.xlu0 %3570
        %3572 = vrot.lane.b32.xlu0 %v289, 95
        %v3573 = vpop.permute.xlu0 %3572
        %vm3574 = vcmp.lt.s32.totalorder %v296, 95
        %v3575 = vsel %vm3574, %v3571, %v3573
        %v3576 = vsel %vm3574, %v3573, %v3571
        %v3579 = vcombine.low %v3575, %v3576
        %v3581 = vmul.f32 %v283, %v3579
        %v3583 = vcombine.high %v3581, %v3581
        %v3585 = vsel %vm308, %v3581, 0.0
        %v3586 = vrot.slane %v3585, 4
        %v3587 = vadd.f32 %v3585, %v3586
        %v3588 = vrot.slane %v3587, 2
        %v3589 = vadd.f32 %v3587, %v3588
        %v3590 = vrot.slane %v3589, 1
        %v3591 = vadd.f32 %v3589, %v3590
        %v3592 = vsel %vm308, %v3583, 0.0
        %v3593 = vrot.slane %v3592, 4
        %v3594 = vadd.f32 %v3592, %v3593
        %v3595 = vrot.slane %v3594, 2
        %v3596 = vadd.f32 %v3594, %v3595
        %v3597 = vrot.slane %v3596, 1
        %v3598 = vadd.f32 %v3596, %v3597
        %vm3599 = vmand %vm3323, %vm614
        %vm3600 = vmand %vm3599, %vm616
        %v3603 = vcombine.low %v3591, %v3598
        %v3605 = vunpack.c.l.s4 1966171168
        %v3606 = vunpack.c.0.s8 %v3605
        %v3607 = vlaneseq
        %v3608 = vshrl.u32 %v3607, 7
        %v3609 = vsub.s32 %v3606, %v3608
        %v3610 = vrot.slane %v3603, %v3609
        %v3612 = vunpack.c.l.s4 1966171168
        %v3613 = vunpack.c.0.s8 %v3612
        %v3614 = vlaneseq
        %v3615 = vshrl.u32 %v3614, 7
        %v3616 = vsub.s32 %v3613, %v3615
        %v3617 = vrot.slane %v3610, %v3616
        %v3619 = vsel %vm3600, %v3617, 0.0
        %s3620 = scalar_lea.vmem [#allocation2], 115
        %v3621 = vld [vmem:[%s3620] ss:$8 sm:$0x3]
        %v3622 = vadd.f32 %v3621, %v3619
        %3623 = vst.msk [vmem:[%s3620] ss:$8 sm:$0x3] %vm354, %v3622
        %3624 = vst.msk [vmem:[%s3620] ss:$8 sm:$0x0] %vm354, %v3622
        %3625 = vrot.lane.b32.xlu0 %v284, 94
        %v3626 = vpop.permute.xlu0 %3625
        %3627 = vrot.lane.b32.xlu0 %v289, 94
        %v3628 = vpop.permute.xlu0 %3627
        %vm3629 = vcmp.lt.s32.totalorder %v296, 94
        %v3630 = vsel %vm3629, %v3626, %v3628
        %v3631 = vsel %vm3629, %v3628, %v3626
        %v3634 = vcombine.low %v3630, %v3631
        %v3636 = vmul.f32 %v283, %v3634
        %v3638 = vcombine.high %v3636, %v3636
        %v3640 = vsel %vm308, %v3636, 0.0
        %v3641 = vrot.slane %v3640, 4
        %v3642 = vadd.f32 %v3640, %v3641
        %v3643 = vrot.slane %v3642, 2
        %v3644 = vadd.f32 %v3642, %v3643
        %v3645 = vrot.slane %v3644, 1
        %v3646 = vadd.f32 %v3644, %v3645
        %v3647 = vsel %vm308, %v3638, 0.0
        %v3648 = vrot.slane %v3647, 4
        %v3649 = vadd.f32 %v3647, %v3648
        %v3650 = vrot.slane %v3649, 2
        %v3651 = vadd.f32 %v3649, %v3650
        %v3652 = vrot.slane %v3651, 1
        %v3653 = vadd.f32 %v3651, %v3652
        %vm3654 = vmand %vm3323, %vm671
        %vm3655 = vmand %vm3654, %vm673
        %v3658 = vcombine.low %v3646, %v3653
        %v3660 = vunpack.c.l.s4 1966171168
        %v3661 = vunpack.c.0.s8 %v3660
        %v3662 = vlaneseq
        %v3663 = vshrl.u32 %v3662, 7
        %v3664 = vsub.s32 %v3661, %v3663
        %v3665 = vrot.slane %v3658, %v3664
        %v3667 = vunpack.c.l.s4 1966171168
        %v3668 = vunpack.c.0.s8 %v3667
        %v3669 = vlaneseq
        %v3670 = vshrl.u32 %v3669, 7
        %v3671 = vsub.s32 %v3668, %v3670
        %v3672 = vrot.slane %v3665, %v3671
        %v3674 = vsel %vm3655, %v3672, 0.0
        %s3675 = scalar_lea.vmem [#allocation2], 116
        %v3676 = vld [vmem:[%s3675] ss:$8 sm:$0x3]
        %v3677 = vadd.f32 %v3676, %v3674
        %3678 = vst.msk [vmem:[%s3675] ss:$8 sm:$0x3] %vm354, %v3677
        %3679 = vst.msk [vmem:[%s3675] ss:$8 sm:$0x0] %vm354, %v3677
        %3680 = vrot.lane.b32.xlu0 %v284, 93
        %v3681 = vpop.permute.xlu0 %3680
        %3682 = vrot.lane.b32.xlu0 %v289, 93
        %v3683 = vpop.permute.xlu0 %3682
        %vm3684 = vcmp.lt.s32.totalorder %v296, 93
        %v3685 = vsel %vm3684, %v3681, %v3683
        %v3686 = vsel %vm3684, %v3683, %v3681
        %v3689 = vcombine.low %v3685, %v3686
        %v3691 = vmul.f32 %v283, %v3689
        %v3693 = vcombine.high %v3691, %v3691
        %v3695 = vsel %vm308, %v3691, 0.0
        %v3696 = vrot.slane %v3695, 4
        %v3697 = vadd.f32 %v3695, %v3696
        %v3698 = vrot.slane %v3697, 2
        %v3699 = vadd.f32 %v3697, %v3698
        %v3700 = vrot.slane %v3699, 1
        %v3701 = vadd.f32 %v3699, %v3700
        %v3702 = vsel %vm308, %v3693, 0.0
        %v3703 = vrot.slane %v3702, 4
        %v3704 = vadd.f32 %v3702, %v3703
        %v3705 = vrot.slane %v3704, 2
        %v3706 = vadd.f32 %v3704, %v3705
        %v3707 = vrot.slane %v3706, 1
        %v3708 = vadd.f32 %v3706, %v3707
        %vm3709 = vmand %vm3323, %vm728
        %vm3710 = vmand %vm3709, %vm730
        %v3713 = vcombine.low %v3701, %v3708
        %v3715 = vunpack.c.l.s4 1966171168
        %v3716 = vunpack.c.0.s8 %v3715
        %v3717 = vlaneseq
        %v3718 = vshrl.u32 %v3717, 7
        %v3719 = vsub.s32 %v3716, %v3718
        %v3720 = vrot.slane %v3713, %v3719
        %v3722 = vunpack.c.l.s4 1966171168
        %v3723 = vunpack.c.0.s8 %v3722
        %v3724 = vlaneseq
        %v3725 = vshrl.u32 %v3724, 7
        %v3726 = vsub.s32 %v3723, %v3725
        %v3727 = vrot.slane %v3720, %v3726
        %v3729 = vsel %vm3710, %v3727, 0.0
        %s3730 = scalar_lea.vmem [#allocation2], 117
        %v3731 = vld [vmem:[%s3730] ss:$8 sm:$0x3]
        %v3732 = vadd.f32 %v3731, %v3729
        %3733 = vst.msk [vmem:[%s3730] ss:$8 sm:$0x3] %vm354, %v3732
        %3734 = vst.msk [vmem:[%s3730] ss:$8 sm:$0x0] %vm354, %v3732
        %3735 = vrot.lane.b32.xlu0 %v284, 92
        %v3736 = vpop.permute.xlu0 %3735
        %3737 = vrot.lane.b32.xlu0 %v289, 92
        %v3738 = vpop.permute.xlu0 %3737
        %vm3739 = vcmp.lt.s32.totalorder %v296, 92
        %v3740 = vsel %vm3739, %v3736, %v3738
        %v3741 = vsel %vm3739, %v3738, %v3736
        %v3744 = vcombine.low %v3740, %v3741
        %v3746 = vmul.f32 %v283, %v3744
        %v3748 = vcombine.high %v3746, %v3746
        %v3750 = vsel %vm308, %v3746, 0.0
        %v3751 = vrot.slane %v3750, 4
        %v3752 = vadd.f32 %v3750, %v3751
        %v3753 = vrot.slane %v3752, 2
        %v3754 = vadd.f32 %v3752, %v3753
        %v3755 = vrot.slane %v3754, 1
        %v3756 = vadd.f32 %v3754, %v3755
        %v3757 = vsel %vm308, %v3748, 0.0
        %v3758 = vrot.slane %v3757, 4
        %v3759 = vadd.f32 %v3757, %v3758
        %v3760 = vrot.slane %v3759, 2
        %v3761 = vadd.f32 %v3759, %v3760
        %v3762 = vrot.slane %v3761, 1
        %v3763 = vadd.f32 %v3761, %v3762
        %vm3764 = vmand %vm3323, %vm785
        %vm3765 = vmand %vm3764, %vm787
        %v3768 = vcombine.low %v3756, %v3763
        %v3770 = vunpack.c.l.s4 1966171168
        %v3771 = vunpack.c.0.s8 %v3770
        %v3772 = vlaneseq
        %v3773 = vshrl.u32 %v3772, 7
        %v3774 = vsub.s32 %v3771, %v3773
        %v3775 = vrot.slane %v3768, %v3774
        %v3777 = vunpack.c.l.s4 1966171168
        %v3778 = vunpack.c.0.s8 %v3777
        %v3779 = vlaneseq
        %v3780 = vshrl.u32 %v3779, 7
        %v3781 = vsub.s32 %v3778, %v3780
        %v3782 = vrot.slane %v3775, %v3781
        %v3784 = vsel %vm3765, %v3782, 0.0
        %s3785 = scalar_lea.vmem [#allocation2], 118
        %v3786 = vld [vmem:[%s3785] ss:$8 sm:$0x3]
        %v3787 = vadd.f32 %v3786, %v3784
        %3788 = vst.msk [vmem:[%s3785] ss:$8 sm:$0x3] %vm354, %v3787
        %3789 = vst.msk [vmem:[%s3785] ss:$8 sm:$0x0] %vm354, %v3787
        %3790 = vrot.lane.b32.xlu0 %v284, 84
        %v3791 = vpop.permute.xlu0 %3790
        %3792 = vrot.lane.b32.xlu0 %v289, 84
        %v3793 = vpop.permute.xlu0 %3792
        %vm3794 = vcmp.lt.s32.totalorder %v296, 84
        %v3795 = vsel %vm3794, %v3791, %v3793
        %v3796 = vsel %vm3794, %v3793, %v3791
        %v3799 = vcombine.low %v3795, %v3796
        %v3801 = vmul.f32 %v283, %v3799
        %v3803 = vcombine.high %v3801, %v3801
        %v3805 = vsel %vm308, %v3801, 0.0
        %v3806 = vrot.slane %v3805, 4
        %v3807 = vadd.f32 %v3805, %v3806
        %v3808 = vrot.slane %v3807, 2
        %v3809 = vadd.f32 %v3807, %v3808
        %v3810 = vrot.slane %v3809, 1
        %v3811 = vadd.f32 %v3809, %v3810
        %v3812 = vsel %vm308, %v3803, 0.0
        %v3813 = vrot.slane %v3812, 4
        %v3814 = vadd.f32 %v3812, %v3813
        %v3815 = vrot.slane %v3814, 2
        %v3816 = vadd.f32 %v3814, %v3815
        %v3817 = vrot.slane %v3816, 1
        %v3818 = vadd.f32 %v3816, %v3817
        %vm3819 = vcmp.ge.s32.totalorder %v285, 4294967293
        %vm3820 = vcmp.lt.s32.totalorder %v285, 13
        %vm3821 = vmand %vm3819, %vm3820
        %vm3822 = vmand %vm3821, %vm326
        %vm3823 = vmand %vm3822, %vm328
        %v3826 = vcombine.low %v3811, %v3818
        %v3828 = vunpack.c.l.s4 1966171168
        %v3829 = vunpack.c.0.s8 %v3828
        %v3830 = vlaneseq
        %v3831 = vshrl.u32 %v3830, 7
        %v3832 = vsub.s32 %v3829, %v3831
        %v3833 = vrot.slane %v3826, %v3832
        %v3835 = vunpack.c.l.s4 1966171168
        %v3836 = vunpack.c.0.s8 %v3835
        %v3837 = vlaneseq
        %v3838 = vshrl.u32 %v3837, 7
        %v3839 = vsub.s32 %v3836, %v3838
        %v3840 = vrot.slane %v3833, %v3839
        %v3842 = vsel %vm3823, %v3840, 0.0
        %s3843 = scalar_lea.vmem [#allocation2], 119
        %v3844 = vld [vmem:[%s3843] ss:$8 sm:$0x3]
        %v3845 = vadd.f32 %v3844, %v3842
        %3846 = vst.msk [vmem:[%s3843] ss:$8 sm:$0x3] %vm354, %v3845
        %3847 = vst.msk [vmem:[%s3843] ss:$8 sm:$0x0] %vm354, %v3845
        %3848 = vrot.lane.b32.xlu0 %v284, 83
        %v3849 = vpop.permute.xlu0 %3848
        %3850 = vrot.lane.b32.xlu0 %v289, 83
        %v3851 = vpop.permute.xlu0 %3850
        %vm3852 = vcmp.lt.s32.totalorder %v296, 83
        %v3853 = vsel %vm3852, %v3849, %v3851
        %v3854 = vsel %vm3852, %v3851, %v3849
        %v3857 = vcombine.low %v3853, %v3854
        %v3859 = vmul.f32 %v283, %v3857
        %v3861 = vcombine.high %v3859, %v3859
        %v3863 = vsel %vm308, %v3859, 0.0
        %v3864 = vrot.slane %v3863, 4
        %v3865 = vadd.f32 %v3863, %v3864
        %v3866 = vrot.slane %v3865, 2
        %v3867 = vadd.f32 %v3865, %v3866
        %v3868 = vrot.slane %v3867, 1
        %v3869 = vadd.f32 %v3867, %v3868
        %v3870 = vsel %vm308, %v3861, 0.0
        %v3871 = vrot.slane %v3870, 4
        %v3872 = vadd.f32 %v3870, %v3871
        %v3873 = vrot.slane %v3872, 2
        %v3874 = vadd.f32 %v3872, %v3873
        %v3875 = vrot.slane %v3874, 1
        %v3876 = vadd.f32 %v3874, %v3875
        %vm3877 = vmand %vm3821, %vm386
        %vm3878 = vmand %vm3877, %vm388
        %v3881 = vcombine.low %v3869, %v3876
        %v3883 = vunpack.c.l.s4 1966171168
        %v3884 = vunpack.c.0.s8 %v3883
        %v3885 = vlaneseq
        %v3886 = vshrl.u32 %v3885, 7
        %v3887 = vsub.s32 %v3884, %v3886
        %v3888 = vrot.slane %v3881, %v3887
        %v3890 = vunpack.c.l.s4 1966171168
        %v3891 = vunpack.c.0.s8 %v3890
        %v3892 = vlaneseq
        %v3893 = vshrl.u32 %v3892, 7
        %v3894 = vsub.s32 %v3891, %v3893
        %v3895 = vrot.slane %v3888, %v3894
        %v3897 = vsel %vm3878, %v3895, 0.0
        %s3898 = scalar_lea.vmem [#allocation2], 128
        %v3899 = vld [vmem:[%s3898] ss:$8 sm:$0x3]
        %v3900 = vadd.f32 %v3899, %v3897
        %3901 = vst.msk [vmem:[%s3898] ss:$8 sm:$0x3] %vm354, %v3900
        %3902 = vst.msk [vmem:[%s3898] ss:$8 sm:$0x0] %vm354, %v3900
        %3903 = vrot.lane.b32.xlu0 %v284, 82
        %v3904 = vpop.permute.xlu0 %3903
        %3905 = vrot.lane.b32.xlu0 %v289, 82
        %v3906 = vpop.permute.xlu0 %3905
        %vm3907 = vcmp.lt.s32.totalorder %v296, 82
        %v3908 = vsel %vm3907, %v3904, %v3906
        %v3909 = vsel %vm3907, %v3906, %v3904
        %v3912 = vcombine.low %v3908, %v3909
        %v3914 = vmul.f32 %v283, %v3912
        %v3916 = vcombine.high %v3914, %v3914
        %v3918 = vsel %vm308, %v3914, 0.0
        %v3919 = vrot.slane %v3918, 4
        %v3920 = vadd.f32 %v3918, %v3919
        %v3921 = vrot.slane %v3920, 2
        %v3922 = vadd.f32 %v3920, %v3921
        %v3923 = vrot.slane %v3922, 1
        %v3924 = vadd.f32 %v3922, %v3923
        %v3925 = vsel %vm308, %v3916, 0.0
        %v3926 = vrot.slane %v3925, 4
        %v3927 = vadd.f32 %v3925, %v3926
        %v3928 = vrot.slane %v3927, 2
        %v3929 = vadd.f32 %v3927, %v3928
        %v3930 = vrot.slane %v3929, 1
        %v3931 = vadd.f32 %v3929, %v3930
        %vm3932 = vmand %vm3821, %vm443
        %vm3933 = vmand %vm3932, %vm445
        %v3936 = vcombine.low %v3924, %v3931
        %v3938 = vunpack.c.l.s4 1966171168
        %v3939 = vunpack.c.0.s8 %v3938
        %v3940 = vlaneseq
        %v3941 = vshrl.u32 %v3940, 7
        %v3942 = vsub.s32 %v3939, %v3941
        %v3943 = vrot.slane %v3936, %v3942
        %v3945 = vunpack.c.l.s4 1966171168
        %v3946 = vunpack.c.0.s8 %v3945
        %v3947 = vlaneseq
        %v3948 = vshrl.u32 %v3947, 7
        %v3949 = vsub.s32 %v3946, %v3948
        %v3950 = vrot.slane %v3943, %v3949
        %v3952 = vsel %vm3933, %v3950, 0.0
        %s3953 = scalar_lea.vmem [#allocation2], 129
        %v3954 = vld [vmem:[%s3953] ss:$8 sm:$0x3]
        %v3955 = vadd.f32 %v3954, %v3952
        %3956 = vst.msk [vmem:[%s3953] ss:$8 sm:$0x3] %vm354, %v3955
        %3957 = vst.msk [vmem:[%s3953] ss:$8 sm:$0x0] %vm354, %v3955
        %3958 = vrot.lane.b32.xlu0 %v284, 81
        %v3959 = vpop.permute.xlu0 %3958
        %3960 = vrot.lane.b32.xlu0 %v289, 81
        %v3961 = vpop.permute.xlu0 %3960
        %vm3962 = vcmp.lt.s32.totalorder %v296, 81
        %v3963 = vsel %vm3962, %v3959, %v3961
        %v3964 = vsel %vm3962, %v3961, %v3959
        %v3967 = vcombine.low %v3963, %v3964
        %v3969 = vmul.f32 %v283, %v3967
        %v3971 = vcombine.high %v3969, %v3969
        %v3973 = vsel %vm308, %v3969, 0.0
        %v3974 = vrot.slane %v3973, 4
        %v3975 = vadd.f32 %v3973, %v3974
        %v3976 = vrot.slane %v3975, 2
        %v3977 = vadd.f32 %v3975, %v3976
        %v3978 = vrot.slane %v3977, 1
        %v3979 = vadd.f32 %v3977, %v3978
        %v3980 = vsel %vm308, %v3971, 0.0
        %v3981 = vrot.slane %v3980, 4
        %v3982 = vadd.f32 %v3980, %v3981
        %v3983 = vrot.slane %v3982, 2
        %v3984 = vadd.f32 %v3982, %v3983
        %v3985 = vrot.slane %v3984, 1
        %v3986 = vadd.f32 %v3984, %v3985
        %vm3987 = vmand %vm3821, %vm500
        %vm3988 = vmand %vm3987, %vm502
        %v3991 = vcombine.low %v3979, %v3986
        %v3993 = vunpack.c.l.s4 1966171168
        %v3994 = vunpack.c.0.s8 %v3993
        %v3995 = vlaneseq
        %v3996 = vshrl.u32 %v3995, 7
        %v3997 = vsub.s32 %v3994, %v3996
        %v3998 = vrot.slane %v3991, %v3997
        %v4000 = vunpack.c.l.s4 1966171168
        %v4001 = vunpack.c.0.s8 %v4000
        %v4002 = vlaneseq
        %v4003 = vshrl.u32 %v4002, 7
        %v4004 = vsub.s32 %v4001, %v4003
        %v4005 = vrot.slane %v3998, %v4004
        %v4007 = vsel %vm3988, %v4005, 0.0
        %s4008 = scalar_lea.vmem [#allocation2], 130
        %v4009 = vld [vmem:[%s4008] ss:$8 sm:$0x3]
        %v4010 = vadd.f32 %v4009, %v4007
        %4011 = vst.msk [vmem:[%s4008] ss:$8 sm:$0x3] %vm354, %v4010
        %4012 = vst.msk [vmem:[%s4008] ss:$8 sm:$0x0] %vm354, %v4010
        %4013 = vrot.lane.b32.xlu0 %v284, 80
        %v4014 = vpop.permute.xlu0 %4013
        %4015 = vrot.lane.b32.xlu0 %v289, 80
        %v4016 = vpop.permute.xlu0 %4015
        %vm4017 = vcmp.lt.s32.totalorder %v296, 80
        %v4018 = vsel %vm4017, %v4014, %v4016
        %v4019 = vsel %vm4017, %v4016, %v4014
        %v4022 = vcombine.low %v4018, %v4019
        %v4024 = vmul.f32 %v283, %v4022
        %v4026 = vcombine.high %v4024, %v4024
        %v4028 = vsel %vm308, %v4024, 0.0
        %v4029 = vrot.slane %v4028, 4
        %v4030 = vadd.f32 %v4028, %v4029
        %v4031 = vrot.slane %v4030, 2
        %v4032 = vadd.f32 %v4030, %v4031
        %v4033 = vrot.slane %v4032, 1
        %v4034 = vadd.f32 %v4032, %v4033
        %v4035 = vsel %vm308, %v4026, 0.0
        %v4036 = vrot.slane %v4035, 4
        %v4037 = vadd.f32 %v4035, %v4036
        %v4038 = vrot.slane %v4037, 2
        %v4039 = vadd.f32 %v4037, %v4038
        %v4040 = vrot.slane %v4039, 1
        %v4041 = vadd.f32 %v4039, %v4040
        %vm4042 = vmand %vm3821, %vm557
        %vm4043 = vmand %vm4042, %vm559
        %v4046 = vcombine.low %v4034, %v4041
        %v4048 = vunpack.c.l.s4 1966171168
        %v4049 = vunpack.c.0.s8 %v4048
        %v4050 = vlaneseq
        %v4051 = vshrl.u32 %v4050, 7
        %v4052 = vsub.s32 %v4049, %v4051
        %v4053 = vrot.slane %v4046, %v4052
        %v4055 = vunpack.c.l.s4 1966171168
        %v4056 = vunpack.c.0.s8 %v4055
        %v4057 = vlaneseq
        %v4058 = vshrl.u32 %v4057, 7
        %v4059 = vsub.s32 %v4056, %v4058
        %v4060 = vrot.slane %v4053, %v4059
        %v4062 = vsel %vm4043, %v4060, 0.0
        %s4063 = scalar_lea.vmem [#allocation2], 131
        %v4064 = vld [vmem:[%s4063] ss:$8 sm:$0x3]
        %v4065 = vadd.f32 %v4064, %v4062
        %4066 = vst.msk [vmem:[%s4063] ss:$8 sm:$0x3] %vm354, %v4065
        %4067 = vst.msk [vmem:[%s4063] ss:$8 sm:$0x0] %vm354, %v4065
        %4068 = vrot.lane.b32.xlu0 %v284, 79
        %v4069 = vpop.permute.xlu0 %4068
        %4070 = vrot.lane.b32.xlu0 %v289, 79
        %v4071 = vpop.permute.xlu0 %4070
        %vm4072 = vcmp.lt.s32.totalorder %v296, 79
        %v4073 = vsel %vm4072, %v4069, %v4071
        %v4074 = vsel %vm4072, %v4071, %v4069
        %v4077 = vcombine.low %v4073, %v4074
        %v4079 = vmul.f32 %v283, %v4077
        %v4081 = vcombine.high %v4079, %v4079
        %v4083 = vsel %vm308, %v4079, 0.0
        %v4084 = vrot.slane %v4083, 4
        %v4085 = vadd.f32 %v4083, %v4084
        %v4086 = vrot.slane %v4085, 2
        %v4087 = vadd.f32 %v4085, %v4086
        %v4088 = vrot.slane %v4087, 1
        %v4089 = vadd.f32 %v4087, %v4088
        %v4090 = vsel %vm308, %v4081, 0.0
        %v4091 = vrot.slane %v4090, 4
        %v4092 = vadd.f32 %v4090, %v4091
        %v4093 = vrot.slane %v4092, 2
        %v4094 = vadd.f32 %v4092, %v4093
        %v4095 = vrot.slane %v4094, 1
        %v4096 = vadd.f32 %v4094, %v4095
        %vm4097 = vmand %vm3821, %vm614
        %vm4098 = vmand %vm4097, %vm616
        %v4101 = vcombine.low %v4089, %v4096
        %v4103 = vunpack.c.l.s4 1966171168
        %v4104 = vunpack.c.0.s8 %v4103
        %v4105 = vlaneseq
        %v4106 = vshrl.u32 %v4105, 7
        %v4107 = vsub.s32 %v4104, %v4106
        %v4108 = vrot.slane %v4101, %v4107
        %v4110 = vunpack.c.l.s4 1966171168
        %v4111 = vunpack.c.0.s8 %v4110
        %v4112 = vlaneseq
        %v4113 = vshrl.u32 %v4112, 7
        %v4114 = vsub.s32 %v4111, %v4113
        %v4115 = vrot.slane %v4108, %v4114
        %v4117 = vsel %vm4098, %v4115, 0.0
        %s4118 = scalar_lea.vmem [#allocation2], 132
        %v4119 = vld [vmem:[%s4118] ss:$8 sm:$0x3]
        %v4120 = vadd.f32 %v4119, %v4117
        %4121 = vst.msk [vmem:[%s4118] ss:$8 sm:$0x3] %vm354, %v4120
        %4122 = vst.msk [vmem:[%s4118] ss:$8 sm:$0x0] %vm354, %v4120
        %4123 = vrot.lane.b32.xlu0 %v284, 78
        %v4124 = vpop.permute.xlu0 %4123
        %4125 = vrot.lane.b32.xlu0 %v289, 78
        %v4126 = vpop.permute.xlu0 %4125
        %vm4127 = vcmp.lt.s32.totalorder %v296, 78
        %v4128 = vsel %vm4127, %v4124, %v4126
        %v4129 = vsel %vm4127, %v4126, %v4124
        %v4132 = vcombine.low %v4128, %v4129
        %v4134 = vmul.f32 %v283, %v4132
        %v4136 = vcombine.high %v4134, %v4134
        %v4138 = vsel %vm308, %v4134, 0.0
        %v4139 = vrot.slane %v4138, 4
        %v4140 = vadd.f32 %v4138, %v4139
        %v4141 = vrot.slane %v4140, 2
        %v4142 = vadd.f32 %v4140, %v4141
        %v4143 = vrot.slane %v4142, 1
        %v4144 = vadd.f32 %v4142, %v4143
        %v4145 = vsel %vm308, %v4136, 0.0
        %v4146 = vrot.slane %v4145, 4
        %v4147 = vadd.f32 %v4145, %v4146
        %v4148 = vrot.slane %v4147, 2
        %v4149 = vadd.f32 %v4147, %v4148
        %v4150 = vrot.slane %v4149, 1
        %v4151 = vadd.f32 %v4149, %v4150
        %vm4152 = vmand %vm3821, %vm671
        %vm4153 = vmand %vm4152, %vm673
        %v4156 = vcombine.low %v4144, %v4151
        %v4158 = vunpack.c.l.s4 1966171168
        %v4159 = vunpack.c.0.s8 %v4158
        %v4160 = vlaneseq
        %v4161 = vshrl.u32 %v4160, 7
        %v4162 = vsub.s32 %v4159, %v4161
        %v4163 = vrot.slane %v4156, %v4162
        %v4165 = vunpack.c.l.s4 1966171168
        %v4166 = vunpack.c.0.s8 %v4165
        %v4167 = vlaneseq
        %v4168 = vshrl.u32 %v4167, 7
        %v4169 = vsub.s32 %v4166, %v4168
        %v4170 = vrot.slane %v4163, %v4169
        %v4172 = vsel %vm4153, %v4170, 0.0
        %s4173 = scalar_lea.vmem [#allocation2], 133
        %v4174 = vld [vmem:[%s4173] ss:$8 sm:$0x3]
        %v4175 = vadd.f32 %v4174, %v4172
        %4176 = vst.msk [vmem:[%s4173] ss:$8 sm:$0x3] %vm354, %v4175
        %4177 = vst.msk [vmem:[%s4173] ss:$8 sm:$0x0] %vm354, %v4175
        %4178 = vrot.lane.b32.xlu0 %v284, 77
        %v4179 = vpop.permute.xlu0 %4178
        %4180 = vrot.lane.b32.xlu0 %v289, 77
        %v4181 = vpop.permute.xlu0 %4180
        %vm4182 = vcmp.lt.s32.totalorder %v296, 77
        %v4183 = vsel %vm4182, %v4179, %v4181
        %v4184 = vsel %vm4182, %v4181, %v4179
        %v4187 = vcombine.low %v4183, %v4184
        %v4189 = vmul.f32 %v283, %v4187
        %v4191 = vcombine.high %v4189, %v4189
        %v4193 = vsel %vm308, %v4189, 0.0
        %v4194 = vrot.slane %v4193, 4
        %v4195 = vadd.f32 %v4193, %v4194
        %v4196 = vrot.slane %v4195, 2
        %v4197 = vadd.f32 %v4195, %v4196
        %v4198 = vrot.slane %v4197, 1
        %v4199 = vadd.f32 %v4197, %v4198
        %v4200 = vsel %vm308, %v4191, 0.0
        %v4201 = vrot.slane %v4200, 4
        %v4202 = vadd.f32 %v4200, %v4201
        %v4203 = vrot.slane %v4202, 2
        %v4204 = vadd.f32 %v4202, %v4203
        %v4205 = vrot.slane %v4204, 1
        %v4206 = vadd.f32 %v4204, %v4205
        %vm4207 = vmand %vm3821, %vm728
        %vm4208 = vmand %vm4207, %vm730
        %v4211 = vcombine.low %v4199, %v4206
        %v4213 = vunpack.c.l.s4 1966171168
        %v4214 = vunpack.c.0.s8 %v4213
        %v4215 = vlaneseq
        %v4216 = vshrl.u32 %v4215, 7
        %v4217 = vsub.s32 %v4214, %v4216
        %v4218 = vrot.slane %v4211, %v4217
        %v4220 = vunpack.c.l.s4 1966171168
        %v4221 = vunpack.c.0.s8 %v4220
        %v4222 = vlaneseq
        %v4223 = vshrl.u32 %v4222, 7
        %v4224 = vsub.s32 %v4221, %v4223
        %v4225 = vrot.slane %v4218, %v4224
        %v4227 = vsel %vm4208, %v4225, 0.0
        %s4228 = scalar_lea.vmem [#allocation2], 134
        %v4229 = vld [vmem:[%s4228] ss:$8 sm:$0x3]
        %v4230 = vadd.f32 %v4229, %v4227
        %4231 = vst.msk [vmem:[%s4228] ss:$8 sm:$0x3] %vm354, %v4230
        %4232 = vst.msk [vmem:[%s4228] ss:$8 sm:$0x0] %vm354, %v4230
        %4233 = vrot.lane.b32.xlu0 %v284, 76
        %v4234 = vpop.permute.xlu0 %4233
        %4235 = vrot.lane.b32.xlu0 %v289, 76
        %v4236 = vpop.permute.xlu0 %4235
        %vm4237 = vcmp.lt.s32.totalorder %v296, 76
        %v4238 = vsel %vm4237, %v4234, %v4236
        %v4239 = vsel %vm4237, %v4236, %v4234
        %v4242 = vcombine.low %v4238, %v4239
        %v4244 = vmul.f32 %v283, %v4242
        %v4246 = vcombine.high %v4244, %v4244
        %v4248 = vsel %vm308, %v4244, 0.0
        %v4249 = vrot.slane %v4248, 4
        %v4250 = vadd.f32 %v4248, %v4249
        %v4251 = vrot.slane %v4250, 2
        %v4252 = vadd.f32 %v4250, %v4251
        %v4253 = vrot.slane %v4252, 1
        %v4254 = vadd.f32 %v4252, %v4253
        %v4255 = vsel %vm308, %v4246, 0.0
        %v4256 = vrot.slane %v4255, 4
        %v4257 = vadd.f32 %v4255, %v4256
        %v4258 = vrot.slane %v4257, 2
        %v4259 = vadd.f32 %v4257, %v4258
        %v4260 = vrot.slane %v4259, 1
        %v4261 = vadd.f32 %v4259, %v4260
        %vm4262 = vmand %vm3821, %vm785
        %vm4263 = vmand %vm4262, %vm787
        %v4266 = vcombine.low %v4254, %v4261
        %v4268 = vunpack.c.l.s4 1966171168
        %v4269 = vunpack.c.0.s8 %v4268
        %v4270 = vlaneseq
        %v4271 = vshrl.u32 %v4270, 7
        %v4272 = vsub.s32 %v4269, %v4271
        %v4273 = vrot.slane %v4266, %v4272
        %v4275 = vunpack.c.l.s4 1966171168
        %v4276 = vunpack.c.0.s8 %v4275
        %v4277 = vlaneseq
        %v4278 = vshrl.u32 %v4277, 7
        %v4279 = vsub.s32 %v4276, %v4278
        %v4280 = vrot.slane %v4273, %v4279
        %v4282 = vsel %vm4263, %v4280, 0.0
        %s4283 = scalar_lea.vmem [#allocation2], 135
        %v4284 = vld [vmem:[%s4283] ss:$8 sm:$0x3]
        %v4285 = vadd.f32 %v4284, %v4282
        %4286 = vst.msk [vmem:[%s4283] ss:$8 sm:$0x3] %vm354, %v4285
        %4287 = vst.msk [vmem:[%s4283] ss:$8 sm:$0x0] %vm354, %v4285
        %v4288 = vcombine.low %v298, %v299
        %v4290 = vmul.f32 %v283, %v4288
        %v4292 = vcombine.high %v4290, %v4290
        %v4294 = vsel %vm308, %v4290, 0.0
        %v4295 = vrot.slane %v4294, 4
        %v4296 = vadd.f32 %v4294, %v4295
        %v4297 = vrot.slane %v4296, 2
        %v4298 = vadd.f32 %v4296, %v4297
        %v4299 = vrot.slane %v4298, 1
        %v4300 = vadd.f32 %v4298, %v4299
        %v4301 = vsel %vm308, %v4292, 0.0
        %v4302 = vrot.slane %v4301, 4
        %v4303 = vadd.f32 %v4301, %v4302
        %v4304 = vrot.slane %v4303, 2
        %v4305 = vadd.f32 %v4303, %v4304
        %v4306 = vrot.slane %v4305, 1
        %v4307 = vadd.f32 %v4305, %v4306
        %vm4308 = vcmp.ge.s32.totalorder %v285, 4294967292
        %vm4309 = vcmp.lt.s32.totalorder %v285, 12
        %vm4310 = vmand %vm4308, %vm4309
        %vm4311 = vmand %vm4310, %vm326
        %vm4312 = vmand %vm4311, %vm328
        %v4315 = vcombine.low %v4300, %v4307
        %v4317 = vunpack.c.l.s4 1966171168
        %v4318 = vunpack.c.0.s8 %v4317
        %v4319 = vlaneseq
        %v4320 = vshrl.u32 %v4319, 7
        %v4321 = vsub.s32 %v4318, %v4320
        %v4322 = vrot.slane %v4315, %v4321
        %v4324 = vunpack.c.l.s4 1966171168
        %v4325 = vunpack.c.0.s8 %v4324
        %v4326 = vlaneseq
        %v4327 = vshrl.u32 %v4326, 7
        %v4328 = vsub.s32 %v4325, %v4327
        %v4329 = vrot.slane %v4322, %v4328
        %v4331 = vsel %vm4312, %v4329, 0.0
        %s4332 = scalar_lea.vmem [#allocation2], 144
        %v4333 = vld [vmem:[%s4332] ss:$8 sm:$0x3]
        %v4334 = vadd.f32 %v4333, %v4331
        %4335 = vst.msk [vmem:[%s4332] ss:$8 sm:$0x3] %vm354, %v4334
        %4336 = vst.msk [vmem:[%s4332] ss:$8 sm:$0x0] %vm354, %v4334
        %v4337 = vcombine.low %v362, %v363
        %v4339 = vmul.f32 %v283, %v4337
        %v4341 = vcombine.high %v4339, %v4339
        %v4343 = vsel %vm308, %v4339, 0.0
        %v4344 = vrot.slane %v4343, 4
        %v4345 = vadd.f32 %v4343, %v4344
        %v4346 = vrot.slane %v4345, 2
        %v4347 = vadd.f32 %v4345, %v4346
        %v4348 = vrot.slane %v4347, 1
        %v4349 = vadd.f32 %v4347, %v4348
        %v4350 = vsel %vm308, %v4341, 0.0
        %v4351 = vrot.slane %v4350, 4
        %v4352 = vadd.f32 %v4350, %v4351
        %v4353 = vrot.slane %v4352, 2
        %v4354 = vadd.f32 %v4352, %v4353
        %v4355 = vrot.slane %v4354, 1
        %v4356 = vadd.f32 %v4354, %v4355
        %vm4357 = vmand %vm4310, %vm386
        %vm4358 = vmand %vm4357, %vm388
        %v4361 = vcombine.low %v4349, %v4356
        %v4363 = vunpack.c.l.s4 1966171168
        %v4364 = vunpack.c.0.s8 %v4363
        %v4365 = vlaneseq
        %v4366 = vshrl.u32 %v4365, 7
        %v4367 = vsub.s32 %v4364, %v4366
        %v4368 = vrot.slane %v4361, %v4367
        %v4370 = vunpack.c.l.s4 1966171168
        %v4371 = vunpack.c.0.s8 %v4370
        %v4372 = vlaneseq
        %v4373 = vshrl.u32 %v4372, 7
        %v4374 = vsub.s32 %v4371, %v4373
        %v4375 = vrot.slane %v4368, %v4374
        %v4377 = vsel %vm4358, %v4375, 0.0
        %s4378 = scalar_lea.vmem [#allocation2], 145
        %v4379 = vld [vmem:[%s4378] ss:$8 sm:$0x3]
        %v4380 = vadd.f32 %v4379, %v4377
        %4381 = vst.msk [vmem:[%s4378] ss:$8 sm:$0x3] %vm354, %v4380
        %4382 = vst.msk [vmem:[%s4378] ss:$8 sm:$0x0] %vm354, %v4380
        %v4383 = vcombine.low %v419, %v420
        %v4385 = vmul.f32 %v283, %v4383
        %v4387 = vcombine.high %v4385, %v4385
        %v4389 = vsel %vm308, %v4385, 0.0
        %v4390 = vrot.slane %v4389, 4
        %v4391 = vadd.f32 %v4389, %v4390
        %v4392 = vrot.slane %v4391, 2
        %v4393 = vadd.f32 %v4391, %v4392
        %v4394 = vrot.slane %v4393, 1
        %v4395 = vadd.f32 %v4393, %v4394
        %v4396 = vsel %vm308, %v4387, 0.0
        %v4397 = vrot.slane %v4396, 4
        %v4398 = vadd.f32 %v4396, %v4397
        %v4399 = vrot.slane %v4398, 2
        %v4400 = vadd.f32 %v4398, %v4399
        %v4401 = vrot.slane %v4400, 1
        %v4402 = vadd.f32 %v4400, %v4401
        %vm4403 = vmand %vm4310, %vm443
        %vm4404 = vmand %vm4403, %vm445
        %v4407 = vcombine.low %v4395, %v4402
        %v4409 = vunpack.c.l.s4 1966171168
        %v4410 = vunpack.c.0.s8 %v4409
        %v4411 = vlaneseq
        %v4412 = vshrl.u32 %v4411, 7
        %v4413 = vsub.s32 %v4410, %v4412
        %v4414 = vrot.slane %v4407, %v4413
        %v4416 = vunpack.c.l.s4 1966171168
        %v4417 = vunpack.c.0.s8 %v4416
        %v4418 = vlaneseq
        %v4419 = vshrl.u32 %v4418, 7
        %v4420 = vsub.s32 %v4417, %v4419
        %v4421 = vrot.slane %v4414, %v4420
        %v4423 = vsel %vm4404, %v4421, 0.0
        %s4424 = scalar_lea.vmem [#allocation2], 146
        %v4425 = vld [vmem:[%s4424] ss:$8 sm:$0x3]
        %v4426 = vadd.f32 %v4425, %v4423
        %4427 = vst.msk [vmem:[%s4424] ss:$8 sm:$0x3] %vm354, %v4426
        %4428 = vst.msk [vmem:[%s4424] ss:$8 sm:$0x0] %vm354, %v4426
        %v4429 = vcombine.low %v476, %v477
        %v4431 = vmul.f32 %v283, %v4429
        %v4433 = vcombine.high %v4431, %v4431
        %v4435 = vsel %vm308, %v4431, 0.0
        %v4436 = vrot.slane %v4435, 4
        %v4437 = vadd.f32 %v4435, %v4436
        %v4438 = vrot.slane %v4437, 2
        %v4439 = vadd.f32 %v4437, %v4438
        %v4440 = vrot.slane %v4439, 1
        %v4441 = vadd.f32 %v4439, %v4440
        %v4442 = vsel %vm308, %v4433, 0.0
        %v4443 = vrot.slane %v4442, 4
        %v4444 = vadd.f32 %v4442, %v4443
        %v4445 = vrot.slane %v4444, 2
        %v4446 = vadd.f32 %v4444, %v4445
        %v4447 = vrot.slane %v4446, 1
        %v4448 = vadd.f32 %v4446, %v4447
        %vm4449 = vmand %vm4310, %vm500
        %vm4450 = vmand %vm4449, %vm502
        %v4453 = vcombine.low %v4441, %v4448
        %v4455 = vunpack.c.l.s4 1966171168
        %v4456 = vunpack.c.0.s8 %v4455
        %v4457 = vlaneseq
        %v4458 = vshrl.u32 %v4457, 7
        %v4459 = vsub.s32 %v4456, %v4458
        %v4460 = vrot.slane %v4453, %v4459
        %v4462 = vunpack.c.l.s4 1966171168
        %v4463 = vunpack.c.0.s8 %v4462
        %v4464 = vlaneseq
        %v4465 = vshrl.u32 %v4464, 7
        %v4466 = vsub.s32 %v4463, %v4465
        %v4467 = vrot.slane %v4460, %v4466
        %v4469 = vsel %vm4450, %v4467, 0.0
        %s4470 = scalar_lea.vmem [#allocation2], 147
        %v4471 = vld [vmem:[%s4470] ss:$8 sm:$0x3]
        %v4472 = vadd.f32 %v4471, %v4469
        %4473 = vst.msk [vmem:[%s4470] ss:$8 sm:$0x3] %vm354, %v4472
        %4474 = vst.msk [vmem:[%s4470] ss:$8 sm:$0x0] %vm354, %v4472
        %v4475 = vcombine.low %v533, %v534
        %v4477 = vmul.f32 %v283, %v4475
        %v4479 = vcombine.high %v4477, %v4477
        %v4481 = vsel %vm308, %v4477, 0.0
        %v4482 = vrot.slane %v4481, 4
        %v4483 = vadd.f32 %v4481, %v4482
        %v4484 = vrot.slane %v4483, 2
        %v4485 = vadd.f32 %v4483, %v4484
        %v4486 = vrot.slane %v4485, 1
        %v4487 = vadd.f32 %v4485, %v4486
        %v4488 = vsel %vm308, %v4479, 0.0
        %v4489 = vrot.slane %v4488, 4
        %v4490 = vadd.f32 %v4488, %v4489
        %v4491 = vrot.slane %v4490, 2
        %v4492 = vadd.f32 %v4490, %v4491
        %v4493 = vrot.slane %v4492, 1
        %v4494 = vadd.f32 %v4492, %v4493
        %vm4495 = vmand %vm4310, %vm557
        %vm4496 = vmand %vm4495, %vm559
        %v4499 = vcombine.low %v4487, %v4494
        %v4501 = vunpack.c.l.s4 1966171168
        %v4502 = vunpack.c.0.s8 %v4501
        %v4503 = vlaneseq
        %v4504 = vshrl.u32 %v4503, 7
        %v4505 = vsub.s32 %v4502, %v4504
        %v4506 = vrot.slane %v4499, %v4505
        %v4508 = vunpack.c.l.s4 1966171168
        %v4509 = vunpack.c.0.s8 %v4508
        %v4510 = vlaneseq
        %v4511 = vshrl.u32 %v4510, 7
        %v4512 = vsub.s32 %v4509, %v4511
        %v4513 = vrot.slane %v4506, %v4512
        %v4515 = vsel %vm4496, %v4513, 0.0
        %s4516 = scalar_lea.vmem [#allocation2], 148
        %v4517 = vld [vmem:[%s4516] ss:$8 sm:$0x3]
        %v4518 = vadd.f32 %v4517, %v4515
        %4519 = vst.msk [vmem:[%s4516] ss:$8 sm:$0x3] %vm354, %v4518
        %4520 = vst.msk [vmem:[%s4516] ss:$8 sm:$0x0] %vm354, %v4518
        %v4521 = vcombine.low %v590, %v591
        %v4523 = vmul.f32 %v283, %v4521
        %v4525 = vcombine.high %v4523, %v4523
        %v4527 = vsel %vm308, %v4523, 0.0
        %v4528 = vrot.slane %v4527, 4
        %v4529 = vadd.f32 %v4527, %v4528
        %v4530 = vrot.slane %v4529, 2
        %v4531 = vadd.f32 %v4529, %v4530
        %v4532 = vrot.slane %v4531, 1
        %v4533 = vadd.f32 %v4531, %v4532
        %v4534 = vsel %vm308, %v4525, 0.0
        %v4535 = vrot.slane %v4534, 4
        %v4536 = vadd.f32 %v4534, %v4535
        %v4537 = vrot.slane %v4536, 2
        %v4538 = vadd.f32 %v4536, %v4537
        %v4539 = vrot.slane %v4538, 1
        %v4540 = vadd.f32 %v4538, %v4539
        %vm4541 = vmand %vm4310, %vm614
        %vm4542 = vmand %vm4541, %vm616
        %v4545 = vcombine.low %v4533, %v4540
        %v4547 = vunpack.c.l.s4 1966171168
        %v4548 = vunpack.c.0.s8 %v4547
        %v4549 = vlaneseq
        %v4550 = vshrl.u32 %v4549, 7
        %v4551 = vsub.s32 %v4548, %v4550
        %v4552 = vrot.slane %v4545, %v4551
        %v4554 = vunpack.c.l.s4 1966171168
        %v4555 = vunpack.c.0.s8 %v4554
        %v4556 = vlaneseq
        %v4557 = vshrl.u32 %v4556, 7
        %v4558 = vsub.s32 %v4555, %v4557
        %v4559 = vrot.slane %v4552, %v4558
        %v4561 = vsel %vm4542, %v4559, 0.0
        %s4562 = scalar_lea.vmem [#allocation2], 149
        %v4563 = vld [vmem:[%s4562] ss:$8 sm:$0x3]
        %v4564 = vadd.f32 %v4563, %v4561
        %4565 = vst.msk [vmem:[%s4562] ss:$8 sm:$0x3] %vm354, %v4564
        %4566 = vst.msk [vmem:[%s4562] ss:$8 sm:$0x0] %vm354, %v4564
        %v4567 = vcombine.low %v647, %v648
        %v4569 = vmul.f32 %v283, %v4567
        %v4571 = vcombine.high %v4569, %v4569
        %v4573 = vsel %vm308, %v4569, 0.0
        %v4574 = vrot.slane %v4573, 4
        %v4575 = vadd.f32 %v4573, %v4574
        %v4576 = vrot.slane %v4575, 2
        %v4577 = vadd.f32 %v4575, %v4576
        %v4578 = vrot.slane %v4577, 1
        %v4579 = vadd.f32 %v4577, %v4578
        %v4580 = vsel %vm308, %v4571, 0.0
        %v4581 = vrot.slane %v4580, 4
        %v4582 = vadd.f32 %v4580, %v4581
        %v4583 = vrot.slane %v4582, 2
        %v4584 = vadd.f32 %v4582, %v4583
        %v4585 = vrot.slane %v4584, 1
        %v4586 = vadd.f32 %v4584, %v4585
        %vm4587 = vmand %vm4310, %vm671
        %vm4588 = vmand %vm4587, %vm673
        %v4591 = vcombine.low %v4579, %v4586
        %v4593 = vunpack.c.l.s4 1966171168
        %v4594 = vunpack.c.0.s8 %v4593
        %v4595 = vlaneseq
        %v4596 = vshrl.u32 %v4595, 7
        %v4597 = vsub.s32 %v4594, %v4596
        %v4598 = vrot.slane %v4591, %v4597
        %v4600 = vunpack.c.l.s4 1966171168
        %v4601 = vunpack.c.0.s8 %v4600
        %v4602 = vlaneseq
        %v4603 = vshrl.u32 %v4602, 7
        %v4604 = vsub.s32 %v4601, %v4603
        %v4605 = vrot.slane %v4598, %v4604
        %v4607 = vsel %vm4588, %v4605, 0.0
        %s4608 = scalar_lea.vmem [#allocation2], 150
        %v4609 = vld [vmem:[%s4608] ss:$8 sm:$0x3]
        %v4610 = vadd.f32 %v4609, %v4607
        %4611 = vst.msk [vmem:[%s4608] ss:$8 sm:$0x3] %vm354, %v4610
        %4612 = vst.msk [vmem:[%s4608] ss:$8 sm:$0x0] %vm354, %v4610
        %v4613 = vcombine.low %v704, %v705
        %v4615 = vmul.f32 %v283, %v4613
        %v4617 = vcombine.high %v4615, %v4615
        %v4619 = vsel %vm308, %v4615, 0.0
        %v4620 = vrot.slane %v4619, 4
        %v4621 = vadd.f32 %v4619, %v4620
        %v4622 = vrot.slane %v4621, 2
        %v4623 = vadd.f32 %v4621, %v4622
        %v4624 = vrot.slane %v4623, 1
        %v4625 = vadd.f32 %v4623, %v4624
        %v4626 = vsel %vm308, %v4617, 0.0
        %v4627 = vrot.slane %v4626, 4
        %v4628 = vadd.f32 %v4626, %v4627
        %v4629 = vrot.slane %v4628, 2
        %v4630 = vadd.f32 %v4628, %v4629
        %v4631 = vrot.slane %v4630, 1
        %v4632 = vadd.f32 %v4630, %v4631
        %vm4633 = vmand %vm4310, %vm728
        %vm4634 = vmand %vm4633, %vm730
        %v4637 = vcombine.low %v4625, %v4632
        %v4639 = vunpack.c.l.s4 1966171168
        %v4640 = vunpack.c.0.s8 %v4639
        %v4641 = vlaneseq
        %v4642 = vshrl.u32 %v4641, 7
        %v4643 = vsub.s32 %v4640, %v4642
        %v4644 = vrot.slane %v4637, %v4643
        %v4646 = vunpack.c.l.s4 1966171168
        %v4647 = vunpack.c.0.s8 %v4646
        %v4648 = vlaneseq
        %v4649 = vshrl.u32 %v4648, 7
        %v4650 = vsub.s32 %v4647, %v4649
        %v4651 = vrot.slane %v4644, %v4650
        %v4653 = vsel %vm4634, %v4651, 0.0
        %s4654 = scalar_lea.vmem [#allocation2], 151
        %v4655 = vld [vmem:[%s4654] ss:$8 sm:$0x3]
        %v4656 = vadd.f32 %v4655, %v4653
        %4657 = vst.msk [vmem:[%s4654] ss:$8 sm:$0x3] %vm354, %v4656
        %4658 = vst.msk [vmem:[%s4654] ss:$8 sm:$0x0] %vm354, %v4656
        %v4659 = vcombine.low %v761, %v762
        %v4661 = vmul.f32 %v283, %v4659
        %v4663 = vcombine.high %v4661, %v4661
        %v4665 = vsel %vm308, %v4661, 0.0
        %v4666 = vrot.slane %v4665, 4
        %v4667 = vadd.f32 %v4665, %v4666
        %v4668 = vrot.slane %v4667, 2
        %v4669 = vadd.f32 %v4667, %v4668
        %v4670 = vrot.slane %v4669, 1
        %v4671 = vadd.f32 %v4669, %v4670
        %v4672 = vsel %vm308, %v4663, 0.0
        %v4673 = vrot.slane %v4672, 4
        %v4674 = vadd.f32 %v4672, %v4673
        %v4675 = vrot.slane %v4674, 2
        %v4676 = vadd.f32 %v4674, %v4675
        %v4677 = vrot.slane %v4676, 1
        %v4678 = vadd.f32 %v4676, %v4677
        %vm4679 = vmand %vm4310, %vm785
        %vm4680 = vmand %vm4679, %vm787
        %v4683 = vcombine.low %v4671, %v4678
        %v4685 = vunpack.c.l.s4 1966171168
        %v4686 = vunpack.c.0.s8 %v4685
        %v4687 = vlaneseq
        %v4688 = vshrl.u32 %v4687, 7
        %v4689 = vsub.s32 %v4686, %v4688
        %v4690 = vrot.slane %v4683, %v4689
        %v4692 = vunpack.c.l.s4 1966171168
        %v4693 = vunpack.c.0.s8 %v4692
        %v4694 = vlaneseq
        %v4695 = vshrl.u32 %v4694, 7
        %v4696 = vsub.s32 %v4693, %v4695
        %v4697 = vrot.slane %v4690, %v4696
        %v4699 = vsel %vm4680, %v4697, 0.0
        %s4700 = scalar_lea.vmem [#allocation2], 160
        %v4701 = vld [vmem:[%s4700] ss:$8 sm:$0x3]
        %v4702 = vadd.f32 %v4701, %v4699
        %4703 = vst.msk [vmem:[%s4700] ss:$8 sm:$0x3] %vm354, %v4702
        %4704 = vst.msk [vmem:[%s4700] ss:$8 sm:$0x0] %vm354, %v4702
        // Predicated region
        $region49: #{tpu_custom_call.1} parent=31 // pred_check
          %p4705 = pneg %p257
        $region50: #{tpu_custom_call.1} parent=31 // pred_check_branch
          %4707 = sbr.rel (%p4705) target = $region52
        $region51: #{tpu_custom_call.1} parent=31 // pred_region
          %v4708 = vld [vmem:[#allocation2] sm:$0xff]
          %v4709 = vld [vmem:[#allocation2 + $0x8] sm:$0xff]
          %v4710 = vld [vmem:[#allocation2 + $0x10] sm:$0xff]
          %v4711 = vld [vmem:[#allocation2 + $0x18] sm:$0xff]
          %v4712 = vld [vmem:[#allocation2 + $0x20] sm:$0xff]
          %v4713 = vld [vmem:[#allocation2 + $0x28] sm:$0xff]
          %v4714 = vld [vmem:[#allocation2 + $0x30] sm:$0xff]
          %v4715 = vld [vmem:[#allocation2 + $0x38] sm:$0xff]
          %v4716 = vld [vmem:[#allocation2 + $0x40] sm:$0xff]
          %v4717 = vld [vmem:[#allocation2 + $0x48] sm:$0xff]
          %v4718 = vld [vmem:[#allocation2 + $0x50] sm:$0xff]
          %v4719 = vld [vmem:[#allocation2 + $0x58] sm:$0xff]
          %v4720 = vld [vmem:[#allocation2 + $0x60] sm:$0xff]
          %v4721 = vld [vmem:[#allocation2 + $0x68] sm:$0xff]
          %v4722 = vld [vmem:[#allocation2 + $0x70] sm:$0xff]
          %v4723 = vld [vmem:[#allocation2 + $0x78] sm:$0xff]
          %v4724 = vld [vmem:[#allocation2 + $0x80] sm:$0xff]
          %v4725 = vld [vmem:[#allocation2 + $0x88] sm:$0xff]
          %v4726 = vld [vmem:[#allocation2 + $0x90] sm:$0xff]
          %v4727 = vld [vmem:[#allocation2 + $0x98] sm:$0xff]
          %v4728 = vld [vmem:[#allocation2 + $0xa0] sm:$0x1]
          %v4729 = vld [vmem:[#allocation2 + $0xa8] sm:$0x1]
          %v4730 = vmul.f32 %v4708, 0.25
          %v4731 = vmul.f32 %v4709, 0.25
          %v4732 = vmul.f32 %v4710, 0.25
          %v4733 = vmul.f32 %v4711, 0.25
          %v4734 = vmul.f32 %v4712, 0.25
          %v4735 = vmul.f32 %v4713, 0.25
          %v4736 = vmul.f32 %v4714, 0.25
          %v4737 = vmul.f32 %v4715, 0.25
          %v4738 = vmul.f32 %v4716, 0.25
          %v4739 = vmul.f32 %v4717, 0.25
          %v4740 = vmul.f32 %v4718, 0.25
          %v4741 = vmul.f32 %v4719, 0.25
          %v4742 = vmul.f32 %v4720, 0.25
          %v4743 = vmul.f32 %v4721, 0.25
          %v4744 = vmul.f32 %v4722, 0.25
          %v4745 = vmul.f32 %v4723, 0.25
          %v4746 = vmul.f32 %v4724, 0.25
          %v4747 = vmul.f32 %v4725, 0.25
          %v4748 = vmul.f32 %v4726, 0.25
          %v4749 = vmul.f32 %v4727, 0.25
          %v4750 = vmul.f32 %v4728, 0.25
          %v4751 = vmul.f32 %v4729, 0.25
          %4752 = vst [vmem:[%s256] sm:$0xff] %v4730
          %4753 = vst [vmem:[%s256 + $0x8] sm:$0xff] %v4731
          %4754 = vst [vmem:[%s256 + $0x10] sm:$0xff] %v4732
          %4755 = vst [vmem:[%s256 + $0x18] sm:$0xff] %v4733
          %4756 = vst [vmem:[%s256 + $0x20] sm:$0xff] %v4734
          %4757 = vst [vmem:[%s256 + $0x28] sm:$0xff] %v4735
          %4758 = vst [vmem:[%s256 + $0x30] sm:$0xff] %v4736
          %4759 = vst [vmem:[%s256 + $0x38] sm:$0xff] %v4737
          %4760 = vst [vmem:[%s256 + $0x40] sm:$0xff] %v4738
          %4761 = vst [vmem:[%s256 + $0x48] sm:$0xff] %v4739
          %4762 = vst [vmem:[%s256 + $0x50] sm:$0xff] %v4740
          %4763 = vst [vmem:[%s256 + $0x58] sm:$0xff] %v4741
          %4764 = vst [vmem:[%s256 + $0x60] sm:$0xff] %v4742
          %4765 = vst [vmem:[%s256 + $0x68] sm:$0xff] %v4743
          %4766 = vst [vmem:[%s256 + $0x70] sm:$0xff] %v4744
          %4767 = vst [vmem:[%s256 + $0x78] sm:$0xff] %v4745
          %4768 = vst [vmem:[%s256 + $0x80] sm:$0xff] %v4746
          %4769 = vst [vmem:[%s256 + $0x88] sm:$0xff] %v4747
          %4770 = vst [vmem:[%s256 + $0x90] sm:$0xff] %v4748
          %4771 = vst [vmem:[%s256 + $0x98] sm:$0xff] %v4749
          %4772 = vst [vmem:[%s256 + $0xa0] sm:$0x1] %v4750
          %4773 = vst [vmem:[%s256 + $0xa8] sm:$0x1] %v4751
        $region52: #{tpu_custom_call.1} parent=31 // pred_fallthru
          _
        %p4774 = scmp.lt.s32.totalorder %s22, 1
        %s4775 = scalar_select %p4774, %s22, 1
        %s4776 = smul.addr %s4775, 22
        %s4777 = smul.addr %s4776, 8
        %s4778 = scalar_lea.vmem %s3, %s4777
        // Predicated region
        $region53: #{tpu_custom_call.1} parent=31 // pred_check
          %p4779 = pneg %p125
        $region54: #{tpu_custom_call.1} parent=31 // pred_check_branch
          %4781 = sbr.rel (%p4779) target = $region56
        $region55: #{tpu_custom_call.1} parent=31 // pred_region
          _
        $region56: #{tpu_custom_call.1} parent=31 // pred_fallthru
          _
      $region32: #{tpu_custom_call.1} parent=5 // pred_fallthru
        _
      %p4782 = scmp.le.s32.totalorder 2, %s13
      // Predicated region
      $region57: #{tpu_custom_call.1} parent=5 // pred_check
        %p4783 = pneg %p4782
      $region58: #{tpu_custom_call.1} parent=5 // pred_check_branch
        %4785 = sbr.rel (%p4783) target = $region60
      $region59: #{tpu_custom_call.1} parent=5 // pred_region
        %s4786 = ssub.s32 %s13, 2
        // Predicated region
        $region61: #{tpu_custom_call.1} parent=59 // pred_check
          %p4787 = pneg %p131
        $region62: #{tpu_custom_call.1} parent=59 // pred_check_branch
          %4789 = sbr.rel (%p4787) target = $region64
        $region63: #{tpu_custom_call.1} parent=59 // pred_region
          %p4790 = scmp.lt.s32.totalorder %s24, 1
          %s4791 = scalar_select %p4790, %s24, 1
          %s4792 = smul.addr %s4791, 22
          %s4793 = smul.addr %s4792, 8
          %s4794 = scalar_lea.vmem %s3, %s4793
        $region64: #{tpu_custom_call.1} parent=59 // pred_fallthru
          _
      $region60: #{tpu_custom_call.1} parent=5 // pred_fallthru
        _
    $region6: #{tpu_custom_call.1} parent=1 // loop_footer
      %s17 = sadd.s32 1, %s13
    $region7: #{tpu_custom_call.1} parent=1 // loop_footer_branch
      %12 = sbr.rel target = $region3
    $region8: #{tpu_custom_call.1} parent=1 // loop_exit
      _
    %4795 = vsyncpa [#allocation4], 1
    %s4796 = scalar_lea.sflag [#allocation4], 1
    %4797 = vsyncpa %s4796, 1
    %4798 = vsyncpa [#allocation6], 1
    %s4799 = scalar_lea.sflag [#allocation6], 1
    %4800 = vsyncpa %s4799, 1

</llo_original>
